<compile_context>
chip_gen: v6e
topology: v6e:2x2x1
jax: 0.10.0
libtpu: 0.0.40
codegen_flags: <defaults>
</compile_context>

<pallas_src>
import jax
import jax.numpy as jnp
from jax.experimental import pallas as pl
from jax.experimental.pallas import tpu as pltpu

# ---------------- config (scaled-down ConvNeXt) ----------------
B = 2
IN_CH = 3
IMG = 32
PATCH = 4                 # stem conv 4x4 stride 4
DIMS = (32, 64)
DEPTHS = (2, 2)
DW_K = 7                  # 7x7 depthwise conv, padding 3
MLP_RATIO = 4
LS_INIT = 1e-6            # layer-scale gamma init (timm ls_init_value)
EPS = 1e-6                # ConvNeXt LayerNorm eps
NUM_FEATURES = DIMS[-1]
HEAD_OUT = 64             # timm head: num_classes=64
COMB_OUT = 3 + 2 + 3      # mask / gender / age heads fused into one matmul

_vmem = lambda: pl.BlockSpec(memory_space=pltpu.MemorySpace.VMEM)


# ---------------- in-kernel helpers (traced inside Pallas bodies) ----------------
def _layernorm(x, g, b):
    mean = jnp.mean(x, axis=-1, keepdims=True)
    var = jnp.mean((x - mean) ** 2, axis=-1, keepdims=True)
    return (x - mean) * jax.lax.rsqrt(var + EPS) * g + b


def _gelu(x):  # exact (erf) GELU, like nn.GELU()
    return 0.5 * x * (1.0 + jax.lax.erf(x * 0.7071067811865476))


# ---------------- Pallas kernels ----------------
def _stem_kernel(p_ref, w_ref, b_ref, g_ref, nb_ref, o_ref):
    # fused: patch-embed matmul + bias + stem LayerNorm
    t = jnp.dot(p_ref[...], w_ref[...], preferred_element_type=jnp.float32) + b_ref[...]
    o_ref[...] = _layernorm(t, g_ref[...], nb_ref[...])


def _convnext_block_kernel(x_ref, cols_ref, dww_ref, dwb_ref, g_ref, nb_ref,
                           w1_ref, b1_ref, w2_ref, b2_ref, gamma_ref, o_ref):
    # fully fused ConvNeXt block: dwconv7x7 + LN + pwconv1 + GELU + pwconv2
    #                             + layer-scale + residual, all VMEM-resident.
    x = x_ref[...]                                   # (N, C) tokens (shortcut)
    # depthwise 7x7 conv: 49 im2col taps (leading-dim indexed), VPU multiply-adds
    t = cols_ref[0] * dww_ref[0]
    for k in range(1, cols_ref.shape[0]):
        t = t + cols_ref[k] * dww_ref[k]
    t = t + dwb_ref[...]
    # channels-last LayerNorm
    t = _layernorm(t, g_ref[...], nb_ref[...])
    # MLP (pwconv1 -> GELU -> pwconv2) on the MXU, intermediate stays in VMEM
    h = _gelu(jnp.dot(t, w1_ref[...], preferred_element_type=jnp.float32) + b1_ref[...])
    y = jnp.dot(h, w2_ref[...], preferred_element_type=jnp.float32) + b2_ref[...]
    # layer scale + residual (drop_path is identity at inference)
    o_ref[...] = x + gamma_ref[...] * y


def _downsample_kernel(cols_ref, g_ref, nb_ref, w_ref, cb_ref, o_ref):
    # fused: per-pixel LayerNorm + 2x2 stride-2 conv (4 tap matmuls) + bias
    acc = None
    for p in range(cols_ref.shape[0]):
        t = _layernorm(cols_ref[p], g_ref[...], nb_ref[...])
        d = jnp.dot(t, w_ref[p], preferred_element_type=jnp.float32)
        acc = d if acc is None else acc + d
    o_ref[...] = acc + cb_ref[...]


def _head_kernel(t_ref, pool_ref, g_ref, nb_ref, hw_ref, hb_ref, cw_ref, cb_ref, o_ref):
    # fused: global-average-pool (as matmul) + LN + swin/convnext head fc (->64)
    #        + concatenated mask/gender/age linears -> single (B, 8) output
    f = jnp.dot(pool_ref[...], t_ref[...], preferred_element_type=jnp.float32)
    f = _layernorm(f, g_ref[...], nb_ref[...])
    h = jnp.dot(f, hw_ref[...], preferred_element_type=jnp.float32) + hb_ref[...]
    o_ref[...] = jnp.dot(h, cw_ref[...], preferred_element_type=jnp.float32) + cb_ref[...]


# ---------------- pallas_call wrappers ----------------
def _stem_call(patches, p):
    n = patches.shape[0]
    return pl.pallas_call(
        _stem_kernel,
        out_shape=jax.ShapeDtypeStruct((n, p["w"].shape[1]), jnp.float32),
        in_specs=[_vmem()] * 5,
        out_specs=_vmem(),
    )(patches, p["w"], p["b"], p["norm_g"], p["norm_b"])


def _block_call(xt, cols, p):
    n, c = xt.shape
    return pl.pallas_call(
        _convnext_block_kernel,
        out_shape=jax.ShapeDtypeStruct((n, c), jnp.float32),
        in_specs=[_vmem()] * 11,
        out_specs=_vmem(),
    )(xt, cols, p["dw_w"], p["dw_b"], p["norm_g"], p["norm_b"],
      p["pw1_w"], p["pw1_b"], p["pw2_w"], p["pw2_b"], p["gamma"])


def _downsample_call(cols, p):
    m = cols.shape[1]
    cout = p["conv_w"].shape[-1]
    return pl.pallas_call(
        _downsample_kernel,
        out_shape=jax.ShapeDtypeStruct((m, cout), jnp.float32),
        in_specs=[_vmem()] * 5,
        out_specs=_vmem(),
    )(cols, p["norm_g"], p["norm_b"], p["conv_w"], p["conv_b"])


def _head_call(tokens, pool, params):
    bsz = pool.shape[0]
    return pl.pallas_call(
        _head_kernel,
        out_shape=jax.ShapeDtypeStruct((bsz, COMB_OUT), jnp.float32),
        in_specs=[_vmem()] * 8,
        out_specs=_vmem(),
    )(tokens, pool, params["head_norm_g"], params["head_norm_b"],
      params["head_w"], params["head_b"], params["comb_w"], params["comb_b"])


# ---------------- glue: ConvNeXt backbone ----------------
def convnext_block(x, p):
    """x: (B, H, W, C) -> (B, H, W, C); layout plumbing (pad + im2col taps) in XLA,
    all compute in one fused Pallas kernel."""
    b, h, w, c = x.shape
    n = b * h * w
    pad = DW_K // 2
    xp = jnp.pad(x, ((0, 0), (pad, pad), (pad, pad), (0, 0)))
    cols = jnp.stack([xp[:, dy:dy + h, dx:dx + w, :]
                      for dy in range(DW_K) for dx in range(DW_K)], axis=0)
    cols = cols.reshape(DW_K * DW_K, n, c)           # (49, tokens, C)
    y = _block_call(x.reshape(n, c), cols, p)
    return y.reshape(b, h, w, c)


def downsample(x, p):
    """LayerNorm + 2x2 stride-2 conv; 2x2 patch taps gathered in the wrapper so the
    kernel only indexes the leading (non-tiled) dim."""
    b, h, w, c = x.shape
    m = b * (h // 2) * (w // 2)
    cols = x.reshape(b, h // 2, 2, w // 2, 2, c).transpose(2, 4, 0, 1, 3, 5)
    cols = cols.reshape(4, m, c)                     # tap index = dy*2 + dx
    y = _downsample_call(cols, p)
    return y.reshape(b, h // 2, w // 2, y.shape[-1])


def convnext_forward(params, x):
    # x: (B, 3, IMG, IMG) NCHW -> NHWC
    x = jnp.transpose(x, (0, 2, 3, 1)).astype(jnp.float32)
    b, h, w, c = x.shape

    # stem: stride-PATCH conv == per-patch matmul, fused with the stem LayerNorm
    ph, pw = h // PATCH, w // PATCH
    patches = x.reshape(b, ph, PATCH, pw, PATCH, c).transpose(0, 1, 3, 2, 4, 5)
    patches = patches.reshape(b * ph * pw, PATCH * PATCH * c)
    t = _stem_call(patches, params["stem"]).reshape(b, ph, pw, DIMS[0])

    # stage 0 (no downsample), then LN+2x2 downsample, then stage 1
    for blk in params["stage0"]:
        t = convnext_block(t, blk)
    t = downsample(t, params["down"])
    for blk in params["stage1"]:
        t = convnext_block(t, blk)

    # head: global average pool + LayerNorm + fc(->64) + fused mask/gender/age heads
    bb, hh, ww, cc = t.shape
    tokens = t.reshape(bb * hh * ww, cc)
    pool = jnp.repeat(jnp.eye(bb, dtype=jnp.float32), hh * ww, axis=1) / float(hh * ww)
    out = _head_call(tokens, pool, params)           # (B, 8) lane-contiguous output
    mask, gender, age = out[:, 0:3], out[:, 3:5], out[:, 5:8]
    return mask, gender, age


# ---------------- deterministic parameter init ----------------
def init_params(key):
    keys = iter(jax.random.split(key, 64))

    def nrm(shape, std=0.02):
        return jax.random.normal(next(keys), shape, jnp.float32) * std

    def block_params(dim):
        return {
            "dw_w": nrm((DW_K * DW_K, 1, dim)),                    # 7x7 depthwise weights
            "dw_b": jnp.zeros((1, dim), jnp.float32),
            "norm_g": jnp.ones((1, dim), jnp.float32),
            "norm_b": jnp.zeros((1, dim), jnp.float32),
            "pw1_w": nrm((dim, MLP_RATIO * dim)),
            "pw1_b": jnp.zeros((1, MLP_RATIO * dim), jnp.float32),
            "pw2_w": nrm((MLP_RATIO * dim, dim)),
            "pw2_b": jnp.zeros((1, dim), jnp.float32),
            "gamma": jnp.full((1, dim), LS_INIT, jnp.float32),     # layer scale
        }

    return {
        "stem": {
            "w": nrm((PATCH * PATCH * IN_CH, DIMS[0])),
            "b": jnp.zeros((1, DIMS[0]), jnp.float32),
            "norm_g": jnp.ones((1, DIMS[0]), jnp.float32),
            "norm_b": jnp.zeros((1, DIMS[0]), jnp.float32),
        },
        "stage0": [block_params(DIMS[0]) for _ in range(DEPTHS[0])],
        "down": {
            "norm_g": jnp.ones((1, DIMS[0]), jnp.float32),
            "norm_b": jnp.zeros((1, DIMS[0]), jnp.float32),
            "conv_w": nrm((4, DIMS[0], DIMS[1])),                  # 2x2 stride-2 conv
            "conv_b": jnp.zeros((1, DIMS[1]), jnp.float32),
        },
        "stage1": [block_params(DIMS[1]) for _ in range(DEPTHS[1])],
        "head_norm_g": jnp.ones((1, NUM_FEATURES), jnp.float32),
        "head_norm_b": jnp.zeros((1, NUM_FEATURES), jnp.float32),
        "head_w": nrm((NUM_FEATURES, HEAD_OUT)),
        "head_b": jnp.zeros((1, HEAD_OUT), jnp.float32),
        # concatenation of mask_fc (3), gender_fc (2), age_fc (3)
        "comb_w": nrm((HEAD_OUT, COMB_OUT)),
        "comb_b": jnp.zeros((1, COMB_OUT), jnp.float32),
    }


if __name__ == "__main__":
    key = jax.random.PRNGKey(0)
    pkey, xkey = jax.random.split(key)
    params = init_params(pkey)
    x = jax.random.normal(xkey, (B, IN_CH, IMG, IMG), jnp.float32)   # NCHW like PyTorch

    fwd = jax.jit(convnext_forward)
    mask, gender, age = fwd(params, x)
    jax.block_until_ready((mask, gender, age))

    assert mask.shape == (B, 3) and gender.shape == (B, 2) and age.shape == (B, 3)
    assert all(bool(jnp.all(jnp.isfinite(o))) for o in (mask, gender, age))
    print("KERNEL_OK")
</pallas_src>

<mosaic_0001>
module attributes {stable_mosaic.version = 11 : i64} {
  func.func @_stem_kernel(%arg0: memref<128x48xf32, #tpu.memory_space<vmem>>, %arg1: memref<48x32xf32, #tpu.memory_space<vmem>>, %arg2: memref<1x32xf32, #tpu.memory_space<vmem>>, %arg3: memref<1x32xf32, #tpu.memory_space<vmem>>, %arg4: memref<1x32xf32, #tpu.memory_space<vmem>>, %arg5: memref<128x32xf32, #tpu.memory_space<vmem>>) attributes {dimension_semantics = [], scalar_prefetch = 0 : i64, scratch_operands = 0 : i64, tpu.core_type = #tpu.core_type<tc>} {
    %c0 = arith.constant 0 : index
    %c0_0 = arith.constant 0 : index
    %0 = vector.load %arg0[%c0, %c0_0] : memref<128x48xf32, #tpu.memory_space<vmem>>, vector<128x48xf32>
    %c0_1 = arith.constant 0 : index
    %c0_2 = arith.constant 0 : index
    %1 = vector.load %arg1[%c0_1, %c0_2] : memref<48x32xf32, #tpu.memory_space<vmem>>, vector<48x32xf32>
    %cst = arith.constant dense<0.000000e+00> : vector<128x32xf32>
    %2 = tpu.matmul %0, %1, %cst {dimension_numbers = #tpu.dot_dimension_numbers<[1], [0], [0], [1], [0, 0, 1, 1], [], []>} : vector<128x48xf32>, vector<48x32xf32>, vector<128x32xf32> -> vector<128x32xf32>
    %c0_3 = arith.constant 0 : index
    %c0_4 = arith.constant 0 : index
    %3 = vector.load %arg2[%c0_3, %c0_4] : memref<1x32xf32, #tpu.memory_space<vmem>>, vector<1x32xf32>
    %4 = vector.broadcast %3 : vector<1x32xf32> to vector<128x32xf32>
    %5 = arith.addf %2, %4 : vector<128x32xf32>
    %c0_5 = arith.constant 0 : index
    %c0_6 = arith.constant 0 : index
    %6 = vector.load %arg3[%c0_5, %c0_6] : memref<1x32xf32, #tpu.memory_space<vmem>>, vector<1x32xf32>
    %c0_7 = arith.constant 0 : index
    %c0_8 = arith.constant 0 : index
    %7 = vector.load %arg4[%c0_7, %c0_8] : memref<1x32xf32, #tpu.memory_space<vmem>>, vector<1x32xf32>
    %cst_9 = arith.constant dense<0.000000e+00> : vector<128xf32>
    %8 = vector.multi_reduction <add>, %5, %cst_9 [1] : vector<128x32xf32> to vector<128xf32>
    %9 = vector.shape_cast %8 : vector<128xf32> to vector<128x1xf32>
    %cst_10 = arith.constant 3.200000e+01 : f32
    %10 = vector.broadcast %cst_10 : f32 to vector<128x1xf32>
    %11 = arith.divf %9, %10 : vector<128x1xf32>
    %12 = vector.broadcast %11 : vector<128x1xf32> to vector<128x32xf32>
    %13 = arith.subf %5, %12 : vector<128x32xf32>
    %14 = arith.mulf %13, %13 : vector<128x32xf32>
    %cst_11 = arith.constant dense<0.000000e+00> : vector<128xf32>
    %15 = vector.multi_reduction <add>, %14, %cst_11 [1] : vector<128x32xf32> to vector<128xf32>
    %16 = vector.shape_cast %15 : vector<128xf32> to vector<128x1xf32>
    %cst_12 = arith.constant 3.200000e+01 : f32
    %17 = vector.broadcast %cst_12 : f32 to vector<128x1xf32>
    %18 = arith.divf %16, %17 : vector<128x1xf32>
    %19 = vector.broadcast %11 : vector<128x1xf32> to vector<128x32xf32>
    %20 = arith.subf %5, %19 : vector<128x32xf32>
    %cst_13 = arith.constant 9.99999997E-7 : f32
    %21 = vector.broadcast %cst_13 : f32 to vector<128x1xf32>
    %22 = arith.addf %18, %21 : vector<128x1xf32>
    %23 = math.rsqrt %22 : vector<128x1xf32>
    %24 = vector.broadcast %23 : vector<128x1xf32> to vector<128x32xf32>
    %25 = arith.mulf %20, %24 : vector<128x32xf32>
    %26 = vector.broadcast %6 : vector<1x32xf32> to vector<128x32xf32>
    %27 = arith.mulf %25, %26 : vector<128x32xf32>
    %28 = vector.broadcast %7 : vector<1x32xf32> to vector<128x32xf32>
    %29 = arith.addf %27, %28 : vector<128x32xf32>
    %c0_14 = arith.constant 0 : index
    %c0_15 = arith.constant 0 : index
    %30 = vector.load %arg5[%c0_14, %c0_15] : memref<128x32xf32, #tpu.memory_space<vmem>>, vector<128x32xf32>
    tpu.vector_store %arg5[%c0_14, %c0_15], %29 {strides = array<i32>} : memref<128x32xf32, #tpu.memory_space<vmem>>, vector<128x32xf32>,
    return
  }
}

module attributes {stable_mosaic.version = 11 : i64} {
  func.func @_convnext_block_kernel(%arg0: memref<128x32xf32, #tpu.memory_space<vmem>>, %arg1: memref<49x128x32xf32, #tpu.memory_space<vmem>>, %arg2: memref<49x1x32xf32, #tpu.memory_space<vmem>>, %arg3: memref<1x32xf32, #tpu.memory_space<vmem>>, %arg4: memref<1x32xf32, #tpu.memory_space<vmem>>, %arg5: memref<1x32xf32, #tpu.memory_space<vmem>>, %arg6: memref<32x128xf32, #tpu.memory_space<vmem>>, %arg7: memref<1x128xf32, #tpu.memory_space<vmem>>, %arg8: memref<128x32xf32, #tpu.memory_space<vmem>>, %arg9: memref<1x32xf32, #tpu.memory_space<vmem>>, %arg10: memref<1x32xf32, #tpu.memory_space<vmem>>, %arg11: memref<128x32xf32, #tpu.memory_space<vmem>>) attributes {dimension_semantics = [], scalar_prefetch = 0 : i64, scratch_operands = 0 : i64, tpu.core_type = #tpu.core_type<tc>} {
    %c0 = arith.constant 0 : index
    %c0_0 = arith.constant 0 : index
    %0 = vector.load %arg0[%c0, %c0_0] : memref<128x32xf32, #tpu.memory_space<vmem>>, vector<128x32xf32>
    %c0_1 = arith.constant 0 : index
    %c0_2 = arith.constant 0 : index
    %c0_3 = arith.constant 0 : index
    %1 = vector.load %arg1[%c0_1, %c0_2, %c0_3] : memref<49x128x32xf32, #tpu.memory_space<vmem>>, vector<1x128x32xf32>
    %2 = vector.shape_cast %1 : vector<1x128x32xf32> to vector<128x32xf32>
    %c0_4 = arith.constant 0 : index
    %c0_5 = arith.constant 0 : index
    %c0_6 = arith.constant 0 : index
    %3 = vector.load %arg2[%c0_4, %c0_5, %c0_6] : memref<49x1x32xf32, #tpu.memory_space<vmem>>, vector<1x1x32xf32>
    %4 = vector.shape_cast %3 : vector<1x1x32xf32> to vector<1x32xf32>
    %5 = vector.broadcast %4 : vector<1x32xf32> to vector<128x32xf32>
    %6 = arith.mulf %2, %5 : vector<128x32xf32>
    %c1 = arith.constant 1 : index
    %c0_7 = arith.constant 0 : index
    %c0_8 = arith.constant 0 : index
    %7 = vector.load %arg1[%c1, %c0_7, %c0_8] : memref<49x128x32xf32, #tpu.memory_space<vmem>>, vector<1x128x32xf32>
    %8 = vector.shape_cast %7 : vector<1x128x32xf32> to vector<128x32xf32>
    %c1_9 = arith.constant 1 : index
    %c0_10 = arith.constant 0 : index
    %c0_11 = arith.constant 0 : index
    %9 = vector.load %arg2[%c1_9, %c0_10, %c0_11] : memref<49x1x32xf32, #tpu.memory_space<vmem>>, vector<1x1x32xf32>
    %10 = vector.shape_cast %9 : vector<1x1x32xf32> to vector<1x32xf32>
    %11 = vector.broadcast %10 : vector<1x32xf32> to vector<128x32xf32>
    %12 = arith.mulf %8, %11 : vector<128x32xf32>
    %13 = arith.addf %6, %12 : vector<128x32xf32>
    %c2 = arith.constant 2 : index
    %c0_12 = arith.constant 0 : index
    %c0_13 = arith.constant 0 : index
    %14 = vector.load %arg1[%c2, %c0_12, %c0_13] : memref<49x128x32xf32, #tpu.memory_space<vmem>>, vector<1x128x32xf32>
    %15 = vector.shape_cast %14 : vector<1x128x32xf32> to vector<128x32xf32>
    %c2_14 = arith.constant 2 : index
    %c0_15 = arith.constant 0 : index
    %c0_16 = arith.constant 0 : index
    %16 = vector.load %arg2[%c2_14, %c0_15, %c0_16] : memref<49x1x32xf32, #tpu.memory_space<vmem>>, vector<1x1x32xf32>
    %17 = vector.shape_cast %16 : vector<1x1x32xf32> to vector<1x32xf32>
    %18 = vector.broadcast %17 : vector<1x32xf32> to vector<128x32xf32>
    %19 = arith.mulf %15, %18 : vector<128x32xf32>
    %20 = arith.addf %13, %19 : vector<128x32xf32>
    %c3 = arith.constant 3 : index
    %c0_17 = arith.constant 0 : index
    %c0_18 = arith.constant 0 : index
    %21 = vector.load %arg1[%c3, %c0_17, %c0_18] : memref<49x128x32xf32, #tpu.memory_space<vmem>>, vector<1x128x32xf32>
    %22 = vector.shape_cast %21 : vector<1x128x32xf32> to vector<128x32xf32>
    %c3_19 = arith.constant 3 : index
    %c0_20 = arith.constant 0 : index
    %c0_21 = arith.constant 0 : index
    %23 = vector.load %arg2[%c3_19, %c0_20, %c0_21] : memref<49x1x32xf32, #tpu.memory_space<vmem>>, vector<1x1x32xf32>
    %24 = vector.shape_cast %23 : vector<1x1x32xf32> to vector<1x32xf32>
    %25 = vector.broadcast %24 : vector<1x32xf32> to vector<128x32xf32>
    %26 = arith.mulf %22, %25 : vector<128x32xf32>
    %27 = arith.addf %20, %26 : vector<128x32xf32>
    %c4 = arith.constant 4 : index
    %c0_22 = arith.constant 0 : index
    %c0_23 = arith.constant 0 : index
    %28 = vector.load %arg1[%c4, %c0_22, %c0_23] : memref<49x128x32xf32, #tpu.memory_space<vmem>>, vector<1x128x32xf32>
    %29 = vector.shape_cast %28 : vector<1x128x32xf32> to vector<128x32xf32>
    %c4_24 = arith.constant 4 : index
    %c0_25 = arith.constant 0 : index
    %c0_26 = arith.constant 0 : index
    %30 = vector.load %arg2[%c4_24, %c0_25, %c0_26] : memref<49x1x32xf32, #tpu.memory_space<vmem>>, vector<1x1x32xf32>
    %31 = vector.shape_cast %30 : vector<1x1x32xf32> to vector<1x32xf32>
    %32 = vector.broadcast %31 : vector<1x32xf32> to vector<128x32xf32>
    %33 = arith.mulf %29, %32 : vector<128x32xf32>
    %34 = arith.addf %27, %33 : vector<128x32xf32>
    %c5 = arith.constant 5 : index
    %c0_27 = arith.constant 0 : index
    %c0_28 = arith.constant 0 : index
    %35 = vector.load %arg1[%c5, %c0_27, %c0_28] : memref<49x128x32xf32, #tpu.memory_space<vmem>>, vector<1x128x32xf32>
    %36 = vector.shape_cast %35 : vector<1x128x32xf32> to vector<128x32xf32>
    %c5_29 = arith.constant 5 : index
    %c0_30 = arith.constant 0 : index
    %c0_31 = arith.constant 0 : index
    %37 = vector.load %arg2[%c5_29, %c0_30, %c0_31] : memref<49x1x32xf32, #tpu.memory_space<vmem>>, vector<1x1x32xf32>
    %38 = vector.shape_cast %37 : vector<1x1x32xf32> to vector<1x32xf32>
    %39 = vector.broadcast %38 : vector<1x32xf32> to vector<128x32xf32>
    %40 = arith.mulf %36, %39 : vector<128x32xf32>
    %41 = arith.addf %34, %40 : vector<128x32xf32>
    %c6 = arith.constant 6 : index
    %c0_32 = arith.constant 0 : index
    %c0_33 = arith.constant 0 : index
    %42 = vector.load %arg1[%c6, %c0_32, %c0_33] : memref<49x128x32xf32, #tpu.memory_space<vmem>>, vector<1x128x32xf32>
    %43 = vector.shape_cast %42 : vector<1x128x32xf32> to vector<128x32xf32>
    %c6_34 = arith.constant 6 : index
    %c0_35 = arith.constant 0 : index
    %c0_36 = arith.constant 0 : index
    %44 = vector.load %arg2[%c6_34, %c0_35, %c0_36] : memref<49x1x32xf32, #tpu.memory_space<vmem>>, vector<1x1x32xf32>
    %45 = vector.shape_cast %44 : vector<1x1x32xf32> to vector<1x32xf32>
    %46 = vector.broadcast %45 : vector<1x32xf32> to vector<128x32xf32>
    %47 = arith.mulf %43, %46 : vector<128x32xf32>
    %48 = arith.addf %41, %47 : vector<128x32xf32>
    %c7 = arith.constant 7 : index
    %c0_37 = arith.constant 0 : index
    %c0_38 = arith.constant 0 : index
    %49 = vector.load %arg1[%c7, %c0_37, %c0_38] : memref<49x128x32xf32, #tpu.memory_space<vmem>>, vector<1x128x32xf32>
    %50 = vector.shape_cast %49 : vector<1x128x32xf32> to vector<128x32xf32>
    %c7_39 = arith.constant 7 : index
    %c0_40 = arith.constant 0 : index
    %c0_41 = arith.constant 0 : index
    %51 = vector.load %arg2[%c7_39, %c0_40, %c0_41] : memref<49x1x32xf32, #tpu.memory_space<vmem>>, vector<1x1x32xf32>
    %52 = vector.shape_cast %51 : vector<1x1x32xf32> to vector<1x32xf32>
    %53 = vector.broadcast %52 : vector<1x32xf32> to vector<128x32xf32>
    %54 = arith.mulf %50, %53 : vector<128x32xf32>
    %55 = arith.addf %48, %54 : vector<128x32xf32>
    %c8 = arith.constant 8 : index
    %c0_42 = arith.constant 0 : index
    %c0_43 = arith.constant 0 : index
    %56 = vector.load %arg1[%c8, %c0_42, %c0_43] : memref<49x128x32xf32, #tpu.memory_space<vmem>>, vector<1x128x32xf32>
    %57 = vector.shape_cast %56 : vector<1x128x32xf32> to vector<128x32xf32>
    %c8_44 = arith.constant 8 : index
    %c0_45 = arith.constant 0 : index
    %c0_46 = arith.constant 0 : index
    %58 = vector.load %arg2[%c8_44, %c0_45, %c0_46] : memref<49x1x32xf32, #tpu.memory_space<vmem>>, vector<1x1x32xf32>
    %59 = vector.shape_cast %58 : vector<1x1x32xf32> to vector<1x32xf32>
    %60 = vector.broadcast %59 : vector<1x32xf32> to vector<128x32xf32>
    %61 = arith.mulf %57, %60 : vector<128x32xf32>
    %62 = arith.addf %55, %61 : vector<128x32xf32>
    %c9 = arith.constant 9 : index
    %c0_47 = arith.constant 0 : index
    %c0_48 = arith.constant 0 : index
    %63 = vector.load %arg1[%c9, %c0_47, %c0_48] : memref<49x128x32xf32, #tpu.memory_space<vmem>>, vector<1x128x32xf32>
    %64 = vector.shape_cast %63 : vector<1x128x32xf32> to vector<128x32xf32>
    %c9_49 = arith.constant 9 : index
    %c0_50 = arith.constant 0 : index
    %c0_51 = arith.constant 0 : index
    %65 = vector.load %arg2[%c9_49, %c0_50, %c0_51] : memref<49x1x32xf32, #tpu.memory_space<vmem>>, vector<1x1x32xf32>
    %66 = vector.shape_cast %65 : vector<1x1x32xf32> to vector<1x32xf32>
    %67 = vector.broadcast %66 : vector<1x32xf32> to vector<128x32xf32>
    %68 = arith.mulf %64, %67 : vector<128x32xf32>
    %69 = arith.addf %62, %68 : vector<128x32xf32>
    %c10 = arith.constant 10 : index
    %c0_52 = arith.constant 0 : index
    %c0_53 = arith.constant 0 : index
    %70 = vector.load %arg1[%c10, %c0_52, %c0_53] : memref<49x128x32xf32, #tpu.memory_space<vmem>>, vector<1x128x32xf32>
    %71 = vector.shape_cast %70 : vector<1x128x32xf32> to vector<128x32xf32>
    %c10_54 = arith.constant 10 : index
    %c0_55 = arith.constant 0 : index
    %c0_56 = arith.constant 0 : index
    %72 = vector.load %arg2[%c10_54, %c0_55, %c0_56] : memref<49x1x32xf32, #tpu.memory_space<vmem>>, vector<1x1x32xf32>
    %73 = vector.shape_cast %72 : vector<1x1x32xf32> to vector<1x32xf32>
    %74 = vector.broadcast %73 : vector<1x32xf32> to vector<128x32xf32>
    %75 = arith.mulf %71, %74 : vector<128x32xf32>
    %76 = arith.addf %69, %75 : vector<128x32xf32>
    %c11 = arith.constant 11 : index
    %c0_57 = arith.constant 0 : index
    %c0_58 = arith.constant 0 : index
    %77 = vector.load %arg1[%c11, %c0_57, %c0_58] : memref<49x128x32xf32, #tpu.memory_space<vmem>>, vector<1x128x32xf32>
    %78 = vector.shape_cast %77 : vector<1x128x32xf32> to vector<128x32xf32>
    %c11_59 = arith.constant 11 : index
    %c0_60 = arith.constant 0 : index
    %c0_61 = arith.constant 0 : index
    %79 = vector.load %arg2[%c11_59, %c0_60, %c0_61] : memref<49x1x32xf32, #tpu.memory_space<vmem>>, vector<1x1x32xf32>
    %80 = vector.shape_cast %79 : vector<1x1x32xf32> to vector<1x32xf32>
    %81 = vector.broadcast %80 : vector<1x32xf32> to vector<128x32xf32>
    %82 = arith.mulf %78, %81 : vector<128x32xf32>
    %83 = arith.addf %76, %82 : vector<128x32xf32>
    %c12 = arith.constant 12 : index
    %c0_62 = arith.constant 0 : index
    %c0_63 = arith.constant 0 : index
    %84 = vector.load %arg1[%c12, %c0_62, %c0_63] : memref<49x128x32xf32, #tpu.memory_space<vmem>>, vector<1x128x32xf32>
    %85 = vector.shape_cast %84 : vector<1x128x32xf32> to vector<128x32xf32>
    %c12_64 = arith.constant 12 : index
    %c0_65 = arith.constant 0 : index
    %c0_66 = arith.constant 0 : index
    %86 = vector.load %arg2[%c12_64, %c0_65, %c0_66] : memref<49x1x32xf32, #tpu.memory_space<vmem>>, vector<1x1x32xf32>
    %87 = vector.shape_cast %86 : vector<1x1x32xf32> to vector<1x32xf32>
    %88 = vector.broadcast %87 : vector<1x32xf32> to vector<128x32xf32>
    %89 = arith.mulf %85, %88 : vector<128x32xf32>
    %90 = arith.addf %83, %89 : vector<128x32xf32>
    %c13 = arith.constant 13 : index
    %c0_67 = arith.constant 0 : index
    %c0_68 = arith.constant 0 : index
    %91 = vector.load %arg1[%c13, %c0_67, %c0_68] : memref<49x128x32xf32, #tpu.memory_space<vmem>>, vector<1x128x32xf32>
    %92 = vector.shape_cast %91 : vector<1x128x32xf32> to vector<128x32xf32>
    %c13_69 = arith.constant 13 : index
    %c0_70 = arith.constant 0 : index
    %c0_71 = arith.constant 0 : index
    %93 = vector.load %arg2[%c13_69, %c0_70, %c0_71] : memref<49x1x32xf32, #tpu.memory_space<vmem>>, vector<1x1x32xf32>
    %94 = vector.shape_cast %93 : vector<1x1x32xf32> to vector<1x32xf32>
    %95 = vector.broadcast %94 : vector<1x32xf32> to vector<128x32xf32>
    %96 = arith.mulf %92, %95 : vector<128x32xf32>
    %97 = arith.addf %90, %96 : vector<128x32xf32>
    %c14 = arith.constant 14 : index
    %c0_72 = arith.constant 0 : index
    %c0_73 = arith.constant 0 : index
    %98 = vector.load %arg1[%c14, %c0_72, %c0_73] : memref<49x128x32xf32, #tpu.memory_space<vmem>>, vector<1x128x32xf32>
    %99 = vector.shape_cast %98 : vector<1x128x32xf32> to vector<128x32xf32>
    %c14_74 = arith.constant 14 : index
    %c0_75 = arith.constant 0 : index
    %c0_76 = arith.constant 0 : index
    %100 = vector.load %arg2[%c14_74, %c0_75, %c0_76] : memref<49x1x32xf32, #tpu.memory_space<vmem>>, vector<1x1x32xf32>
    %101 = vector.shape_cast %100 : vector<1x1x32xf32> to vector<1x32xf32>
    %102 = vector.broadcast %101 : vector<1x32xf32> to vector<128x32xf32>
    %103 = arith.mulf %99, %102 : vector<128x32xf32>
    %104 = arith.addf %97, %103 : vector<128x32xf32>
    %c15 = arith.constant 15 : index
    %c0_77 = arith.constant 0 : index
    %c0_78 = arith.constant 0 : index
    %105 = vector.load %arg1[%c15, %c0_77, %c0_78] : memref<49x128x32xf32, #tpu.memory_space<vmem>>, vector<1x128x32xf32>
    %106 = vector.shape_cast %105 : vector<1x128x32xf32> to vector<128x32xf32>
    %c15_79 = arith.constant 15 : index
    %c0_80 = arith.constant 0 : index
    %c0_81 = arith.constant 0 : index
    %107 = vector.load %arg2[%c15_79, %c0_80, %c0_81] : memref<49x1x32xf32, #tpu.memory_space<vmem>>, vector<1x1x32xf32>
    %108 = vector.shape_cast %107 : vector<1x1x32xf32> to vector<1x32xf32>
    %109 = vector.broadcast %108 : vector<1x32xf32> to vector<128x32xf32>
    %110 = arith.mulf %106, %109 : vector<128x32xf32>
    %111 = arith.addf %104, %110 : vector<128x32xf32>
    %c16 = arith.constant 16 : index
    %c0_82 = arith.constant 0 : index
    %c0_83 = arith.constant 0 : index
    %112 = vector.load %arg1[%c16, %c0_82, %c0_83] : memref<49x128x32xf32, #tpu.memory_space<vmem>>, vector<1x128x32xf32>
    %113 = vector.shape_cast %112 : vector<1x128x32xf32> to vector<128x32xf32>
    %c16_84 = arith.constant 16 : index
    %c0_85 = arith.constant 0 : index
    %c0_86 = arith.constant 0 : index
    %114 = vector.load %arg2[%c16_84, %c0_85, %c0_86] : memref<49x1x32xf32, #tpu.memory_space<vmem>>, vector<1x1x32xf32>
    %115 = vector.shape_cast %114 : vector<1x1x32xf32> to vector<1x32xf32>
    %116 = vector.broadcast %115 : vector<1x32xf32> to vector<128x32xf32>
    %117 = arith.mulf %113, %116 : vector<128x32xf32>
    %118 = arith.addf %111, %117 : vector<128x32xf32>
    %c17 = arith.constant 17 : index
    %c0_87 = arith.constant 0 : index
    %c0_88 = arith.constant 0 : index
    %119 = vector.load %arg1[%c17, %c0_87, %c0_88] : memref<49x128x32xf32, #tpu.memory_space<vmem>>, vector<1x128x32xf32>
    %120 = vector.shape_cast %119 : vector<1x128x32xf32> to vector<128x32xf32>
    %c17_89 = arith.constant 17 : index
    %c0_90 = arith.constant 0 : index
    %c0_91 = arith.constant 0 : index
    %121 = vector.load %arg2[%c17_89, %c0_90, %c0_91] : memref<49x1x32xf32, #tpu.memory_space<vmem>>, vector<1x1x32xf32>
    %122 = vector.shape_cast %121 : vector<1x1x32xf32> to vector<1x32xf32>
    %123 = vector.broadcast %122 : vector<1x32xf32> to vector<128x32xf32>
    %124 = arith.mulf %120, %123 : vector<128x32xf32>
    %125 = arith.addf %118, %124 : vector<128x32xf32>
    %c18 = arith.constant 18 : index
    %c0_92 = arith.constant 0 : index
    %c0_93 = arith.constant 0 : index
    %126 = vector.load %arg1[%c18, %c0_92, %c0_93] : memref<49x128x32xf32, #tpu.memory_space<vmem>>, vector<1x128x32xf32>
    %127 = vector.shape_cast %126 : vector<1x128x32xf32> to vector<128x32xf32>
    %c18_94 = arith.constant 18 : index
    %c0_95 = arith.constant 0 : index
    %c0_96 = arith.constant 0 : index
    %128 = vector.load %arg2[%c18_94, %c0_95, %c0_96] : memref<49x1x32xf32, #tpu.memory_space<vmem>>, vector<1x1x32xf32>
    %129 = vector.shape_cast %128 : vector<1x1x32xf32> to vector<1x32xf32>
    %130 = vector.broadcast %129 : vector<1x32xf32> to vector<128x32xf32>
    %131 = arith.mulf %127, %130 : vector<128x32xf32>
    %132 = arith.addf %125, %131 : vector<128x32xf32>
    %c19 = arith.constant 19 : index
    %c0_97 = arith.constant 0 : index
    %c0_98 = arith.constant 0 : index
    %133 = vector.load %arg1[%c19, %c0_97, %c0_98] : memref<49x128x32xf32, #tpu.memory_space<vmem>>, vector<1x128x32xf32>
    %134 = vector.shape_cast %133 : vector<1x128x32xf32> to vector<128x32xf32>
    %c19_99 = arith.constant 19 : index
    %c0_100 = arith.constant 0 : index
    %c0_101 = arith.constant 0 : index
    %135 = vector.load %arg2[%c19_99, %c0_100, %c0_101] : memref<49x1x32xf32, #tpu.memory_space<vmem>>, vector<1x1x32xf32>
    %136 = vector.shape_cast %135 : vector<1x1x32xf32> to vector<1x32xf32>
    %137 = vector.broadcast %136 : vector<1x32xf32> to vector<128x32xf32>
    %138 = arith.mulf %134, %137 : vector<128x32xf32>
    %139 = arith.addf %132, %138 : vector<128x32xf32>
    %c20 = arith.constant 20 : index
    %c0_102 = arith.constant 0 : index
    %c0_103 = arith.constant 0 : index
    %140 = vector.load %arg1[%c20, %c0_102, %c0_103] : memref<49x128x32xf32, #tpu.memory_space<vmem>>, vector<1x128x32xf32>
    %141 = vector.shape_cast %140 : vector<1x128x32xf32> to vector<128x32xf32>
    %c20_104 = arith.constant 20 : index
    %c0_105 = arith.constant 0 : index
    %c0_106 = arith.constant 0 : index
    %142 = vector.load %arg2[%c20_104, %c0_105, %c0_106] : memref<49x1x32xf32, #tpu.memory_space<vmem>>, vector<1x1x32xf32>
    %143 = vector.shape_cast %142 : vector<1x1x32xf32> to vector<1x32xf32>
    %144 = vector.broadcast %143 : vector<1x32xf32> to vector<128x32xf32>
    %145 = arith.mulf %141, %144 : vector<128x32xf32>
    %146 = arith.addf %139, %145 : vector<128x32xf32>
    %c21 = arith.constant 21 : index
    %c0_107 = arith.constant 0 : index
    %c0_108 = arith.constant 0 : index
    %147 = vector.load %arg1[%c21, %c0_107, %c0_108] : memref<49x128x32xf32, #tpu.memory_space<vmem>>, vector<1x128x32xf32>
    %148 = vector.shape_cast %147 : vector<1x128x32xf32> to vector<128x32xf32>
    %c21_109 = arith.constant 21 : index
    %c0_110 = arith.constant 0 : index
    %c0_111 = arith.constant 0 : index
    %149 = vector.load %arg2[%c21_109, %c0_110, %c0_111] : memref<49x1x32xf32, #tpu.memory_space<vmem>>, vector<1x1x32xf32>
    %150 = vector.shape_cast %149 : vector<1x1x32xf32> to vector<1x32xf32>
    %151 = vector.broadcast %150 : vector<1x32xf32> to vector<128x32xf32>
    %152 = arith.mulf %148, %151 : vector<128x32xf32>
    %153 = arith.addf %146, %152 : vector<128x32xf32>
    %c22 = arith.constant 22 : index
    %c0_112 = arith.constant 0 : index
    %c0_113 = arith.constant 0 : index
    %154 = vector.load %arg1[%c22, %c0_112, %c0_113] : memref<49x128x32xf32, #tpu.memory_space<vmem>>, vector<1x128x32xf32>
    %155 = vector.shape_cast %154 : vector<1x128x32xf32> to vector<128x32xf32>
    %c22_114 = arith.constant 22 : index
    %c0_115 = arith.constant 0 : index
    %c0_116 = arith.constant 0 : index
    %156 = vector.load %arg2[%c22_114, %c0_115, %c0_116] : memref<49x1x32xf32, #tpu.memory_space<vmem>>, vector<1x1x32xf32>
    %157 = vector.shape_cast %156 : vector<1x1x32xf32> to vector<1x32xf32>
    %158 = vector.broadcast %157 : vector<1x32xf32> to vector<128x32xf32>
    %159 = arith.mulf %155, %158 : vector<128x32xf32>
    %160 = arith.addf %153, %159 : vector<128x32xf32>
    %c23 = arith.constant 23 : index
    %c0_117 = arith.constant 0 : index
    %c0_118 = arith.constant 0 : index
    %161 = vector.load %arg1[%c23, %c0_117, %c0_118] : memref<49x128x32xf32, #tpu.memory_space<vmem>>, vector<1x128x32xf32>
    %162 = vector.shape_cast %161 : vector<1x128x32xf32> to vector<128x32xf32>
    %c23_119 = arith.constant 23 : index
    %c0_120 = arith.constant 0 : index
    %c0_121 = arith.constant 0 : index
    %163 = vector.load %arg2[%c23_119, %c0_120, %c0_121] : memref<49x1x32xf32, #tpu.memory_space<vmem>>, vector<1x1x32xf32>
    %164 = vector.shape_cast %163 : vector<1x1x32xf32> to vector<1x32xf32>
    %165 = vector.broadcast %164 : vector<1x32xf32> to vector<128x32xf32>
    %166 = arith.mulf %162, %165 : vector<128x32xf32>
    %167 = arith.addf %160, %166 : vector<128x32xf32>
    %c24 = arith.constant 24 : index
    %c0_122 = arith.constant 0 : index
    %c0_123 = arith.constant 0 : index
    %168 = vector.load %arg1[%c24, %c0_122, %c0_123] : memref<49x128x32xf32, #tpu.memory_space<vmem>>, vector<1x128x32xf32>
    %169 = vector.shape_cast %168 : vector<1x128x32xf32> to vector<128x32xf32>
    %c24_124 = arith.constant 24 : index
    %c0_125 = arith.constant 0 : index
    %c0_126 = arith.constant 0 : index
    %170 = vector.load %arg2[%c24_124, %c0_125, %c0_126] : memref<49x1x32xf32, #tpu.memory_space<vmem>>, vector<1x1x32xf32>
    %171 = vector.shape_cast %170 : vector<1x1x32xf32> to vector<1x32xf32>
    %172 = vector.broadcast %171 : vector<1x32xf32> to vector<128x32xf32>
    %173 = arith.mulf %169, %172 : vector<128x32xf32>
    %174 = arith.addf %167, %173 : vector<128x32xf32>
    %c25 = arith.constant 25 : index
    %c0_127 = arith.constant 0 : index
    %c0_128 = arith.constant 0 : index
    %175 = vector.load %arg1[%c25, %c0_127, %c0_128] : memref<49x128x32xf32, #tpu.memory_space<vmem>>, vector<1x128x32xf32>
    %176 = vector.shape_cast %175 : vector<1x128x32xf32> to vector<128x32xf32>
    %c25_129 = arith.constant 25 : index
    %c0_130 = arith.constant 0 : index
    %c0_131 = arith.constant 0 : index
    %177 = vector.load %arg2[%c25_129, %c0_130, %c0_131] : memref<49x1x32xf32, #tpu.memory_space<vmem>>, vector<1x1x32xf32>
    %178 = vector.shape_cast %177 : vector<1x1x32xf32> to vector<1x32xf32>
    %179 = vector.broadcast %178 : vector<1x32xf32> to vector<128x32xf32>
    %180 = arith.mulf %176, %179 : vector<128x32xf32>
    %181 = arith.addf %174, %180 : vector<128x32xf32>
    %c26 = arith.constant 26 : index
    %c0_132 = arith.constant 0 : index
    %c0_133 = arith.constant 0 : index
    %182 = vector.load %arg1[%c26, %c0_132, %c0_133] : memref<49x128x32xf32, #tpu.memory_space<vmem>>, vector<1x128x32xf32>
    %183 = vector.shape_cast %182 : vector<1x128x32xf32> to vector<128x32xf32>
    %c26_134 = arith.constant 26 : index
    %c0_135 = arith.constant 0 : index
    %c0_136 = arith.constant 0 : index
    %184 = vector.load %arg2[%c26_134, %c0_135, %c0_136] : memref<49x1x32xf32, #tpu.memory_space<vmem>>, vector<1x1x32xf32>
    %185 = vector.shape_cast %184 : vector<1x1x32xf32> to vector<1x32xf32>
    %186 = vector.broadcast %185 : vector<1x32xf32> to vector<128x32xf32>
    %187 = arith.mulf %183, %186 : vector<128x32xf32>
    %188 = arith.addf %181, %187 : vector<128x32xf32>
    %c27 = arith.constant 27 : index
    %c0_137 = arith.constant 0 : index
    %c0_138 = arith.constant 0 : index
    %189 = vector.load %arg1[%c27, %c0_137, %c0_138] : memref<49x128x32xf32, #tpu.memory_space<vmem>>, vector<1x128x32xf32>
    %190 = vector.shape_cast %189 : vector<1x128x32xf32> to vector<128x32xf32>
    %c27_139 = arith.constant 27 : index
    %c0_140 = arith.constant 0 : index
    %c0_141 = arith.constant 0 : index
    %191 = vector.load %arg2[%c27_139, %c0_140, %c0_141] : memref<49x1x32xf32, #tpu.memory_space<vmem>>, vector<1x1x32xf32>
    %192 = vector.shape_cast %191 : vector<1x1x32xf32> to vector<1x32xf32>
    %193 = vector.broadcast %192 : vector<1x32xf32> to vector<128x32xf32>
    %194 = arith.mulf %190, %193 : vector<128x32xf32>
    %195 = arith.addf %188, %194 : vector<128x32xf32>
    %c28 = arith.constant 28 : index
    %c0_142 = arith.constant 0 : index
    %c0_143 = arith.constant 0 : index
    %196 = vector.load %arg1[%c28, %c0_142, %c0_143] : memref<49x128x32xf32, #tpu.memory_space<vmem>>, vector<1x128x32xf32>
    %197 = vector.shape_cast %196 : vector<1x128x32xf32> to vector<128x32xf32>
    %c28_144 = arith.constant 28 : index
    %c0_145 = arith.constant 0 : index
    %c0_146 = arith.constant 0 : index
    %198 = vector.load %arg2[%c28_144, %c0_145, %c0_146] : memref<49x1x32xf32, #tpu.memory_space<vmem>>, vector<1x1x32xf32>
    %199 = vector.shape_cast %198 : vector<1x1x32xf32> to vector<1x32xf32>
    %200 = vector.broadcast %199 : vector<1x32xf32> to vector<128x32xf32>
    %201 = arith.mulf %197, %200 : vector<128x32xf32>
    %202 = arith.addf %195, %201 : vector<128x32xf32>
    %c29 = arith.constant 29 : index
    %c0_147 = arith.constant 0 : index
    %c0_148 = arith.constant 0 : index
    %203 = vector.load %arg1[%c29, %c0_147, %c0_148] : memref<49x128x32xf32, #tpu.memory_space<vmem>>, vector<1x128x32xf32>
    %204 = vector.shape_cast %203 : vector<1x128x32xf32> to vector<128x32xf32>
    %c29_149 = arith.constant 29 : index
    %c0_150 = arith.constant 0 : index
    %c0_151 = arith.constant 0 : index
    %205 = vector.load %arg2[%c29_149, %c0_150, %c0_151] : memref<49x1x32xf32, #tpu.memory_space<vmem>>, vector<1x1x32xf32>
    %206 = vector.shape_cast %205 : vector<1x1x32xf32> to vector<1x32xf32>
    %207 = vector.broadcast %206 : vector<1x32xf32> to vector<128x32xf32>
    %208 = arith.mulf %204, %207 : vector<128x32xf32>
    %209 = arith.addf %202, %208 : vector<128x32xf32>
    %c30 = arith.constant 30 : index
    %c0_152 = arith.constant 0 : index
    %c0_153 = arith.constant 0 : index
    %210 = vector.load %arg1[%c30, %c0_152, %c0_153] : memref<49x128x32xf32, #tpu.memory_space<vmem>>, vector<1x128x32xf32>
    %211 = vector.shape_cast %210 : vector<1x128x32xf32> to vector<128x32xf32>
    %c30_154 = arith.constant 30 : index
    %c0_155 = arith.constant 0 : index
    %c0_156 = arith.constant 0 : index
    %212 = vector.load %arg2[%c30_154, %c0_155, %c0_156] : memref<49x1x32xf32, #tpu.memory_space<vmem>>, vector<1x1x32xf32>
    %213 = vector.shape_cast %212 : vector<1x1x32xf32> to vector<1x32xf32>
    %214 = vector.broadcast %213 : vector<1x32xf32> to vector<128x32xf32>
    %215 = arith.mulf %211, %214 : vector<128x32xf32>
    %216 = arith.addf %209, %215 : vector<128x32xf32>
    %c31 = arith.constant 31 : index
    %c0_157 = arith.constant 0 : index
    %c0_158 = arith.constant 0 : index
    %217 = vector.load %arg1[%c31, %c0_157, %c0_158] : memref<49x128x32xf32, #tpu.memory_space<vmem>>, vector<1x128x32xf32>
    %218 = vector.shape_cast %217 : vector<1x128x32xf32> to vector<128x32xf32>
    %c31_159 = arith.constant 31 : index
    %c0_160 = arith.constant 0 : index
    %c0_161 = arith.constant 0 : index
    %219 = vector.load %arg2[%c31_159, %c0_160, %c0_161] : memref<49x1x32xf32, #tpu.memory_space<vmem>>, vector<1x1x32xf32>
    %220 = vector.shape_cast %219 : vector<1x1x32xf32> to vector<1x32xf32>
    %221 = vector.broadcast %220 : vector<1x32xf32> to vector<128x32xf32>
    %222 = arith.mulf %218, %221 : vector<128x32xf32>
    %223 = arith.addf %216, %222 : vector<128x32xf32>
    %c32 = arith.constant 32 : index
    %c0_162 = arith.constant 0 : index
    %c0_163 = arith.constant 0 : index
    %224 = vector.load %arg1[%c32, %c0_162, %c0_163] : memref<49x128x32xf32, #tpu.memory_space<vmem>>, vector<1x128x32xf32>
    %225 = vector.shape_cast %224 : vector<1x128x32xf32> to vector<128x32xf32>
    %c32_164 = arith.constant 32 : index
    %c0_165 = arith.constant 0 : index
    %c0_166 = arith.constant 0 : index
    %226 = vector.load %arg2[%c32_164, %c0_165, %c0_166] : memref<49x1x32xf32, #tpu.memory_space<vmem>>, vector<1x1x32xf32>
    %227 = vector.shape_cast %226 : vector<1x1x32xf32> to vector<1x32xf32>
    %228 = vector.broadcast %227 : vector<1x32xf32> to vector<128x32xf32>
    %229 = arith.mulf %225, %228 : vector<128x32xf32>
    %230 = arith.addf %223, %229 : vector<128x32xf32>
    %c33 = arith.constant 33 : index
    %c0_167 = arith.constant 0 : index
    %c0_168 = arith.constant 0 : index
    %231 = vector.load %arg1[%c33, %c0_167, %c0_168] : memref<49x128x32xf32, #tpu.memory_space<vmem>>, vector<1x128x32xf32>
    %232 = vector.shape_cast %231 : vector<1x128x32xf32> to vector<128x32xf32>
    %c33_169 = arith.constant 33 : index
    %c0_170 = arith.constant 0 : index
    %c0_171 = arith.constant 0 : index
    %233 = vector.load %arg2[%c33_169, %c0_170, %c0_171] : memref<49x1x32xf32, #tpu.memory_space<vmem>>, vector<1x1x32xf32>
    %234 = vector.shape_cast %233 : vector<1x1x32xf32> to vector<1x32xf32>
    %235 = vector.broadcast %234 : vector<1x32xf32> to vector<128x32xf32>
    %236 = arith.mulf %232, %235 : vector<128x32xf32>
    %237 = arith.addf %230, %236 : vector<128x32xf32>
    %c34 = arith.constant 34 : index
    %c0_172 = arith.constant 0 : index
    %c0_173 = arith.constant 0 : index
    %238 = vector.load %arg1[%c34, %c0_172, %c0_173] : memref<49x128x32xf32, #tpu.memory_space<vmem>>, vector<1x128x32xf32>
    %239 = vector.shape_cast %238 : vector<1x128x32xf32> to vector<128x32xf32>
    %c34_174 = arith.constant 34 : index
    %c0_175 = arith.constant 0 : index
    %c0_176 = arith.constant 0 : index
    %240 = vector.load %arg2[%c34_174, %c0_175, %c0_176] : memref<49x1x32xf32, #tpu.memory_space<vmem>>, vector<1x1x32xf32>
    %241 = vector.shape_cast %240 : vector<1x1x32xf32> to vector<1x32xf32>
    %242 = vector.broadcast %241 : vector<1x32xf32> to vector<128x32xf32>
    %243 = arith.mulf %239, %242 : vector<128x32xf32>
    %244 = arith.addf %237, %243 : vector<128x32xf32>
    %c35 = arith.constant 35 : index
    %c0_177 = arith.constant 0 : index
    %c0_178 = arith.constant 0 : index
    %245 = vector.load %arg1[%c35, %c0_177, %c0_178] : memref<49x128x32xf32, #tpu.memory_space<vmem>>, vector<1x128x32xf32>
    %246 = vector.shape_cast %245 : vector<1x128x32xf32> to vector<128x32xf32>
    %c35_179 = arith.constant 35 : index
    %c0_180 = arith.constant 0 : index
    %c0_181 = arith.constant 0 : index
    %247 = vector.load %arg2[%c35_179, %c0_180, %c0_181] : memref<49x1x32xf32, #tpu.memory_space<vmem>>, vector<1x1x32xf32>
    %248 = vector.shape_cast %247 : vector<1x1x32xf32> to vector<1x32xf32>
    %249 = vector.broadcast %248 : vector<1x32xf32> to vector<128x32xf32>
    %250 = arith.mulf %246, %249 : vector<128x32xf32>
    %251 = arith.addf %244, %250 : vector<128x32xf32>
    %c36 = arith.constant 36 : index
    %c0_182 = arith.constant 0 : index
    %c0_183 = arith.constant 0 : index
    %252 = vector.load %arg1[%c36, %c0_182, %c0_183] : memref<49x128x32xf32, #tpu.memory_space<vmem>>, vector<1x128x32xf32>
    %253 = vector.shape_cast %252 : vector<1x128x32xf32> to vector<128x32xf32>
    %c36_184 = arith.constant 36 : index
    %c0_185 = arith.constant 0 : index
    %c0_186 = arith.constant 0 : index
    %254 = vector.load %arg2[%c36_184, %c0_185, %c0_186] : memref<49x1x32xf32, #tpu.memory_space<vmem>>, vector<1x1x32xf32>
    %255 = vector.shape_cast %254 : vector<1x1x32xf32> to vector<1x32xf32>
    %256 = vector.broadcast %255 : vector<1x32xf32> to vector<128x32xf32>
    %257 = arith.mulf %253, %256 : vector<128x32xf32>
    %258 = arith.addf %251, %257 : vector<128x32xf32>
    %c37 = arith.constant 37 : index
    %c0_187 = arith.constant 0 : index
    %c0_188 = arith.constant 0 : index
    %259 = vector.load %arg1[%c37, %c0_187, %c0_188] : memref<49x128x32xf32, #tpu.memory_space<vmem>>, vector<1x128x32xf32>
    %260 = vector.shape_cast %259 : vector<1x128x32xf32> to vector<128x32xf32>
    %c37_189 = arith.constant 37 : index
    %c0_190 = arith.constant 0 : index
    %c0_191 = arith.constant 0 : index
    %261 = vector.load %arg2[%c37_189, %c0_190, %c0_191] : memref<49x1x32xf32, #tpu.memory_space<vmem>>, vector<1x1x32xf32>
    %262 = vector.shape_cast %261 : vector<1x1x32xf32> to vector<1x32xf32>
    %263 = vector.broadcast %262 : vector<1x32xf32> to vector<128x32xf32>
    %264 = arith.mulf %260, %263 : vector<128x32xf32>
    %265 = arith.addf %258, %264 : vector<128x32xf32>
    %c38 = arith.constant 38 : index
    %c0_192 = arith.constant 0 : index
    %c0_193 = arith.constant 0 : index
    %266 = vector.load %arg1[%c38, %c0_192, %c0_193] : memref<49x128x32xf32, #tpu.memory_space<vmem>>, vector<1x128x32xf32>
    %267 = vector.shape_cast %266 : vector<1x128x32xf32> to vector<128x32xf32>
    %c38_194 = arith.constant 38 : index
    %c0_195 = arith.constant 0 : index
    %c0_196 = arith.constant 0 : index
    %268 = vector.load %arg2[%c38_194, %c0_195, %c0_196] : memref<49x1x32xf32, #tpu.memory_space<vmem>>, vector<1x1x32xf32>
    %269 = vector.shape_cast %268 : vector<1x1x32xf32> to vector<1x32xf32>
    %270 = vector.broadcast %269 : vector<1x32xf32> to vector<128x32xf32>
    %271 = arith.mulf %267, %270 : vector<128x32xf32>
    %272 = arith.addf %265, %271 : vector<128x32xf32>
    %c39 = arith.constant 39 : index
    %c0_197 = arith.constant 0 : index
    %c0_198 = arith.constant 0 : index
    %273 = vector.load %arg1[%c39, %c0_197, %c0_198] : memref<49x128x32xf32, #tpu.memory_space<vmem>>, vector<1x128x32xf32>
    %274 = vector.shape_cast %273 : vector<1x128x32xf32> to vector<128x32xf32>
    %c39_199 = arith.constant 39 : index
    %c0_200 = arith.constant 0 : index
    %c0_201 = arith.constant 0 : index
    %275 = vector.load %arg2[%c39_199, %c0_200, %c0_201] : memref<49x1x32xf32, #tpu.memory_space<vmem>>, vector<1x1x32xf32>
    %276 = vector.shape_cast %275 : vector<1x1x32xf32> to vector<1x32xf32>
    %277 = vector.broadcast %276 : vector<1x32xf32> to vector<128x32xf32>
    %278 = arith.mulf %274, %277 : vector<128x32xf32>
    %279 = arith.addf %272, %278 : vector<128x32xf32>
    %c40 = arith.constant 40 : index
    %c0_202 = arith.constant 0 : index
    %c0_203 = arith.constant 0 : index
    %280 = vector.load %arg1[%c40, %c0_202, %c0_203] : memref<49x128x32xf32, #tpu.memory_space<vmem>>, vector<1x128x32xf32>
    %281 = vector.shape_cast %280 : vector<1x128x32xf32> to vector<128x32xf32>
    %c40_204 = arith.constant 40 : index
    %c0_205 = arith.constant 0 : index
    %c0_206 = arith.constant 0 : index
    %282 = vector.load %arg2[%c40_204, %c0_205, %c0_206] : memref<49x1x32xf32, #tpu.memory_space<vmem>>, vector<1x1x32xf32>
    %283 = vector.shape_cast %282 : vector<1x1x32xf32> to vector<1x32xf32>
    %284 = vector.broadcast %283 : vector<1x32xf32> to vector<128x32xf32>
    %285 = arith.mulf %281, %284 : vector<128x32xf32>
    %286 = arith.addf %279, %285 : vector<128x32xf32>
    %c41 = arith.constant 41 : index
    %c0_207 = arith.constant 0 : index
    %c0_208 = arith.constant 0 : index
    %287 = vector.load %arg1[%c41, %c0_207, %c0_208] : memref<49x128x32xf32, #tpu.memory_space<vmem>>, vector<1x128x32xf32>
    %288 = vector.shape_cast %287 : vector<1x128x32xf32> to vector<128x32xf32>
    %c41_209 = arith.constant 41 : index
    %c0_210 = arith.constant 0 : index
    %c0_211 = arith.constant 0 : index
    %289 = vector.load %arg2[%c41_209, %c0_210, %c0_211] : memref<49x1x32xf32, #tpu.memory_space<vmem>>, vector<1x1x32xf32>
    %290 = vector.shape_cast %289 : vector<1x1x32xf32> to vector<1x32xf32>
    %291 = vector.broadcast %290 : vector<1x32xf32> to vector<128x32xf32>
    %292 = arith.mulf %288, %291 : vector<128x32xf32>
    %293 = arith.addf %286, %292 : vector<128x32xf32>
    %c42 = arith.constant 42 : index
    %c0_212 = arith.constant 0 : index
    %c0_213 = arith.constant 0 : index
    %294 = vector.load %arg1[%c42, %c0_212, %c0_213] : memref<49x128x32xf32, #tpu.memory_space<vmem>>, vector<1x128x32xf32>
    %295 = vector.shape_cast %294 : vector<1x128x32xf32> to vector<128x32xf32>
    %c42_214 = arith.constant 42 : index
    %c0_215 = arith.constant 0 : index
    %c0_216 = arith.constant 0 : index
    %296 = vector.load %arg2[%c42_214, %c0_215, %c0_216] : memref<49x1x32xf32, #tpu.memory_space<vmem>>, vector<1x1x32xf32>
    %297 = vector.shape_cast %296 : vector<1x1x32xf32> to vector<1x32xf32>
    %298 = vector.broadcast %297 : vector<1x32xf32> to vector<128x32xf32>
    %299 = arith.mulf %295, %298 : vector<128x32xf32>
    %300 = arith.addf %293, %299 : vector<128x32xf32>
    %c43 = arith.constant 43 : index
    %c0_217 = arith.constant 0 : index
    %c0_218 = arith.constant 0 : index
    %301 = vector.load %arg1[%c43, %c0_217, %c0_218] : memref<49x128x32xf32, #tpu.memory_space<vmem>>, vector<1x128x32xf32>
    %302 = vector.shape_cast %301 : vector<1x128x32xf32> to vector<128x32xf32>
    %c43_219 = arith.constant 43 : index
    %c0_220 = arith.constant 0 : index
    %c0_221 = arith.constant 0 : index
    %303 = vector.load %arg2[%c43_219, %c0_220, %c0_221] : memref<49x1x32xf32, #tpu.memory_space<vmem>>, vector<1x1x32xf32>
    %304 = vector.shape_cast %303 : vector<1x1x32xf32> to vector<1x32xf32>
    %305 = vector.broadcast %304 : vector<1x32xf32> to vector<128x32xf32>
    %306 = arith.mulf %302, %305 : vector<128x32xf32>
    %307 = arith.addf %300, %306 : vector<128x32xf32>
    %c44 = arith.constant 44 : index
    %c0_222 = arith.constant 0 : index
    %c0_223 = arith.constant 0 : index
    %308 = vector.load %arg1[%c44, %c0_222, %c0_223] : memref<49x128x32xf32, #tpu.memory_space<vmem>>, vector<1x128x32xf32>
    %309 = vector.shape_cast %308 : vector<1x128x32xf32> to vector<128x32xf32>
    %c44_224 = arith.constant 44 : index
    %c0_225 = arith.constant 0 : index
    %c0_226 = arith.constant 0 : index
    %310 = vector.load %arg2[%c44_224, %c0_225, %c0_226] : memref<49x1x32xf32, #tpu.memory_space<vmem>>, vector<1x1x32xf32>
    %311 = vector.shape_cast %310 : vector<1x1x32xf32> to vector<1x32xf32>
    %312 = vector.broadcast %311 : vector<1x32xf32> to vector<128x32xf32>
    %313 = arith.mulf %309, %312 : vector<128x32xf32>
    %314 = arith.addf %307, %313 : vector<128x32xf32>
    %c45 = arith.constant 45 : index
    %c0_227 = arith.constant 0 : index
    %c0_228 = arith.constant 0 : index
    %315 = vector.load %arg1[%c45, %c0_227, %c0_228] : memref<49x128x32xf32, #tpu.memory_space<vmem>>, vector<1x128x32xf32>
    %316 = vector.shape_cast %315 : vector<1x128x32xf32> to vector<128x32xf32>
    %c45_229 = arith.constant 45 : index
    %c0_230 = arith.constant 0 : index
    %c0_231 = arith.constant 0 : index
    %317 = vector.load %arg2[%c45_229, %c0_230, %c0_231] : memref<49x1x32xf32, #tpu.memory_space<vmem>>, vector<1x1x32xf32>
    %318 = vector.shape_cast %317 : vector<1x1x32xf32> to vector<1x32xf32>
    %319 = vector.broadcast %318 : vector<1x32xf32> to vector<128x32xf32>
    %320 = arith.mulf %316, %319 : vector<128x32xf32>
    %321 = arith.addf %314, %320 : vector<128x32xf32>
    %c46 = arith.constant 46 : index
    %c0_232 = arith.constant 0 : index
    %c0_233 = arith.constant 0 : index
    %322 = vector.load %arg1[%c46, %c0_232, %c0_233] : memref<49x128x32xf32, #tpu.memory_space<vmem>>, vector<1x128x32xf32>
    %323 = vector.shape_cast %322 : vector<1x128x32xf32> to vector<128x32xf32>
    %c46_234 = arith.constant 46 : index
    %c0_235 = arith.constant 0 : index
    %c0_236 = arith.constant 0 : index
    %324 = vector.load %arg2[%c46_234, %c0_235, %c0_236] : memref<49x1x32xf32, #tpu.memory_space<vmem>>, vector<1x1x32xf32>
    %325 = vector.shape_cast %324 : vector<1x1x32xf32> to vector<1x32xf32>
    %326 = vector.broadcast %325 : vector<1x32xf32> to vector<128x32xf32>
    %327 = arith.mulf %323, %326 : vector<128x32xf32>
    %328 = arith.addf %321, %327 : vector<128x32xf32>
    %c47 = arith.constant 47 : index
    %c0_237 = arith.constant 0 : index
    %c0_238 = arith.constant 0 : index
    %329 = vector.load %arg1[%c47, %c0_237, %c0_238] : memref<49x128x32xf32, #tpu.memory_space<vmem>>, vector<1x128x32xf32>
    %330 = vector.shape_cast %329 : vector<1x128x32xf32> to vector<128x32xf32>
    %c47_239 = arith.constant 47 : index
    %c0_240 = arith.constant 0 : index
    %c0_241 = arith.constant 0 : index
    %331 = vector.load %arg2[%c47_239, %c0_240, %c0_241] : memref<49x1x32xf32, #tpu.memory_space<vmem>>, vector<1x1x32xf32>
    %332 = vector.shape_cast %331 : vector<1x1x32xf32> to vector<1x32xf32>
    %333 = vector.broadcast %332 : vector<1x32xf32> to vector<128x32xf32>
    %334 = arith.mulf %330, %333 : vector<128x32xf32>
    %335 = arith.addf %328, %334 : vector<128x32xf32>
    %c48 = arith.constant 48 : index
    %c0_242 = arith.constant 0 : index
    %c0_243 = arith.constant 0 : index
    %336 = vector.load %arg1[%c48, %c0_242, %c0_243] : memref<49x128x32xf32, #tpu.memory_space<vmem>>, vector<1x128x32xf32>
    %337 = vector.shape_cast %336 : vector<1x128x32xf32> to vector<128x32xf32>
    %c48_244 = arith.constant 48 : index
    %c0_245 = arith.constant 0 : index
    %c0_246 = arith.constant 0 : index
    %338 = vector.load %arg2[%c48_244, %c0_245, %c0_246] : memref<49x1x32xf32, #tpu.memory_space<vmem>>, vector<1x1x32xf32>
    %339 = vector.shape_cast %338 : vector<1x1x32xf32> to vector<1x32xf32>
    %340 = vector.broadcast %339 : vector<1x32xf32> to vector<128x32xf32>
    %341 = arith.mulf %337, %340 : vector<128x32xf32>
    %342 = arith.addf %335, %341 : vector<128x32xf32>
    %c0_247 = arith.constant 0 : index
    %c0_248 = arith.constant 0 : index
    %343 = vector.load %arg3[%c0_247, %c0_248] : memref<1x32xf32, #tpu.memory_space<vmem>>, vector<1x32xf32>
    %344 = vector.broadcast %343 : vector<1x32xf32> to vector<128x32xf32>
    %345 = arith.addf %342, %344 : vector<128x32xf32>
    %c0_249 = arith.constant 0 : index
    %c0_250 = arith.constant 0 : index
    %346 = vector.load %arg4[%c0_249, %c0_250] : memref<1x32xf32, #tpu.memory_space<vmem>>, vector<1x32xf32>
    %c0_251 = arith.constant 0 : index
    %c0_252 = arith.constant 0 : index
    %347 = vector.load %arg5[%c0_251, %c0_252] : memref<1x32xf32, #tpu.memory_space<vmem>>, vector<1x32xf32>
    %cst = arith.constant dense<0.000000e+00> : vector<128xf32>
    %348 = vector.multi_reduction <add>, %345, %cst [1] : vector<128x32xf32> to vector<128xf32>
    %349 = vector.shape_cast %348 : vector<128xf32> to vector<128x1xf32>
    %cst_253 = arith.constant 3.200000e+01 : f32
    %350 = vector.broadcast %cst_253 : f32 to vector<128x1xf32>
    %351 = arith.divf %349, %350 : vector<128x1xf32>
    %352 = vector.broadcast %351 : vector<128x1xf32> to vector<128x32xf32>
    %353 = arith.subf %345, %352 : vector<128x32xf32>
    %354 = arith.mulf %353, %353 : vector<128x32xf32>
    %cst_254 = arith.constant dense<0.000000e+00> : vector<128xf32>
    %355 = vector.multi_reduction <add>, %354, %cst_254 [1] : vector<128x32xf32> to vector<128xf32>
    %356 = vector.shape_cast %355 : vector<128xf32> to vector<128x1xf32>
    %cst_255 = arith.constant 3.200000e+01 : f32
    %357 = vector.broadcast %cst_255 : f32 to vector<128x1xf32>
    %358 = arith.divf %356, %357 : vector<128x1xf32>
    %359 = vector.broadcast %351 : vector<128x1xf32> to vector<128x32xf32>
    %360 = arith.subf %345, %359 : vector<128x32xf32>
    %cst_256 = arith.constant 9.99999997E-7 : f32
    %361 = vector.broadcast %cst_256 : f32 to vector<128x1xf32>
    %362 = arith.addf %358, %361 : vector<128x1xf32>
    %363 = math.rsqrt %362 : vector<128x1xf32>
    %364 = vector.broadcast %363 : vector<128x1xf32> to vector<128x32xf32>
    %365 = arith.mulf %360, %364 : vector<128x32xf32>
    %366 = vector.broadcast %346 : vector<1x32xf32> to vector<128x32xf32>
    %367 = arith.mulf %365, %366 : vector<128x32xf32>
    %368 = vector.broadcast %347 : vector<1x32xf32> to vector<128x32xf32>
    %369 = arith.addf %367, %368 : vector<128x32xf32>
    %c0_257 = arith.constant 0 : index
    %c0_258 = arith.constant 0 : index
    %370 = vector.load %arg6[%c0_257, %c0_258] : memref<32x128xf32, #tpu.memory_space<vmem>>, vector<32x128xf32>
    %cst_259 = arith.constant dense<0.000000e+00> : vector<128x128xf32>
    %371 = tpu.matmul %369, %370, %cst_259 {dimension_numbers = #tpu.dot_dimension_numbers<[1], [0], [0], [1], [0, 0, 1, 1], [], []>} : vector<128x32xf32>, vector<32x128xf32>, vector<128x128xf32> -> vector<128x128xf32>
    %c0_260 = arith.constant 0 : index
    %c0_261 = arith.constant 0 : index
    %372 = vector.load %arg7[%c0_260, %c0_261] : memref<1x128xf32, #tpu.memory_space<vmem>>, vector<1x128xf32>
    %373 = vector.broadcast %372 : vector<1x128xf32> to vector<128x128xf32>
    %374 = arith.addf %371, %373 : vector<128x128xf32>
    %cst_262 = arith.constant 5.000000e-01 : f32
    %375 = vector.broadcast %cst_262 : f32 to vector<128x128xf32>
    %376 = arith.mulf %375, %374 : vector<128x128xf32>
    %cst_263 = arith.constant 0.707106769 : f32
    %377 = vector.broadcast %cst_263 : f32 to vector<128x128xf32>
    %378 = arith.mulf %374, %377 : vector<128x128xf32>
    %379 = math.erf %378 : vector<128x128xf32>
    %cst_264 = arith.constant 1.000000e+00 : f32
    %380 = vector.broadcast %cst_264 : f32 to vector<128x128xf32>
    %381 = arith.addf %380, %379 : vector<128x128xf32>
    %382 = arith.mulf %376, %381 : vector<128x128xf32>
    %c0_265 = arith.constant 0 : index
    %c0_266 = arith.constant 0 : index
    %383 = vector.load %arg8[%c0_265, %c0_266] : memref<128x32xf32, #tpu.memory_space<vmem>>, vector<128x32xf32>
    %cst_267 = arith.constant dense<0.000000e+00> : vector<128x32xf32>
    %384 = tpu.matmul %382, %383, %cst_267 {dimension_numbers = #tpu.dot_dimension_numbers<[1], [0], [0], [1], [0, 0, 1, 1], [], []>} : vector<128x128xf32>, vector<128x32xf32>, vector<128x32xf32> -> vector<128x32xf32>
    %c0_268 = arith.constant 0 : index
    %c0_269 = arith.constant 0 : index
    %385 = vector.load %arg9[%c0_268, %c0_269] : memref<1x32xf32, #tpu.memory_space<vmem>>, vector<1x32xf32>
    %386 = vector.broadcast %385 : vector<1x32xf32> to vector<128x32xf32>
    %387 = arith.addf %384, %386 : vector<128x32xf32>
    %c0_270 = arith.constant 0 : index
    %c0_271 = arith.constant 0 : index
    %388 = vector.load %arg10[%c0_270, %c0_271] : memref<1x32xf32, #tpu.memory_space<vmem>>, vector<1x32xf32>
    %389 = vector.broadcast %388 : vector<1x32xf32> to vector<128x32xf32>
    %390 = arith.mulf %389, %387 : vector<128x32xf32>
    %391 = arith.addf %0, %390 : vector<128x32xf32>
    %c0_272 = arith.constant 0 : index
    %c0_273 = arith.constant 0 : index
    %392 = vector.load %arg11[%c0_272, %c0_273] : memref<128x32xf32, #tpu.memory_space<vmem>>, vector<128x32xf32>
    tpu.vector_store %arg11[%c0_272, %c0_273], %391 {strides = array<i32>} : memref<128x32xf32, #tpu.memory_space<vmem>>, vector<128x32xf32>,
    return
  }
}

module attributes {stable_mosaic.version = 11 : i64} {
  func.func @_downsample_kernel(%arg0: memref<4x32x32xf32, #tpu.memory_space<vmem>>, %arg1: memref<1x32xf32, #tpu.memory_space<vmem>>, %arg2: memref<1x32xf32, #tpu.memory_space<vmem>>, %arg3: memref<4x32x64xf32, #tpu.memory_space<vmem>>, %arg4: memref<1x64xf32, #tpu.memory_space<vmem>>, %arg5: memref<32x64xf32, #tpu.memory_space<vmem>>) attributes {dimension_semantics = [], scalar_prefetch = 0 : i64, scratch_operands = 0 : i64, tpu.core_type = #tpu.core_type<tc>} {
    %c0 = arith.constant 0 : index
    %c0_0 = arith.constant 0 : index
    %c0_1 = arith.constant 0 : index
    %0 = vector.load %arg0[%c0, %c0_0, %c0_1] : memref<4x32x32xf32, #tpu.memory_space<vmem>>, vector<1x32x32xf32>
    %1 = vector.shape_cast %0 : vector<1x32x32xf32> to vector<32x32xf32>
    %c0_2 = arith.constant 0 : index
    %c0_3 = arith.constant 0 : index
    %2 = vector.load %arg1[%c0_2, %c0_3] : memref<1x32xf32, #tpu.memory_space<vmem>>, vector<1x32xf32>
    %c0_4 = arith.constant 0 : index
    %c0_5 = arith.constant 0 : index
    %3 = vector.load %arg2[%c0_4, %c0_5] : memref<1x32xf32, #tpu.memory_space<vmem>>, vector<1x32xf32>
    %cst = arith.constant dense<0.000000e+00> : vector<32xf32>
    %4 = vector.multi_reduction <add>, %1, %cst [1] : vector<32x32xf32> to vector<32xf32>
    %5 = vector.shape_cast %4 : vector<32xf32> to vector<32x1xf32>
    %cst_6 = arith.constant 3.200000e+01 : f32
    %6 = vector.broadcast %cst_6 : f32 to vector<32x1xf32>
    %7 = arith.divf %5, %6 : vector<32x1xf32>
    %8 = vector.broadcast %7 : vector<32x1xf32> to vector<32x32xf32>
    %9 = arith.subf %1, %8 : vector<32x32xf32>
    %10 = arith.mulf %9, %9 : vector<32x32xf32>
    %cst_7 = arith.constant dense<0.000000e+00> : vector<32xf32>
    %11 = vector.multi_reduction <add>, %10, %cst_7 [1] : vector<32x32xf32> to vector<32xf32>
    %12 = vector.shape_cast %11 : vector<32xf32> to vector<32x1xf32>
    %cst_8 = arith.constant 3.200000e+01 : f32
    %13 = vector.broadcast %cst_8 : f32 to vector<32x1xf32>
    %14 = arith.divf %12, %13 : vector<32x1xf32>
    %15 = vector.broadcast %7 : vector<32x1xf32> to vector<32x32xf32>
    %16 = arith.subf %1, %15 : vector<32x32xf32>
    %cst_9 = arith.constant 9.99999997E-7 : f32
    %17 = vector.broadcast %cst_9 : f32 to vector<32x1xf32>
    %18 = arith.addf %14, %17 : vector<32x1xf32>
    %19 = math.rsqrt %18 : vector<32x1xf32>
    %20 = vector.broadcast %19 : vector<32x1xf32> to vector<32x32xf32>
    %21 = arith.mulf %16, %20 : vector<32x32xf32>
    %22 = vector.broadcast %2 : vector<1x32xf32> to vector<32x32xf32>
    %23 = arith.mulf %21, %22 : vector<32x32xf32>
    %24 = vector.broadcast %3 : vector<1x32xf32> to vector<32x32xf32>
    %25 = arith.addf %23, %24 : vector<32x32xf32>
    %c0_10 = arith.constant 0 : index
    %c0_11 = arith.constant 0 : index
    %c0_12 = arith.constant 0 : index
    %26 = vector.load %arg3[%c0_10, %c0_11, %c0_12] : memref<4x32x64xf32, #tpu.memory_space<vmem>>, vector<1x32x64xf32>
    %27 = vector.shape_cast %26 : vector<1x32x64xf32> to vector<32x64xf32>
    %cst_13 = arith.constant dense<0.000000e+00> : vector<32x64xf32>
    %28 = tpu.matmul %25, %27, %cst_13 {dimension_numbers = #tpu.dot_dimension_numbers<[1], [0], [0], [1], [0, 0, 1, 1], [], []>} : vector<32x32xf32>, vector<32x64xf32>, vector<32x64xf32> -> vector<32x64xf32>
    %c1 = arith.constant 1 : index
    %c0_14 = arith.constant 0 : index
    %c0_15 = arith.constant 0 : index
    %29 = vector.load %arg0[%c1, %c0_14, %c0_15] : memref<4x32x32xf32, #tpu.memory_space<vmem>>, vector<1x32x32xf32>
    %30 = vector.shape_cast %29 : vector<1x32x32xf32> to vector<32x32xf32>
    %c0_16 = arith.constant 0 : index
    %c0_17 = arith.constant 0 : index
    %31 = vector.load %arg1[%c0_16, %c0_17] : memref<1x32xf32, #tpu.memory_space<vmem>>, vector<1x32xf32>
    %c0_18 = arith.constant 0 : index
    %c0_19 = arith.constant 0 : index
    %32 = vector.load %arg2[%c0_18, %c0_19] : memref<1x32xf32, #tpu.memory_space<vmem>>, vector<1x32xf32>
    %cst_20 = arith.constant dense<0.000000e+00> : vector<32xf32>
    %33 = vector.multi_reduction <add>, %30, %cst_20 [1] : vector<32x32xf32> to vector<32xf32>
    %34 = vector.shape_cast %33 : vector<32xf32> to vector<32x1xf32>
    %cst_21 = arith.constant 3.200000e+01 : f32
    %35 = vector.broadcast %cst_21 : f32 to vector<32x1xf32>
    %36 = arith.divf %34, %35 : vector<32x1xf32>
    %37 = vector.broadcast %36 : vector<32x1xf32> to vector<32x32xf32>
    %38 = arith.subf %30, %37 : vector<32x32xf32>
    %39 = arith.mulf %38, %38 : vector<32x32xf32>
    %cst_22 = arith.constant dense<0.000000e+00> : vector<32xf32>
    %40 = vector.multi_reduction <add>, %39, %cst_22 [1] : vector<32x32xf32> to vector<32xf32>
    %41 = vector.shape_cast %40 : vector<32xf32> to vector<32x1xf32>
    %cst_23 = arith.constant 3.200000e+01 : f32
    %42 = vector.broadcast %cst_23 : f32 to vector<32x1xf32>
    %43 = arith.divf %41, %42 : vector<32x1xf32>
    %44 = vector.broadcast %36 : vector<32x1xf32> to vector<32x32xf32>
    %45 = arith.subf %30, %44 : vector<32x32xf32>
    %cst_24 = arith.constant 9.99999997E-7 : f32
    %46 = vector.broadcast %cst_24 : f32 to vector<32x1xf32>
    %47 = arith.addf %43, %46 : vector<32x1xf32>
    %48 = math.rsqrt %47 : vector<32x1xf32>
    %49 = vector.broadcast %48 : vector<32x1xf32> to vector<32x32xf32>
    %50 = arith.mulf %45, %49 : vector<32x32xf32>
    %51 = vector.broadcast %31 : vector<1x32xf32> to vector<32x32xf32>
    %52 = arith.mulf %50, %51 : vector<32x32xf32>
    %53 = vector.broadcast %32 : vector<1x32xf32> to vector<32x32xf32>
    %54 = arith.addf %52, %53 : vector<32x32xf32>
    %c1_25 = arith.constant 1 : index
    %c0_26 = arith.constant 0 : index
    %c0_27 = arith.constant 0 : index
    %55 = vector.load %arg3[%c1_25, %c0_26, %c0_27] : memref<4x32x64xf32, #tpu.memory_space<vmem>>, vector<1x32x64xf32>
    %56 = vector.shape_cast %55 : vector<1x32x64xf32> to vector<32x64xf32>
    %cst_28 = arith.constant dense<0.000000e+00> : vector<32x64xf32>
    %57 = tpu.matmul %54, %56, %cst_28 {dimension_numbers = #tpu.dot_dimension_numbers<[1], [0], [0], [1], [0, 0, 1, 1], [], []>} : vector<32x32xf32>, vector<32x64xf32>, vector<32x64xf32> -> vector<32x64xf32>
    %58 = arith.addf %28, %57 : vector<32x64xf32>
    %c2 = arith.constant 2 : index
    %c0_29 = arith.constant 0 : index
    %c0_30 = arith.constant 0 : index
    %59 = vector.load %arg0[%c2, %c0_29, %c0_30] : memref<4x32x32xf32, #tpu.memory_space<vmem>>, vector<1x32x32xf32>
    %60 = vector.shape_cast %59 : vector<1x32x32xf32> to vector<32x32xf32>
    %c0_31 = arith.constant 0 : index
    %c0_32 = arith.constant 0 : index
    %61 = vector.load %arg1[%c0_31, %c0_32] : memref<1x32xf32, #tpu.memory_space<vmem>>, vector<1x32xf32>
    %c0_33 = arith.constant 0 : index
    %c0_34 = arith.constant 0 : index
    %62 = vector.load %arg2[%c0_33, %c0_34] : memref<1x32xf32, #tpu.memory_space<vmem>>, vector<1x32xf32>
    %cst_35 = arith.constant dense<0.000000e+00> : vector<32xf32>
    %63 = vector.multi_reduction <add>, %60, %cst_35 [1] : vector<32x32xf32> to vector<32xf32>
    %64 = vector.shape_cast %63 : vector<32xf32> to vector<32x1xf32>
    %cst_36 = arith.constant 3.200000e+01 : f32
    %65 = vector.broadcast %cst_36 : f32 to vector<32x1xf32>
    %66 = arith.divf %64, %65 : vector<32x1xf32>
    %67 = vector.broadcast %66 : vector<32x1xf32> to vector<32x32xf32>
    %68 = arith.subf %60, %67 : vector<32x32xf32>
    %69 = arith.mulf %68, %68 : vector<32x32xf32>
    %cst_37 = arith.constant dense<0.000000e+00> : vector<32xf32>
    %70 = vector.multi_reduction <add>, %69, %cst_37 [1] : vector<32x32xf32> to vector<32xf32>
    %71 = vector.shape_cast %70 : vector<32xf32> to vector<32x1xf32>
    %cst_38 = arith.constant 3.200000e+01 : f32
    %72 = vector.broadcast %cst_38 : f32 to vector<32x1xf32>
    %73 = arith.divf %71, %72 : vector<32x1xf32>
    %74 = vector.broadcast %66 : vector<32x1xf32> to vector<32x32xf32>
    %75 = arith.subf %60, %74 : vector<32x32xf32>
    %cst_39 = arith.constant 9.99999997E-7 : f32
    %76 = vector.broadcast %cst_39 : f32 to vector<32x1xf32>
    %77 = arith.addf %73, %76 : vector<32x1xf32>
    %78 = math.rsqrt %77 : vector<32x1xf32>
    %79 = vector.broadcast %78 : vector<32x1xf32> to vector<32x32xf32>
    %80 = arith.mulf %75, %79 : vector<32x32xf32>
    %81 = vector.broadcast %61 : vector<1x32xf32> to vector<32x32xf32>
    %82 = arith.mulf %80, %81 : vector<32x32xf32>
    %83 = vector.broadcast %62 : vector<1x32xf32> to vector<32x32xf32>
    %84 = arith.addf %82, %83 : vector<32x32xf32>
    %c2_40 = arith.constant 2 : index
    %c0_41 = arith.constant 0 : index
    %c0_42 = arith.constant 0 : index
    %85 = vector.load %arg3[%c2_40, %c0_41, %c0_42] : memref<4x32x64xf32, #tpu.memory_space<vmem>>, vector<1x32x64xf32>
    %86 = vector.shape_cast %85 : vector<1x32x64xf32> to vector<32x64xf32>
    %cst_43 = arith.constant dense<0.000000e+00> : vector<32x64xf32>
    %87 = tpu.matmul %84, %86, %cst_43 {dimension_numbers = #tpu.dot_dimension_numbers<[1], [0], [0], [1], [0, 0, 1, 1], [], []>} : vector<32x32xf32>, vector<32x64xf32>, vector<32x64xf32> -> vector<32x64xf32>
    %88 = arith.addf %58, %87 : vector<32x64xf32>
    %c3 = arith.constant 3 : index
    %c0_44 = arith.constant 0 : index
    %c0_45 = arith.constant 0 : index
    %89 = vector.load %arg0[%c3, %c0_44, %c0_45] : memref<4x32x32xf32, #tpu.memory_space<vmem>>, vector<1x32x32xf32>
    %90 = vector.shape_cast %89 : vector<1x32x32xf32> to vector<32x32xf32>
    %c0_46 = arith.constant 0 : index
    %c0_47 = arith.constant 0 : index
    %91 = vector.load %arg1[%c0_46, %c0_47] : memref<1x32xf32, #tpu.memory_space<vmem>>, vector<1x32xf32>
    %c0_48 = arith.constant 0 : index
    %c0_49 = arith.constant 0 : index
    %92 = vector.load %arg2[%c0_48, %c0_49] : memref<1x32xf32, #tpu.memory_space<vmem>>, vector<1x32xf32>
    %cst_50 = arith.constant dense<0.000000e+00> : vector<32xf32>
    %93 = vector.multi_reduction <add>, %90, %cst_50 [1] : vector<32x32xf32> to vector<32xf32>
    %94 = vector.shape_cast %93 : vector<32xf32> to vector<32x1xf32>
    %cst_51 = arith.constant 3.200000e+01 : f32
    %95 = vector.broadcast %cst_51 : f32 to vector<32x1xf32>
    %96 = arith.divf %94, %95 : vector<32x1xf32>
    %97 = vector.broadcast %96 : vector<32x1xf32> to vector<32x32xf32>
    %98 = arith.subf %90, %97 : vector<32x32xf32>
    %99 = arith.mulf %98, %98 : vector<32x32xf32>
    %cst_52 = arith.constant dense<0.000000e+00> : vector<32xf32>
    %100 = vector.multi_reduction <add>, %99, %cst_52 [1] : vector<32x32xf32> to vector<32xf32>
    %101 = vector.shape_cast %100 : vector<32xf32> to vector<32x1xf32>
    %cst_53 = arith.constant 3.200000e+01 : f32
    %102 = vector.broadcast %cst_53 : f32 to vector<32x1xf32>
    %103 = arith.divf %101, %102 : vector<32x1xf32>
    %104 = vector.broadcast %96 : vector<32x1xf32> to vector<32x32xf32>
    %105 = arith.subf %90, %104 : vector<32x32xf32>
    %cst_54 = arith.constant 9.99999997E-7 : f32
    %106 = vector.broadcast %cst_54 : f32 to vector<32x1xf32>
    %107 = arith.addf %103, %106 : vector<32x1xf32>
    %108 = math.rsqrt %107 : vector<32x1xf32>
    %109 = vector.broadcast %108 : vector<32x1xf32> to vector<32x32xf32>
    %110 = arith.mulf %105, %109 : vector<32x32xf32>
    %111 = vector.broadcast %91 : vector<1x32xf32> to vector<32x32xf32>
    %112 = arith.mulf %110, %111 : vector<32x32xf32>
    %113 = vector.broadcast %92 : vector<1x32xf32> to vector<32x32xf32>
    %114 = arith.addf %112, %113 : vector<32x32xf32>
    %c3_55 = arith.constant 3 : index
    %c0_56 = arith.constant 0 : index
    %c0_57 = arith.constant 0 : index
    %115 = vector.load %arg3[%c3_55, %c0_56, %c0_57] : memref<4x32x64xf32, #tpu.memory_space<vmem>>, vector<1x32x64xf32>
    %116 = vector.shape_cast %115 : vector<1x32x64xf32> to vector<32x64xf32>
    %cst_58 = arith.constant dense<0.000000e+00> : vector<32x64xf32>
    %117 = tpu.matmul %114, %116, %cst_58 {dimension_numbers = #tpu.dot_dimension_numbers<[1], [0], [0], [1], [0, 0, 1, 1], [], []>} : vector<32x32xf32>, vector<32x64xf32>, vector<32x64xf32> -> vector<32x64xf32>
    %118 = arith.addf %88, %117 : vector<32x64xf32>
    %c0_59 = arith.constant 0 : index
    %c0_60 = arith.constant 0 : index
    %119 = vector.load %arg4[%c0_59, %c0_60] : memref<1x64xf32, #tpu.memory_space<vmem>>, vector<1x64xf32>
    %120 = vector.broadcast %119 : vector<1x64xf32> to vector<32x64xf32>
    %121 = arith.addf %118, %120 : vector<32x64xf32>
    %c0_61 = arith.constant 0 : index
    %c0_62 = arith.constant 0 : index
    %122 = vector.load %arg5[%c0_61, %c0_62] : memref<32x64xf32, #tpu.memory_space<vmem>>, vector<32x64xf32>
    tpu.vector_store %arg5[%c0_61, %c0_62], %121 {strides = array<i32>} : memref<32x64xf32, #tpu.memory_space<vmem>>, vector<32x64xf32>,
    return
  }
}

module attributes {stable_mosaic.version = 11 : i64} {
  func.func @_convnext_block_kernel(%arg0: memref<32x64xf32, #tpu.memory_space<vmem>>, %arg1: memref<49x32x64xf32, #tpu.memory_space<vmem>>, %arg2: memref<49x1x64xf32, #tpu.memory_space<vmem>>, %arg3: memref<1x64xf32, #tpu.memory_space<vmem>>, %arg4: memref<1x64xf32, #tpu.memory_space<vmem>>, %arg5: memref<1x64xf32, #tpu.memory_space<vmem>>, %arg6: memref<64x256xf32, #tpu.memory_space<vmem>>, %arg7: memref<1x256xf32, #tpu.memory_space<vmem>>, %arg8: memref<256x64xf32, #tpu.memory_space<vmem>>, %arg9: memref<1x64xf32, #tpu.memory_space<vmem>>, %arg10: memref<1x64xf32, #tpu.memory_space<vmem>>, %arg11: memref<32x64xf32, #tpu.memory_space<vmem>>) attributes {dimension_semantics = [], scalar_prefetch = 0 : i64, scratch_operands = 0 : i64, tpu.core_type = #tpu.core_type<tc>} {
    %c0 = arith.constant 0 : index
    %c0_0 = arith.constant 0 : index
    %0 = vector.load %arg0[%c0, %c0_0] : memref<32x64xf32, #tpu.memory_space<vmem>>, vector<32x64xf32>
    %c0_1 = arith.constant 0 : index
    %c0_2 = arith.constant 0 : index
    %c0_3 = arith.constant 0 : index
    %1 = vector.load %arg1[%c0_1, %c0_2, %c0_3] : memref<49x32x64xf32, #tpu.memory_space<vmem>>, vector<1x32x64xf32>
    %2 = vector.shape_cast %1 : vector<1x32x64xf32> to vector<32x64xf32>
    %c0_4 = arith.constant 0 : index
    %c0_5 = arith.constant 0 : index
    %c0_6 = arith.constant 0 : index
    %3 = vector.load %arg2[%c0_4, %c0_5, %c0_6] : memref<49x1x64xf32, #tpu.memory_space<vmem>>, vector<1x1x64xf32>
    %4 = vector.shape_cast %3 : vector<1x1x64xf32> to vector<1x64xf32>
    %5 = vector.broadcast %4 : vector<1x64xf32> to vector<32x64xf32>
    %6 = arith.mulf %2, %5 : vector<32x64xf32>
    %c1 = arith.constant 1 : index
    %c0_7 = arith.constant 0 : index
    %c0_8 = arith.constant 0 : index
    %7 = vector.load %arg1[%c1, %c0_7, %c0_8] : memref<49x32x64xf32, #tpu.memory_space<vmem>>, vector<1x32x64xf32>
    %8 = vector.shape_cast %7 : vector<1x32x64xf32> to vector<32x64xf32>
    %c1_9 = arith.constant 1 : index
    %c0_10 = arith.constant 0 : index
    %c0_11 = arith.constant 0 : index
    %9 = vector.load %arg2[%c1_9, %c0_10, %c0_11] : memref<49x1x64xf32, #tpu.memory_space<vmem>>, vector<1x1x64xf32>
    %10 = vector.shape_cast %9 : vector<1x1x64xf32> to vector<1x64xf32>
    %11 = vector.broadcast %10 : vector<1x64xf32> to vector<32x64xf32>
    %12 = arith.mulf %8, %11 : vector<32x64xf32>
    %13 = arith.addf %6, %12 : vector<32x64xf32>
    %c2 = arith.constant 2 : index
    %c0_12 = arith.constant 0 : index
    %c0_13 = arith.constant 0 : index
    %14 = vector.load %arg1[%c2, %c0_12, %c0_13] : memref<49x32x64xf32, #tpu.memory_space<vmem>>, vector<1x32x64xf32>
    %15 = vector.shape_cast %14 : vector<1x32x64xf32> to vector<32x64xf32>
    %c2_14 = arith.constant 2 : index
    %c0_15 = arith.constant 0 : index
    %c0_16 = arith.constant 0 : index
    %16 = vector.load %arg2[%c2_14, %c0_15, %c0_16] : memref<49x1x64xf32, #tpu.memory_space<vmem>>, vector<1x1x64xf32>
    %17 = vector.shape_cast %16 : vector<1x1x64xf32> to vector<1x64xf32>
    %18 = vector.broadcast %17 : vector<1x64xf32> to vector<32x64xf32>
    %19 = arith.mulf %15, %18 : vector<32x64xf32>
    %20 = arith.addf %13, %19 : vector<32x64xf32>
    %c3 = arith.constant 3 : index
    %c0_17 = arith.constant 0 : index
    %c0_18 = arith.constant 0 : index
    %21 = vector.load %arg1[%c3, %c0_17, %c0_18] : memref<49x32x64xf32, #tpu.memory_space<vmem>>, vector<1x32x64xf32>
    %22 = vector.shape_cast %21 : vector<1x32x64xf32> to vector<32x64xf32>
    %c3_19 = arith.constant 3 : index
    %c0_20 = arith.constant 0 : index
    %c0_21 = arith.constant 0 : index
    %23 = vector.load %arg2[%c3_19, %c0_20, %c0_21] : memref<49x1x64xf32, #tpu.memory_space<vmem>>, vector<1x1x64xf32>
    %24 = vector.shape_cast %23 : vector<1x1x64xf32> to vector<1x64xf32>
    %25 = vector.broadcast %24 : vector<1x64xf32> to vector<32x64xf32>
    %26 = arith.mulf %22, %25 : vector<32x64xf32>
    %27 = arith.addf %20, %26 : vector<32x64xf32>
    %c4 = arith.constant 4 : index
    %c0_22 = arith.constant 0 : index
    %c0_23 = arith.constant 0 : index
    %28 = vector.load %arg1[%c4, %c0_22, %c0_23] : memref<49x32x64xf32, #tpu.memory_space<vmem>>, vector<1x32x64xf32>
    %29 = vector.shape_cast %28 : vector<1x32x64xf32> to vector<32x64xf32>
    %c4_24 = arith.constant 4 : index
    %c0_25 = arith.constant 0 : index
    %c0_26 = arith.constant 0 : index
    %30 = vector.load %arg2[%c4_24, %c0_25, %c0_26] : memref<49x1x64xf32, #tpu.memory_space<vmem>>, vector<1x1x64xf32>
    %31 = vector.shape_cast %30 : vector<1x1x64xf32> to vector<1x64xf32>
    %32 = vector.broadcast %31 : vector<1x64xf32> to vector<32x64xf32>
    %33 = arith.mulf %29, %32 : vector<32x64xf32>
    %34 = arith.addf %27, %33 : vector<32x64xf32>
    %c5 = arith.constant 5 : index
    %c0_27 = arith.constant 0 : index
    %c0_28 = arith.constant 0 : index
    %35 = vector.load %arg1[%c5, %c0_27, %c0_28] : memref<49x32x64xf32, #tpu.memory_space<vmem>>, vector<1x32x64xf32>
    %36 = vector.shape_cast %35 : vector<1x32x64xf32> to vector<32x64xf32>
    %c5_29 = arith.constant 5 : index
    %c0_30 = arith.constant 0 : index
    %c0_31 = arith.constant 0 : index
    %37 = vector.load %arg2[%c5_29, %c0_30, %c0_31] : memref<49x1x64xf32, #tpu.memory_space<vmem>>, vector<1x1x64xf32>
    %38 = vector.shape_cast %37 : vector<1x1x64xf32> to vector<1x64xf32>
    %39 = vector.broadcast %38 : vector<1x64xf32> to vector<32x64xf32>
    %40 = arith.mulf %36, %39 : vector<32x64xf32>
    %41 = arith.addf %34, %40 : vector<32x64xf32>
    %c6 = arith.constant 6 : index
    %c0_32 = arith.constant 0 : index
    %c0_33 = arith.constant 0 : index
    %42 = vector.load %arg1[%c6, %c0_32, %c0_33] : memref<49x32x64xf32, #tpu.memory_space<vmem>>, vector<1x32x64xf32>
    %43 = vector.shape_cast %42 : vector<1x32x64xf32> to vector<32x64xf32>
    %c6_34 = arith.constant 6 : index
    %c0_35 = arith.constant 0 : index
    %c0_36 = arith.constant 0 : index
    %44 = vector.load %arg2[%c6_34, %c0_35, %c0_36] : memref<49x1x64xf32, #tpu.memory_space<vmem>>, vector<1x1x64xf32>
    %45 = vector.shape_cast %44 : vector<1x1x64xf32> to vector<1x64xf32>
    %46 = vector.broadcast %45 : vector<1x64xf32> to vector<32x64xf32>
    %47 = arith.mulf %43, %46 : vector<32x64xf32>
    %48 = arith.addf %41, %47 : vector<32x64xf32>
    %c7 = arith.constant 7 : index
    %c0_37 = arith.constant 0 : index
    %c0_38 = arith.constant 0 : index
    %49 = vector.load %arg1[%c7, %c0_37, %c0_38] : memref<49x32x64xf32, #tpu.memory_space<vmem>>, vector<1x32x64xf32>
    %50 = vector.shape_cast %49 : vector<1x32x64xf32> to vector<32x64xf32>
    %c7_39 = arith.constant 7 : index
    %c0_40 = arith.constant 0 : index
    %c0_41 = arith.constant 0 : index
    %51 = vector.load %arg2[%c7_39, %c0_40, %c0_41] : memref<49x1x64xf32, #tpu.memory_space<vmem>>, vector<1x1x64xf32>
    %52 = vector.shape_cast %51 : vector<1x1x64xf32> to vector<1x64xf32>
    %53 = vector.broadcast %52 : vector<1x64xf32> to vector<32x64xf32>
    %54 = arith.mulf %50, %53 : vector<32x64xf32>
    %55 = arith.addf %48, %54 : vector<32x64xf32>
    %c8 = arith.constant 8 : index
    %c0_42 = arith.constant 0 : index
    %c0_43 = arith.constant 0 : index
    %56 = vector.load %arg1[%c8, %c0_42, %c0_43] : memref<49x32x64xf32, #tpu.memory_space<vmem>>, vector<1x32x64xf32>
    %57 = vector.shape_cast %56 : vector<1x32x64xf32> to vector<32x64xf32>
    %c8_44 = arith.constant 8 : index
    %c0_45 = arith.constant 0 : index
    %c0_46 = arith.constant 0 : index
    %58 = vector.load %arg2[%c8_44, %c0_45, %c0_46] : memref<49x1x64xf32, #tpu.memory_space<vmem>>, vector<1x1x64xf32>
    %59 = vector.shape_cast %58 : vector<1x1x64xf32> to vector<1x64xf32>
    %60 = vector.broadcast %59 : vector<1x64xf32> to vector<32x64xf32>
    %61 = arith.mulf %57, %60 : vector<32x64xf32>
    %62 = arith.addf %55, %61 : vector<32x64xf32>
    %c9 = arith.constant 9 : index
    %c0_47 = arith.constant 0 : index
    %c0_48 = arith.constant 0 : index
    %63 = vector.load %arg1[%c9, %c0_47, %c0_48] : memref<49x32x64xf32, #tpu.memory_space<vmem>>, vector<1x32x64xf32>
    %64 = vector.shape_cast %63 : vector<1x32x64xf32> to vector<32x64xf32>
    %c9_49 = arith.constant 9 : index
    %c0_50 = arith.constant 0 : index
    %c0_51 = arith.constant 0 : index
    %65 = vector.load %arg2[%c9_49, %c0_50, %c0_51] : memref<49x1x64xf32, #tpu.memory_space<vmem>>, vector<1x1x64xf32>
    %66 = vector.shape_cast %65 : vector<1x1x64xf32> to vector<1x64xf32>
    %67 = vector.broadcast %66 : vector<1x64xf32> to vector<32x64xf32>
    %68 = arith.mulf %64, %67 : vector<32x64xf32>
    %69 = arith.addf %62, %68 : vector<32x64xf32>
    %c10 = arith.constant 10 : index
    %c0_52 = arith.constant 0 : index
    %c0_53 = arith.constant 0 : index
    %70 = vector.load %arg1[%c10, %c0_52, %c0_53] : memref<49x32x64xf32, #tpu.memory_space<vmem>>, vector<1x32x64xf32>
    %71 = vector.shape_cast %70 : vector<1x32x64xf32> to vector<32x64xf32>
    %c10_54 = arith.constant 10 : index
    %c0_55 = arith.constant 0 : index
    %c0_56 = arith.constant 0 : index
    %72 = vector.load %arg2[%c10_54, %c0_55, %c0_56] : memref<49x1x64xf32, #tpu.memory_space<vmem>>, vector<1x1x64xf32>
    %73 = vector.shape_cast %72 : vector<1x1x64xf32> to vector<1x64xf32>
    %74 = vector.broadcast %73 : vector<1x64xf32> to vector<32x64xf32>
    %75 = arith.mulf %71, %74 : vector<32x64xf32>
    %76 = arith.addf %69, %75 : vector<32x64xf32>
    %c11 = arith.constant 11 : index
    %c0_57 = arith.constant 0 : index
    %c0_58 = arith.constant 0 : index
    %77 = vector.load %arg1[%c11, %c0_57, %c0_58] : memref<49x32x64xf32, #tpu.memory_space<vmem>>, vector<1x32x64xf32>
    %78 = vector.shape_cast %77 : vector<1x32x64xf32> to vector<32x64xf32>
    %c11_59 = arith.constant 11 : index
    %c0_60 = arith.constant 0 : index
    %c0_61 = arith.constant 0 : index
    %79 = vector.load %arg2[%c11_59, %c0_60, %c0_61] : memref<49x1x64xf32, #tpu.memory_space<vmem>>, vector<1x1x64xf32>
    %80 = vector.shape_cast %79 : vector<1x1x64xf32> to vector<1x64xf32>
    %81 = vector.broadcast %80 : vector<1x64xf32> to vector<32x64xf32>
    %82 = arith.mulf %78, %81 : vector<32x64xf32>
    %83 = arith.addf %76, %82 : vector<32x64xf32>
    %c12 = arith.constant 12 : index
    %c0_62 = arith.constant 0 : index
    %c0_63 = arith.constant 0 : index
    %84 = vector.load %arg1[%c12, %c0_62, %c0_63] : memref<49x32x64xf32, #tpu.memory_space<vmem>>, vector<1x32x64xf32>
    %85 = vector.shape_cast %84 : vector<1x32x64xf32> to vector<32x64xf32>
    %c12_64 = arith.constant 12 : index
    %c0_65 = arith.constant 0 : index
    %c0_66 = arith.constant 0 : index
    %86 = vector.load %arg2[%c12_64, %c0_65, %c0_66] : memref<49x1x64xf32, #tpu.memory_space<vmem>>, vector<1x1x64xf32>
    %87 = vector.shape_cast %86 : vector<1x1x64xf32> to vector<1x64xf32>
    %88 = vector.broadcast %87 : vector<1x64xf32> to vector<32x64xf32>
    %89 = arith.mulf %85, %88 : vector<32x64xf32>
    %90 = arith.addf %83, %89 : vector<32x64xf32>
    %c13 = arith.constant 13 : index
    %c0_67 = arith.constant 0 : index
    %c0_68 = arith.constant 0 : index
    %91 = vector.load %arg1[%c13, %c0_67, %c0_68] : memref<49x32x64xf32, #tpu.memory_space<vmem>>, vector<1x32x64xf32>
    %92 = vector.shape_cast %91 : vector<1x32x64xf32> to vector<32x64xf32>
    %c13_69 = arith.constant 13 : index
    %c0_70 = arith.constant 0 : index
    %c0_71 = arith.constant 0 : index
    %93 = vector.load %arg2[%c13_69, %c0_70, %c0_71] : memref<49x1x64xf32, #tpu.memory_space<vmem>>, vector<1x1x64xf32>
    %94 = vector.shape_cast %93 : vector<1x1x64xf32> to vector<1x64xf32>
    %95 = vector.broadcast %94 : vector<1x64xf32> to vector<32x64xf32>
    %96 = arith.mulf %92, %95 : vector<32x64xf32>
    %97 = arith.addf %90, %96 : vector<32x64xf32>
    %c14 = arith.constant 14 : index
    %c0_72 = arith.constant 0 : index
    %c0_73 = arith.constant 0 : index
    %98 = vector.load %arg1[%c14, %c0_72, %c0_73] : memref<49x32x64xf32, #tpu.memory_space<vmem>>, vector<1x32x64xf32>
    %99 = vector.shape_cast %98 : vector<1x32x64xf32> to vector<32x64xf32>
    %c14_74 = arith.constant 14 : index
    %c0_75 = arith.constant 0 : index
    %c0_76 = arith.constant 0 : index
    %100 = vector.load %arg2[%c14_74, %c0_75, %c0_76] : memref<49x1x64xf32, #tpu.memory_space<vmem>>, vector<1x1x64xf32>
    %101 = vector.shape_cast %100 : vector<1x1x64xf32> to vector<1x64xf32>
    %102 = vector.broadcast %101 : vector<1x64xf32> to vector<32x64xf32>
    %103 = arith.mulf %99, %102 : vector<32x64xf32>
    %104 = arith.addf %97, %103 : vector<32x64xf32>
    %c15 = arith.constant 15 : index
    %c0_77 = arith.constant 0 : index
    %c0_78 = arith.constant 0 : index
    %105 = vector.load %arg1[%c15, %c0_77, %c0_78] : memref<49x32x64xf32, #tpu.memory_space<vmem>>, vector<1x32x64xf32>
    %106 = vector.shape_cast %105 : vector<1x32x64xf32> to vector<32x64xf32>
    %c15_79 = arith.constant 15 : index
    %c0_80 = arith.constant 0 : index
    %c0_81 = arith.constant 0 : index
    %107 = vector.load %arg2[%c15_79, %c0_80, %c0_81] : memref<49x1x64xf32, #tpu.memory_space<vmem>>, vector<1x1x64xf32>
    %108 = vector.shape_cast %107 : vector<1x1x64xf32> to vector<1x64xf32>
    %109 = vector.broadcast %108 : vector<1x64xf32> to vector<32x64xf32>
    %110 = arith.mulf %106, %109 : vector<32x64xf32>
    %111 = arith.addf %104, %110 : vector<32x64xf32>
    %c16 = arith.constant 16 : index
    %c0_82 = arith.constant 0 : index
    %c0_83 = arith.constant 0 : index
    %112 = vector.load %arg1[%c16, %c0_82, %c0_83] : memref<49x32x64xf32, #tpu.memory_space<vmem>>, vector<1x32x64xf32>
    %113 = vector.shape_cast %112 : vector<1x32x64xf32> to vector<32x64xf32>
    %c16_84 = arith.constant 16 : index
    %c0_85 = arith.constant 0 : index
    %c0_86 = arith.constant 0 : index
    %114 = vector.load %arg2[%c16_84, %c0_85, %c0_86] : memref<49x1x64xf32, #tpu.memory_space<vmem>>, vector<1x1x64xf32>
    %115 = vector.shape_cast %114 : vector<1x1x64xf32> to vector<1x64xf32>
    %116 = vector.broadcast %115 : vector<1x64xf32> to vector<32x64xf32>
    %117 = arith.mulf %113, %116 : vector<32x64xf32>
    %118 = arith.addf %111, %117 : vector<32x64xf32>
    %c17 = arith.constant 17 : index
    %c0_87 = arith.constant 0 : index
    %c0_88 = arith.constant 0 : index
    %119 = vector.load %arg1[%c17, %c0_87, %c0_88] : memref<49x32x64xf32, #tpu.memory_space<vmem>>, vector<1x32x64xf32>
    %120 = vector.shape_cast %119 : vector<1x32x64xf32> to vector<32x64xf32>
    %c17_89 = arith.constant 17 : index
    %c0_90 = arith.constant 0 : index
    %c0_91 = arith.constant 0 : index
    %121 = vector.load %arg2[%c17_89, %c0_90, %c0_91] : memref<49x1x64xf32, #tpu.memory_space<vmem>>, vector<1x1x64xf32>
    %122 = vector.shape_cast %121 : vector<1x1x64xf32> to vector<1x64xf32>
    %123 = vector.broadcast %122 : vector<1x64xf32> to vector<32x64xf32>
    %124 = arith.mulf %120, %123 : vector<32x64xf32>
    %125 = arith.addf %118, %124 : vector<32x64xf32>
    %c18 = arith.constant 18 : index
    %c0_92 = arith.constant 0 : index
    %c0_93 = arith.constant 0 : index
    %126 = vector.load %arg1[%c18, %c0_92, %c0_93] : memref<49x32x64xf32, #tpu.memory_space<vmem>>, vector<1x32x64xf32>
    %127 = vector.shape_cast %126 : vector<1x32x64xf32> to vector<32x64xf32>
    %c18_94 = arith.constant 18 : index
    %c0_95 = arith.constant 0 : index
    %c0_96 = arith.constant 0 : index
    %128 = vector.load %arg2[%c18_94, %c0_95, %c0_96] : memref<49x1x64xf32, #tpu.memory_space<vmem>>, vector<1x1x64xf32>
    %129 = vector.shape_cast %128 : vector<1x1x64xf32> to vector<1x64xf32>
    %130 = vector.broadcast %129 : vector<1x64xf32> to vector<32x64xf32>
    %131 = arith.mulf %127, %130 : vector<32x64xf32>
    %132 = arith.addf %125, %131 : vector<32x64xf32>
    %c19 = arith.constant 19 : index
    %c0_97 = arith.constant 0 : index
    %c0_98 = arith.constant 0 : index
    %133 = vector.load %arg1[%c19, %c0_97, %c0_98] : memref<49x32x64xf32, #tpu.memory_space<vmem>>, vector<1x32x64xf32>
    %134 = vector.shape_cast %133 : vector<1x32x64xf32> to vector<32x64xf32>
    %c19_99 = arith.constant 19 : index
    %c0_100 = arith.constant 0 : index
    %c0_101 = arith.constant 0 : index
    %135 = vector.load %arg2[%c19_99, %c0_100, %c0_101] : memref<49x1x64xf32, #tpu.memory_space<vmem>>, vector<1x1x64xf32>
    %136 = vector.shape_cast %135 : vector<1x1x64xf32> to vector<1x64xf32>
    %137 = vector.broadcast %136 : vector<1x64xf32> to vector<32x64xf32>
    %138 = arith.mulf %134, %137 : vector<32x64xf32>
    %139 = arith.addf %132, %138 : vector<32x64xf32>
    %c20 = arith.constant 20 : index
    %c0_102 = arith.constant 0 : index
    %c0_103 = arith.constant 0 : index
    %140 = vector.load %arg1[%c20, %c0_102, %c0_103] : memref<49x32x64xf32, #tpu.memory_space<vmem>>, vector<1x32x64xf32>
    %141 = vector.shape_cast %140 : vector<1x32x64xf32> to vector<32x64xf32>
    %c20_104 = arith.constant 20 : index
    %c0_105 = arith.constant 0 : index
    %c0_106 = arith.constant 0 : index
    %142 = vector.load %arg2[%c20_104, %c0_105, %c0_106] : memref<49x1x64xf32, #tpu.memory_space<vmem>>, vector<1x1x64xf32>
    %143 = vector.shape_cast %142 : vector<1x1x64xf32> to vector<1x64xf32>
    %144 = vector.broadcast %143 : vector<1x64xf32> to vector<32x64xf32>
    %145 = arith.mulf %141, %144 : vector<32x64xf32>
    %146 = arith.addf %139, %145 : vector<32x64xf32>
    %c21 = arith.constant 21 : index
    %c0_107 = arith.constant 0 : index
    %c0_108 = arith.constant 0 : index
    %147 = vector.load %arg1[%c21, %c0_107, %c0_108] : memref<49x32x64xf32, #tpu.memory_space<vmem>>, vector<1x32x64xf32>
    %148 = vector.shape_cast %147 : vector<1x32x64xf32> to vector<32x64xf32>
    %c21_109 = arith.constant 21 : index
    %c0_110 = arith.constant 0 : index
    %c0_111 = arith.constant 0 : index
    %149 = vector.load %arg2[%c21_109, %c0_110, %c0_111] : memref<49x1x64xf32, #tpu.memory_space<vmem>>, vector<1x1x64xf32>
    %150 = vector.shape_cast %149 : vector<1x1x64xf32> to vector<1x64xf32>
    %151 = vector.broadcast %150 : vector<1x64xf32> to vector<32x64xf32>
    %152 = arith.mulf %148, %151 : vector<32x64xf32>
    %153 = arith.addf %146, %152 : vector<32x64xf32>
    %c22 = arith.constant 22 : index
    %c0_112 = arith.constant 0 : index
    %c0_113 = arith.constant 0 : index
    %154 = vector.load %arg1[%c22, %c0_112, %c0_113] : memref<49x32x64xf32, #tpu.memory_space<vmem>>, vector<1x32x64xf32>
    %155 = vector.shape_cast %154 : vector<1x32x64xf32> to vector<32x64xf32>
    %c22_114 = arith.constant 22 : index
    %c0_115 = arith.constant 0 : index
    %c0_116 = arith.constant 0 : index
    %156 = vector.load %arg2[%c22_114, %c0_115, %c0_116] : memref<49x1x64xf32, #tpu.memory_space<vmem>>, vector<1x1x64xf32>
    %157 = vector.shape_cast %156 : vector<1x1x64xf32> to vector<1x64xf32>
    %158 = vector.broadcast %157 : vector<1x64xf32> to vector<32x64xf32>
    %159 = arith.mulf %155, %158 : vector<32x64xf32>
    %160 = arith.addf %153, %159 : vector<32x64xf32>
    %c23 = arith.constant 23 : index
    %c0_117 = arith.constant 0 : index
    %c0_118 = arith.constant 0 : index
    %161 = vector.load %arg1[%c23, %c0_117, %c0_118] : memref<49x32x64xf32, #tpu.memory_space<vmem>>, vector<1x32x64xf32>
    %162 = vector.shape_cast %161 : vector<1x32x64xf32> to vector<32x64xf32>
    %c23_119 = arith.constant 23 : index
    %c0_120 = arith.constant 0 : index
    %c0_121 = arith.constant 0 : index
    %163 = vector.load %arg2[%c23_119, %c0_120, %c0_121] : memref<49x1x64xf32, #tpu.memory_space<vmem>>, vector<1x1x64xf32>
    %164 = vector.shape_cast %163 : vector<1x1x64xf32> to vector<1x64xf32>
    %165 = vector.broadcast %164 : vector<1x64xf32> to vector<32x64xf32>
    %166 = arith.mulf %162, %165 : vector<32x64xf32>
    %167 = arith.addf %160, %166 : vector<32x64xf32>
    %c24 = arith.constant 24 : index
    %c0_122 = arith.constant 0 : index
    %c0_123 = arith.constant 0 : index
    %168 = vector.load %arg1[%c24, %c0_122, %c0_123] : memref<49x32x64xf32, #tpu.memory_space<vmem>>, vector<1x32x64xf32>
    %169 = vector.shape_cast %168 : vector<1x32x64xf32> to vector<32x64xf32>
    %c24_124 = arith.constant 24 : index
    %c0_125 = arith.constant 0 : index
    %c0_126 = arith.constant 0 : index
    %170 = vector.load %arg2[%c24_124, %c0_125, %c0_126] : memref<49x1x64xf32, #tpu.memory_space<vmem>>, vector<1x1x64xf32>
    %171 = vector.shape_cast %170 : vector<1x1x64xf32> to vector<1x64xf32>
    %172 = vector.broadcast %171 : vector<1x64xf32> to vector<32x64xf32>
    %173 = arith.mulf %169, %172 : vector<32x64xf32>
    %174 = arith.addf %167, %173 : vector<32x64xf32>
    %c25 = arith.constant 25 : index
    %c0_127 = arith.constant 0 : index
    %c0_128 = arith.constant 0 : index
    %175 = vector.load %arg1[%c25, %c0_127, %c0_128] : memref<49x32x64xf32, #tpu.memory_space<vmem>>, vector<1x32x64xf32>
    %176 = vector.shape_cast %175 : vector<1x32x64xf32> to vector<32x64xf32>
    %c25_129 = arith.constant 25 : index
    %c0_130 = arith.constant 0 : index
    %c0_131 = arith.constant 0 : index
    %177 = vector.load %arg2[%c25_129, %c0_130, %c0_131] : memref<49x1x64xf32, #tpu.memory_space<vmem>>, vector<1x1x64xf32>
    %178 = vector.shape_cast %177 : vector<1x1x64xf32> to vector<1x64xf32>
    %179 = vector.broadcast %178 : vector<1x64xf32> to vector<32x64xf32>
    %180 = arith.mulf %176, %179 : vector<32x64xf32>
    %181 = arith.addf %174, %180 : vector<32x64xf32>
    %c26 = arith.constant 26 : index
    %c0_132 = arith.constant 0 : index
    %c0_133 = arith.constant 0 : index
    %182 = vector.load %arg1[%c26, %c0_132, %c0_133] : memref<49x32x64xf32, #tpu.memory_space<vmem>>, vector<1x32x64xf32>
    %183 = vector.shape_cast %182 : vector<1x32x64xf32> to vector<32x64xf32>
    %c26_134 = arith.constant 26 : index
    %c0_135 = arith.constant 0 : index
    %c0_136 = arith.constant 0 : index
    %184 = vector.load %arg2[%c26_134, %c0_135, %c0_136] : memref<49x1x64xf32, #tpu.memory_space<vmem>>, vector<1x1x64xf32>
    %185 = vector.shape_cast %184 : vector<1x1x64xf32> to vector<1x64xf32>
    %186 = vector.broadcast %185 : vector<1x64xf32> to vector<32x64xf32>
    %187 = arith.mulf %183, %186 : vector<32x64xf32>
    %188 = arith.addf %181, %187 : vector<32x64xf32>
    %c27 = arith.constant 27 : index
    %c0_137 = arith.constant 0 : index
    %c0_138 = arith.constant 0 : index
    %189 = vector.load %arg1[%c27, %c0_137, %c0_138] : memref<49x32x64xf32, #tpu.memory_space<vmem>>, vector<1x32x64xf32>
    %190 = vector.shape_cast %189 : vector<1x32x64xf32> to vector<32x64xf32>
    %c27_139 = arith.constant 27 : index
    %c0_140 = arith.constant 0 : index
    %c0_141 = arith.constant 0 : index
    %191 = vector.load %arg2[%c27_139, %c0_140, %c0_141] : memref<49x1x64xf32, #tpu.memory_space<vmem>>, vector<1x1x64xf32>
    %192 = vector.shape_cast %191 : vector<1x1x64xf32> to vector<1x64xf32>
    %193 = vector.broadcast %192 : vector<1x64xf32> to vector<32x64xf32>
    %194 = arith.mulf %190, %193 : vector<32x64xf32>
    %195 = arith.addf %188, %194 : vector<32x64xf32>
    %c28 = arith.constant 28 : index
    %c0_142 = arith.constant 0 : index
    %c0_143 = arith.constant 0 : index
    %196 = vector.load %arg1[%c28, %c0_142, %c0_143] : memref<49x32x64xf32, #tpu.memory_space<vmem>>, vector<1x32x64xf32>
    %197 = vector.shape_cast %196 : vector<1x32x64xf32> to vector<32x64xf32>
    %c28_144 = arith.constant 28 : index
    %c0_145 = arith.constant 0 : index
    %c0_146 = arith.constant 0 : index
    %198 = vector.load %arg2[%c28_144, %c0_145, %c0_146] : memref<49x1x64xf32, #tpu.memory_space<vmem>>, vector<1x1x64xf32>
    %199 = vector.shape_cast %198 : vector<1x1x64xf32> to vector<1x64xf32>
    %200 = vector.broadcast %199 : vector<1x64xf32> to vector<32x64xf32>
    %201 = arith.mulf %197, %200 : vector<32x64xf32>
    %202 = arith.addf %195, %201 : vector<32x64xf32>
    %c29 = arith.constant 29 : index
    %c0_147 = arith.constant 0 : index
    %c0_148 = arith.constant 0 : index
    %203 = vector.load %arg1[%c29, %c0_147, %c0_148] : memref<49x32x64xf32, #tpu.memory_space<vmem>>, vector<1x32x64xf32>
    %204 = vector.shape_cast %203 : vector<1x32x64xf32> to vector<32x64xf32>
    %c29_149 = arith.constant 29 : index
    %c0_150 = arith.constant 0 : index
    %c0_151 = arith.constant 0 : index
    %205 = vector.load %arg2[%c29_149, %c0_150, %c0_151] : memref<49x1x64xf32, #tpu.memory_space<vmem>>, vector<1x1x64xf32>
    %206 = vector.shape_cast %205 : vector<1x1x64xf32> to vector<1x64xf32>
    %207 = vector.broadcast %206 : vector<1x64xf32> to vector<32x64xf32>
    %208 = arith.mulf %204, %207 : vector<32x64xf32>
    %209 = arith.addf %202, %208 : vector<32x64xf32>
    %c30 = arith.constant 30 : index
    %c0_152 = arith.constant 0 : index
    %c0_153 = arith.constant 0 : index
    %210 = vector.load %arg1[%c30, %c0_152, %c0_153] : memref<49x32x64xf32, #tpu.memory_space<vmem>>, vector<1x32x64xf32>
    %211 = vector.shape_cast %210 : vector<1x32x64xf32> to vector<32x64xf32>
    %c30_154 = arith.constant 30 : index
    %c0_155 = arith.constant 0 : index
    %c0_156 = arith.constant 0 : index
    %212 = vector.load %arg2[%c30_154, %c0_155, %c0_156] : memref<49x1x64xf32, #tpu.memory_space<vmem>>, vector<1x1x64xf32>
    %213 = vector.shape_cast %212 : vector<1x1x64xf32> to vector<1x64xf32>
    %214 = vector.broadcast %213 : vector<1x64xf32> to vector<32x64xf32>
    %215 = arith.mulf %211, %214 : vector<32x64xf32>
    %216 = arith.addf %209, %215 : vector<32x64xf32>
    %c31 = arith.constant 31 : index
    %c0_157 = arith.constant 0 : index
    %c0_158 = arith.constant 0 : index
    %217 = vector.load %arg1[%c31, %c0_157, %c0_158] : memref<49x32x64xf32, #tpu.memory_space<vmem>>, vector<1x32x64xf32>
    %218 = vector.shape_cast %217 : vector<1x32x64xf32> to vector<32x64xf32>
    %c31_159 = arith.constant 31 : index
    %c0_160 = arith.constant 0 : index
    %c0_161 = arith.constant 0 : index
    %219 = vector.load %arg2[%c31_159, %c0_160, %c0_161] : memref<49x1x64xf32, #tpu.memory_space<vmem>>, vector<1x1x64xf32>
    %220 = vector.shape_cast %219 : vector<1x1x64xf32> to vector<1x64xf32>
    %221 = vector.broadcast %220 : vector<1x64xf32> to vector<32x64xf32>
    %222 = arith.mulf %218, %221 : vector<32x64xf32>
    %223 = arith.addf %216, %222 : vector<32x64xf32>
    %c32 = arith.constant 32 : index
    %c0_162 = arith.constant 0 : index
    %c0_163 = arith.constant 0 : index
    %224 = vector.load %arg1[%c32, %c0_162, %c0_163] : memref<49x32x64xf32, #tpu.memory_space<vmem>>, vector<1x32x64xf32>
    %225 = vector.shape_cast %224 : vector<1x32x64xf32> to vector<32x64xf32>
    %c32_164 = arith.constant 32 : index
    %c0_165 = arith.constant 0 : index
    %c0_166 = arith.constant 0 : index
    %226 = vector.load %arg2[%c32_164, %c0_165, %c0_166] : memref<49x1x64xf32, #tpu.memory_space<vmem>>, vector<1x1x64xf32>
    %227 = vector.shape_cast %226 : vector<1x1x64xf32> to vector<1x64xf32>
    %228 = vector.broadcast %227 : vector<1x64xf32> to vector<32x64xf32>
    %229 = arith.mulf %225, %228 : vector<32x64xf32>
    %230 = arith.addf %223, %229 : vector<32x64xf32>
    %c33 = arith.constant 33 : index
    %c0_167 = arith.constant 0 : index
    %c0_168 = arith.constant 0 : index
    %231 = vector.load %arg1[%c33, %c0_167, %c0_168] : memref<49x32x64xf32, #tpu.memory_space<vmem>>, vector<1x32x64xf32>
    %232 = vector.shape_cast %231 : vector<1x32x64xf32> to vector<32x64xf32>
    %c33_169 = arith.constant 33 : index
    %c0_170 = arith.constant 0 : index
    %c0_171 = arith.constant 0 : index
    %233 = vector.load %arg2[%c33_169, %c0_170, %c0_171] : memref<49x1x64xf32, #tpu.memory_space<vmem>>, vector<1x1x64xf32>
    %234 = vector.shape_cast %233 : vector<1x1x64xf32> to vector<1x64xf32>
    %235 = vector.broadcast %234 : vector<1x64xf32> to vector<32x64xf32>
    %236 = arith.mulf %232, %235 : vector<32x64xf32>
    %237 = arith.addf %230, %236 : vector<32x64xf32>
    %c34 = arith.constant 34 : index
    %c0_172 = arith.constant 0 : index
    %c0_173 = arith.constant 0 : index
    %238 = vector.load %arg1[%c34, %c0_172, %c0_173] : memref<49x32x64xf32, #tpu.memory_space<vmem>>, vector<1x32x64xf32>
    %239 = vector.shape_cast %238 : vector<1x32x64xf32> to vector<32x64xf32>
    %c34_174 = arith.constant 34 : index
    %c0_175 = arith.constant 0 : index
    %c0_176 = arith.constant 0 : index
    %240 = vector.load %arg2[%c34_174, %c0_175, %c0_176] : memref<49x1x64xf32, #tpu.memory_space<vmem>>, vector<1x1x64xf32>
    %241 = vector.shape_cast %240 : vector<1x1x64xf32> to vector<1x64xf32>
    %242 = vector.broadcast %241 : vector<1x64xf32> to vector<32x64xf32>
    %243 = arith.mulf %239, %242 : vector<32x64xf32>
    %244 = arith.addf %237, %243 : vector<32x64xf32>
    %c35 = arith.constant 35 : index
    %c0_177 = arith.constant 0 : index
    %c0_178 = arith.constant 0 : index
    %245 = vector.load %arg1[%c35, %c0_177, %c0_178] : memref<49x32x64xf32, #tpu.memory_space<vmem>>, vector<1x32x64xf32>
    %246 = vector.shape_cast %245 : vector<1x32x64xf32> to vector<32x64xf32>
    %c35_179 = arith.constant 35 : index
    %c0_180 = arith.constant 0 : index
    %c0_181 = arith.constant 0 : index
    %247 = vector.load %arg2[%c35_179, %c0_180, %c0_181] : memref<49x1x64xf32, #tpu.memory_space<vmem>>, vector<1x1x64xf32>
    %248 = vector.shape_cast %247 : vector<1x1x64xf32> to vector<1x64xf32>
    %249 = vector.broadcast %248 : vector<1x64xf32> to vector<32x64xf32>
    %250 = arith.mulf %246, %249 : vector<32x64xf32>
    %251 = arith.addf %244, %250 : vector<32x64xf32>
    %c36 = arith.constant 36 : index
    %c0_182 = arith.constant 0 : index
    %c0_183 = arith.constant 0 : index
    %252 = vector.load %arg1[%c36, %c0_182, %c0_183] : memref<49x32x64xf32, #tpu.memory_space<vmem>>, vector<1x32x64xf32>
    %253 = vector.shape_cast %252 : vector<1x32x64xf32> to vector<32x64xf32>
    %c36_184 = arith.constant 36 : index
    %c0_185 = arith.constant 0 : index
    %c0_186 = arith.constant 0 : index
    %254 = vector.load %arg2[%c36_184, %c0_185, %c0_186] : memref<49x1x64xf32, #tpu.memory_space<vmem>>, vector<1x1x64xf32>
    %255 = vector.shape_cast %254 : vector<1x1x64xf32> to vector<1x64xf32>
    %256 = vector.broadcast %255 : vector<1x64xf32> to vector<32x64xf32>
    %257 = arith.mulf %253, %256 : vector<32x64xf32>
    %258 = arith.addf %251, %257 : vector<32x64xf32>
    %c37 = arith.constant 37 : index
    %c0_187 = arith.constant 0 : index
    %c0_188 = arith.constant 0 : index
    %259 = vector.load %arg1[%c37, %c0_187, %c0_188] : memref<49x32x64xf32, #tpu.memory_space<vmem>>, vector<1x32x64xf32>
    %260 = vector.shape_cast %259 : vector<1x32x64xf32> to vector<32x64xf32>
    %c37_189 = arith.constant 37 : index
    %c0_190 = arith.constant 0 : index
    %c0_191 = arith.constant 0 : index
    %261 = vector.load %arg2[%c37_189, %c0_190, %c0_191] : memref<49x1x64xf32, #tpu.memory_space<vmem>>, vector<1x1x64xf32>
    %262 = vector.shape_cast %261 : vector<1x1x64xf32> to vector<1x64xf32>
    %263 = vector.broadcast %262 : vector<1x64xf32> to vector<32x64xf32>
    %264 = arith.mulf %260, %263 : vector<32x64xf32>
    %265 = arith.addf %258, %264 : vector<32x64xf32>
    %c38 = arith.constant 38 : index
    %c0_192 = arith.constant 0 : index
    %c0_193 = arith.constant 0 : index
    %266 = vector.load %arg1[%c38, %c0_192, %c0_193] : memref<49x32x64xf32, #tpu.memory_space<vmem>>, vector<1x32x64xf32>
    %267 = vector.shape_cast %266 : vector<1x32x64xf32> to vector<32x64xf32>
    %c38_194 = arith.constant 38 : index
    %c0_195 = arith.constant 0 : index
    %c0_196 = arith.constant 0 : index
    %268 = vector.load %arg2[%c38_194, %c0_195, %c0_196] : memref<49x1x64xf32, #tpu.memory_space<vmem>>, vector<1x1x64xf32>
    %269 = vector.shape_cast %268 : vector<1x1x64xf32> to vector<1x64xf32>
    %270 = vector.broadcast %269 : vector<1x64xf32> to vector<32x64xf32>
    %271 = arith.mulf %267, %270 : vector<32x64xf32>
    %272 = arith.addf %265, %271 : vector<32x64xf32>
    %c39 = arith.constant 39 : index
    %c0_197 = arith.constant 0 : index
    %c0_198 = arith.constant 0 : index
    %273 = vector.load %arg1[%c39, %c0_197, %c0_198] : memref<49x32x64xf32, #tpu.memory_space<vmem>>, vector<1x32x64xf32>
    %274 = vector.shape_cast %273 : vector<1x32x64xf32> to vector<32x64xf32>
    %c39_199 = arith.constant 39 : index
    %c0_200 = arith.constant 0 : index
    %c0_201 = arith.constant 0 : index
    %275 = vector.load %arg2[%c39_199, %c0_200, %c0_201] : memref<49x1x64xf32, #tpu.memory_space<vmem>>, vector<1x1x64xf32>
    %276 = vector.shape_cast %275 : vector<1x1x64xf32> to vector<1x64xf32>
    %277 = vector.broadcast %276 : vector<1x64xf32> to vector<32x64xf32>
    %278 = arith.mulf %274, %277 : vector<32x64xf32>
    %279 = arith.addf %272, %278 : vector<32x64xf32>
    %c40 = arith.constant 40 : index
    %c0_202 = arith.constant 0 : index
    %c0_203 = arith.constant 0 : index
    %280 = vector.load %arg1[%c40, %c0_202, %c0_203] : memref<49x32x64xf32, #tpu.memory_space<vmem>>, vector<1x32x64xf32>
    %281 = vector.shape_cast %280 : vector<1x32x64xf32> to vector<32x64xf32>
    %c40_204 = arith.constant 40 : index
    %c0_205 = arith.constant 0 : index
    %c0_206 = arith.constant 0 : index
    %282 = vector.load %arg2[%c40_204, %c0_205, %c0_206] : memref<49x1x64xf32, #tpu.memory_space<vmem>>, vector<1x1x64xf32>
    %283 = vector.shape_cast %282 : vector<1x1x64xf32> to vector<1x64xf32>
    %284 = vector.broadcast %283 : vector<1x64xf32> to vector<32x64xf32>
    %285 = arith.mulf %281, %284 : vector<32x64xf32>
    %286 = arith.addf %279, %285 : vector<32x64xf32>
    %c41 = arith.constant 41 : index
    %c0_207 = arith.constant 0 : index
    %c0_208 = arith.constant 0 : index
    %287 = vector.load %arg1[%c41, %c0_207, %c0_208] : memref<49x32x64xf32, #tpu.memory_space<vmem>>, vector<1x32x64xf32>
    %288 = vector.shape_cast %287 : vector<1x32x64xf32> to vector<32x64xf32>
    %c41_209 = arith.constant 41 : index
    %c0_210 = arith.constant 0 : index
    %c0_211 = arith.constant 0 : index
    %289 = vector.load %arg2[%c41_209, %c0_210, %c0_211] : memref<49x1x64xf32, #tpu.memory_space<vmem>>, vector<1x1x64xf32>
    %290 = vector.shape_cast %289 : vector<1x1x64xf32> to vector<1x64xf32>
    %291 = vector.broadcast %290 : vector<1x64xf32> to vector<32x64xf32>
    %292 = arith.mulf %288, %291 : vector<32x64xf32>
    %293 = arith.addf %286, %292 : vector<32x64xf32>
    %c42 = arith.constant 42 : index
    %c0_212 = arith.constant 0 : index
    %c0_213 = arith.constant 0 : index
    %294 = vector.load %arg1[%c42, %c0_212, %c0_213] : memref<49x32x64xf32, #tpu.memory_space<vmem>>, vector<1x32x64xf32>
    %295 = vector.shape_cast %294 : vector<1x32x64xf32> to vector<32x64xf32>
    %c42_214 = arith.constant 42 : index
    %c0_215 = arith.constant 0 : index
    %c0_216 = arith.constant 0 : index
    %296 = vector.load %arg2[%c42_214, %c0_215, %c0_216] : memref<49x1x64xf32, #tpu.memory_space<vmem>>, vector<1x1x64xf32>
    %297 = vector.shape_cast %296 : vector<1x1x64xf32> to vector<1x64xf32>
    %298 = vector.broadcast %297 : vector<1x64xf32> to vector<32x64xf32>
    %299 = arith.mulf %295, %298 : vector<32x64xf32>
    %300 = arith.addf %293, %299 : vector<32x64xf32>
    %c43 = arith.constant 43 : index
    %c0_217 = arith.constant 0 : index
    %c0_218 = arith.constant 0 : index
    %301 = vector.load %arg1[%c43, %c0_217, %c0_218] : memref<49x32x64xf32, #tpu.memory_space<vmem>>, vector<1x32x64xf32>
    %302 = vector.shape_cast %301 : vector<1x32x64xf32> to vector<32x64xf32>
    %c43_219 = arith.constant 43 : index
    %c0_220 = arith.constant 0 : index
    %c0_221 = arith.constant 0 : index
    %303 = vector.load %arg2[%c43_219, %c0_220, %c0_221] : memref<49x1x64xf32, #tpu.memory_space<vmem>>, vector<1x1x64xf32>
    %304 = vector.shape_cast %303 : vector<1x1x64xf32> to vector<1x64xf32>
    %305 = vector.broadcast %304 : vector<1x64xf32> to vector<32x64xf32>
    %306 = arith.mulf %302, %305 : vector<32x64xf32>
    %307 = arith.addf %300, %306 : vector<32x64xf32>
    %c44 = arith.constant 44 : index
    %c0_222 = arith.constant 0 : index
    %c0_223 = arith.constant 0 : index
    %308 = vector.load %arg1[%c44, %c0_222, %c0_223] : memref<49x32x64xf32, #tpu.memory_space<vmem>>, vector<1x32x64xf32>
    %309 = vector.shape_cast %308 : vector<1x32x64xf32> to vector<32x64xf32>
    %c44_224 = arith.constant 44 : index
    %c0_225 = arith.constant 0 : index
    %c0_226 = arith.constant 0 : index
    %310 = vector.load %arg2[%c44_224, %c0_225, %c0_226] : memref<49x1x64xf32, #tpu.memory_space<vmem>>, vector<1x1x64xf32>
    %311 = vector.shape_cast %310 : vector<1x1x64xf32> to vector<1x64xf32>
    %312 = vector.broadcast %311 : vector<1x64xf32> to vector<32x64xf32>
    %313 = arith.mulf %309, %312 : vector<32x64xf32>
    %314 = arith.addf %307, %313 : vector<32x64xf32>
    %c45 = arith.constant 45 : index
    %c0_227 = arith.constant 0 : index
    %c0_228 = arith.constant 0 : index
    %315 = vector.load %arg1[%c45, %c0_227, %c0_228] : memref<49x32x64xf32, #tpu.memory_space<vmem>>, vector<1x32x64xf32>
    %316 = vector.shape_cast %315 : vector<1x32x64xf32> to vector<32x64xf32>
    %c45_229 = arith.constant 45 : index
    %c0_230 = arith.constant 0 : index
    %c0_231 = arith.constant 0 : index
    %317 = vector.load %arg2[%c45_229, %c0_230, %c0_231] : memref<49x1x64xf32, #tpu.memory_space<vmem>>, vector<1x1x64xf32>
    %318 = vector.shape_cast %317 : vector<1x1x64xf32> to vector<1x64xf32>
    %319 = vector.broadcast %318 : vector<1x64xf32> to vector<32x64xf32>
    %320 = arith.mulf %316, %319 : vector<32x64xf32>
    %321 = arith.addf %314, %320 : vector<32x64xf32>
    %c46 = arith.constant 46 : index
    %c0_232 = arith.constant 0 : index
    %c0_233 = arith.constant 0 : index
    %322 = vector.load %arg1[%c46, %c0_232, %c0_233] : memref<49x32x64xf32, #tpu.memory_space<vmem>>, vector<1x32x64xf32>
    %323 = vector.shape_cast %322 : vector<1x32x64xf32> to vector<32x64xf32>
    %c46_234 = arith.constant 46 : index
    %c0_235 = arith.constant 0 : index
    %c0_236 = arith.constant 0 : index
    %324 = vector.load %arg2[%c46_234, %c0_235, %c0_236] : memref<49x1x64xf32, #tpu.memory_space<vmem>>, vector<1x1x64xf32>
    %325 = vector.shape_cast %324 : vector<1x1x64xf32> to vector<1x64xf32>
    %326 = vector.broadcast %325 : vector<1x64xf32> to vector<32x64xf32>
    %327 = arith.mulf %323, %326 : vector<32x64xf32>
    %328 = arith.addf %321, %327 : vector<32x64xf32>
    %c47 = arith.constant 47 : index
    %c0_237 = arith.constant 0 : index
    %c0_238 = arith.constant 0 : index
    %329 = vector.load %arg1[%c47, %c0_237, %c0_238] : memref<49x32x64xf32, #tpu.memory_space<vmem>>, vector<1x32x64xf32>
    %330 = vector.shape_cast %329 : vector<1x32x64xf32> to vector<32x64xf32>
    %c47_239 = arith.constant 47 : index
    %c0_240 = arith.constant 0 : index
    %c0_241 = arith.constant 0 : index
    %331 = vector.load %arg2[%c47_239, %c0_240, %c0_241] : memref<49x1x64xf32, #tpu.memory_space<vmem>>, vector<1x1x64xf32>
    %332 = vector.shape_cast %331 : vector<1x1x64xf32> to vector<1x64xf32>
    %333 = vector.broadcast %332 : vector<1x64xf32> to vector<32x64xf32>
    %334 = arith.mulf %330, %333 : vector<32x64xf32>
    %335 = arith.addf %328, %334 : vector<32x64xf32>
    %c48 = arith.constant 48 : index
    %c0_242 = arith.constant 0 : index
    %c0_243 = arith.constant 0 : index
    %336 = vector.load %arg1[%c48, %c0_242, %c0_243] : memref<49x32x64xf32, #tpu.memory_space<vmem>>, vector<1x32x64xf32>
    %337 = vector.shape_cast %336 : vector<1x32x64xf32> to vector<32x64xf32>
    %c48_244 = arith.constant 48 : index
    %c0_245 = arith.constant 0 : index
    %c0_246 = arith.constant 0 : index
    %338 = vector.load %arg2[%c48_244, %c0_245, %c0_246] : memref<49x1x64xf32, #tpu.memory_space<vmem>>, vector<1x1x64xf32>
    %339 = vector.shape_cast %338 : vector<1x1x64xf32> to vector<1x64xf32>
    %340 = vector.broadcast %339 : vector<1x64xf32> to vector<32x64xf32>
    %341 = arith.mulf %337, %340 : vector<32x64xf32>
    %342 = arith.addf %335, %341 : vector<32x64xf32>
    %c0_247 = arith.constant 0 : index
    %c0_248 = arith.constant 0 : index
    %343 = vector.load %arg3[%c0_247, %c0_248] : memref<1x64xf32, #tpu.memory_space<vmem>>, vector<1x64xf32>
    %344 = vector.broadcast %343 : vector<1x64xf32> to vector<32x64xf32>
    %345 = arith.addf %342, %344 : vector<32x64xf32>
    %c0_249 = arith.constant 0 : index
    %c0_250 = arith.constant 0 : index
    %346 = vector.load %arg4[%c0_249, %c0_250] : memref<1x64xf32, #tpu.memory_space<vmem>>, vector<1x64xf32>
    %c0_251 = arith.constant 0 : index
    %c0_252 = arith.constant 0 : index
    %347 = vector.load %arg5[%c0_251, %c0_252] : memref<1x64xf32, #tpu.memory_space<vmem>>, vector<1x64xf32>
    %cst = arith.constant dense<0.000000e+00> : vector<32xf32>
    %348 = vector.multi_reduction <add>, %345, %cst [1] : vector<32x64xf32> to vector<32xf32>
    %349 = vector.shape_cast %348 : vector<32xf32> to vector<32x1xf32>
    %cst_253 = arith.constant 6.400000e+01 : f32
    %350 = vector.broadcast %cst_253 : f32 to vector<32x1xf32>
    %351 = arith.divf %349, %350 : vector<32x1xf32>
    %352 = vector.broadcast %351 : vector<32x1xf32> to vector<32x64xf32>
    %353 = arith.subf %345, %352 : vector<32x64xf32>
    %354 = arith.mulf %353, %353 : vector<32x64xf32>
    %cst_254 = arith.constant dense<0.000000e+00> : vector<32xf32>
    %355 = vector.multi_reduction <add>, %354, %cst_254 [1] : vector<32x64xf32> to vector<32xf32>
    %356 = vector.shape_cast %355 : vector<32xf32> to vector<32x1xf32>
    %cst_255 = arith.constant 6.400000e+01 : f32
    %357 = vector.broadcast %cst_255 : f32 to vector<32x1xf32>
    %358 = arith.divf %356, %357 : vector<32x1xf32>
    %359 = vector.broadcast %351 : vector<32x1xf32> to vector<32x64xf32>
    %360 = arith.subf %345, %359 : vector<32x64xf32>
    %cst_256 = arith.constant 9.99999997E-7 : f32
    %361 = vector.broadcast %cst_256 : f32 to vector<32x1xf32>
    %362 = arith.addf %358, %361 : vector<32x1xf32>
    %363 = math.rsqrt %362 : vector<32x1xf32>
    %364 = vector.broadcast %363 : vector<32x1xf32> to vector<32x64xf32>
    %365 = arith.mulf %360, %364 : vector<32x64xf32>
    %366 = vector.broadcast %346 : vector<1x64xf32> to vector<32x64xf32>
    %367 = arith.mulf %365, %366 : vector<32x64xf32>
    %368 = vector.broadcast %347 : vector<1x64xf32> to vector<32x64xf32>
    %369 = arith.addf %367, %368 : vector<32x64xf32>
    %c0_257 = arith.constant 0 : index
    %c0_258 = arith.constant 0 : index
    %370 = vector.load %arg6[%c0_257, %c0_258] : memref<64x256xf32, #tpu.memory_space<vmem>>, vector<64x256xf32>
    %cst_259 = arith.constant dense<0.000000e+00> : vector<32x256xf32>
    %371 = tpu.matmul %369, %370, %cst_259 {dimension_numbers = #tpu.dot_dimension_numbers<[1], [0], [0], [1], [0, 0, 1, 1], [], []>} : vector<32x64xf32>, vector<64x256xf32>, vector<32x256xf32> -> vector<32x256xf32>
    %c0_260 = arith.constant 0 : index
    %c0_261 = arith.constant 0 : index
    %372 = vector.load %arg7[%c0_260, %c0_261] : memref<1x256xf32, #tpu.memory_space<vmem>>, vector<1x256xf32>
    %373 = vector.broadcast %372 : vector<1x256xf32> to vector<32x256xf32>
    %374 = arith.addf %371, %373 : vector<32x256xf32>
    %cst_262 = arith.constant 5.000000e-01 : f32
    %375 = vector.broadcast %cst_262 : f32 to vector<32x256xf32>
    %376 = arith.mulf %375, %374 : vector<32x256xf32>
    %cst_263 = arith.constant 0.707106769 : f32
    %377 = vector.broadcast %cst_263 : f32 to vector<32x256xf32>
    %378 = arith.mulf %374, %377 : vector<32x256xf32>
    %379 = math.erf %378 : vector<32x256xf32>
    %cst_264 = arith.constant 1.000000e+00 : f32
    %380 = vector.broadcast %cst_264 : f32 to vector<32x256xf32>
    %381 = arith.addf %380, %379 : vector<32x256xf32>
    %382 = arith.mulf %376, %381 : vector<32x256xf32>
    %c0_265 = arith.constant 0 : index
    %c0_266 = arith.constant 0 : index
    %383 = vector.load %arg8[%c0_265, %c0_266] : memref<256x64xf32, #tpu.memory_space<vmem>>, vector<256x64xf32>
    %cst_267 = arith.constant dense<0.000000e+00> : vector<32x64xf32>
    %384 = tpu.matmul %382, %383, %cst_267 {dimension_numbers = #tpu.dot_dimension_numbers<[1], [0], [0], [1], [0, 0, 1, 1], [], []>} : vector<32x256xf32>, vector<256x64xf32>, vector<32x64xf32> -> vector<32x64xf32>
    %c0_268 = arith.constant 0 : index
    %c0_269 = arith.constant 0 : index
    %385 = vector.load %arg9[%c0_268, %c0_269] : memref<1x64xf32, #tpu.memory_space<vmem>>, vector<1x64xf32>
    %386 = vector.broadcast %385 : vector<1x64xf32> to vector<32x64xf32>
    %387 = arith.addf %384, %386 : vector<32x64xf32>
    %c0_270 = arith.constant 0 : index
    %c0_271 = arith.constant 0 : index
    %388 = vector.load %arg10[%c0_270, %c0_271] : memref<1x64xf32, #tpu.memory_space<vmem>>, vector<1x64xf32>
    %389 = vector.broadcast %388 : vector<1x64xf32> to vector<32x64xf32>
    %390 = arith.mulf %389, %387 : vector<32x64xf32>
    %391 = arith.addf %0, %390 : vector<32x64xf32>
    %c0_272 = arith.constant 0 : index
    %c0_273 = arith.constant 0 : index
    %392 = vector.load %arg11[%c0_272, %c0_273] : memref<32x64xf32, #tpu.memory_space<vmem>>, vector<32x64xf32>
    tpu.vector_store %arg11[%c0_272, %c0_273], %391 {strides = array<i32>} : memref<32x64xf32, #tpu.memory_space<vmem>>, vector<32x64xf32>,
    return
  }
}

module attributes {stable_mosaic.version = 11 : i64} {
  func.func @_head_kernel(%arg0: memref<32x64xf32, #tpu.memory_space<vmem>>, %arg1: memref<2x32xf32, #tpu.memory_space<vmem>>, %arg2: memref<1x64xf32, #tpu.memory_space<vmem>>, %arg3: memref<1x64xf32, #tpu.memory_space<vmem>>, %arg4: memref<64x64xf32, #tpu.memory_space<vmem>>, %arg5: memref<1x64xf32, #tpu.memory_space<vmem>>, %arg6: memref<64x8xf32, #tpu.memory_space<vmem>>, %arg7: memref<1x8xf32, #tpu.memory_space<vmem>>, %arg8: memref<2x8xf32, #tpu.memory_space<vmem>>) attributes {dimension_semantics = [], scalar_prefetch = 0 : i64, scratch_operands = 0 : i64, tpu.core_type = #tpu.core_type<tc>} {
    %c0 = arith.constant 0 : index
    %c0_0 = arith.constant 0 : index
    %0 = vector.load %arg1[%c0, %c0_0] : memref<2x32xf32, #tpu.memory_space<vmem>>, vector<2x32xf32>
    %c0_1 = arith.constant 0 : index
    %c0_2 = arith.constant 0 : index
    %1 = vector.load %arg0[%c0_1, %c0_2] : memref<32x64xf32, #tpu.memory_space<vmem>>, vector<32x64xf32>
    %cst = arith.constant dense<0.000000e+00> : vector<2x64xf32>
    %2 = tpu.matmul %0, %1, %cst {dimension_numbers = #tpu.dot_dimension_numbers<[1], [0], [0], [1], [0, 0, 1, 1], [], []>} : vector<2x32xf32>, vector<32x64xf32>, vector<2x64xf32> -> vector<2x64xf32>
    %c0_3 = arith.constant 0 : index
    %c0_4 = arith.constant 0 : index
    %3 = vector.load %arg2[%c0_3, %c0_4] : memref<1x64xf32, #tpu.memory_space<vmem>>, vector<1x64xf32>
    %c0_5 = arith.constant 0 : index
    %c0_6 = arith.constant 0 : index
    %4 = vector.load %arg3[%c0_5, %c0_6] : memref<1x64xf32, #tpu.memory_space<vmem>>, vector<1x64xf32>
    %cst_7 = arith.constant dense<0.000000e+00> : vector<2xf32>
    %5 = vector.multi_reduction <add>, %2, %cst_7 [1] : vector<2x64xf32> to vector<2xf32>
    %6 = vector.shape_cast %5 : vector<2xf32> to vector<2x1xf32>
    %cst_8 = arith.constant 6.400000e+01 : f32
    %7 = vector.broadcast %cst_8 : f32 to vector<2x1xf32>
    %8 = arith.divf %6, %7 : vector<2x1xf32>
    %9 = vector.broadcast %8 : vector<2x1xf32> to vector<2x64xf32>
    %10 = arith.subf %2, %9 : vector<2x64xf32>
    %11 = arith.mulf %10, %10 : vector<2x64xf32>
    %cst_9 = arith.constant dense<0.000000e+00> : vector<2xf32>
    %12 = vector.multi_reduction <add>, %11, %cst_9 [1] : vector<2x64xf32> to vector<2xf32>
    %13 = vector.shape_cast %12 : vector<2xf32> to vector<2x1xf32>
    %cst_10 = arith.constant 6.400000e+01 : f32
    %14 = vector.broadcast %cst_10 : f32 to vector<2x1xf32>
    %15 = arith.divf %13, %14 : vector<2x1xf32>
    %16 = vector.broadcast %8 : vector<2x1xf32> to vector<2x64xf32>
    %17 = arith.subf %2, %16 : vector<2x64xf32>
    %cst_11 = arith.constant 9.99999997E-7 : f32
    %18 = vector.broadcast %cst_11 : f32 to vector<2x1xf32>
    %19 = arith.addf %15, %18 : vector<2x1xf32>
    %20 = math.rsqrt %19 : vector<2x1xf32>
    %21 = vector.broadcast %20 : vector<2x1xf32> to vector<2x64xf32>
    %22 = arith.mulf %17, %21 : vector<2x64xf32>
    %23 = vector.broadcast %3 : vector<1x64xf32> to vector<2x64xf32>
    %24 = arith.mulf %22, %23 : vector<2x64xf32>
    %25 = vector.broadcast %4 : vector<1x64xf32> to vector<2x64xf32>
    %26 = arith.addf %24, %25 : vector<2x64xf32>
    %c0_12 = arith.constant 0 : index
    %c0_13 = arith.constant 0 : index
    %27 = vector.load %arg4[%c0_12, %c0_13] : memref<64x64xf32, #tpu.memory_space<vmem>>, vector<64x64xf32>
    %cst_14 = arith.constant dense<0.000000e+00> : vector<2x64xf32>
    %28 = tpu.matmul %26, %27, %cst_14 {dimension_numbers = #tpu.dot_dimension_numbers<[1], [0], [0], [1], [0, 0, 1, 1], [], []>} : vector<2x64xf32>, vector<64x64xf32>, vector<2x64xf32> -> vector<2x64xf32>
    %c0_15 = arith.constant 0 : index
    %c0_16 = arith.constant 0 : index
    %29 = vector.load %arg5[%c0_15, %c0_16] : memref<1x64xf32, #tpu.memory_space<vmem>>, vector<1x64xf32>
    %30 = vector.broadcast %29 : vector<1x64xf32> to vector<2x64xf32>
    %31 = arith.addf %28, %30 : vector<2x64xf32>
    %c0_17 = arith.constant 0 : index
    %c0_18 = arith.constant 0 : index
    %32 = vector.load %arg6[%c0_17, %c0_18] : memref<64x8xf32, #tpu.memory_space<vmem>>, vector<64x8xf32>
    %cst_19 = arith.constant dense<0.000000e+00> : vector<2x8xf32>
    %33 = tpu.matmul %31, %32, %cst_19 {dimension_numbers = #tpu.dot_dimension_numbers<[1], [0], [0], [1], [0, 0, 1, 1], [], []>} : vector<2x64xf32>, vector<64x8xf32>, vector<2x8xf32> -> vector<2x8xf32>
    %c0_20 = arith.constant 0 : index
    %c0_21 = arith.constant 0 : index
    %34 = vector.load %arg7[%c0_20, %c0_21] : memref<1x8xf32, #tpu.memory_space<vmem>>, vector<1x8xf32>
    %35 = vector.broadcast %34 : vector<1x8xf32> to vector<2x8xf32>
    %36 = arith.addf %33, %35 : vector<2x8xf32>
    %c0_22 = arith.constant 0 : index
    %c0_23 = arith.constant 0 : index
    %37 = vector.load %arg8[%c0_22, %c0_23] : memref<2x8xf32, #tpu.memory_space<vmem>>, vector<2x8xf32>
    tpu.vector_store %arg8[%c0_22, %c0_23], %36 {strides = array<i32>} : memref<2x8xf32, #tpu.memory_space<vmem>>, vector<2x8xf32>,
    return
  }
}

</mosaic_0001>

<llo_original>
// kernel: convnext_forward.7
$region0: #{convnext_forward.7}
  #allocation0 [shape = 'u32[]', space=smem, size = 0x4, offset = 0x4, fixed_abs, tag = 'smem constant byte address 0x4 - core index']
  #allocation1 [shape = 'u32[144,128]{1,0:T(1,128)}', space=vmem, size = 0x12000, scoped, tag = 'internal scratch']
  %s0 = inlined_call_operand.vmem [shape: f32[128,48], index: 0, kind: input, shape index: {}]
  %s1 = inlined_call_operand.vmem [shape: f32[48,32], index: 1, kind: input, shape index: {}]
  %s2 = inlined_call_operand.hbm [shape: f32[1,32], index: 2, kind: input, shape index: {}]
  %s3 = inlined_call_operand.hbm [shape: f32[1,32], index: 3, kind: input, shape index: {}]
  %s4 = inlined_call_operand.hbm [shape: f32[1,32], index: 4, kind: input, shape index: {}]
  %s5 = inlined_call_operand.vmem [shape: f32[128,32], index: 5, kind: output, shape index: {}]
  %s6 = sld [smem:[#allocation0]]
  $region42: #{convnext_forward.7} parent=0
    _
  %s8 = ssub.s32 1, %s6
  %s9 = scalar_select 0, %s8, %s6
  $region1: #{convnext_forward.7} parent=0
    #allocation2 [shape = 'u8[512]{0}', space=vmem, size = 0x400, scoped, tag = 'input window, operand 2, single buffered']
    #allocation3 [shape = 's32[1]{0}', space=sflag, size = 0x4, scoped, tag = 'scoped memory for convnext_forward.7']
    #allocation4 [shape = 'u8[512]{0}', space=vmem, size = 0x400, scoped, tag = 'input window, operand 3, single buffered']
    #allocation5 [shape = 's32[1]{0}', space=sflag, size = 0x4, scoped, tag = 'scoped memory for convnext_forward.7']
    #allocation6 [shape = 'u8[512]{0}', space=vmem, size = 0x400, scoped, tag = 'input window, operand 4, single buffered']
    %10 = vsyncpa [#allocation3], 0
    %11 = vsyncpa [#allocation5], 0
    // Predicated region
    $region2: #{convnext_forward.7} parent=1 // pred_check
      _
    $region3: #{convnext_forward.7} parent=1 // pred_check_branch
      %13 = sbr.rel (0) target = $region5
    $region4: #{convnext_forward.7} parent=1 // pred_region
      _
    $region5: #{convnext_forward.7} parent=1 // pred_fallthru
      _
    // Predicated region
    $region6: #{convnext_forward.7} parent=1 // pred_check
      _
    $region7: #{convnext_forward.7} parent=1 // pred_check_branch
      %15 = sbr.rel (0) target = $region9
    $region8: #{convnext_forward.7} parent=1 // pred_region
      _
    $region9: #{convnext_forward.7} parent=1 // pred_fallthru
      _
    // Predicated region
    $region10: #{convnext_forward.7} parent=1 // pred_check
      _
    $region11: #{convnext_forward.7} parent=1 // pred_check_branch
      %17 = sbr.rel (0) target = $region13
    $region12: #{convnext_forward.7} parent=1 // pred_region
      %s19 = ssub.s32 16, 16
      %20 = vsyncadd [#allocation3], %s19
      %s22 = sshll.u32 [#allocation2], 4
      %s23 = int_to_ptr.vmem [resolvable:$true] %s22
      %25 = dma.hbm_to_vmem [thread:$0]  %s2, 16, %s23, [#allocation3]
    $region13: #{convnext_forward.7} parent=1 // pred_fallthru
      _
    // Predicated region
    $region14: #{convnext_forward.7} parent=1 // pred_check
      _
    $region15: #{convnext_forward.7} parent=1 // pred_check_branch
      %27 = sbr.rel (0) target = $region17
    $region16: #{convnext_forward.7} parent=1 // pred_region
      %s29 = ssub.s32 16, 16
      %30 = vsyncadd [#allocation5], %s29
      %s32 = sshll.u32 [#allocation4], 4
      %s33 = int_to_ptr.vmem [resolvable:$true] %s32
      %35 = dma.hbm_to_vmem [thread:$0]  %s3, 16, %s33, [#allocation5]
    $region17: #{convnext_forward.7} parent=1 // pred_fallthru
      _
    // Predicated region
    $region18: #{convnext_forward.7} parent=1 // pred_check
      _
    $region19: #{convnext_forward.7} parent=1 // pred_check_branch
      %37 = sbr.rel (0) target = $region21
    $region20: #{convnext_forward.7} parent=1 // pred_region
      %s39 = ssub.s32 16, 16
      %40 = vsyncadd [#allocation5], %s39
      %s42 = sshll.u32 [#allocation6], 4
      %s43 = int_to_ptr.vmem [resolvable:$true] %s42
      %45 = dma.hbm_to_vmem [thread:$0]  %s4, 16, %s43, [#allocation5]
    $region21: #{convnext_forward.7} parent=1 // pred_fallthru
      _
    // Predicated region
    $region22: #{convnext_forward.7} parent=1 // pred_check
      _
    $region23: #{convnext_forward.7} parent=1 // pred_check_branch
      %47 = sbr.rel (0) target = $region25
    $region24: #{convnext_forward.7} parent=1 // pred_region
      %48 = dma.done [#allocation3], 16
    $region25: #{convnext_forward.7} parent=1 // pred_fallthru
      _
    // Predicated region
    $region26: #{convnext_forward.7} parent=1 // pred_check
      _
    $region27: #{convnext_forward.7} parent=1 // pred_check_branch
      %50 = sbr.rel (0) target = $region29
    $region28: #{convnext_forward.7} parent=1 // pred_region
      %51 = dma.done [#allocation5], 16
    $region29: #{convnext_forward.7} parent=1 // pred_fallthru
      _
    // Predicated region
    $region30: #{convnext_forward.7} parent=1 // pred_check
      _
    $region31: #{convnext_forward.7} parent=1 // pred_check_branch
      %53 = sbr.rel (0) target = $region33
    $region32: #{convnext_forward.7} parent=1 // pred_region
      %54 = dma.done [#allocation5], 16
    $region33: #{convnext_forward.7} parent=1 // pred_fallthru
      _
    %v55 = vld [vmem:[%s0] sm:$0xff]
    %v56 = vld [vmem:[%s0 + $0x8] sm:$0xff]
    %v57 = vld [vmem:[%s0 + $0x10] sm:$0xff]
    %v58 = vld [vmem:[%s0 + $0x18] sm:$0xff]
    %v59 = vld [vmem:[%s0 + $0x20] sm:$0xff]
    %v60 = vld [vmem:[%s0 + $0x28] sm:$0xff]
    %v61 = vld [vmem:[%s0 + $0x30] sm:$0xff]
    %v62 = vld [vmem:[%s0 + $0x38] sm:$0xff]
    %v63 = vld [vmem:[%s0 + $0x40] sm:$0xff]
    %v64 = vld [vmem:[%s0 + $0x48] sm:$0xff]
    %v65 = vld [vmem:[%s0 + $0x50] sm:$0xff]
    %v66 = vld [vmem:[%s0 + $0x58] sm:$0xff]
    %v67 = vld [vmem:[%s0 + $0x60] sm:$0xff]
    %v68 = vld [vmem:[%s0 + $0x68] sm:$0xff]
    %v69 = vld [vmem:[%s0 + $0x70] sm:$0xff]
    %v70 = vld [vmem:[%s0 + $0x78] sm:$0xff]
    %v71 = vld [vmem:[%s1] sm:$0xff]
    %v72 = vld [vmem:[%s1 + $0x8] sm:$0xff]
    %v73 = vld [vmem:[%s1 + $0x10] sm:$0xff]
    %v74 = vld [vmem:[%s1 + $0x18] sm:$0xff]
    %v75 = vld [vmem:[%s1 + $0x20] sm:$0xff]
    %v76 = vld [vmem:[%s1 + $0x28] sm:$0xff]
    %v77 = vld [vmem:[#allocation2] sm:$0x1]
    %v79 = vlaneseq
    %v80 = vshrl.u32 %v79, 7
    %v81 = vsub.s32 0, %v80
    %v82 = vrot.slane %v77, %v81
    %vm84 = vcmask 392192
    %v86 = vsel %vm84, %v55, 0
    %v89 = vsel %vm84, %v56, 0
    %v92 = vsel %vm84, %v57, 0
    %v95 = vsel %vm84, %v58, 0
    %v98 = vsel %vm84, %v59, 0
    %v101 = vsel %vm84, %v60, 0
    %v104 = vsel %vm84, %v61, 0
    %v107 = vsel %vm84, %v62, 0
    %v110 = vsel %vm84, %v63, 0
    %v113 = vsel %vm84, %v64, 0
    %v116 = vsel %vm84, %v65, 0
    %v119 = vsel %vm84, %v66, 0
    %v122 = vsel %vm84, %v67, 0
    %v125 = vsel %vm84, %v68, 0
    %v128 = vsel %vm84, %v69, 0
    %v131 = vsel %vm84, %v70, 0
    %133 = vmatprep.subr.mxu0 0.0
    %134 = vmatpush1.msra.mxu0 0.0
    %135 = vmatprep.subr.mxu0 0.0
    %136 = vmatpush1.msra.mxu0 0.0
    %137 = vmatprep.subr.mxu0 0.0
    %138 = vmatpush1.msra.mxu0 0.0
    %139 = vmatprep.subr.mxu0 0.0
    %140 = vmatpush1.msra.mxu0 0.0
    %141 = vmatprep.subr.mxu0 0.0
    %142 = vmatpush1.msra.mxu0 0.0
    %143 = vmatprep.subr.mxu0 0.0
    %144 = vmatpush1.msra.mxu0 0.0
    %145 = vmatprep.subr.mxu0 0.0
    %146 = vmatpush1.msra.mxu0 0.0
    %147 = vmatprep.subr.mxu0 0.0
    %148 = vmatpush1.msra.mxu0 0.0
    %149 = vmatprep.subr.mxu0 0.0
    %150 = vmatpush1.msra.mxu0 0.0
    %151 = vmatprep.subr.mxu0 0.0
    %152 = vmatpush1.msra.mxu0 0.0
    %153 = vmatprep.subr.mxu0 0.0
    %154 = vmatpush1.msra.mxu0 %v76
    %155 = vmatprep.subr.mxu0 0.0
    %156 = vmatpush1.msra.mxu0 %v75
    %157 = vmatprep.subr.mxu0 0.0
    %158 = vmatpush1.msra.mxu0 %v74
    %159 = vmatprep.subr.mxu0 0.0
    %160 = vmatpush1.msra.mxu0 %v73
    %161 = vmatprep.subr.mxu0 0.0
    %162 = vmatpush1.msra.mxu0 %v72
    %163 = vmatprep.subr.mxu0 0.0
    %164 = vmatpush1.msra.mxu0 %v71
    %165 = vmatprep.subr.mxu0 0.0
    %166 = vmatpush2.msra.mxu0 0.0
    %167 = vmatprep.subr.mxu0 0.0
    %168 = vmatpush2.msra.mxu0 0.0
    %169 = vmatprep.subr.mxu0 0.0
    %170 = vmatpush2.msra.mxu0 0.0
    %171 = vmatprep.subr.mxu0 0.0
    %172 = vmatpush2.msra.mxu0 0.0
    %173 = vmatprep.subr.mxu0 0.0
    %174 = vmatpush2.msra.mxu0 0.0
    %175 = vmatprep.subr.mxu0 0.0
    %176 = vmatpush2.msra.mxu0 0.0
    %177 = vmatprep.subr.mxu0 0.0
    %178 = vmatpush2.msra.mxu0 0.0
    %179 = vmatprep.subr.mxu0 0.0
    %180 = vmatpush2.msra.mxu0 0.0
    %181 = vmatprep.subr.mxu0 0.0
    %182 = vmatpush2.msra.mxu0 0.0
    %183 = vmatprep.subr.mxu0 0.0
    %184 = vmatpush2.msra.mxu0 0.0
    %185 = vmatprep.subr.mxu0 0.0
    %186 = vmatpush2.msra.mxu0 0.0
    %187 = vmatprep.subr.mxu0 0.0
    %188 = vmatpush2.msra.mxu0 0.0
    %189 = vmatprep.subr.mxu0 0.0
    %190 = vmatpush2.msra.mxu0 0.0
    %191 = vmatprep.subr.mxu0 0.0
    %192 = vmatpush2.msra.mxu0 0.0
    %193 = vmatprep.subr.mxu0 0.0
    %194 = vmatpush2.msra.mxu0 0.0
    %195 = vmatprep.subr.mxu0 0.0
    %196 = vmatpush2.msra.mxu0 0.0
    %197 = vmatprep.mubr.f32.mxu0 0.0
    %198 = vmatmul.mubr.f32.gmra.mxu0 %v86
    %v199 = vpop.f32.mrf.mxu0
    %v200 = vadd.f32 %v82, %v199
    %v201 = vpop.f32.mrf.mxu0
    %202 = vmatprep.mubr.f32.mxu0 0.0
    %203 = vmatmul.mubr.f32.gmra.mxu0 %v89
    %v204 = vpop.f32.mrf.mxu0
    %v205 = vadd.f32 %v82, %v204
    %v206 = vpop.f32.mrf.mxu0
    %207 = vmatprep.mubr.f32.mxu0 0.0
    %208 = vmatmul.mubr.f32.gmra.mxu0 %v92
    %v209 = vpop.f32.mrf.mxu0
    %v210 = vadd.f32 %v82, %v209
    %v211 = vpop.f32.mrf.mxu0
    %212 = vmatprep.mubr.f32.mxu0 0.0
    %213 = vmatmul.mubr.f32.gmra.mxu0 %v95
    %v214 = vpop.f32.mrf.mxu0
    %v215 = vadd.f32 %v82, %v214
    %v216 = vpop.f32.mrf.mxu0
    %217 = vmatprep.mubr.f32.mxu0 0.0
    %218 = vmatmul.mubr.f32.gmra.mxu0 %v98
    %v219 = vpop.f32.mrf.mxu0
    %v220 = vadd.f32 %v82, %v219
    %v221 = vpop.f32.mrf.mxu0
    %222 = vmatprep.mubr.f32.mxu0 0.0
    %223 = vmatmul.mubr.f32.gmra.mxu0 %v101
    %v224 = vpop.f32.mrf.mxu0
    %v225 = vadd.f32 %v82, %v224
    %v226 = vpop.f32.mrf.mxu0
    %227 = vmatprep.mubr.f32.mxu0 0.0
    %228 = vmatmul.mubr.f32.gmra.mxu0 %v104
    %v229 = vpop.f32.mrf.mxu0
    %v230 = vadd.f32 %v82, %v229
    %v231 = vpop.f32.mrf.mxu0
    %232 = vmatprep.mubr.f32.mxu0 0.0
    %233 = vmatmul.mubr.f32.gmra.mxu0 %v107
    %v234 = vpop.f32.mrf.mxu0
    %v235 = vadd.f32 %v82, %v234
    %v236 = vpop.f32.mrf.mxu0
    %237 = vmatprep.mubr.f32.mxu0 0.0
    %238 = vmatmul.mubr.f32.gmra.mxu0 %v110
    %v239 = vpop.f32.mrf.mxu0
    %v240 = vadd.f32 %v82, %v239
    %v241 = vpop.f32.mrf.mxu0
    %242 = vmatprep.mubr.f32.mxu0 0.0
    %243 = vmatmul.mubr.f32.gmra.mxu0 %v113
    %v244 = vpop.f32.mrf.mxu0
    %v245 = vadd.f32 %v82, %v244
    %v246 = vpop.f32.mrf.mxu0
    %247 = vmatprep.mubr.f32.mxu0 0.0
    %248 = vmatmul.mubr.f32.gmra.mxu0 %v116
    %v249 = vpop.f32.mrf.mxu0
    %v250 = vadd.f32 %v82, %v249
    %v251 = vpop.f32.mrf.mxu0
    %252 = vmatprep.mubr.f32.mxu0 0.0
    %253 = vmatmul.mubr.f32.gmra.mxu0 %v119
    %v254 = vpop.f32.mrf.mxu0
    %v255 = vadd.f32 %v82, %v254
    %v256 = vpop.f32.mrf.mxu0
    %257 = vmatprep.mubr.f32.mxu0 0.0
    %258 = vmatmul.mubr.f32.gmra.mxu0 %v122
    %v259 = vpop.f32.mrf.mxu0
    %v260 = vadd.f32 %v82, %v259
    %v261 = vpop.f32.mrf.mxu0
    %262 = vmatprep.mubr.f32.mxu0 0.0
    %263 = vmatmul.mubr.f32.gmra.mxu0 %v125
    %v264 = vpop.f32.mrf.mxu0
    %v265 = vadd.f32 %v82, %v264
    %v266 = vpop.f32.mrf.mxu0
    %267 = vmatprep.mubr.f32.mxu0 0.0
    %268 = vmatmul.mubr.f32.gmra.mxu0 %v128
    %v269 = vpop.f32.mrf.mxu0
    %v270 = vadd.f32 %v82, %v269
    %v271 = vpop.f32.mrf.mxu0
    %272 = vmatprep.mubr.f32.mxu0 0.0
    %273 = vmatmul.mubr.f32.gmra.mxu0 %v131
    %v274 = vpop.f32.mrf.mxu0
    %v275 = vadd.f32 %v82, %v274
    %v276 = vpop.f32.mrf.mxu0
    %277 = vdwg.mxu0
    %v278 = vld [vmem:[#allocation4] sm:$0x1]
    %v279 = vld [vmem:[#allocation6] sm:$0x1]
    %vm280 = vcmask 261120
    %v281 = vsel %vm280, %v200, 0.0
    %282 = vadd.xlane.f32.xlu0 %v281
    %v283 = vpop.xlane.xlu0 %282
    %v284 = vsel %vm280, %v205, 0.0
    %285 = vadd.xlane.f32.xlu0 %v284
    %v286 = vpop.xlane.xlu0 %285
    %v287 = vsel %vm280, %v210, 0.0
    %288 = vadd.xlane.f32.xlu0 %v287
    %v289 = vpop.xlane.xlu0 %288
    %v290 = vsel %vm280, %v215, 0.0
    %291 = vadd.xlane.f32.xlu0 %v290
    %v292 = vpop.xlane.xlu0 %291
    %v293 = vsel %vm280, %v220, 0.0
    %294 = vadd.xlane.f32.xlu0 %v293
    %v295 = vpop.xlane.xlu0 %294
    %v296 = vsel %vm280, %v225, 0.0
    %297 = vadd.xlane.f32.xlu0 %v296
    %v298 = vpop.xlane.xlu0 %297
    %v299 = vsel %vm280, %v230, 0.0
    %300 = vadd.xlane.f32.xlu0 %v299
    %v301 = vpop.xlane.xlu0 %300
    %v302 = vsel %vm280, %v235, 0.0
    %303 = vadd.xlane.f32.xlu0 %v302
    %v304 = vpop.xlane.xlu0 %303
    %v305 = vsel %vm280, %v240, 0.0
    %306 = vadd.xlane.f32.xlu0 %v305
    %v307 = vpop.xlane.xlu0 %306
    %v308 = vsel %vm280, %v245, 0.0
    %309 = vadd.xlane.f32.xlu0 %v308
    %v310 = vpop.xlane.xlu0 %309
    %v311 = vsel %vm280, %v250, 0.0
    %312 = vadd.xlane.f32.xlu0 %v311
    %v313 = vpop.xlane.xlu0 %312
    %v314 = vsel %vm280, %v255, 0.0
    %315 = vadd.xlane.f32.xlu0 %v314
    %v316 = vpop.xlane.xlu0 %315
    %v317 = vsel %vm280, %v260, 0.0
    %318 = vadd.xlane.f32.xlu0 %v317
    %v319 = vpop.xlane.xlu0 %318
    %v320 = vsel %vm280, %v265, 0.0
    %321 = vadd.xlane.f32.xlu0 %v320
    %v322 = vpop.xlane.xlu0 %321
    %v323 = vsel %vm280, %v270, 0.0
    %324 = vadd.xlane.f32.xlu0 %v323
    %v325 = vpop.xlane.xlu0 %324
    %v326 = vsel %vm280, %v275, 0.0
    %327 = vadd.xlane.f32.xlu0 %v326
    %v328 = vpop.xlane.xlu0 %327
    %v329 = vrcp.pop 32.0
    %v330 = vmul.f32 %v283, %v329
    %v331 = vmul.f32 %v286, %v329
    %v332 = vmul.f32 %v289, %v329
    %v333 = vmul.f32 %v292, %v329
    %v334 = vmul.f32 %v295, %v329
    %v335 = vmul.f32 %v298, %v329
    %v336 = vmul.f32 %v301, %v329
    %v337 = vmul.f32 %v304, %v329
    %v338 = vmul.f32 %v307, %v329
    %v339 = vmul.f32 %v310, %v329
    %v340 = vmul.f32 %v313, %v329
    %v341 = vmul.f32 %v316, %v329
    %v342 = vmul.f32 %v319, %v329
    %v343 = vmul.f32 %v322, %v329
    %v344 = vmul.f32 %v325, %v329
    %v345 = vmul.f32 %v328, %v329
    %v346 = vsub.f32 %v200, %v330
    %v347 = vsub.f32 %v205, %v331
    %v348 = vsub.f32 %v210, %v332
    %v349 = vsub.f32 %v215, %v333
    %v350 = vsub.f32 %v220, %v334
    %v351 = vsub.f32 %v225, %v335
    %v352 = vsub.f32 %v230, %v336
    %v353 = vsub.f32 %v235, %v337
    %v354 = vsub.f32 %v240, %v338
    %v355 = vsub.f32 %v245, %v339
    %v356 = vsub.f32 %v250, %v340
    %v357 = vsub.f32 %v255, %v341
    %v358 = vsub.f32 %v260, %v342
    %v359 = vsub.f32 %v265, %v343
    %v360 = vsub.f32 %v270, %v344
    %v361 = vsub.f32 %v275, %v345
    %v362 = vmul.f32 %v346, %v346
    %v363 = vmul.f32 %v347, %v347
    %v364 = vmul.f32 %v348, %v348
    %v365 = vmul.f32 %v349, %v349
    %v366 = vmul.f32 %v350, %v350
    %v367 = vmul.f32 %v351, %v351
    %v368 = vmul.f32 %v352, %v352
    %v369 = vmul.f32 %v353, %v353
    %v370 = vmul.f32 %v354, %v354
    %v371 = vmul.f32 %v355, %v355
    %v372 = vmul.f32 %v356, %v356
    %v373 = vmul.f32 %v357, %v357
    %v374 = vmul.f32 %v358, %v358
    %v375 = vmul.f32 %v359, %v359
    %v376 = vmul.f32 %v360, %v360
    %v377 = vmul.f32 %v361, %v361
    %v378 = vsel %vm280, %v362, 0.0
    %379 = vadd.xlane.f32.xlu0 %v378
    %v380 = vpop.xlane.xlu0 %379
    %v381 = vsel %vm280, %v363, 0.0
    %382 = vadd.xlane.f32.xlu0 %v381
    %v383 = vpop.xlane.xlu0 %382
    %v384 = vsel %vm280, %v364, 0.0
    %385 = vadd.xlane.f32.xlu0 %v384
    %v386 = vpop.xlane.xlu0 %385
    %v387 = vsel %vm280, %v365, 0.0
    %388 = vadd.xlane.f32.xlu0 %v387
    %v389 = vpop.xlane.xlu0 %388
    %v390 = vsel %vm280, %v366, 0.0
    %391 = vadd.xlane.f32.xlu0 %v390
    %v392 = vpop.xlane.xlu0 %391
    %v393 = vsel %vm280, %v367, 0.0
    %394 = vadd.xlane.f32.xlu0 %v393
    %v395 = vpop.xlane.xlu0 %394
    %v396 = vsel %vm280, %v368, 0.0
    %397 = vadd.xlane.f32.xlu0 %v396
    %v398 = vpop.xlane.xlu0 %397
    %v399 = vsel %vm280, %v369, 0.0
    %400 = vadd.xlane.f32.xlu0 %v399
    %v401 = vpop.xlane.xlu0 %400
    %v402 = vsel %vm280, %v370, 0.0
    %403 = vadd.xlane.f32.xlu0 %v402
    %v404 = vpop.xlane.xlu0 %403
    %v405 = vsel %vm280, %v371, 0.0
    %406 = vadd.xlane.f32.xlu0 %v405
    %v407 = vpop.xlane.xlu0 %406
    %v408 = vsel %vm280, %v372, 0.0
    %409 = vadd.xlane.f32.xlu0 %v408
    %v410 = vpop.xlane.xlu0 %409
    %v411 = vsel %vm280, %v373, 0.0
    %412 = vadd.xlane.f32.xlu0 %v411
    %v413 = vpop.xlane.xlu0 %412
    %v414 = vsel %vm280, %v374, 0.0
    %415 = vadd.xlane.f32.xlu0 %v414
    %v416 = vpop.xlane.xlu0 %415
    %v417 = vsel %vm280, %v375, 0.0
    %418 = vadd.xlane.f32.xlu0 %v417
    %v419 = vpop.xlane.xlu0 %418
    %v420 = vsel %vm280, %v376, 0.0
    %421 = vadd.xlane.f32.xlu0 %v420
    %v422 = vpop.xlane.xlu0 %421
    %v423 = vsel %vm280, %v377, 0.0
    %424 = vadd.xlane.f32.xlu0 %v423
    %v425 = vpop.xlane.xlu0 %424
    %v426 = vmul.f32 %v380, %v329
    %v427 = vmul.f32 %v383, %v329
    %v428 = vmul.f32 %v386, %v329
    %v429 = vmul.f32 %v389, %v329
    %v430 = vmul.f32 %v392, %v329
    %v431 = vmul.f32 %v395, %v329
    %v432 = vmul.f32 %v398, %v329
    %v433 = vmul.f32 %v401, %v329
    %v434 = vmul.f32 %v404, %v329
    %v435 = vmul.f32 %v407, %v329
    %v436 = vmul.f32 %v410, %v329
    %v437 = vmul.f32 %v413, %v329
    %v438 = vmul.f32 %v416, %v329
    %v439 = vmul.f32 %v419, %v329
    %v440 = vmul.f32 %v422, %v329
    %v441 = vmul.f32 %v425, %v329
    %v442 = vadd.f32 %v426, 1e-06
    %v443 = vadd.f32 %v427, 1e-06
    %v444 = vadd.f32 %v428, 1e-06
    %v445 = vadd.f32 %v429, 1e-06
    %v446 = vadd.f32 %v430, 1e-06
    %v447 = vadd.f32 %v431, 1e-06
    %v448 = vadd.f32 %v432, 1e-06
    %v449 = vadd.f32 %v433, 1e-06
    %v450 = vadd.f32 %v434, 1e-06
    %v451 = vadd.f32 %v435, 1e-06
    %v452 = vadd.f32 %v436, 1e-06
    %v453 = vadd.f32 %v437, 1e-06
    %v454 = vadd.f32 %v438, 1e-06
    %v455 = vadd.f32 %v439, 1e-06
    %v456 = vadd.f32 %v440, 1e-06
    %v457 = vadd.f32 %v441, 1e-06
    %v458 = vrsqrt.pop %v442
    %v459 = vrsqrt.pop %v443
    %v460 = vrsqrt.pop %v444
    %v461 = vrsqrt.pop %v445
    %v462 = vrsqrt.pop %v446
    %v463 = vrsqrt.pop %v447
    %v464 = vrsqrt.pop %v448
    %v465 = vrsqrt.pop %v449
    %v466 = vrsqrt.pop %v450
    %v467 = vrsqrt.pop %v451
    %v468 = vrsqrt.pop %v452
    %v469 = vrsqrt.pop %v453
    %v470 = vrsqrt.pop %v454
    %v471 = vrsqrt.pop %v455
    %v472 = vrsqrt.pop %v456
    %v473 = vrsqrt.pop %v457
    %v474 = vmul.f32 %v346, %v458
    %v475 = vmul.f32 %v347, %v459
    %v476 = vmul.f32 %v348, %v460
    %v477 = vmul.f32 %v349, %v461
    %v478 = vmul.f32 %v350, %v462
    %v479 = vmul.f32 %v351, %v463
    %v480 = vmul.f32 %v352, %v464
    %v481 = vmul.f32 %v353, %v465
    %v482 = vmul.f32 %v354, %v466
    %v483 = vmul.f32 %v355, %v467
    %v484 = vmul.f32 %v356, %v468
    %v485 = vmul.f32 %v357, %v469
    %v486 = vmul.f32 %v358, %v470
    %v487 = vmul.f32 %v359, %v471
    %v488 = vmul.f32 %v360, %v472
    %v489 = vmul.f32 %v361, %v473
    %v491 = vlaneseq
    %v492 = vshrl.u32 %v491, 7
    %v493 = vsub.s32 0, %v492
    %v494 = vrot.slane %v278, %v493
    %v496 = vmul.f32 %v474, %v494
    %v497 = vmul.f32 %v475, %v494
    %v498 = vmul.f32 %v476, %v494
    %v499 = vmul.f32 %v477, %v494
    %v500 = vmul.f32 %v478, %v494
    %v501 = vmul.f32 %v479, %v494
    %v502 = vmul.f32 %v480, %v494
    %v503 = vmul.f32 %v481, %v494
    %v504 = vmul.f32 %v482, %v494
    %v505 = vmul.f32 %v483, %v494
    %v506 = vmul.f32 %v484, %v494
    %v507 = vmul.f32 %v485, %v494
    %v508 = vmul.f32 %v486, %v494
    %v509 = vmul.f32 %v487, %v494
    %v510 = vmul.f32 %v488, %v494
    %v511 = vmul.f32 %v489, %v494
    %v513 = vlaneseq
    %v514 = vshrl.u32 %v513, 7
    %v515 = vsub.s32 0, %v514
    %v516 = vrot.slane %v279, %v515
    %v518 = vadd.f32 %v496, %v516
    %v519 = vadd.f32 %v497, %v516
    %v520 = vadd.f32 %v498, %v516
    %v521 = vadd.f32 %v499, %v516
    %v522 = vadd.f32 %v500, %v516
    %v523 = vadd.f32 %v501, %v516
    %v524 = vadd.f32 %v502, %v516
    %v525 = vadd.f32 %v503, %v516
    %v526 = vadd.f32 %v504, %v516
    %v527 = vadd.f32 %v505, %v516
    %v528 = vadd.f32 %v506, %v516
    %v529 = vadd.f32 %v507, %v516
    %v530 = vadd.f32 %v508, %v516
    %v531 = vadd.f32 %v509, %v516
    %v532 = vadd.f32 %v510, %v516
    %v533 = vadd.f32 %v511, %v516
    %534 = vst.msk [vmem:[%s5] sm:$0xff] %vm280, %v518
    %535 = vst.msk [vmem:[%s5 + $0x8] sm:$0xff] %vm280, %v519
    %536 = vst.msk [vmem:[%s5 + $0x10] sm:$0xff] %vm280, %v520
    %537 = vst.msk [vmem:[%s5 + $0x18] sm:$0xff] %vm280, %v521
    %538 = vst.msk [vmem:[%s5 + $0x20] sm:$0xff] %vm280, %v522
    %539 = vst.msk [vmem:[%s5 + $0x28] sm:$0xff] %vm280, %v523
    %540 = vst.msk [vmem:[%s5 + $0x30] sm:$0xff] %vm280, %v524
    %541 = vst.msk [vmem:[%s5 + $0x38] sm:$0xff] %vm280, %v525
    %542 = vst.msk [vmem:[%s5 + $0x40] sm:$0xff] %vm280, %v526
    %543 = vst.msk [vmem:[%s5 + $0x48] sm:$0xff] %vm280, %v527
    %544 = vst.msk [vmem:[%s5 + $0x50] sm:$0xff] %vm280, %v528
    %545 = vst.msk [vmem:[%s5 + $0x58] sm:$0xff] %vm280, %v529
    %546 = vst.msk [vmem:[%s5 + $0x60] sm:$0xff] %vm280, %v530
    %547 = vst.msk [vmem:[%s5 + $0x68] sm:$0xff] %vm280, %v531
    %548 = vst.msk [vmem:[%s5 + $0x70] sm:$0xff] %vm280, %v532
    %549 = vst.msk [vmem:[%s5 + $0x78] sm:$0xff] %vm280, %v533
    // Predicated region
    $region34: #{convnext_forward.7} parent=1 // pred_check
      _
    $region35: #{convnext_forward.7} parent=1 // pred_check_branch
      %551 = sbr.rel (0) target = $region37
    $region36: #{convnext_forward.7} parent=1 // pred_region
      _
    $region37: #{convnext_forward.7} parent=1 // pred_fallthru
      _
    // Predicated region
    $region38: #{convnext_forward.7} parent=1 // pred_check
      _
    $region39: #{convnext_forward.7} parent=1 // pred_check_branch
      %553 = sbr.rel (0) target = $region41
    $region40: #{convnext_forward.7} parent=1 // pred_region
      _
    $region41: #{convnext_forward.7} parent=1 // pred_fallthru
      _
    %554 = vsyncpa [#allocation3], 1
    %555 = vsyncpa [#allocation5], 1

// kernel: convnext_forward.10
$region0: #{convnext_forward.10}
  #allocation0 [shape = 'u32[]', space=smem, size = 0x4, offset = 0x4, fixed_abs, tag = 'smem constant byte address 0x4 - core index']
  #allocation1 [shape = 'u32[144,128]{1,0:T(1,128)}', space=vmem, size = 0x12000, scoped, tag = 'internal scratch']
  %s0 = inlined_call_operand.vmem [shape: f32[4,32,32], index: 0, kind: input, shape index: {}]
  %s1 = inlined_call_operand.vmem [shape: f32[1,32], index: 1, kind: input, shape index: {}]
  %s2 = inlined_call_operand.vmem [shape: f32[1,32], index: 2, kind: input, shape index: {}]
  %s3 = inlined_call_operand.vmem [shape: f32[4,32,64], index: 3, kind: input, shape index: {}]
  %s4 = inlined_call_operand.vmem [shape: f32[1,64], index: 4, kind: input, shape index: {}]
  %s5 = inlined_call_operand.vmem [shape: f32[32,64], index: 5, kind: output, shape index: {}]
  %s6 = sld [smem:[#allocation0]]
  $region30: #{convnext_forward.10} parent=0
    _
  %s8 = ssub.s32 1, %s6
  %s9 = scalar_select 0, %s8, %s6
  // Predicated region
  $region2: #{convnext_forward.10} parent=0 // pred_check
    _
  $region3: #{convnext_forward.10} parent=0 // pred_check_branch
    %11 = sbr.rel (0) target = $region5
  $region4: #{convnext_forward.10} parent=0 // pred_region
    _
  $region5: #{convnext_forward.10} parent=0 // pred_fallthru
    _
  // Predicated region
  $region6: #{convnext_forward.10} parent=0 // pred_check
    _
  $region7: #{convnext_forward.10} parent=0 // pred_check_branch
    %13 = sbr.rel (0) target = $region9
  $region8: #{convnext_forward.10} parent=0 // pred_region
    _
  $region9: #{convnext_forward.10} parent=0 // pred_fallthru
    _
  // Predicated region
  $region10: #{convnext_forward.10} parent=0 // pred_check
    _
  $region11: #{convnext_forward.10} parent=0 // pred_check_branch
    %15 = sbr.rel (0) target = $region13
  $region12: #{convnext_forward.10} parent=0 // pred_region
    _
  $region13: #{convnext_forward.10} parent=0 // pred_fallthru
    _
  // Predicated region
  $region14: #{convnext_forward.10} parent=0 // pred_check
    _
  $region15: #{convnext_forward.10} parent=0 // pred_check_branch
    %17 = sbr.rel (0) target = $region17
  $region16: #{convnext_forward.10} parent=0 // pred_region
    _
  $region17: #{convnext_forward.10} parent=0 // pred_fallthru
    _
  // Predicated region
  $region18: #{convnext_forward.10} parent=0 // pred_check
    _
  $region19: #{convnext_forward.10} parent=0 // pred_check_branch
    %19 = sbr.rel (0) target = $region21
  $region20: #{convnext_forward.10} parent=0 // pred_region
    _
  $region21: #{convnext_forward.10} parent=0 // pred_fallthru
    _
  %v20 = vld [vmem:[%s0] sm:$0xff]
  %v21 = vld [vmem:[%s0 + $0x8] sm:$0xff]
  %v22 = vld [vmem:[%s0 + $0x10] sm:$0xff]
  %v23 = vld [vmem:[%s0 + $0x18] sm:$0xff]
  %v24 = vld [vmem:[%s1] sm:$0x1]
  %v25 = vld [vmem:[%s2] sm:$0x1]
  %vm26 = vcmask 261120
  %v27 = vsel %vm26, %v20, 0.0
  %28 = vadd.xlane.f32.xlu0 %v27
  %v29 = vpop.xlane.xlu0 %28
  %v30 = vsel %vm26, %v21, 0.0
  %31 = vadd.xlane.f32.xlu0 %v30
  %v32 = vpop.xlane.xlu0 %31
  %v33 = vsel %vm26, %v22, 0.0
  %34 = vadd.xlane.f32.xlu0 %v33
  %v35 = vpop.xlane.xlu0 %34
  %v36 = vsel %vm26, %v23, 0.0
  %37 = vadd.xlane.f32.xlu0 %v36
  %v38 = vpop.xlane.xlu0 %37
  %v39 = vrcp.pop 32.0
  %v40 = vmul.f32 %v29, %v39
  %v41 = vmul.f32 %v32, %v39
  %v42 = vmul.f32 %v35, %v39
  %v43 = vmul.f32 %v38, %v39
  %v44 = vsub.f32 %v20, %v40
  %v45 = vsub.f32 %v21, %v41
  %v46 = vsub.f32 %v22, %v42
  %v47 = vsub.f32 %v23, %v43
  %v48 = vmul.f32 %v44, %v44
  %v49 = vmul.f32 %v45, %v45
  %v50 = vmul.f32 %v46, %v46
  %v51 = vmul.f32 %v47, %v47
  %v52 = vsel %vm26, %v48, 0.0
  %53 = vadd.xlane.f32.xlu0 %v52
  %v54 = vpop.xlane.xlu0 %53
  %v55 = vsel %vm26, %v49, 0.0
  %56 = vadd.xlane.f32.xlu0 %v55
  %v57 = vpop.xlane.xlu0 %56
  %v58 = vsel %vm26, %v50, 0.0
  %59 = vadd.xlane.f32.xlu0 %v58
  %v60 = vpop.xlane.xlu0 %59
  %v61 = vsel %vm26, %v51, 0.0
  %62 = vadd.xlane.f32.xlu0 %v61
  %v63 = vpop.xlane.xlu0 %62
  %v64 = vmul.f32 %v54, %v39
  %v65 = vmul.f32 %v57, %v39
  %v66 = vmul.f32 %v60, %v39
  %v67 = vmul.f32 %v63, %v39
  %v68 = vadd.f32 %v64, 1e-06
  %v69 = vadd.f32 %v65, 1e-06
  %v70 = vadd.f32 %v66, 1e-06
  %v71 = vadd.f32 %v67, 1e-06
  %v72 = vrsqrt.pop %v68
  %v73 = vrsqrt.pop %v69
  %v74 = vrsqrt.pop %v70
  %v75 = vrsqrt.pop %v71
  %v76 = vmul.f32 %v44, %v72
  %v77 = vmul.f32 %v45, %v73
  %v78 = vmul.f32 %v46, %v74
  %v79 = vmul.f32 %v47, %v75
  %v81 = vlaneseq
  %v82 = vshrl.u32 %v81, 7
  %v83 = vsub.s32 0, %v82
  %v84 = vrot.slane %v24, %v83
  %v86 = vmul.f32 %v76, %v84
  %v87 = vmul.f32 %v77, %v84
  %v88 = vmul.f32 %v78, %v84
  %v89 = vmul.f32 %v79, %v84
  %v91 = vlaneseq
  %v92 = vshrl.u32 %v91, 7
  %v93 = vsub.s32 0, %v92
  %v94 = vrot.slane %v25, %v93
  %v96 = vadd.f32 %v86, %v94
  %v97 = vadd.f32 %v87, %v94
  %v98 = vadd.f32 %v88, %v94
  %v99 = vadd.f32 %v89, %v94
  %v100 = vld [vmem:[%s3] sm:$0xff]
  %v101 = vld [vmem:[%s3 + $0x8] sm:$0xff]
  %v102 = vld [vmem:[%s3 + $0x10] sm:$0xff]
  %v103 = vld [vmem:[%s3 + $0x18] sm:$0xff]
  %s104 = scalar_lea.vmem %s0, 32
  %v105 = vld [vmem:[%s104] sm:$0xff]
  %v106 = vld [vmem:[%s104 + $0x8] sm:$0xff]
  %v107 = vld [vmem:[%s104 + $0x10] sm:$0xff]
  %v108 = vld [vmem:[%s104 + $0x18] sm:$0xff]
  %v109 = vsel %vm26, %v105, 0.0
  %110 = vadd.xlane.f32.xlu0 %v109
  %v111 = vpop.xlane.xlu0 %110
  %v112 = vsel %vm26, %v106, 0.0
  %113 = vadd.xlane.f32.xlu0 %v112
  %v114 = vpop.xlane.xlu0 %113
  %v115 = vsel %vm26, %v107, 0.0
  %116 = vadd.xlane.f32.xlu0 %v115
  %v117 = vpop.xlane.xlu0 %116
  %v118 = vsel %vm26, %v108, 0.0
  %119 = vadd.xlane.f32.xlu0 %v118
  %v120 = vpop.xlane.xlu0 %119
  %v121 = vmul.f32 %v111, %v39
  %v122 = vmul.f32 %v114, %v39
  %v123 = vmul.f32 %v117, %v39
  %v124 = vmul.f32 %v120, %v39
  %v125 = vsub.f32 %v105, %v121
  %v126 = vsub.f32 %v106, %v122
  %v127 = vsub.f32 %v107, %v123
  %v128 = vsub.f32 %v108, %v124
  %v129 = vmul.f32 %v125, %v125
  %v130 = vmul.f32 %v126, %v126
  %v131 = vmul.f32 %v127, %v127
  %v132 = vmul.f32 %v128, %v128
  %v133 = vsel %vm26, %v129, 0.0
  %134 = vadd.xlane.f32.xlu0 %v133
  %v135 = vpop.xlane.xlu0 %134
  %v136 = vsel %vm26, %v130, 0.0
  %137 = vadd.xlane.f32.xlu0 %v136
  %v138 = vpop.xlane.xlu0 %137
  %v139 = vsel %vm26, %v131, 0.0
  %140 = vadd.xlane.f32.xlu0 %v139
  %v141 = vpop.xlane.xlu0 %140
  %v142 = vsel %vm26, %v132, 0.0
  %143 = vadd.xlane.f32.xlu0 %v142
  %v144 = vpop.xlane.xlu0 %143
  %v145 = vmul.f32 %v135, %v39
  %v146 = vmul.f32 %v138, %v39
  %v147 = vmul.f32 %v141, %v39
  %v148 = vmul.f32 %v144, %v39
  %v149 = vadd.f32 %v145, 1e-06
  %v150 = vadd.f32 %v146, 1e-06
  %v151 = vadd.f32 %v147, 1e-06
  %v152 = vadd.f32 %v148, 1e-06
  %v153 = vrsqrt.pop %v149
  %v154 = vrsqrt.pop %v150
  %v155 = vrsqrt.pop %v151
  %v156 = vrsqrt.pop %v152
  %v157 = vmul.f32 %v125, %v153
  %v158 = vmul.f32 %v126, %v154
  %v159 = vmul.f32 %v127, %v155
  %v160 = vmul.f32 %v128, %v156
  %v161 = vmul.f32 %v157, %v84
  %v162 = vmul.f32 %v158, %v84
  %v163 = vmul.f32 %v159, %v84
  %v164 = vmul.f32 %v160, %v84
  %v165 = vadd.f32 %v161, %v94
  %v166 = vadd.f32 %v162, %v94
  %v167 = vadd.f32 %v163, %v94
  %v168 = vadd.f32 %v164, %v94
  %s169 = scalar_lea.vmem %s3, 32
  %v170 = vld [vmem:[%s169] sm:$0xff]
  %v171 = vld [vmem:[%s169 + $0x8] sm:$0xff]
  %v172 = vld [vmem:[%s169 + $0x10] sm:$0xff]
  %v173 = vld [vmem:[%s169 + $0x18] sm:$0xff]
  %v175 = vsel %vm26, %v165, 0
  %v178 = vsel %vm26, %v166, 0
  %v181 = vsel %vm26, %v167, 0
  %v184 = vsel %vm26, %v168, 0
  %186 = vmatprep.subr.mxu0 0.0
  %187 = vmatpush1.msra.mxu0 0.0
  %188 = vmatprep.subr.mxu0 0.0
  %189 = vmatpush1.msra.mxu0 0.0
  %190 = vmatprep.subr.mxu0 0.0
  %191 = vmatpush1.msra.mxu0 0.0
  %192 = vmatprep.subr.mxu0 0.0
  %193 = vmatpush1.msra.mxu0 0.0
  %194 = vmatprep.subr.mxu0 0.0
  %195 = vmatpush1.msra.mxu0 0.0
  %196 = vmatprep.subr.mxu0 0.0
  %197 = vmatpush1.msra.mxu0 0.0
  %198 = vmatprep.subr.mxu0 0.0
  %199 = vmatpush1.msra.mxu0 0.0
  %200 = vmatprep.subr.mxu0 0.0
  %201 = vmatpush1.msra.mxu0 0.0
  %202 = vmatprep.subr.mxu0 0.0
  %203 = vmatpush1.msra.mxu0 0.0
  %204 = vmatprep.subr.mxu0 0.0
  %205 = vmatpush1.msra.mxu0 0.0
  %206 = vmatprep.subr.mxu0 0.0
  %207 = vmatpush1.msra.mxu0 0.0
  %208 = vmatprep.subr.mxu0 0.0
  %209 = vmatpush1.msra.mxu0 0.0
  %210 = vmatprep.subr.mxu0 0.0
  %211 = vmatpush1.msra.mxu0 %v173
  %212 = vmatprep.subr.mxu0 0.0
  %213 = vmatpush1.msra.mxu0 %v172
  %214 = vmatprep.subr.mxu0 0.0
  %215 = vmatpush1.msra.mxu0 %v171
  %216 = vmatprep.subr.mxu0 0.0
  %217 = vmatpush1.msra.mxu0 %v170
  %218 = vmatprep.subr.mxu0 0.0
  %219 = vmatpush2.msra.mxu0 0.0
  %220 = vmatprep.subr.mxu0 0.0
  %221 = vmatpush2.msra.mxu0 0.0
  %222 = vmatprep.subr.mxu0 0.0
  %223 = vmatpush2.msra.mxu0 0.0
  %224 = vmatprep.subr.mxu0 0.0
  %225 = vmatpush2.msra.mxu0 0.0
  %226 = vmatprep.subr.mxu0 0.0
  %227 = vmatpush2.msra.mxu0 0.0
  %228 = vmatprep.subr.mxu0 0.0
  %229 = vmatpush2.msra.mxu0 0.0
  %230 = vmatprep.subr.mxu0 0.0
  %231 = vmatpush2.msra.mxu0 0.0
  %232 = vmatprep.subr.mxu0 0.0
  %233 = vmatpush2.msra.mxu0 0.0
  %234 = vmatprep.subr.mxu0 0.0
  %235 = vmatpush2.msra.mxu0 0.0
  %236 = vmatprep.subr.mxu0 0.0
  %237 = vmatpush2.msra.mxu0 0.0
  %238 = vmatprep.subr.mxu0 0.0
  %239 = vmatpush2.msra.mxu0 0.0
  %240 = vmatprep.subr.mxu0 0.0
  %241 = vmatpush2.msra.mxu0 0.0
  %242 = vmatprep.subr.mxu0 0.0
  %243 = vmatpush2.msra.mxu0 0.0
  %244 = vmatprep.subr.mxu0 0.0
  %245 = vmatpush2.msra.mxu0 0.0
  %246 = vmatprep.subr.mxu0 0.0
  %247 = vmatpush2.msra.mxu0 0.0
  %248 = vmatprep.subr.mxu0 0.0
  %249 = vmatpush2.msra.mxu0 0.0
  %250 = vmatprep.mubr.f32.mxu0 0.0
  %251 = vmatmul.mubr.f32.gmra.mxu0 %v175
  %v252 = vpop.f32.mrf.mxu0
  %v253 = vadd.f32 0.0, %v252
  %v254 = vpop.f32.mrf.mxu0
  %255 = vmatprep.mubr.f32.mxu0 0.0
  %256 = vmatmul.mubr.f32.gmra.mxu0 %v178
  %v257 = vpop.f32.mrf.mxu0
  %v258 = vadd.f32 0.0, %v257
  %v259 = vpop.f32.mrf.mxu0
  %260 = vmatprep.mubr.f32.mxu0 0.0
  %261 = vmatmul.mubr.f32.gmra.mxu0 %v181
  %v262 = vpop.f32.mrf.mxu0
  %v263 = vadd.f32 0.0, %v262
  %v264 = vpop.f32.mrf.mxu0
  %265 = vmatprep.mubr.f32.mxu0 0.0
  %266 = vmatmul.mubr.f32.gmra.mxu0 %v184
  %v267 = vpop.f32.mrf.mxu0
  %v268 = vadd.f32 0.0, %v267
  %v269 = vpop.f32.mrf.mxu0
  %270 = vdwg.mxu0
  %v272 = vsel %vm26, %v96, 0
  %v275 = vsel %vm26, %v97, 0
  %v278 = vsel %vm26, %v98, 0
  %v281 = vsel %vm26, %v99, 0
  %283 = vmatprep.subr.mxu0 0.0
  %284 = vmatpush1.msra.mxu0 0.0
  %285 = vmatprep.subr.mxu0 0.0
  %286 = vmatpush1.msra.mxu0 0.0
  %287 = vmatprep.subr.mxu0 0.0
  %288 = vmatpush1.msra.mxu0 0.0
  %289 = vmatprep.subr.mxu0 0.0
  %290 = vmatpush1.msra.mxu0 0.0
  %291 = vmatprep.subr.mxu0 0.0
  %292 = vmatpush1.msra.mxu0 0.0
  %293 = vmatprep.subr.mxu0 0.0
  %294 = vmatpush1.msra.mxu0 0.0
  %295 = vmatprep.subr.mxu0 0.0
  %296 = vmatpush1.msra.mxu0 0.0
  %297 = vmatprep.subr.mxu0 0.0
  %298 = vmatpush1.msra.mxu0 0.0
  %299 = vmatprep.subr.mxu0 0.0
  %300 = vmatpush1.msra.mxu0 0.0
  %301 = vmatprep.subr.mxu0 0.0
  %302 = vmatpush1.msra.mxu0 0.0
  %303 = vmatprep.subr.mxu0 0.0
  %304 = vmatpush1.msra.mxu0 0.0
  %305 = vmatprep.subr.mxu0 0.0
  %306 = vmatpush1.msra.mxu0 0.0
  %307 = vmatprep.subr.mxu0 0.0
  %308 = vmatpush1.msra.mxu0 %v103
  %309 = vmatprep.subr.mxu0 0.0
  %310 = vmatpush1.msra.mxu0 %v102
  %311 = vmatprep.subr.mxu0 0.0
  %312 = vmatpush1.msra.mxu0 %v101
  %313 = vmatprep.subr.mxu0 0.0
  %314 = vmatpush1.msra.mxu0 %v100
  %315 = vmatprep.subr.mxu0 0.0
  %316 = vmatpush2.msra.mxu0 0.0
  %317 = vmatprep.subr.mxu0 0.0
  %318 = vmatpush2.msra.mxu0 0.0
  %319 = vmatprep.subr.mxu0 0.0
  %320 = vmatpush2.msra.mxu0 0.0
  %321 = vmatprep.subr.mxu0 0.0
  %322 = vmatpush2.msra.mxu0 0.0
  %323 = vmatprep.subr.mxu0 0.0
  %324 = vmatpush2.msra.mxu0 0.0
  %325 = vmatprep.subr.mxu0 0.0
  %326 = vmatpush2.msra.mxu0 0.0
  %327 = vmatprep.subr.mxu0 0.0
  %328 = vmatpush2.msra.mxu0 0.0
  %329 = vmatprep.subr.mxu0 0.0
  %330 = vmatpush2.msra.mxu0 0.0
  %331 = vmatprep.subr.mxu0 0.0
  %332 = vmatpush2.msra.mxu0 0.0
  %333 = vmatprep.subr.mxu0 0.0
  %334 = vmatpush2.msra.mxu0 0.0
  %335 = vmatprep.subr.mxu0 0.0
  %336 = vmatpush2.msra.mxu0 0.0
  %337 = vmatprep.subr.mxu0 0.0
  %338 = vmatpush2.msra.mxu0 0.0
  %339 = vmatprep.subr.mxu0 0.0
  %340 = vmatpush2.msra.mxu0 0.0
  %341 = vmatprep.subr.mxu0 0.0
  %342 = vmatpush2.msra.mxu0 0.0
  %343 = vmatprep.subr.mxu0 0.0
  %344 = vmatpush2.msra.mxu0 0.0
  %345 = vmatprep.subr.mxu0 0.0
  %346 = vmatpush2.msra.mxu0 0.0
  %347 = vmatprep.mubr.f32.mxu0 0.0
  %348 = vmatmul.mubr.f32.gmra.mxu0 %v272
  %v349 = vpop.f32.mrf.mxu0
  %v350 = vadd.f32 %v253, %v349
  %v351 = vpop.f32.mrf.mxu0
  %352 = vmatprep.mubr.f32.mxu0 0.0
  %353 = vmatmul.mubr.f32.gmra.mxu0 %v275
  %v354 = vpop.f32.mrf.mxu0
  %v355 = vadd.f32 %v258, %v354
  %v356 = vpop.f32.mrf.mxu0
  %357 = vmatprep.mubr.f32.mxu0 0.0
  %358 = vmatmul.mubr.f32.gmra.mxu0 %v278
  %v359 = vpop.f32.mrf.mxu0
  %v360 = vadd.f32 %v263, %v359
  %v361 = vpop.f32.mrf.mxu0
  %362 = vmatprep.mubr.f32.mxu0 0.0
  %363 = vmatmul.mubr.f32.gmra.mxu0 %v281
  %v364 = vpop.f32.mrf.mxu0
  %v365 = vadd.f32 %v268, %v364
  %v366 = vpop.f32.mrf.mxu0
  %367 = vdwg.mxu0
  %s368 = scalar_lea.vmem %s0, 64
  %v369 = vld [vmem:[%s368] sm:$0xff]
  %v370 = vld [vmem:[%s368 + $0x8] sm:$0xff]
  %v371 = vld [vmem:[%s368 + $0x10] sm:$0xff]
  %v372 = vld [vmem:[%s368 + $0x18] sm:$0xff]
  %v373 = vsel %vm26, %v369, 0.0
  %374 = vadd.xlane.f32.xlu0 %v373
  %v375 = vpop.xlane.xlu0 %374
  %v376 = vsel %vm26, %v370, 0.0
  %377 = vadd.xlane.f32.xlu0 %v376
  %v378 = vpop.xlane.xlu0 %377
  %v379 = vsel %vm26, %v371, 0.0
  %380 = vadd.xlane.f32.xlu0 %v379
  %v381 = vpop.xlane.xlu0 %380
  %v382 = vsel %vm26, %v372, 0.0
  %383 = vadd.xlane.f32.xlu0 %v382
  %v384 = vpop.xlane.xlu0 %383
  %v385 = vmul.f32 %v375, %v39
  %v386 = vmul.f32 %v378, %v39
  %v387 = vmul.f32 %v381, %v39
  %v388 = vmul.f32 %v384, %v39
  %v389 = vsub.f32 %v369, %v385
  %v390 = vsub.f32 %v370, %v386
  %v391 = vsub.f32 %v371, %v387
  %v392 = vsub.f32 %v372, %v388
  %v393 = vmul.f32 %v389, %v389
  %v394 = vmul.f32 %v390, %v390
  %v395 = vmul.f32 %v391, %v391
  %v396 = vmul.f32 %v392, %v392
  %v397 = vsel %vm26, %v393, 0.0
  %398 = vadd.xlane.f32.xlu0 %v397
  %v399 = vpop.xlane.xlu0 %398
  %v400 = vsel %vm26, %v394, 0.0
  %401 = vadd.xlane.f32.xlu0 %v400
  %v402 = vpop.xlane.xlu0 %401
  %v403 = vsel %vm26, %v395, 0.0
  %404 = vadd.xlane.f32.xlu0 %v403
  %v405 = vpop.xlane.xlu0 %404
  %v406 = vsel %vm26, %v396, 0.0
  %407 = vadd.xlane.f32.xlu0 %v406
  %v408 = vpop.xlane.xlu0 %407
  %v409 = vmul.f32 %v399, %v39
  %v410 = vmul.f32 %v402, %v39
  %v411 = vmul.f32 %v405, %v39
  %v412 = vmul.f32 %v408, %v39
  %v413 = vadd.f32 %v409, 1e-06
  %v414 = vadd.f32 %v410, 1e-06
  %v415 = vadd.f32 %v411, 1e-06
  %v416 = vadd.f32 %v412, 1e-06
  %v417 = vrsqrt.pop %v413
  %v418 = vrsqrt.pop %v414
  %v419 = vrsqrt.pop %v415
  %v420 = vrsqrt.pop %v416
  %v421 = vmul.f32 %v389, %v417
  %v422 = vmul.f32 %v390, %v418
  %v423 = vmul.f32 %v391, %v419
  %v424 = vmul.f32 %v392, %v420
  %v425 = vmul.f32 %v421, %v84
  %v426 = vmul.f32 %v422, %v84
  %v427 = vmul.f32 %v423, %v84
  %v428 = vmul.f32 %v424, %v84
  %v429 = vadd.f32 %v425, %v94
  %v430 = vadd.f32 %v426, %v94
  %v431 = vadd.f32 %v427, %v94
  %v432 = vadd.f32 %v428, %v94
  %s433 = scalar_lea.vmem %s3, 64
  %v434 = vld [vmem:[%s433] sm:$0xff]
  %v435 = vld [vmem:[%s433 + $0x8] sm:$0xff]
  %v436 = vld [vmem:[%s433 + $0x10] sm:$0xff]
  %v437 = vld [vmem:[%s433 + $0x18] sm:$0xff]
  %v439 = vsel %vm26, %v429, 0
  %v442 = vsel %vm26, %v430, 0
  %v445 = vsel %vm26, %v431, 0
  %v448 = vsel %vm26, %v432, 0
  %450 = vmatprep.subr.mxu0 0.0
  %451 = vmatpush1.msra.mxu0 0.0
  %452 = vmatprep.subr.mxu0 0.0
  %453 = vmatpush1.msra.mxu0 0.0
  %454 = vmatprep.subr.mxu0 0.0
  %455 = vmatpush1.msra.mxu0 0.0
  %456 = vmatprep.subr.mxu0 0.0
  %457 = vmatpush1.msra.mxu0 0.0
  %458 = vmatprep.subr.mxu0 0.0
  %459 = vmatpush1.msra.mxu0 0.0
  %460 = vmatprep.subr.mxu0 0.0
  %461 = vmatpush1.msra.mxu0 0.0
  %462 = vmatprep.subr.mxu0 0.0
  %463 = vmatpush1.msra.mxu0 0.0
  %464 = vmatprep.subr.mxu0 0.0
  %465 = vmatpush1.msra.mxu0 0.0
  %466 = vmatprep.subr.mxu0 0.0
  %467 = vmatpush1.msra.mxu0 0.0
  %468 = vmatprep.subr.mxu0 0.0
  %469 = vmatpush1.msra.mxu0 0.0
  %470 = vmatprep.subr.mxu0 0.0
  %471 = vmatpush1.msra.mxu0 0.0
  %472 = vmatprep.subr.mxu0 0.0
  %473 = vmatpush1.msra.mxu0 0.0
  %474 = vmatprep.subr.mxu0 0.0
  %475 = vmatpush1.msra.mxu0 %v437
  %476 = vmatprep.subr.mxu0 0.0
  %477 = vmatpush1.msra.mxu0 %v436
  %478 = vmatprep.subr.mxu0 0.0
  %479 = vmatpush1.msra.mxu0 %v435
  %480 = vmatprep.subr.mxu0 0.0
  %481 = vmatpush1.msra.mxu0 %v434
  %482 = vmatprep.subr.mxu0 0.0
  %483 = vmatpush2.msra.mxu0 0.0
  %484 = vmatprep.subr.mxu0 0.0
  %485 = vmatpush2.msra.mxu0 0.0
  %486 = vmatprep.subr.mxu0 0.0
  %487 = vmatpush2.msra.mxu0 0.0
  %488 = vmatprep.subr.mxu0 0.0
  %489 = vmatpush2.msra.mxu0 0.0
  %490 = vmatprep.subr.mxu0 0.0
  %491 = vmatpush2.msra.mxu0 0.0
  %492 = vmatprep.subr.mxu0 0.0
  %493 = vmatpush2.msra.mxu0 0.0
  %494 = vmatprep.subr.mxu0 0.0
  %495 = vmatpush2.msra.mxu0 0.0
  %496 = vmatprep.subr.mxu0 0.0
  %497 = vmatpush2.msra.mxu0 0.0
  %498 = vmatprep.subr.mxu0 0.0
  %499 = vmatpush2.msra.mxu0 0.0
  %500 = vmatprep.subr.mxu0 0.0
  %501 = vmatpush2.msra.mxu0 0.0
  %502 = vmatprep.subr.mxu0 0.0
  %503 = vmatpush2.msra.mxu0 0.0
  %504 = vmatprep.subr.mxu0 0.0
  %505 = vmatpush2.msra.mxu0 0.0
  %506 = vmatprep.subr.mxu0 0.0
  %507 = vmatpush2.msra.mxu0 0.0
  %508 = vmatprep.subr.mxu0 0.0
  %509 = vmatpush2.msra.mxu0 0.0
  %510 = vmatprep.subr.mxu0 0.0
  %511 = vmatpush2.msra.mxu0 0.0
  %512 = vmatprep.subr.mxu0 0.0
  %513 = vmatpush2.msra.mxu0 0.0
  %514 = vmatprep.mubr.f32.mxu0 0.0
  %515 = vmatmul.mubr.f32.gmra.mxu0 %v439
  %v516 = vpop.f32.mrf.mxu0
  %v517 = vadd.f32 0.0, %v516
  %v518 = vpop.f32.mrf.mxu0
  %519 = vmatprep.mubr.f32.mxu0 0.0
  %520 = vmatmul.mubr.f32.gmra.mxu0 %v442
  %v521 = vpop.f32.mrf.mxu0
  %v522 = vadd.f32 0.0, %v521
  %v523 = vpop.f32.mrf.mxu0
  %524 = vmatprep.mubr.f32.mxu0 0.0
  %525 = vmatmul.mubr.f32.gmra.mxu0 %v445
  %v526 = vpop.f32.mrf.mxu0
  %v527 = vadd.f32 0.0, %v526
  %v528 = vpop.f32.mrf.mxu0
  %529 = vmatprep.mubr.f32.mxu0 0.0
  %530 = vmatmul.mubr.f32.gmra.mxu0 %v448
  %v531 = vpop.f32.mrf.mxu0
  %v532 = vadd.f32 0.0, %v531
  %v533 = vpop.f32.mrf.mxu0
  %534 = vdwg.mxu0
  %v535 = vadd.f32 %v350, %v517
  %v536 = vadd.f32 %v355, %v522
  %v537 = vadd.f32 %v360, %v527
  %v538 = vadd.f32 %v365, %v532
  %s539 = scalar_lea.vmem %s0, 96
  %v540 = vld [vmem:[%s539] sm:$0xff]
  %v541 = vld [vmem:[%s539 + $0x8] sm:$0xff]
  %v542 = vld [vmem:[%s539 + $0x10] sm:$0xff]
  %v543 = vld [vmem:[%s539 + $0x18] sm:$0xff]
  %v544 = vsel %vm26, %v540, 0.0
  %545 = vadd.xlane.f32.xlu0 %v544
  %v546 = vpop.xlane.xlu0 %545
  %v547 = vsel %vm26, %v541, 0.0
  %548 = vadd.xlane.f32.xlu0 %v547
  %v549 = vpop.xlane.xlu0 %548
  %v550 = vsel %vm26, %v542, 0.0
  %551 = vadd.xlane.f32.xlu0 %v550
  %v552 = vpop.xlane.xlu0 %551
  %v553 = vsel %vm26, %v543, 0.0
  %554 = vadd.xlane.f32.xlu0 %v553
  %v555 = vpop.xlane.xlu0 %554
  %v556 = vmul.f32 %v546, %v39
  %v557 = vmul.f32 %v549, %v39
  %v558 = vmul.f32 %v552, %v39
  %v559 = vmul.f32 %v555, %v39
  %v560 = vsub.f32 %v540, %v556
  %v561 = vsub.f32 %v541, %v557
  %v562 = vsub.f32 %v542, %v558
  %v563 = vsub.f32 %v543, %v559
  %v564 = vmul.f32 %v560, %v560
  %v565 = vmul.f32 %v561, %v561
  %v566 = vmul.f32 %v562, %v562
  %v567 = vmul.f32 %v563, %v563
  %v568 = vsel %vm26, %v564, 0.0
  %569 = vadd.xlane.f32.xlu0 %v568
  %v570 = vpop.xlane.xlu0 %569
  %v571 = vsel %vm26, %v565, 0.0
  %572 = vadd.xlane.f32.xlu0 %v571
  %v573 = vpop.xlane.xlu0 %572
  %v574 = vsel %vm26, %v566, 0.0
  %575 = vadd.xlane.f32.xlu0 %v574
  %v576 = vpop.xlane.xlu0 %575
  %v577 = vsel %vm26, %v567, 0.0
  %578 = vadd.xlane.f32.xlu0 %v577
  %v579 = vpop.xlane.xlu0 %578
  %v580 = vmul.f32 %v570, %v39
  %v581 = vmul.f32 %v573, %v39
  %v582 = vmul.f32 %v576, %v39
  %v583 = vmul.f32 %v579, %v39
  %v584 = vadd.f32 %v580, 1e-06
  %v585 = vadd.f32 %v581, 1e-06
  %v586 = vadd.f32 %v582, 1e-06
  %v587 = vadd.f32 %v583, 1e-06
  %v588 = vrsqrt.pop %v584
  %v589 = vrsqrt.pop %v585
  %v590 = vrsqrt.pop %v586
  %v591 = vrsqrt.pop %v587
  %v592 = vmul.f32 %v560, %v588
  %v593 = vmul.f32 %v561, %v589
  %v594 = vmul.f32 %v562, %v590
  %v595 = vmul.f32 %v563, %v591
  %v596 = vmul.f32 %v592, %v84
  %v597 = vmul.f32 %v593, %v84
  %v598 = vmul.f32 %v594, %v84
  %v599 = vmul.f32 %v595, %v84
  %v600 = vadd.f32 %v596, %v94
  %v601 = vadd.f32 %v597, %v94
  %v602 = vadd.f32 %v598, %v94
  %v603 = vadd.f32 %v599, %v94
  %s604 = scalar_lea.vmem %s3, 96
  %v605 = vld [vmem:[%s604] sm:$0xff]
  %v606 = vld [vmem:[%s604 + $0x8] sm:$0xff]
  %v607 = vld [vmem:[%s604 + $0x10] sm:$0xff]
  %v608 = vld [vmem:[%s604 + $0x18] sm:$0xff]
  %v610 = vsel %vm26, %v600, 0
  %v613 = vsel %vm26, %v601, 0
  %v616 = vsel %vm26, %v602, 0
  %v619 = vsel %vm26, %v603, 0
  %621 = vmatprep.subr.mxu0 0.0
  %622 = vmatpush1.msra.mxu0 0.0
  %623 = vmatprep.subr.mxu0 0.0
  %624 = vmatpush1.msra.mxu0 0.0
  %625 = vmatprep.subr.mxu0 0.0
  %626 = vmatpush1.msra.mxu0 0.0
  %627 = vmatprep.subr.mxu0 0.0
  %628 = vmatpush1.msra.mxu0 0.0
  %629 = vmatprep.subr.mxu0 0.0
  %630 = vmatpush1.msra.mxu0 0.0
  %631 = vmatprep.subr.mxu0 0.0
  %632 = vmatpush1.msra.mxu0 0.0
  %633 = vmatprep.subr.mxu0 0.0
  %634 = vmatpush1.msra.mxu0 0.0
  %635 = vmatprep.subr.mxu0 0.0
  %636 = vmatpush1.msra.mxu0 0.0
  %637 = vmatprep.subr.mxu0 0.0
  %638 = vmatpush1.msra.mxu0 0.0
  %639 = vmatprep.subr.mxu0 0.0
  %640 = vmatpush1.msra.mxu0 0.0
  %641 = vmatprep.subr.mxu0 0.0
  %642 = vmatpush1.msra.mxu0 0.0
  %643 = vmatprep.subr.mxu0 0.0
  %644 = vmatpush1.msra.mxu0 0.0
  %645 = vmatprep.subr.mxu0 0.0
  %646 = vmatpush1.msra.mxu0 %v608
  %647 = vmatprep.subr.mxu0 0.0
  %648 = vmatpush1.msra.mxu0 %v607
  %649 = vmatprep.subr.mxu0 0.0
  %650 = vmatpush1.msra.mxu0 %v606
  %651 = vmatprep.subr.mxu0 0.0
  %652 = vmatpush1.msra.mxu0 %v605
  %653 = vmatprep.subr.mxu0 0.0
  %654 = vmatpush2.msra.mxu0 0.0
  %655 = vmatprep.subr.mxu0 0.0
  %656 = vmatpush2.msra.mxu0 0.0
  %657 = vmatprep.subr.mxu0 0.0
  %658 = vmatpush2.msra.mxu0 0.0
  %659 = vmatprep.subr.mxu0 0.0
  %660 = vmatpush2.msra.mxu0 0.0
  %661 = vmatprep.subr.mxu0 0.0
  %662 = vmatpush2.msra.mxu0 0.0
  %663 = vmatprep.subr.mxu0 0.0
  %664 = vmatpush2.msra.mxu0 0.0
  %665 = vmatprep.subr.mxu0 0.0
  %666 = vmatpush2.msra.mxu0 0.0
  %667 = vmatprep.subr.mxu0 0.0
  %668 = vmatpush2.msra.mxu0 0.0
  %669 = vmatprep.subr.mxu0 0.0
  %670 = vmatpush2.msra.mxu0 0.0
  %671 = vmatprep.subr.mxu0 0.0
  %672 = vmatpush2.msra.mxu0 0.0
  %673 = vmatprep.subr.mxu0 0.0
  %674 = vmatpush2.msra.mxu0 0.0
  %675 = vmatprep.subr.mxu0 0.0
  %676 = vmatpush2.msra.mxu0 0.0
  %677 = vmatprep.subr.mxu0 0.0
  %678 = vmatpush2.msra.mxu0 0.0
  %679 = vmatprep.subr.mxu0 0.0
  %680 = vmatpush2.msra.mxu0 0.0
  %681 = vmatprep.subr.mxu0 0.0
  %682 = vmatpush2.msra.mxu0 0.0
  %683 = vmatprep.subr.mxu0 0.0
  %684 = vmatpush2.msra.mxu0 0.0
  %685 = vmatprep.mubr.f32.mxu0 0.0
  %686 = vmatmul.mubr.f32.gmra.mxu0 %v610
  %v687 = vpop.f32.mrf.mxu0
  %v688 = vadd.f32 0.0, %v687
  %v689 = vpop.f32.mrf.mxu0
  %690 = vmatprep.mubr.f32.mxu0 0.0
  %691 = vmatmul.mubr.f32.gmra.mxu0 %v613
  %v692 = vpop.f32.mrf.mxu0
  %v693 = vadd.f32 0.0, %v692
  %v694 = vpop.f32.mrf.mxu0
  %695 = vmatprep.mubr.f32.mxu0 0.0
  %696 = vmatmul.mubr.f32.gmra.mxu0 %v616
  %v697 = vpop.f32.mrf.mxu0
  %v698 = vadd.f32 0.0, %v697
  %v699 = vpop.f32.mrf.mxu0
  %700 = vmatprep.mubr.f32.mxu0 0.0
  %701 = vmatmul.mubr.f32.gmra.mxu0 %v619
  %v702 = vpop.f32.mrf.mxu0
  %v703 = vadd.f32 0.0, %v702
  %v704 = vpop.f32.mrf.mxu0
  %705 = vdwg.mxu0
  %v706 = vadd.f32 %v535, %v688
  %v707 = vadd.f32 %v536, %v693
  %v708 = vadd.f32 %v537, %v698
  %v709 = vadd.f32 %v538, %v703
  %v710 = vld [vmem:[%s4] sm:$0x1]
  %v712 = vlaneseq
  %v713 = vshrl.u32 %v712, 7
  %v714 = vsub.s32 0, %v713
  %v715 = vrot.slane %v710, %v714
  %v717 = vadd.f32 %v706, %v715
  %v718 = vadd.f32 %v707, %v715
  %v719 = vadd.f32 %v708, %v715
  %v720 = vadd.f32 %v709, %v715
  %vm721 = vcmask 523264
  %722 = vst.msk [vmem:[%s5] sm:$0xff] %vm721, %v717
  %723 = vst.msk [vmem:[%s5 + $0x8] sm:$0xff] %vm721, %v718
  %724 = vst.msk [vmem:[%s5 + $0x10] sm:$0xff] %vm721, %v719
  %725 = vst.msk [vmem:[%s5 + $0x18] sm:$0xff] %vm721, %v720
  // Predicated region
  $region22: #{convnext_forward.10} parent=0 // pred_check
    _
  $region23: #{convnext_forward.10} parent=0 // pred_check_branch
    %727 = sbr.rel (0) target = $region25
  $region24: #{convnext_forward.10} parent=0 // pred_region
    _
  $region25: #{convnext_forward.10} parent=0 // pred_fallthru
    _
  // Predicated region
  $region26: #{convnext_forward.10} parent=0 // pred_check
    _
  $region27: #{convnext_forward.10} parent=0 // pred_check_branch
    %729 = sbr.rel (0) target = $region29
  $region28: #{convnext_forward.10} parent=0 // pred_region
    _
  $region29: #{convnext_forward.10} parent=0 // pred_fallthru
    _

// kernel: convnext_forward.13
$region0: #{convnext_forward.13}
  #allocation0 [shape = 'u32[]', space=smem, size = 0x4, offset = 0x4, fixed_abs, tag = 'smem constant byte address 0x4 - core index']
  #allocation1 [shape = 'u32[144,128]{1,0:T(1,128)}', space=vmem, size = 0x12000, scoped, tag = 'internal scratch']
  %s0 = inlined_call_operand.vmem [shape: f32[32,64], index: 0, kind: input, shape index: {}]
  %s1 = inlined_call_operand.vmem [shape: f32[2,32], index: 1, kind: input, shape index: {}]
  %s2 = inlined_call_operand.vmem [shape: f32[1,64], index: 2, kind: input, shape index: {}]
  %s3 = inlined_call_operand.vmem [shape: f32[1,64], index: 3, kind: input, shape index: {}]
  %s4 = inlined_call_operand.vmem [shape: f32[64,64], index: 4, kind: input, shape index: {}]
  %s5 = inlined_call_operand.vmem [shape: f32[1,64], index: 5, kind: input, shape index: {}]
  %s6 = inlined_call_operand.vmem [shape: f32[64,8], index: 6, kind: input, shape index: {}]
  %s7 = inlined_call_operand.vmem [shape: f32[1,8], index: 7, kind: input, shape index: {}]
  %s8 = inlined_call_operand.vmem [shape: f32[2,8], index: 8, kind: output, shape index: {}]
  %s9 = sld [smem:[#allocation0]]
  $region42: #{convnext_forward.13} parent=0
    _
  %s11 = ssub.s32 1, %s9
  %s12 = scalar_select 0, %s11, %s9
  // Predicated region
  $region2: #{convnext_forward.13} parent=0 // pred_check
    _
  $region3: #{convnext_forward.13} parent=0 // pred_check_branch
    %14 = sbr.rel (0) target = $region5
  $region4: #{convnext_forward.13} parent=0 // pred_region
    _
  $region5: #{convnext_forward.13} parent=0 // pred_fallthru
    _
  // Predicated region
  $region6: #{convnext_forward.13} parent=0 // pred_check
    _
  $region7: #{convnext_forward.13} parent=0 // pred_check_branch
    %16 = sbr.rel (0) target = $region9
  $region8: #{convnext_forward.13} parent=0 // pred_region
    _
  $region9: #{convnext_forward.13} parent=0 // pred_fallthru
    _
  // Predicated region
  $region10: #{convnext_forward.13} parent=0 // pred_check
    _
  $region11: #{convnext_forward.13} parent=0 // pred_check_branch
    %18 = sbr.rel (0) target = $region13
  $region12: #{convnext_forward.13} parent=0 // pred_region
    _
  $region13: #{convnext_forward.13} parent=0 // pred_fallthru
    _
  // Predicated region
  $region14: #{convnext_forward.13} parent=0 // pred_check
    _
  $region15: #{convnext_forward.13} parent=0 // pred_check_branch
    %20 = sbr.rel (0) target = $region17
  $region16: #{convnext_forward.13} parent=0 // pred_region
    _
  $region17: #{convnext_forward.13} parent=0 // pred_fallthru
    _
  // Predicated region
  $region18: #{convnext_forward.13} parent=0 // pred_check
    _
  $region19: #{convnext_forward.13} parent=0 // pred_check_branch
    %22 = sbr.rel (0) target = $region21
  $region20: #{convnext_forward.13} parent=0 // pred_region
    _
  $region21: #{convnext_forward.13} parent=0 // pred_fallthru
    _
  // Predicated region
  $region22: #{convnext_forward.13} parent=0 // pred_check
    _
  $region23: #{convnext_forward.13} parent=0 // pred_check_branch
    %24 = sbr.rel (0) target = $region25
  $region24: #{convnext_forward.13} parent=0 // pred_region
    _
  $region25: #{convnext_forward.13} parent=0 // pred_fallthru
    _
  // Predicated region
  $region26: #{convnext_forward.13} parent=0 // pred_check
    _
  $region27: #{convnext_forward.13} parent=0 // pred_check_branch
    %26 = sbr.rel (0) target = $region29
  $region28: #{convnext_forward.13} parent=0 // pred_region
    _
  $region29: #{convnext_forward.13} parent=0 // pred_fallthru
    _
  // Predicated region
  $region30: #{convnext_forward.13} parent=0 // pred_check
    _
  $region31: #{convnext_forward.13} parent=0 // pred_check_branch
    %28 = sbr.rel (0) target = $region33
  $region32: #{convnext_forward.13} parent=0 // pred_region
    _
  $region33: #{convnext_forward.13} parent=0 // pred_fallthru
    _
  %v29 = vld [vmem:[%s1] sm:$0x3]
  %v30 = vld [vmem:[%s0] sm:$0xff]
  %v31 = vld [vmem:[%s0 + $0x8] sm:$0xff]
  %v32 = vld [vmem:[%s0 + $0x10] sm:$0xff]
  %v33 = vld [vmem:[%s0 + $0x18] sm:$0xff]
  %vm34 = vcmask 261120
  %v36 = vsel %vm34, %v29, 0
  %38 = vmatprep.subr.mxu0 0.0
  %39 = vmatpush1.msra.mxu0 0.0
  %40 = vmatprep.subr.mxu0 0.0
  %41 = vmatpush1.msra.mxu0 0.0
  %42 = vmatprep.subr.mxu0 0.0
  %43 = vmatpush1.msra.mxu0 0.0
  %44 = vmatprep.subr.mxu0 0.0
  %45 = vmatpush1.msra.mxu0 0.0
  %46 = vmatprep.subr.mxu0 0.0
  %47 = vmatpush1.msra.mxu0 0.0
  %48 = vmatprep.subr.mxu0 0.0
  %49 = vmatpush1.msra.mxu0 0.0
  %50 = vmatprep.subr.mxu0 0.0
  %51 = vmatpush1.msra.mxu0 0.0
  %52 = vmatprep.subr.mxu0 0.0
  %53 = vmatpush1.msra.mxu0 0.0
  %54 = vmatprep.subr.mxu0 0.0
  %55 = vmatpush1.msra.mxu0 0.0
  %56 = vmatprep.subr.mxu0 0.0
  %57 = vmatpush1.msra.mxu0 0.0
  %58 = vmatprep.subr.mxu0 0.0
  %59 = vmatpush1.msra.mxu0 0.0
  %60 = vmatprep.subr.mxu0 0.0
  %61 = vmatpush1.msra.mxu0 0.0
  %62 = vmatprep.subr.mxu0 0.0
  %63 = vmatpush1.msra.mxu0 %v33
  %64 = vmatprep.subr.mxu0 0.0
  %65 = vmatpush1.msra.mxu0 %v32
  %66 = vmatprep.subr.mxu0 0.0
  %67 = vmatpush1.msra.mxu0 %v31
  %68 = vmatprep.subr.mxu0 0.0
  %69 = vmatpush1.msra.mxu0 %v30
  %70 = vmatprep.subr.mxu0 0.0
  %71 = vmatpush2.msra.mxu0 0.0
  %72 = vmatprep.subr.mxu0 0.0
  %73 = vmatpush2.msra.mxu0 0.0
  %74 = vmatprep.subr.mxu0 0.0
  %75 = vmatpush2.msra.mxu0 0.0
  %76 = vmatprep.subr.mxu0 0.0
  %77 = vmatpush2.msra.mxu0 0.0
  %78 = vmatprep.subr.mxu0 0.0
  %79 = vmatpush2.msra.mxu0 0.0
  %80 = vmatprep.subr.mxu0 0.0
  %81 = vmatpush2.msra.mxu0 0.0
  %82 = vmatprep.subr.mxu0 0.0
  %83 = vmatpush2.msra.mxu0 0.0
  %84 = vmatprep.subr.mxu0 0.0
  %85 = vmatpush2.msra.mxu0 0.0
  %86 = vmatprep.subr.mxu0 0.0
  %87 = vmatpush2.msra.mxu0 0.0
  %88 = vmatprep.subr.mxu0 0.0
  %89 = vmatpush2.msra.mxu0 0.0
  %90 = vmatprep.subr.mxu0 0.0
  %91 = vmatpush2.msra.mxu0 0.0
  %92 = vmatprep.subr.mxu0 0.0
  %93 = vmatpush2.msra.mxu0 0.0
  %94 = vmatprep.subr.mxu0 0.0
  %95 = vmatpush2.msra.mxu0 0.0
  %96 = vmatprep.subr.mxu0 0.0
  %97 = vmatpush2.msra.mxu0 0.0
  %98 = vmatprep.subr.mxu0 0.0
  %99 = vmatpush2.msra.mxu0 0.0
  %100 = vmatprep.subr.mxu0 0.0
  %101 = vmatpush2.msra.mxu0 0.0
  %102 = vmatprep.mubr.f32.mxu0 0.0
  %103 = vmatmul.mubr.f32.gmra.mxu0 %v36
  %v104 = vpop.f32.mrf.mxu0
  %v105 = vadd.f32 0.0, %v104
  %v106 = vpop.f32.mrf.mxu0
  %107 = vdwg.mxu0
  %v108 = vld [vmem:[%s2] sm:$0x1]
  %v109 = vld [vmem:[%s3] sm:$0x1]
  %vm110 = vcmask 517120
  %v111 = vsel %vm110, %v105, 0.0
  %112 = vadd.xlane.f32.xlu0 %v111
  %v113 = vpop.xlane.xlu0 %112
  %v114 = vrcp.pop 64.0
  %v115 = vmul.f32 %v113, %v114
  %v116 = vsub.f32 %v105, %v115
  %v117 = vmul.f32 %v116, %v116
  %v118 = vsel %vm110, %v117, 0.0
  %119 = vadd.xlane.f32.xlu0 %v118
  %v120 = vpop.xlane.xlu0 %119
  %v121 = vmul.f32 %v120, %v114
  %v122 = vadd.f32 %v121, 1e-06
  %v123 = vrsqrt.pop %v122
  %v124 = vmul.f32 %v116, %v123
  %v126 = vlaneseq
  %v127 = vshrl.u32 %v126, 7
  %v128 = vsub.s32 0, %v127
  %v129 = vrot.slane %v108, %v128
  %v131 = vmul.f32 %v124, %v129
  %v133 = vlaneseq
  %v134 = vshrl.u32 %v133, 7
  %v135 = vsub.s32 0, %v134
  %v136 = vrot.slane %v109, %v135
  %v138 = vadd.f32 %v131, %v136
  %v139 = vld [vmem:[%s4] sm:$0xff]
  %v140 = vld [vmem:[%s4 + $0x8] sm:$0xff]
  %v141 = vld [vmem:[%s4 + $0x10] sm:$0xff]
  %v142 = vld [vmem:[%s4 + $0x18] sm:$0xff]
  %v143 = vld [vmem:[%s4 + $0x20] sm:$0xff]
  %v144 = vld [vmem:[%s4 + $0x28] sm:$0xff]
  %v145 = vld [vmem:[%s4 + $0x30] sm:$0xff]
  %v146 = vld [vmem:[%s4 + $0x38] sm:$0xff]
  %v147 = vld [vmem:[%s5] sm:$0x1]
  %v149 = vlaneseq
  %v150 = vshrl.u32 %v149, 7
  %v151 = vsub.s32 0, %v150
  %v152 = vrot.slane %v147, %v151
  %vm154 = vcmask 523264
  %v156 = vsel %vm154, %v138, 0
  %158 = vmatprep.subr.mxu0 0.0
  %159 = vmatpush1.msra.mxu0 0.0
  %160 = vmatprep.subr.mxu0 0.0
  %161 = vmatpush1.msra.mxu0 0.0
  %162 = vmatprep.subr.mxu0 0.0
  %163 = vmatpush1.msra.mxu0 0.0
  %164 = vmatprep.subr.mxu0 0.0
  %165 = vmatpush1.msra.mxu0 0.0
  %166 = vmatprep.subr.mxu0 0.0
  %167 = vmatpush1.msra.mxu0 0.0
  %168 = vmatprep.subr.mxu0 0.0
  %169 = vmatpush1.msra.mxu0 0.0
  %170 = vmatprep.subr.mxu0 0.0
  %171 = vmatpush1.msra.mxu0 0.0
  %172 = vmatprep.subr.mxu0 0.0
  %173 = vmatpush1.msra.mxu0 0.0
  %174 = vmatprep.subr.mxu0 0.0
  %175 = vmatpush1.msra.mxu0 %v146
  %176 = vmatprep.subr.mxu0 0.0
  %177 = vmatpush1.msra.mxu0 %v145
  %178 = vmatprep.subr.mxu0 0.0
  %179 = vmatpush1.msra.mxu0 %v144
  %180 = vmatprep.subr.mxu0 0.0
  %181 = vmatpush1.msra.mxu0 %v143
  %182 = vmatprep.subr.mxu0 0.0
  %183 = vmatpush1.msra.mxu0 %v142
  %184 = vmatprep.subr.mxu0 0.0
  %185 = vmatpush1.msra.mxu0 %v141
  %186 = vmatprep.subr.mxu0 0.0
  %187 = vmatpush1.msra.mxu0 %v140
  %188 = vmatprep.subr.mxu0 0.0
  %189 = vmatpush1.msra.mxu0 %v139
  %190 = vmatprep.subr.mxu0 0.0
  %191 = vmatpush2.msra.mxu0 0.0
  %192 = vmatprep.subr.mxu0 0.0
  %193 = vmatpush2.msra.mxu0 0.0
  %194 = vmatprep.subr.mxu0 0.0
  %195 = vmatpush2.msra.mxu0 0.0
  %196 = vmatprep.subr.mxu0 0.0
  %197 = vmatpush2.msra.mxu0 0.0
  %198 = vmatprep.subr.mxu0 0.0
  %199 = vmatpush2.msra.mxu0 0.0
  %200 = vmatprep.subr.mxu0 0.0
  %201 = vmatpush2.msra.mxu0 0.0
  %202 = vmatprep.subr.mxu0 0.0
  %203 = vmatpush2.msra.mxu0 0.0
  %204 = vmatprep.subr.mxu0 0.0
  %205 = vmatpush2.msra.mxu0 0.0
  %206 = vmatprep.subr.mxu0 0.0
  %207 = vmatpush2.msra.mxu0 0.0
  %208 = vmatprep.subr.mxu0 0.0
  %209 = vmatpush2.msra.mxu0 0.0
  %210 = vmatprep.subr.mxu0 0.0
  %211 = vmatpush2.msra.mxu0 0.0
  %212 = vmatprep.subr.mxu0 0.0
  %213 = vmatpush2.msra.mxu0 0.0
  %214 = vmatprep.subr.mxu0 0.0
  %215 = vmatpush2.msra.mxu0 0.0
  %216 = vmatprep.subr.mxu0 0.0
  %217 = vmatpush2.msra.mxu0 0.0
  %218 = vmatprep.subr.mxu0 0.0
  %219 = vmatpush2.msra.mxu0 0.0
  %220 = vmatprep.subr.mxu0 0.0
  %221 = vmatpush2.msra.mxu0 0.0
  %222 = vmatprep.mubr.f32.mxu0 0.0
  %223 = vmatmul.mubr.f32.gmra.mxu0 %v156
  %v224 = vpop.f32.mrf.mxu0
  %v225 = vadd.f32 %v152, %v224
  %v226 = vpop.f32.mrf.mxu0
  %227 = vdwg.mxu0
  %v228 = vld [vmem:[%s6] sm:$0xff]
  %v229 = vld [vmem:[%s6 + $0x8] sm:$0xff]
  %v230 = vld [vmem:[%s6 + $0x10] sm:$0xff]
  %v231 = vld [vmem:[%s6 + $0x18] sm:$0xff]
  %v232 = vld [vmem:[%s6 + $0x20] sm:$0xff]
  %v233 = vld [vmem:[%s6 + $0x28] sm:$0xff]
  %v234 = vld [vmem:[%s6 + $0x30] sm:$0xff]
  %v235 = vld [vmem:[%s6 + $0x38] sm:$0xff]
  %v236 = vld [vmem:[%s7] sm:$0x1]
  %v238 = vlaneseq
  %v239 = vshrl.u32 %v238, 7
  %v240 = vsub.s32 0, %v239
  %v241 = vrot.slane %v236, %v240
  %v244 = vsel %vm154, %v225, 0
  %246 = vmatprep.subr.mxu0 0.0
  %247 = vmatpush1.msra.mxu0 0.0
  %248 = vmatprep.subr.mxu0 0.0
  %249 = vmatpush1.msra.mxu0 0.0
  %250 = vmatprep.subr.mxu0 0.0
  %251 = vmatpush1.msra.mxu0 0.0
  %252 = vmatprep.subr.mxu0 0.0
  %253 = vmatpush1.msra.mxu0 0.0
  %254 = vmatprep.subr.mxu0 0.0
  %255 = vmatpush1.msra.mxu0 0.0
  %256 = vmatprep.subr.mxu0 0.0
  %257 = vmatpush1.msra.mxu0 0.0
  %258 = vmatprep.subr.mxu0 0.0
  %259 = vmatpush1.msra.mxu0 0.0
  %260 = vmatprep.subr.mxu0 0.0
  %261 = vmatpush1.msra.mxu0 0.0
  %262 = vmatprep.subr.mxu0 0.0
  %263 = vmatpush1.msra.mxu0 %v235
  %264 = vmatprep.subr.mxu0 0.0
  %265 = vmatpush1.msra.mxu0 %v234
  %266 = vmatprep.subr.mxu0 0.0
  %267 = vmatpush1.msra.mxu0 %v233
  %268 = vmatprep.subr.mxu0 0.0
  %269 = vmatpush1.msra.mxu0 %v232
  %270 = vmatprep.subr.mxu0 0.0
  %271 = vmatpush1.msra.mxu0 %v231
  %272 = vmatprep.subr.mxu0 0.0
  %273 = vmatpush1.msra.mxu0 %v230
  %274 = vmatprep.subr.mxu0 0.0
  %275 = vmatpush1.msra.mxu0 %v229
  %276 = vmatprep.subr.mxu0 0.0
  %277 = vmatpush1.msra.mxu0 %v228
  %278 = vmatprep.subr.mxu0 0.0
  %279 = vmatpush2.msra.mxu0 0.0
  %280 = vmatprep.subr.mxu0 0.0
  %281 = vmatpush2.msra.mxu0 0.0
  %282 = vmatprep.subr.mxu0 0.0
  %283 = vmatpush2.msra.mxu0 0.0
  %284 = vmatprep.subr.mxu0 0.0
  %285 = vmatpush2.msra.mxu0 0.0
  %286 = vmatprep.subr.mxu0 0.0
  %287 = vmatpush2.msra.mxu0 0.0
  %288 = vmatprep.subr.mxu0 0.0
  %289 = vmatpush2.msra.mxu0 0.0
  %290 = vmatprep.subr.mxu0 0.0
  %291 = vmatpush2.msra.mxu0 0.0
  %292 = vmatprep.subr.mxu0 0.0
  %293 = vmatpush2.msra.mxu0 0.0
  %294 = vmatprep.subr.mxu0 0.0
  %295 = vmatpush2.msra.mxu0 0.0
  %296 = vmatprep.subr.mxu0 0.0
  %297 = vmatpush2.msra.mxu0 0.0
  %298 = vmatprep.subr.mxu0 0.0
  %299 = vmatpush2.msra.mxu0 0.0
  %300 = vmatprep.subr.mxu0 0.0
  %301 = vmatpush2.msra.mxu0 0.0
  %302 = vmatprep.subr.mxu0 0.0
  %303 = vmatpush2.msra.mxu0 0.0
  %304 = vmatprep.subr.mxu0 0.0
  %305 = vmatpush2.msra.mxu0 0.0
  %306 = vmatprep.subr.mxu0 0.0
  %307 = vmatpush2.msra.mxu0 0.0
  %308 = vmatprep.subr.mxu0 0.0
  %309 = vmatpush2.msra.mxu0 0.0
  %310 = vmatprep.mubr.f32.mxu0 0.0
  %311 = vmatmul.mubr.f32.gmra.mxu0 %v244
  %v312 = vpop.f32.mrf.mxu0
  %v313 = vadd.f32 %v241, %v312
  %v314 = vpop.f32.mrf.mxu0
  %315 = vdwg.mxu0
  %vm316 = vcmask 58368
  %317 = vst.msk [vmem:[%s8] sm:$0x3] %vm316, %v313
  // Predicated region
  $region34: #{convnext_forward.13} parent=0 // pred_check
    _
  $region35: #{convnext_forward.13} parent=0 // pred_check_branch
    %319 = sbr.rel (0) target = $region37
  $region36: #{convnext_forward.13} parent=0 // pred_region
    _
  $region37: #{convnext_forward.13} parent=0 // pred_fallthru
    _
  // Predicated region
  $region38: #{convnext_forward.13} parent=0 // pred_check
    _
  $region39: #{convnext_forward.13} parent=0 // pred_check_branch
    %321 = sbr.rel (0) target = $region41
  $region40: #{convnext_forward.13} parent=0 // pred_region
    _
  $region41: #{convnext_forward.13} parent=0 // pred_fallthru
    _

// kernel: convnext_forward.11
$region0: #{convnext_forward.11}
  #allocation0 [shape = 'u32[]', space=smem, size = 0x4, offset = 0x4, fixed_abs, tag = 'smem constant byte address 0x4 - core index']
  #allocation1 [shape = 'u32[144,128]{1,0:T(1,128)}', space=vmem, size = 0x12000, scoped, tag = 'internal scratch']
  %s0 = inlined_call_operand.vmem [shape: f32[32,64], index: 0, kind: input, shape index: {}]
  %s1 = inlined_call_operand.vmem [shape: f32[49,32,64], index: 1, kind: input, shape index: {}]
  %s2 = inlined_call_operand.vmem [shape: f32[49,1,64], index: 2, kind: input, shape index: {}]
  %s3 = inlined_call_operand.vmem [shape: f32[1,64], index: 3, kind: input, shape index: {}]
  %s4 = inlined_call_operand.vmem [shape: f32[1,64], index: 4, kind: input, shape index: {}]
  %s5 = inlined_call_operand.vmem [shape: f32[1,64], index: 5, kind: input, shape index: {}]
  %s6 = inlined_call_operand.vmem [shape: f32[64,256], index: 6, kind: input, shape index: {}]
  %s7 = inlined_call_operand.vmem [shape: f32[1,256], index: 7, kind: input, shape index: {}]
  %s8 = inlined_call_operand.vmem [shape: f32[256,64], index: 8, kind: input, shape index: {}]
  %s9 = inlined_call_operand.vmem [shape: f32[1,64], index: 9, kind: input, shape index: {}]
  %s10 = inlined_call_operand.vmem [shape: f32[1,64], index: 10, kind: input, shape index: {}]
  %s11 = inlined_call_operand.vmem [shape: f32[32,64], index: 11, kind: output, shape index: {}]
  %s12 = sld [smem:[#allocation0]]
  $region54: #{convnext_forward.11} parent=0
    _
  %s14 = ssub.s32 1, %s12
  %s15 = scalar_select 0, %s14, %s12
  // Predicated region
  $region2: #{convnext_forward.11} parent=0 // pred_check
    _
  $region3: #{convnext_forward.11} parent=0 // pred_check_branch
    %17 = sbr.rel (0) target = $region5
  $region4: #{convnext_forward.11} parent=0 // pred_region
    _
  $region5: #{convnext_forward.11} parent=0 // pred_fallthru
    _
  // Predicated region
  $region6: #{convnext_forward.11} parent=0 // pred_check
    _
  $region7: #{convnext_forward.11} parent=0 // pred_check_branch
    %19 = sbr.rel (0) target = $region9
  $region8: #{convnext_forward.11} parent=0 // pred_region
    _
  $region9: #{convnext_forward.11} parent=0 // pred_fallthru
    _
  // Predicated region
  $region10: #{convnext_forward.11} parent=0 // pred_check
    _
  $region11: #{convnext_forward.11} parent=0 // pred_check_branch
    %21 = sbr.rel (0) target = $region13
  $region12: #{convnext_forward.11} parent=0 // pred_region
    _
  $region13: #{convnext_forward.11} parent=0 // pred_fallthru
    _
  // Predicated region
  $region14: #{convnext_forward.11} parent=0 // pred_check
    _
  $region15: #{convnext_forward.11} parent=0 // pred_check_branch
    %23 = sbr.rel (0) target = $region17
  $region16: #{convnext_forward.11} parent=0 // pred_region
    _
  $region17: #{convnext_forward.11} parent=0 // pred_fallthru
    _
  // Predicated region
  $region18: #{convnext_forward.11} parent=0 // pred_check
    _
  $region19: #{convnext_forward.11} parent=0 // pred_check_branch
    %25 = sbr.rel (0) target = $region21
  $region20: #{convnext_forward.11} parent=0 // pred_region
    _
  $region21: #{convnext_forward.11} parent=0 // pred_fallthru
    _
  // Predicated region
  $region22: #{convnext_forward.11} parent=0 // pred_check
    _
  $region23: #{convnext_forward.11} parent=0 // pred_check_branch
    %27 = sbr.rel (0) target = $region25
  $region24: #{convnext_forward.11} parent=0 // pred_region
    _
  $region25: #{convnext_forward.11} parent=0 // pred_fallthru
    _
  // Predicated region
  $region26: #{convnext_forward.11} parent=0 // pred_check
    _
  $region27: #{convnext_forward.11} parent=0 // pred_check_branch
    %29 = sbr.rel (0) target = $region29
  $region28: #{convnext_forward.11} parent=0 // pred_region
    _
  $region29: #{convnext_forward.11} parent=0 // pred_fallthru
    _
  // Predicated region
  $region30: #{convnext_forward.11} parent=0 // pred_check
    _
  $region31: #{convnext_forward.11} parent=0 // pred_check_branch
    %31 = sbr.rel (0) target = $region33
  $region32: #{convnext_forward.11} parent=0 // pred_region
    _
  $region33: #{convnext_forward.11} parent=0 // pred_fallthru
    _
  // Predicated region
  $region34: #{convnext_forward.11} parent=0 // pred_check
    _
  $region35: #{convnext_forward.11} parent=0 // pred_check_branch
    %33 = sbr.rel (0) target = $region37
  $region36: #{convnext_forward.11} parent=0 // pred_region
    _
  $region37: #{convnext_forward.11} parent=0 // pred_fallthru
    _
  // Predicated region
  $region38: #{convnext_forward.11} parent=0 // pred_check
    _
  $region39: #{convnext_forward.11} parent=0 // pred_check_branch
    %35 = sbr.rel (0) target = $region41
  $region40: #{convnext_forward.11} parent=0 // pred_region
    _
  $region41: #{convnext_forward.11} parent=0 // pred_fallthru
    _
  // Predicated region
  $region42: #{convnext_forward.11} parent=0 // pred_check
    _
  $region43: #{convnext_forward.11} parent=0 // pred_check_branch
    %37 = sbr.rel (0) target = $region45
  $region44: #{convnext_forward.11} parent=0 // pred_region
    _
  $region45: #{convnext_forward.11} parent=0 // pred_fallthru
    _
  %v38 = vld [vmem:[%s0] sm:$0xff]
  %v39 = vld [vmem:[%s0 + $0x8] sm:$0xff]
  %v40 = vld [vmem:[%s0 + $0x10] sm:$0xff]
  %v41 = vld [vmem:[%s0 + $0x18] sm:$0xff]
  %v42 = vld [vmem:[%s1] sm:$0xff]
  %v43 = vld [vmem:[%s1 + $0x8] sm:$0xff]
  %v44 = vld [vmem:[%s1 + $0x10] sm:$0xff]
  %v45 = vld [vmem:[%s1 + $0x18] sm:$0xff]
  %v46 = vld [vmem:[%s2] sm:$0x1]
  %v48 = vlaneseq
  %v49 = vshrl.u32 %v48, 7
  %v50 = vsub.s32 0, %v49
  %v51 = vrot.slane %v46, %v50
  %v53 = vmul.f32 %v42, %v51
  %v54 = vmul.f32 %v43, %v51
  %v55 = vmul.f32 %v44, %v51
  %v56 = vmul.f32 %v45, %v51
  %s57 = scalar_lea.vmem %s1, 32
  %v58 = vld [vmem:[%s57] sm:$0xff]
  %v59 = vld [vmem:[%s57 + $0x8] sm:$0xff]
  %v60 = vld [vmem:[%s57 + $0x10] sm:$0xff]
  %v61 = vld [vmem:[%s57 + $0x18] sm:$0xff]
  %s62 = scalar_lea.vmem %s2, 1
  %v63 = vld [vmem:[%s62] sm:$0x1]
  %v65 = vlaneseq
  %v66 = vshrl.u32 %v65, 7
  %v67 = vsub.s32 0, %v66
  %v68 = vrot.slane %v63, %v67
  %v70 = vmul.f32 %v58, %v68
  %v71 = vmul.f32 %v59, %v68
  %v72 = vmul.f32 %v60, %v68
  %v73 = vmul.f32 %v61, %v68
  %v74 = vadd.f32 %v53, %v70
  %v75 = vadd.f32 %v54, %v71
  %v76 = vadd.f32 %v55, %v72
  %v77 = vadd.f32 %v56, %v73
  %s78 = scalar_lea.vmem %s1, 64
  %v79 = vld [vmem:[%s78] sm:$0xff]
  %v80 = vld [vmem:[%s78 + $0x8] sm:$0xff]
  %v81 = vld [vmem:[%s78 + $0x10] sm:$0xff]
  %v82 = vld [vmem:[%s78 + $0x18] sm:$0xff]
  %s83 = scalar_lea.vmem %s2, 2
  %v84 = vld [vmem:[%s83] sm:$0x1]
  %v86 = vlaneseq
  %v87 = vshrl.u32 %v86, 7
  %v88 = vsub.s32 0, %v87
  %v89 = vrot.slane %v84, %v88
  %v91 = vmul.f32 %v79, %v89
  %v92 = vmul.f32 %v80, %v89
  %v93 = vmul.f32 %v81, %v89
  %v94 = vmul.f32 %v82, %v89
  %v95 = vadd.f32 %v74, %v91
  %v96 = vadd.f32 %v75, %v92
  %v97 = vadd.f32 %v76, %v93
  %v98 = vadd.f32 %v77, %v94
  %s99 = scalar_lea.vmem %s1, 96
  %v100 = vld [vmem:[%s99] sm:$0xff]
  %v101 = vld [vmem:[%s99 + $0x8] sm:$0xff]
  %v102 = vld [vmem:[%s99 + $0x10] sm:$0xff]
  %v103 = vld [vmem:[%s99 + $0x18] sm:$0xff]
  %s104 = scalar_lea.vmem %s2, 3
  %v105 = vld [vmem:[%s104] sm:$0x1]
  %v107 = vlaneseq
  %v108 = vshrl.u32 %v107, 7
  %v109 = vsub.s32 0, %v108
  %v110 = vrot.slane %v105, %v109
  %v112 = vmul.f32 %v100, %v110
  %v113 = vmul.f32 %v101, %v110
  %v114 = vmul.f32 %v102, %v110
  %v115 = vmul.f32 %v103, %v110
  %v116 = vadd.f32 %v95, %v112
  %v117 = vadd.f32 %v96, %v113
  %v118 = vadd.f32 %v97, %v114
  %v119 = vadd.f32 %v98, %v115
  %s120 = scalar_lea.vmem %s1, 128
  %v121 = vld [vmem:[%s120] sm:$0xff]
  %v122 = vld [vmem:[%s120 + $0x8] sm:$0xff]
  %v123 = vld [vmem:[%s120 + $0x10] sm:$0xff]
  %v124 = vld [vmem:[%s120 + $0x18] sm:$0xff]
  %s125 = scalar_lea.vmem %s2, 4
  %v126 = vld [vmem:[%s125] sm:$0x1]
  %v128 = vlaneseq
  %v129 = vshrl.u32 %v128, 7
  %v130 = vsub.s32 0, %v129
  %v131 = vrot.slane %v126, %v130
  %v133 = vmul.f32 %v121, %v131
  %v134 = vmul.f32 %v122, %v131
  %v135 = vmul.f32 %v123, %v131
  %v136 = vmul.f32 %v124, %v131
  %v137 = vadd.f32 %v116, %v133
  %v138 = vadd.f32 %v117, %v134
  %v139 = vadd.f32 %v118, %v135
  %v140 = vadd.f32 %v119, %v136
  %s141 = scalar_lea.vmem %s1, 160
  %v142 = vld [vmem:[%s141] sm:$0xff]
  %v143 = vld [vmem:[%s141 + $0x8] sm:$0xff]
  %v144 = vld [vmem:[%s141 + $0x10] sm:$0xff]
  %v145 = vld [vmem:[%s141 + $0x18] sm:$0xff]
  %s146 = scalar_lea.vmem %s2, 5
  %v147 = vld [vmem:[%s146] sm:$0x1]
  %v149 = vlaneseq
  %v150 = vshrl.u32 %v149, 7
  %v151 = vsub.s32 0, %v150
  %v152 = vrot.slane %v147, %v151
  %v154 = vmul.f32 %v142, %v152
  %v155 = vmul.f32 %v143, %v152
  %v156 = vmul.f32 %v144, %v152
  %v157 = vmul.f32 %v145, %v152
  %v158 = vadd.f32 %v137, %v154
  %v159 = vadd.f32 %v138, %v155
  %v160 = vadd.f32 %v139, %v156
  %v161 = vadd.f32 %v140, %v157
  %s162 = scalar_lea.vmem %s1, 192
  %v163 = vld [vmem:[%s162] sm:$0xff]
  %v164 = vld [vmem:[%s162 + $0x8] sm:$0xff]
  %v165 = vld [vmem:[%s162 + $0x10] sm:$0xff]
  %v166 = vld [vmem:[%s162 + $0x18] sm:$0xff]
  %s167 = scalar_lea.vmem %s2, 6
  %v168 = vld [vmem:[%s167] sm:$0x1]
  %v170 = vlaneseq
  %v171 = vshrl.u32 %v170, 7
  %v172 = vsub.s32 0, %v171
  %v173 = vrot.slane %v168, %v172
  %v175 = vmul.f32 %v163, %v173
  %v176 = vmul.f32 %v164, %v173
  %v177 = vmul.f32 %v165, %v173
  %v178 = vmul.f32 %v166, %v173
  %v179 = vadd.f32 %v158, %v175
  %v180 = vadd.f32 %v159, %v176
  %v181 = vadd.f32 %v160, %v177
  %v182 = vadd.f32 %v161, %v178
  %s183 = scalar_lea.vmem %s1, 224
  %v184 = vld [vmem:[%s183] sm:$0xff]
  %v185 = vld [vmem:[%s183 + $0x8] sm:$0xff]
  %v186 = vld [vmem:[%s183 + $0x10] sm:$0xff]
  %v187 = vld [vmem:[%s183 + $0x18] sm:$0xff]
  %s188 = scalar_lea.vmem %s2, 7
  %v189 = vld [vmem:[%s188] sm:$0x1]
  %v191 = vlaneseq
  %v192 = vshrl.u32 %v191, 7
  %v193 = vsub.s32 0, %v192
  %v194 = vrot.slane %v189, %v193
  %v196 = vmul.f32 %v184, %v194
  %v197 = vmul.f32 %v185, %v194
  %v198 = vmul.f32 %v186, %v194
  %v199 = vmul.f32 %v187, %v194
  %v200 = vadd.f32 %v179, %v196
  %v201 = vadd.f32 %v180, %v197
  %v202 = vadd.f32 %v181, %v198
  %v203 = vadd.f32 %v182, %v199
  %s204 = scalar_lea.vmem %s1, 256
  %v205 = vld [vmem:[%s204] sm:$0xff]
  %v206 = vld [vmem:[%s204 + $0x8] sm:$0xff]
  %v207 = vld [vmem:[%s204 + $0x10] sm:$0xff]
  %v208 = vld [vmem:[%s204 + $0x18] sm:$0xff]
  %s209 = scalar_lea.vmem %s2, 8
  %v210 = vld [vmem:[%s209] sm:$0x1]
  %v212 = vlaneseq
  %v213 = vshrl.u32 %v212, 7
  %v214 = vsub.s32 0, %v213
  %v215 = vrot.slane %v210, %v214
  %v217 = vmul.f32 %v205, %v215
  %v218 = vmul.f32 %v206, %v215
  %v219 = vmul.f32 %v207, %v215
  %v220 = vmul.f32 %v208, %v215
  %v221 = vadd.f32 %v200, %v217
  %v222 = vadd.f32 %v201, %v218
  %v223 = vadd.f32 %v202, %v219
  %v224 = vadd.f32 %v203, %v220
  %s225 = scalar_lea.vmem %s1, 288
  %v226 = vld [vmem:[%s225] sm:$0xff]
  %v227 = vld [vmem:[%s225 + $0x8] sm:$0xff]
  %v228 = vld [vmem:[%s225 + $0x10] sm:$0xff]
  %v229 = vld [vmem:[%s225 + $0x18] sm:$0xff]
  %s230 = scalar_lea.vmem %s2, 9
  %v231 = vld [vmem:[%s230] sm:$0x1]
  %v233 = vlaneseq
  %v234 = vshrl.u32 %v233, 7
  %v235 = vsub.s32 0, %v234
  %v236 = vrot.slane %v231, %v235
  %v238 = vmul.f32 %v226, %v236
  %v239 = vmul.f32 %v227, %v236
  %v240 = vmul.f32 %v228, %v236
  %v241 = vmul.f32 %v229, %v236
  %v242 = vadd.f32 %v221, %v238
  %v243 = vadd.f32 %v222, %v239
  %v244 = vadd.f32 %v223, %v240
  %v245 = vadd.f32 %v224, %v241
  %s246 = scalar_lea.vmem %s1, 320
  %v247 = vld [vmem:[%s246] sm:$0xff]
  %v248 = vld [vmem:[%s246 + $0x8] sm:$0xff]
  %v249 = vld [vmem:[%s246 + $0x10] sm:$0xff]
  %v250 = vld [vmem:[%s246 + $0x18] sm:$0xff]
  %s251 = scalar_lea.vmem %s2, 10
  %v252 = vld [vmem:[%s251] sm:$0x1]
  %v254 = vlaneseq
  %v255 = vshrl.u32 %v254, 7
  %v256 = vsub.s32 0, %v255
  %v257 = vrot.slane %v252, %v256
  %v259 = vmul.f32 %v247, %v257
  %v260 = vmul.f32 %v248, %v257
  %v261 = vmul.f32 %v249, %v257
  %v262 = vmul.f32 %v250, %v257
  %v263 = vadd.f32 %v242, %v259
  %v264 = vadd.f32 %v243, %v260
  %v265 = vadd.f32 %v244, %v261
  %v266 = vadd.f32 %v245, %v262
  %s267 = scalar_lea.vmem %s1, 352
  %v268 = vld [vmem:[%s267] sm:$0xff]
  %v269 = vld [vmem:[%s267 + $0x8] sm:$0xff]
  %v270 = vld [vmem:[%s267 + $0x10] sm:$0xff]
  %v271 = vld [vmem:[%s267 + $0x18] sm:$0xff]
  %s272 = scalar_lea.vmem %s2, 11
  %v273 = vld [vmem:[%s272] sm:$0x1]
  %v275 = vlaneseq
  %v276 = vshrl.u32 %v275, 7
  %v277 = vsub.s32 0, %v276
  %v278 = vrot.slane %v273, %v277
  %v280 = vmul.f32 %v268, %v278
  %v281 = vmul.f32 %v269, %v278
  %v282 = vmul.f32 %v270, %v278
  %v283 = vmul.f32 %v271, %v278
  %v284 = vadd.f32 %v263, %v280
  %v285 = vadd.f32 %v264, %v281
  %v286 = vadd.f32 %v265, %v282
  %v287 = vadd.f32 %v266, %v283
  %s288 = scalar_lea.vmem %s1, 384
  %v289 = vld [vmem:[%s288] sm:$0xff]
  %v290 = vld [vmem:[%s288 + $0x8] sm:$0xff]
  %v291 = vld [vmem:[%s288 + $0x10] sm:$0xff]
  %v292 = vld [vmem:[%s288 + $0x18] sm:$0xff]
  %s293 = scalar_lea.vmem %s2, 12
  %v294 = vld [vmem:[%s293] sm:$0x1]
  %v296 = vlaneseq
  %v297 = vshrl.u32 %v296, 7
  %v298 = vsub.s32 0, %v297
  %v299 = vrot.slane %v294, %v298
  %v301 = vmul.f32 %v289, %v299
  %v302 = vmul.f32 %v290, %v299
  %v303 = vmul.f32 %v291, %v299
  %v304 = vmul.f32 %v292, %v299
  %v305 = vadd.f32 %v284, %v301
  %v306 = vadd.f32 %v285, %v302
  %v307 = vadd.f32 %v286, %v303
  %v308 = vadd.f32 %v287, %v304
  %s309 = scalar_lea.vmem %s1, 416
  %v310 = vld [vmem:[%s309] sm:$0xff]
  %v311 = vld [vmem:[%s309 + $0x8] sm:$0xff]
  %v312 = vld [vmem:[%s309 + $0x10] sm:$0xff]
  %v313 = vld [vmem:[%s309 + $0x18] sm:$0xff]
  %s314 = scalar_lea.vmem %s2, 13
  %v315 = vld [vmem:[%s314] sm:$0x1]
  %v317 = vlaneseq
  %v318 = vshrl.u32 %v317, 7
  %v319 = vsub.s32 0, %v318
  %v320 = vrot.slane %v315, %v319
  %v322 = vmul.f32 %v310, %v320
  %v323 = vmul.f32 %v311, %v320
  %v324 = vmul.f32 %v312, %v320
  %v325 = vmul.f32 %v313, %v320
  %v326 = vadd.f32 %v305, %v322
  %v327 = vadd.f32 %v306, %v323
  %v328 = vadd.f32 %v307, %v324
  %v329 = vadd.f32 %v308, %v325
  %s330 = scalar_lea.vmem %s1, 448
  %v331 = vld [vmem:[%s330] sm:$0xff]
  %v332 = vld [vmem:[%s330 + $0x8] sm:$0xff]
  %v333 = vld [vmem:[%s330 + $0x10] sm:$0xff]
  %v334 = vld [vmem:[%s330 + $0x18] sm:$0xff]
  %s335 = scalar_lea.vmem %s2, 14
  %v336 = vld [vmem:[%s335] sm:$0x1]
  %v338 = vlaneseq
  %v339 = vshrl.u32 %v338, 7
  %v340 = vsub.s32 0, %v339
  %v341 = vrot.slane %v336, %v340
  %v343 = vmul.f32 %v331, %v341
  %v344 = vmul.f32 %v332, %v341
  %v345 = vmul.f32 %v333, %v341
  %v346 = vmul.f32 %v334, %v341
  %v347 = vadd.f32 %v326, %v343
  %v348 = vadd.f32 %v327, %v344
  %v349 = vadd.f32 %v328, %v345
  %v350 = vadd.f32 %v329, %v346
  %s351 = scalar_lea.vmem %s1, 480
  %v352 = vld [vmem:[%s351] sm:$0xff]
  %v353 = vld [vmem:[%s351 + $0x8] sm:$0xff]
  %v354 = vld [vmem:[%s351 + $0x10] sm:$0xff]
  %v355 = vld [vmem:[%s351 + $0x18] sm:$0xff]
  %s356 = scalar_lea.vmem %s2, 15
  %v357 = vld [vmem:[%s356] sm:$0x1]
  %v359 = vlaneseq
  %v360 = vshrl.u32 %v359, 7
  %v361 = vsub.s32 0, %v360
  %v362 = vrot.slane %v357, %v361
  %v364 = vmul.f32 %v352, %v362
  %v365 = vmul.f32 %v353, %v362
  %v366 = vmul.f32 %v354, %v362
  %v367 = vmul.f32 %v355, %v362
  %v368 = vadd.f32 %v347, %v364
  %v369 = vadd.f32 %v348, %v365
  %v370 = vadd.f32 %v349, %v366
  %v371 = vadd.f32 %v350, %v367
  %s372 = scalar_lea.vmem %s1, 512
  %v373 = vld [vmem:[%s372] sm:$0xff]
  %v374 = vld [vmem:[%s372 + $0x8] sm:$0xff]
  %v375 = vld [vmem:[%s372 + $0x10] sm:$0xff]
  %v376 = vld [vmem:[%s372 + $0x18] sm:$0xff]
  %s377 = scalar_lea.vmem %s2, 16
  %v378 = vld [vmem:[%s377] sm:$0x1]
  %v380 = vlaneseq
  %v381 = vshrl.u32 %v380, 7
  %v382 = vsub.s32 0, %v381
  %v383 = vrot.slane %v378, %v382
  %v385 = vmul.f32 %v373, %v383
  %v386 = vmul.f32 %v374, %v383
  %v387 = vmul.f32 %v375, %v383
  %v388 = vmul.f32 %v376, %v383
  %v389 = vadd.f32 %v368, %v385
  %v390 = vadd.f32 %v369, %v386
  %v391 = vadd.f32 %v370, %v387
  %v392 = vadd.f32 %v371, %v388
  %s393 = scalar_lea.vmem %s1, 544
  %v394 = vld [vmem:[%s393] sm:$0xff]
  %v395 = vld [vmem:[%s393 + $0x8] sm:$0xff]
  %v396 = vld [vmem:[%s393 + $0x10] sm:$0xff]
  %v397 = vld [vmem:[%s393 + $0x18] sm:$0xff]
  %s398 = scalar_lea.vmem %s2, 17
  %v399 = vld [vmem:[%s398] sm:$0x1]
  %v401 = vlaneseq
  %v402 = vshrl.u32 %v401, 7
  %v403 = vsub.s32 0, %v402
  %v404 = vrot.slane %v399, %v403
  %v406 = vmul.f32 %v394, %v404
  %v407 = vmul.f32 %v395, %v404
  %v408 = vmul.f32 %v396, %v404
  %v409 = vmul.f32 %v397, %v404
  %v410 = vadd.f32 %v389, %v406
  %v411 = vadd.f32 %v390, %v407
  %v412 = vadd.f32 %v391, %v408
  %v413 = vadd.f32 %v392, %v409
  %s414 = scalar_lea.vmem %s1, 576
  %v415 = vld [vmem:[%s414] sm:$0xff]
  %v416 = vld [vmem:[%s414 + $0x8] sm:$0xff]
  %v417 = vld [vmem:[%s414 + $0x10] sm:$0xff]
  %v418 = vld [vmem:[%s414 + $0x18] sm:$0xff]
  %s419 = scalar_lea.vmem %s2, 18
  %v420 = vld [vmem:[%s419] sm:$0x1]
  %v422 = vlaneseq
  %v423 = vshrl.u32 %v422, 7
  %v424 = vsub.s32 0, %v423
  %v425 = vrot.slane %v420, %v424
  %v427 = vmul.f32 %v415, %v425
  %v428 = vmul.f32 %v416, %v425
  %v429 = vmul.f32 %v417, %v425
  %v430 = vmul.f32 %v418, %v425
  %v431 = vadd.f32 %v410, %v427
  %v432 = vadd.f32 %v411, %v428
  %v433 = vadd.f32 %v412, %v429
  %v434 = vadd.f32 %v413, %v430
  %s435 = scalar_lea.vmem %s1, 608
  %v436 = vld [vmem:[%s435] sm:$0xff]
  %v437 = vld [vmem:[%s435 + $0x8] sm:$0xff]
  %v438 = vld [vmem:[%s435 + $0x10] sm:$0xff]
  %v439 = vld [vmem:[%s435 + $0x18] sm:$0xff]
  %s440 = scalar_lea.vmem %s2, 19
  %v441 = vld [vmem:[%s440] sm:$0x1]
  %v443 = vlaneseq
  %v444 = vshrl.u32 %v443, 7
  %v445 = vsub.s32 0, %v444
  %v446 = vrot.slane %v441, %v445
  %v448 = vmul.f32 %v436, %v446
  %v449 = vmul.f32 %v437, %v446
  %v450 = vmul.f32 %v438, %v446
  %v451 = vmul.f32 %v439, %v446
  %v452 = vadd.f32 %v431, %v448
  %v453 = vadd.f32 %v432, %v449
  %v454 = vadd.f32 %v433, %v450
  %v455 = vadd.f32 %v434, %v451
  %s456 = scalar_lea.vmem %s1, 640
  %v457 = vld [vmem:[%s456] sm:$0xff]
  %v458 = vld [vmem:[%s456 + $0x8] sm:$0xff]
  %v459 = vld [vmem:[%s456 + $0x10] sm:$0xff]
  %v460 = vld [vmem:[%s456 + $0x18] sm:$0xff]
  %s461 = scalar_lea.vmem %s2, 20
  %v462 = vld [vmem:[%s461] sm:$0x1]
  %v464 = vlaneseq
  %v465 = vshrl.u32 %v464, 7
  %v466 = vsub.s32 0, %v465
  %v467 = vrot.slane %v462, %v466
  %v469 = vmul.f32 %v457, %v467
  %v470 = vmul.f32 %v458, %v467
  %v471 = vmul.f32 %v459, %v467
  %v472 = vmul.f32 %v460, %v467
  %v473 = vadd.f32 %v452, %v469
  %v474 = vadd.f32 %v453, %v470
  %v475 = vadd.f32 %v454, %v471
  %v476 = vadd.f32 %v455, %v472
  %s477 = scalar_lea.vmem %s1, 672
  %v478 = vld [vmem:[%s477] sm:$0xff]
  %v479 = vld [vmem:[%s477 + $0x8] sm:$0xff]
  %v480 = vld [vmem:[%s477 + $0x10] sm:$0xff]
  %v481 = vld [vmem:[%s477 + $0x18] sm:$0xff]
  %s482 = scalar_lea.vmem %s2, 21
  %v483 = vld [vmem:[%s482] sm:$0x1]
  %v485 = vlaneseq
  %v486 = vshrl.u32 %v485, 7
  %v487 = vsub.s32 0, %v486
  %v488 = vrot.slane %v483, %v487
  %v490 = vmul.f32 %v478, %v488
  %v491 = vmul.f32 %v479, %v488
  %v492 = vmul.f32 %v480, %v488
  %v493 = vmul.f32 %v481, %v488
  %v494 = vadd.f32 %v473, %v490
  %v495 = vadd.f32 %v474, %v491
  %v496 = vadd.f32 %v475, %v492
  %v497 = vadd.f32 %v476, %v493
  %s498 = scalar_lea.vmem %s1, 704
  %v499 = vld [vmem:[%s498] sm:$0xff]
  %v500 = vld [vmem:[%s498 + $0x8] sm:$0xff]
  %v501 = vld [vmem:[%s498 + $0x10] sm:$0xff]
  %v502 = vld [vmem:[%s498 + $0x18] sm:$0xff]
  %s503 = scalar_lea.vmem %s2, 22
  %v504 = vld [vmem:[%s503] sm:$0x1]
  %v506 = vlaneseq
  %v507 = vshrl.u32 %v506, 7
  %v508 = vsub.s32 0, %v507
  %v509 = vrot.slane %v504, %v508
  %v511 = vmul.f32 %v499, %v509
  %v512 = vmul.f32 %v500, %v509
  %v513 = vmul.f32 %v501, %v509
  %v514 = vmul.f32 %v502, %v509
  %v515 = vadd.f32 %v494, %v511
  %v516 = vadd.f32 %v495, %v512
  %v517 = vadd.f32 %v496, %v513
  %v518 = vadd.f32 %v497, %v514
  %s519 = scalar_lea.vmem %s1, 736
  %v520 = vld [vmem:[%s519] sm:$0xff]
  %v521 = vld [vmem:[%s519 + $0x8] sm:$0xff]
  %v522 = vld [vmem:[%s519 + $0x10] sm:$0xff]
  %v523 = vld [vmem:[%s519 + $0x18] sm:$0xff]
  %s524 = scalar_lea.vmem %s2, 23
  %v525 = vld [vmem:[%s524] sm:$0x1]
  %v527 = vlaneseq
  %v528 = vshrl.u32 %v527, 7
  %v529 = vsub.s32 0, %v528
  %v530 = vrot.slane %v525, %v529
  %v532 = vmul.f32 %v520, %v530
  %v533 = vmul.f32 %v521, %v530
  %v534 = vmul.f32 %v522, %v530
  %v535 = vmul.f32 %v523, %v530
  %v536 = vadd.f32 %v515, %v532
  %v537 = vadd.f32 %v516, %v533
  %v538 = vadd.f32 %v517, %v534
  %v539 = vadd.f32 %v518, %v535
  %s540 = scalar_lea.vmem %s1, 768
  %v541 = vld [vmem:[%s540] sm:$0xff]
  %v542 = vld [vmem:[%s540 + $0x8] sm:$0xff]
  %v543 = vld [vmem:[%s540 + $0x10] sm:$0xff]
  %v544 = vld [vmem:[%s540 + $0x18] sm:$0xff]
  %s545 = scalar_lea.vmem %s2, 24
  %v546 = vld [vmem:[%s545] sm:$0x1]
  %v548 = vlaneseq
  %v549 = vshrl.u32 %v548, 7
  %v550 = vsub.s32 0, %v549
  %v551 = vrot.slane %v546, %v550
  %v553 = vmul.f32 %v541, %v551
  %v554 = vmul.f32 %v542, %v551
  %v555 = vmul.f32 %v543, %v551
  %v556 = vmul.f32 %v544, %v551
  %v557 = vadd.f32 %v536, %v553
  %v558 = vadd.f32 %v537, %v554
  %v559 = vadd.f32 %v538, %v555
  %v560 = vadd.f32 %v539, %v556
  %s561 = scalar_lea.vmem %s1, 800
  %v562 = vld [vmem:[%s561] sm:$0xff]
  %v563 = vld [vmem:[%s561 + $0x8] sm:$0xff]
  %v564 = vld [vmem:[%s561 + $0x10] sm:$0xff]
  %v565 = vld [vmem:[%s561 + $0x18] sm:$0xff]
  %s566 = scalar_lea.vmem %s2, 25
  %v567 = vld [vmem:[%s566] sm:$0x1]
  %v569 = vlaneseq
  %v570 = vshrl.u32 %v569, 7
  %v571 = vsub.s32 0, %v570
  %v572 = vrot.slane %v567, %v571
  %v574 = vmul.f32 %v562, %v572
  %v575 = vmul.f32 %v563, %v572
  %v576 = vmul.f32 %v564, %v572
  %v577 = vmul.f32 %v565, %v572
  %v578 = vadd.f32 %v557, %v574
  %v579 = vadd.f32 %v558, %v575
  %v580 = vadd.f32 %v559, %v576
  %v581 = vadd.f32 %v560, %v577
  %s582 = scalar_lea.vmem %s1, 832
  %v583 = vld [vmem:[%s582] sm:$0xff]
  %v584 = vld [vmem:[%s582 + $0x8] sm:$0xff]
  %v585 = vld [vmem:[%s582 + $0x10] sm:$0xff]
  %v586 = vld [vmem:[%s582 + $0x18] sm:$0xff]
  %s587 = scalar_lea.vmem %s2, 26
  %v588 = vld [vmem:[%s587] sm:$0x1]
  %v590 = vlaneseq
  %v591 = vshrl.u32 %v590, 7
  %v592 = vsub.s32 0, %v591
  %v593 = vrot.slane %v588, %v592
  %v595 = vmul.f32 %v583, %v593
  %v596 = vmul.f32 %v584, %v593
  %v597 = vmul.f32 %v585, %v593
  %v598 = vmul.f32 %v586, %v593
  %v599 = vadd.f32 %v578, %v595
  %v600 = vadd.f32 %v579, %v596
  %v601 = vadd.f32 %v580, %v597
  %v602 = vadd.f32 %v581, %v598
  %s603 = scalar_lea.vmem %s1, 864
  %v604 = vld [vmem:[%s603] sm:$0xff]
  %v605 = vld [vmem:[%s603 + $0x8] sm:$0xff]
  %v606 = vld [vmem:[%s603 + $0x10] sm:$0xff]
  %v607 = vld [vmem:[%s603 + $0x18] sm:$0xff]
  %s608 = scalar_lea.vmem %s2, 27
  %v609 = vld [vmem:[%s608] sm:$0x1]
  %v611 = vlaneseq
  %v612 = vshrl.u32 %v611, 7
  %v613 = vsub.s32 0, %v612
  %v614 = vrot.slane %v609, %v613
  %v616 = vmul.f32 %v604, %v614
  %v617 = vmul.f32 %v605, %v614
  %v618 = vmul.f32 %v606, %v614
  %v619 = vmul.f32 %v607, %v614
  %v620 = vadd.f32 %v599, %v616
  %v621 = vadd.f32 %v600, %v617
  %v622 = vadd.f32 %v601, %v618
  %v623 = vadd.f32 %v602, %v619
  %s624 = scalar_lea.vmem %s1, 896
  %v625 = vld [vmem:[%s624] sm:$0xff]
  %v626 = vld [vmem:[%s624 + $0x8] sm:$0xff]
  %v627 = vld [vmem:[%s624 + $0x10] sm:$0xff]
  %v628 = vld [vmem:[%s624 + $0x18] sm:$0xff]
  %s629 = scalar_lea.vmem %s2, 28
  %v630 = vld [vmem:[%s629] sm:$0x1]
  %v632 = vlaneseq
  %v633 = vshrl.u32 %v632, 7
  %v634 = vsub.s32 0, %v633
  %v635 = vrot.slane %v630, %v634
  %v637 = vmul.f32 %v625, %v635
  %v638 = vmul.f32 %v626, %v635
  %v639 = vmul.f32 %v627, %v635
  %v640 = vmul.f32 %v628, %v635
  %v641 = vadd.f32 %v620, %v637
  %v642 = vadd.f32 %v621, %v638
  %v643 = vadd.f32 %v622, %v639
  %v644 = vadd.f32 %v623, %v640
  %s645 = scalar_lea.vmem %s1, 928
  %v646 = vld [vmem:[%s645] sm:$0xff]
  %v647 = vld [vmem:[%s645 + $0x8] sm:$0xff]
  %v648 = vld [vmem:[%s645 + $0x10] sm:$0xff]
  %v649 = vld [vmem:[%s645 + $0x18] sm:$0xff]
  %s650 = scalar_lea.vmem %s2, 29
  %v651 = vld [vmem:[%s650] sm:$0x1]
  %v653 = vlaneseq
  %v654 = vshrl.u32 %v653, 7
  %v655 = vsub.s32 0, %v654
  %v656 = vrot.slane %v651, %v655
  %v658 = vmul.f32 %v646, %v656
  %v659 = vmul.f32 %v647, %v656
  %v660 = vmul.f32 %v648, %v656
  %v661 = vmul.f32 %v649, %v656
  %v662 = vadd.f32 %v641, %v658
  %v663 = vadd.f32 %v642, %v659
  %v664 = vadd.f32 %v643, %v660
  %v665 = vadd.f32 %v644, %v661
  %s666 = scalar_lea.vmem %s1, 960
  %v667 = vld [vmem:[%s666] sm:$0xff]
  %v668 = vld [vmem:[%s666 + $0x8] sm:$0xff]
  %v669 = vld [vmem:[%s666 + $0x10] sm:$0xff]
  %v670 = vld [vmem:[%s666 + $0x18] sm:$0xff]
  %s671 = scalar_lea.vmem %s2, 30
  %v672 = vld [vmem:[%s671] sm:$0x1]
  %v674 = vlaneseq
  %v675 = vshrl.u32 %v674, 7
  %v676 = vsub.s32 0, %v675
  %v677 = vrot.slane %v672, %v676
  %v679 = vmul.f32 %v667, %v677
  %v680 = vmul.f32 %v668, %v677
  %v681 = vmul.f32 %v669, %v677
  %v682 = vmul.f32 %v670, %v677
  %v683 = vadd.f32 %v662, %v679
  %v684 = vadd.f32 %v663, %v680
  %v685 = vadd.f32 %v664, %v681
  %v686 = vadd.f32 %v665, %v682
  %s687 = scalar_lea.vmem %s1, 992
  %v688 = vld [vmem:[%s687] sm:$0xff]
  %v689 = vld [vmem:[%s687 + $0x8] sm:$0xff]
  %v690 = vld [vmem:[%s687 + $0x10] sm:$0xff]
  %v691 = vld [vmem:[%s687 + $0x18] sm:$0xff]
  %s692 = scalar_lea.vmem %s2, 31
  %v693 = vld [vmem:[%s692] sm:$0x1]
  %v695 = vlaneseq
  %v696 = vshrl.u32 %v695, 7
  %v697 = vsub.s32 0, %v696
  %v698 = vrot.slane %v693, %v697
  %v700 = vmul.f32 %v688, %v698
  %v701 = vmul.f32 %v689, %v698
  %v702 = vmul.f32 %v690, %v698
  %v703 = vmul.f32 %v691, %v698
  %v704 = vadd.f32 %v683, %v700
  %v705 = vadd.f32 %v684, %v701
  %v706 = vadd.f32 %v685, %v702
  %v707 = vadd.f32 %v686, %v703
  %s708 = scalar_lea.vmem %s1, 1024
  %v709 = vld [vmem:[%s708] sm:$0xff]
  %v710 = vld [vmem:[%s708 + $0x8] sm:$0xff]
  %v711 = vld [vmem:[%s708 + $0x10] sm:$0xff]
  %v712 = vld [vmem:[%s708 + $0x18] sm:$0xff]
  %s713 = scalar_lea.vmem %s2, 32
  %v714 = vld [vmem:[%s713] sm:$0x1]
  %v716 = vlaneseq
  %v717 = vshrl.u32 %v716, 7
  %v718 = vsub.s32 0, %v717
  %v719 = vrot.slane %v714, %v718
  %v721 = vmul.f32 %v709, %v719
  %v722 = vmul.f32 %v710, %v719
  %v723 = vmul.f32 %v711, %v719
  %v724 = vmul.f32 %v712, %v719
  %v725 = vadd.f32 %v704, %v721
  %v726 = vadd.f32 %v705, %v722
  %v727 = vadd.f32 %v706, %v723
  %v728 = vadd.f32 %v707, %v724
  %s729 = scalar_lea.vmem %s1, 1056
  %v730 = vld [vmem:[%s729] sm:$0xff]
  %v731 = vld [vmem:[%s729 + $0x8] sm:$0xff]
  %v732 = vld [vmem:[%s729 + $0x10] sm:$0xff]
  %v733 = vld [vmem:[%s729 + $0x18] sm:$0xff]
  %s734 = scalar_lea.vmem %s2, 33
  %v735 = vld [vmem:[%s734] sm:$0x1]
  %v737 = vlaneseq
  %v738 = vshrl.u32 %v737, 7
  %v739 = vsub.s32 0, %v738
  %v740 = vrot.slane %v735, %v739
  %v742 = vmul.f32 %v730, %v740
  %v743 = vmul.f32 %v731, %v740
  %v744 = vmul.f32 %v732, %v740
  %v745 = vmul.f32 %v733, %v740
  %v746 = vadd.f32 %v725, %v742
  %v747 = vadd.f32 %v726, %v743
  %v748 = vadd.f32 %v727, %v744
  %v749 = vadd.f32 %v728, %v745
  %s750 = scalar_lea.vmem %s1, 1088
  %v751 = vld [vmem:[%s750] sm:$0xff]
  %v752 = vld [vmem:[%s750 + $0x8] sm:$0xff]
  %v753 = vld [vmem:[%s750 + $0x10] sm:$0xff]
  %v754 = vld [vmem:[%s750 + $0x18] sm:$0xff]
  %s755 = scalar_lea.vmem %s2, 34
  %v756 = vld [vmem:[%s755] sm:$0x1]
  %v758 = vlaneseq
  %v759 = vshrl.u32 %v758, 7
  %v760 = vsub.s32 0, %v759
  %v761 = vrot.slane %v756, %v760
  %v763 = vmul.f32 %v751, %v761
  %v764 = vmul.f32 %v752, %v761
  %v765 = vmul.f32 %v753, %v761
  %v766 = vmul.f32 %v754, %v761
  %v767 = vadd.f32 %v746, %v763
  %v768 = vadd.f32 %v747, %v764
  %v769 = vadd.f32 %v748, %v765
  %v770 = vadd.f32 %v749, %v766
  %s771 = scalar_lea.vmem %s1, 1120
  %v772 = vld [vmem:[%s771] sm:$0xff]
  %v773 = vld [vmem:[%s771 + $0x8] sm:$0xff]
  %v774 = vld [vmem:[%s771 + $0x10] sm:$0xff]
  %v775 = vld [vmem:[%s771 + $0x18] sm:$0xff]
  %s776 = scalar_lea.vmem %s2, 35
  %v777 = vld [vmem:[%s776] sm:$0x1]
  %v779 = vlaneseq
  %v780 = vshrl.u32 %v779, 7
  %v781 = vsub.s32 0, %v780
  %v782 = vrot.slane %v777, %v781
  %v784 = vmul.f32 %v772, %v782
  %v785 = vmul.f32 %v773, %v782
  %v786 = vmul.f32 %v774, %v782
  %v787 = vmul.f32 %v775, %v782
  %v788 = vadd.f32 %v767, %v784
  %v789 = vadd.f32 %v768, %v785
  %v790 = vadd.f32 %v769, %v786
  %v791 = vadd.f32 %v770, %v787
  %s792 = scalar_lea.vmem %s1, 1152
  %v793 = vld [vmem:[%s792] sm:$0xff]
  %v794 = vld [vmem:[%s792 + $0x8] sm:$0xff]
  %v795 = vld [vmem:[%s792 + $0x10] sm:$0xff]
  %v796 = vld [vmem:[%s792 + $0x18] sm:$0xff]
  %s797 = scalar_lea.vmem %s2, 36
  %v798 = vld [vmem:[%s797] sm:$0x1]
  %v800 = vlaneseq
  %v801 = vshrl.u32 %v800, 7
  %v802 = vsub.s32 0, %v801
  %v803 = vrot.slane %v798, %v802
  %v805 = vmul.f32 %v793, %v803
  %v806 = vmul.f32 %v794, %v803
  %v807 = vmul.f32 %v795, %v803
  %v808 = vmul.f32 %v796, %v803
  %v809 = vadd.f32 %v788, %v805
  %v810 = vadd.f32 %v789, %v806
  %v811 = vadd.f32 %v790, %v807
  %v812 = vadd.f32 %v791, %v808
  %s813 = scalar_lea.vmem %s1, 1184
  %v814 = vld [vmem:[%s813] sm:$0xff]
  %v815 = vld [vmem:[%s813 + $0x8] sm:$0xff]
  %v816 = vld [vmem:[%s813 + $0x10] sm:$0xff]
  %v817 = vld [vmem:[%s813 + $0x18] sm:$0xff]
  %s818 = scalar_lea.vmem %s2, 37
  %v819 = vld [vmem:[%s818] sm:$0x1]
  %v821 = vlaneseq
  %v822 = vshrl.u32 %v821, 7
  %v823 = vsub.s32 0, %v822
  %v824 = vrot.slane %v819, %v823
  %v826 = vmul.f32 %v814, %v824
  %v827 = vmul.f32 %v815, %v824
  %v828 = vmul.f32 %v816, %v824
  %v829 = vmul.f32 %v817, %v824
  %v830 = vadd.f32 %v809, %v826
  %v831 = vadd.f32 %v810, %v827
  %v832 = vadd.f32 %v811, %v828
  %v833 = vadd.f32 %v812, %v829
  %s834 = scalar_lea.vmem %s1, 1216
  %v835 = vld [vmem:[%s834] sm:$0xff]
  %v836 = vld [vmem:[%s834 + $0x8] sm:$0xff]
  %v837 = vld [vmem:[%s834 + $0x10] sm:$0xff]
  %v838 = vld [vmem:[%s834 + $0x18] sm:$0xff]
  %s839 = scalar_lea.vmem %s2, 38
  %v840 = vld [vmem:[%s839] sm:$0x1]
  %v842 = vlaneseq
  %v843 = vshrl.u32 %v842, 7
  %v844 = vsub.s32 0, %v843
  %v845 = vrot.slane %v840, %v844
  %v847 = vmul.f32 %v835, %v845
  %v848 = vmul.f32 %v836, %v845
  %v849 = vmul.f32 %v837, %v845
  %v850 = vmul.f32 %v838, %v845
  %v851 = vadd.f32 %v830, %v847
  %v852 = vadd.f32 %v831, %v848
  %v853 = vadd.f32 %v832, %v849
  %v854 = vadd.f32 %v833, %v850
  %s855 = scalar_lea.vmem %s1, 1248
  %v856 = vld [vmem:[%s855] sm:$0xff]
  %v857 = vld [vmem:[%s855 + $0x8] sm:$0xff]
  %v858 = vld [vmem:[%s855 + $0x10] sm:$0xff]
  %v859 = vld [vmem:[%s855 + $0x18] sm:$0xff]
  %s860 = scalar_lea.vmem %s2, 39
  %v861 = vld [vmem:[%s860] sm:$0x1]
  %v863 = vlaneseq
  %v864 = vshrl.u32 %v863, 7
  %v865 = vsub.s32 0, %v864
  %v866 = vrot.slane %v861, %v865
  %v868 = vmul.f32 %v856, %v866
  %v869 = vmul.f32 %v857, %v866
  %v870 = vmul.f32 %v858, %v866
  %v871 = vmul.f32 %v859, %v866
  %v872 = vadd.f32 %v851, %v868
  %v873 = vadd.f32 %v852, %v869
  %v874 = vadd.f32 %v853, %v870
  %v875 = vadd.f32 %v854, %v871
  %s876 = scalar_lea.vmem %s1, 1280
  %v877 = vld [vmem:[%s876] sm:$0xff]
  %v878 = vld [vmem:[%s876 + $0x8] sm:$0xff]
  %v879 = vld [vmem:[%s876 + $0x10] sm:$0xff]
  %v880 = vld [vmem:[%s876 + $0x18] sm:$0xff]
  %s881 = scalar_lea.vmem %s2, 40
  %v882 = vld [vmem:[%s881] sm:$0x1]
  %v884 = vlaneseq
  %v885 = vshrl.u32 %v884, 7
  %v886 = vsub.s32 0, %v885
  %v887 = vrot.slane %v882, %v886
  %v889 = vmul.f32 %v877, %v887
  %v890 = vmul.f32 %v878, %v887
  %v891 = vmul.f32 %v879, %v887
  %v892 = vmul.f32 %v880, %v887
  %v893 = vadd.f32 %v872, %v889
  %v894 = vadd.f32 %v873, %v890
  %v895 = vadd.f32 %v874, %v891
  %v896 = vadd.f32 %v875, %v892
  %s897 = scalar_lea.vmem %s1, 1312
  %v898 = vld [vmem:[%s897] sm:$0xff]
  %v899 = vld [vmem:[%s897 + $0x8] sm:$0xff]
  %v900 = vld [vmem:[%s897 + $0x10] sm:$0xff]
  %v901 = vld [vmem:[%s897 + $0x18] sm:$0xff]
  %s902 = scalar_lea.vmem %s2, 41
  %v903 = vld [vmem:[%s902] sm:$0x1]
  %v905 = vlaneseq
  %v906 = vshrl.u32 %v905, 7
  %v907 = vsub.s32 0, %v906
  %v908 = vrot.slane %v903, %v907
  %v910 = vmul.f32 %v898, %v908
  %v911 = vmul.f32 %v899, %v908
  %v912 = vmul.f32 %v900, %v908
  %v913 = vmul.f32 %v901, %v908
  %v914 = vadd.f32 %v893, %v910
  %v915 = vadd.f32 %v894, %v911
  %v916 = vadd.f32 %v895, %v912
  %v917 = vadd.f32 %v896, %v913
  %s918 = scalar_lea.vmem %s1, 1344
  %v919 = vld [vmem:[%s918] sm:$0xff]
  %v920 = vld [vmem:[%s918 + $0x8] sm:$0xff]
  %v921 = vld [vmem:[%s918 + $0x10] sm:$0xff]
  %v922 = vld [vmem:[%s918 + $0x18] sm:$0xff]
  %s923 = scalar_lea.vmem %s2, 42
  %v924 = vld [vmem:[%s923] sm:$0x1]
  %v926 = vlaneseq
  %v927 = vshrl.u32 %v926, 7
  %v928 = vsub.s32 0, %v927
  %v929 = vrot.slane %v924, %v928
  %v931 = vmul.f32 %v919, %v929
  %v932 = vmul.f32 %v920, %v929
  %v933 = vmul.f32 %v921, %v929
  %v934 = vmul.f32 %v922, %v929
  %v935 = vadd.f32 %v914, %v931
  %v936 = vadd.f32 %v915, %v932
  %v937 = vadd.f32 %v916, %v933
  %v938 = vadd.f32 %v917, %v934
  %s939 = scalar_lea.vmem %s1, 1376
  %v940 = vld [vmem:[%s939] sm:$0xff]
  %v941 = vld [vmem:[%s939 + $0x8] sm:$0xff]
  %v942 = vld [vmem:[%s939 + $0x10] sm:$0xff]
  %v943 = vld [vmem:[%s939 + $0x18] sm:$0xff]
  %s944 = scalar_lea.vmem %s2, 43
  %v945 = vld [vmem:[%s944] sm:$0x1]
  %v947 = vlaneseq
  %v948 = vshrl.u32 %v947, 7
  %v949 = vsub.s32 0, %v948
  %v950 = vrot.slane %v945, %v949
  %v952 = vmul.f32 %v940, %v950
  %v953 = vmul.f32 %v941, %v950
  %v954 = vmul.f32 %v942, %v950
  %v955 = vmul.f32 %v943, %v950
  %v956 = vadd.f32 %v935, %v952
  %v957 = vadd.f32 %v936, %v953
  %v958 = vadd.f32 %v937, %v954
  %v959 = vadd.f32 %v938, %v955
  %s960 = scalar_lea.vmem %s1, 1408
  %v961 = vld [vmem:[%s960] sm:$0xff]
  %v962 = vld [vmem:[%s960 + $0x8] sm:$0xff]
  %v963 = vld [vmem:[%s960 + $0x10] sm:$0xff]
  %v964 = vld [vmem:[%s960 + $0x18] sm:$0xff]
  %s965 = scalar_lea.vmem %s2, 44
  %v966 = vld [vmem:[%s965] sm:$0x1]
  %v968 = vlaneseq
  %v969 = vshrl.u32 %v968, 7
  %v970 = vsub.s32 0, %v969
  %v971 = vrot.slane %v966, %v970
  %v973 = vmul.f32 %v961, %v971
  %v974 = vmul.f32 %v962, %v971
  %v975 = vmul.f32 %v963, %v971
  %v976 = vmul.f32 %v964, %v971
  %v977 = vadd.f32 %v956, %v973
  %v978 = vadd.f32 %v957, %v974
  %v979 = vadd.f32 %v958, %v975
  %v980 = vadd.f32 %v959, %v976
  %s981 = scalar_lea.vmem %s1, 1440
  %v982 = vld [vmem:[%s981] sm:$0xff]
  %v983 = vld [vmem:[%s981 + $0x8] sm:$0xff]
  %v984 = vld [vmem:[%s981 + $0x10] sm:$0xff]
  %v985 = vld [vmem:[%s981 + $0x18] sm:$0xff]
  %s986 = scalar_lea.vmem %s2, 45
  %v987 = vld [vmem:[%s986] sm:$0x1]
  %v989 = vlaneseq
  %v990 = vshrl.u32 %v989, 7
  %v991 = vsub.s32 0, %v990
  %v992 = vrot.slane %v987, %v991
  %v994 = vmul.f32 %v982, %v992
  %v995 = vmul.f32 %v983, %v992
  %v996 = vmul.f32 %v984, %v992
  %v997 = vmul.f32 %v985, %v992
  %v998 = vadd.f32 %v977, %v994
  %v999 = vadd.f32 %v978, %v995
  %v1000 = vadd.f32 %v979, %v996
  %v1001 = vadd.f32 %v980, %v997
  %s1002 = scalar_lea.vmem %s1, 1472
  %v1003 = vld [vmem:[%s1002] sm:$0xff]
  %v1004 = vld [vmem:[%s1002 + $0x8] sm:$0xff]
  %v1005 = vld [vmem:[%s1002 + $0x10] sm:$0xff]
  %v1006 = vld [vmem:[%s1002 + $0x18] sm:$0xff]
  %s1007 = scalar_lea.vmem %s2, 46
  %v1008 = vld [vmem:[%s1007] sm:$0x1]
  %v1010 = vlaneseq
  %v1011 = vshrl.u32 %v1010, 7
  %v1012 = vsub.s32 0, %v1011
  %v1013 = vrot.slane %v1008, %v1012
  %v1015 = vmul.f32 %v1003, %v1013
  %v1016 = vmul.f32 %v1004, %v1013
  %v1017 = vmul.f32 %v1005, %v1013
  %v1018 = vmul.f32 %v1006, %v1013
  %v1019 = vadd.f32 %v998, %v1015
  %v1020 = vadd.f32 %v999, %v1016
  %v1021 = vadd.f32 %v1000, %v1017
  %v1022 = vadd.f32 %v1001, %v1018
  %s1023 = scalar_lea.vmem %s1, 1504
  %v1024 = vld [vmem:[%s1023] sm:$0xff]
  %v1025 = vld [vmem:[%s1023 + $0x8] sm:$0xff]
  %v1026 = vld [vmem:[%s1023 + $0x10] sm:$0xff]
  %v1027 = vld [vmem:[%s1023 + $0x18] sm:$0xff]
  %s1028 = scalar_lea.vmem %s2, 47
  %v1029 = vld [vmem:[%s1028] sm:$0x1]
  %v1031 = vlaneseq
  %v1032 = vshrl.u32 %v1031, 7
  %v1033 = vsub.s32 0, %v1032
  %v1034 = vrot.slane %v1029, %v1033
  %v1036 = vmul.f32 %v1024, %v1034
  %v1037 = vmul.f32 %v1025, %v1034
  %v1038 = vmul.f32 %v1026, %v1034
  %v1039 = vmul.f32 %v1027, %v1034
  %v1040 = vadd.f32 %v1019, %v1036
  %v1041 = vadd.f32 %v1020, %v1037
  %v1042 = vadd.f32 %v1021, %v1038
  %v1043 = vadd.f32 %v1022, %v1039
  %s1044 = scalar_lea.vmem %s1, 1536
  %v1045 = vld [vmem:[%s1044] sm:$0xff]
  %v1046 = vld [vmem:[%s1044 + $0x8] sm:$0xff]
  %v1047 = vld [vmem:[%s1044 + $0x10] sm:$0xff]
  %v1048 = vld [vmem:[%s1044 + $0x18] sm:$0xff]
  %s1049 = scalar_lea.vmem %s2, 48
  %v1050 = vld [vmem:[%s1049] sm:$0x1]
  %v1052 = vlaneseq
  %v1053 = vshrl.u32 %v1052, 7
  %v1054 = vsub.s32 0, %v1053
  %v1055 = vrot.slane %v1050, %v1054
  %v1057 = vmul.f32 %v1045, %v1055
  %v1058 = vmul.f32 %v1046, %v1055
  %v1059 = vmul.f32 %v1047, %v1055
  %v1060 = vmul.f32 %v1048, %v1055
  %v1061 = vadd.f32 %v1040, %v1057
  %v1062 = vadd.f32 %v1041, %v1058
  %v1063 = vadd.f32 %v1042, %v1059
  %v1064 = vadd.f32 %v1043, %v1060
  %v1065 = vld [vmem:[%s3] sm:$0x1]
  %v1067 = vlaneseq
  %v1068 = vshrl.u32 %v1067, 7
  %v1069 = vsub.s32 0, %v1068
  %v1070 = vrot.slane %v1065, %v1069
  %v1072 = vadd.f32 %v1061, %v1070
  %v1073 = vadd.f32 %v1062, %v1070
  %v1074 = vadd.f32 %v1063, %v1070
  %v1075 = vadd.f32 %v1064, %v1070
  %v1076 = vld [vmem:[%s4] sm:$0x1]
  %v1077 = vld [vmem:[%s5] sm:$0x1]
  %vm1078 = vcmask 523264
  %v1079 = vsel %vm1078, %v1072, 0.0
  %1080 = vadd.xlane.f32.xlu0 %v1079
  %v1081 = vpop.xlane.xlu0 %1080
  %v1082 = vsel %vm1078, %v1073, 0.0
  %1083 = vadd.xlane.f32.xlu0 %v1082
  %v1084 = vpop.xlane.xlu0 %1083
  %v1085 = vsel %vm1078, %v1074, 0.0
  %1086 = vadd.xlane.f32.xlu0 %v1085
  %v1087 = vpop.xlane.xlu0 %1086
  %v1088 = vsel %vm1078, %v1075, 0.0
  %1089 = vadd.xlane.f32.xlu0 %v1088
  %v1090 = vpop.xlane.xlu0 %1089
  %v1091 = vrcp.pop 64.0
  %v1092 = vmul.f32 %v1081, %v1091
  %v1093 = vmul.f32 %v1084, %v1091
  %v1094 = vmul.f32 %v1087, %v1091
  %v1095 = vmul.f32 %v1090, %v1091
  %v1096 = vsub.f32 %v1072, %v1092
  %v1097 = vsub.f32 %v1073, %v1093
  %v1098 = vsub.f32 %v1074, %v1094
  %v1099 = vsub.f32 %v1075, %v1095
  %v1100 = vmul.f32 %v1096, %v1096
  %v1101 = vmul.f32 %v1097, %v1097
  %v1102 = vmul.f32 %v1098, %v1098
  %v1103 = vmul.f32 %v1099, %v1099
  %v1104 = vsel %vm1078, %v1100, 0.0
  %1105 = vadd.xlane.f32.xlu0 %v1104
  %v1106 = vpop.xlane.xlu0 %1105
  %v1107 = vsel %vm1078, %v1101, 0.0
  %1108 = vadd.xlane.f32.xlu0 %v1107
  %v1109 = vpop.xlane.xlu0 %1108
  %v1110 = vsel %vm1078, %v1102, 0.0
  %1111 = vadd.xlane.f32.xlu0 %v1110
  %v1112 = vpop.xlane.xlu0 %1111
  %v1113 = vsel %vm1078, %v1103, 0.0
  %1114 = vadd.xlane.f32.xlu0 %v1113
  %v1115 = vpop.xlane.xlu0 %1114
  %v1116 = vmul.f32 %v1106, %v1091
  %v1117 = vmul.f32 %v1109, %v1091
  %v1118 = vmul.f32 %v1112, %v1091
  %v1119 = vmul.f32 %v1115, %v1091
  %v1120 = vadd.f32 %v1116, 1e-06
  %v1121 = vadd.f32 %v1117, 1e-06
  %v1122 = vadd.f32 %v1118, 1e-06
  %v1123 = vadd.f32 %v1119, 1e-06
  %v1124 = vrsqrt.pop %v1120
  %v1125 = vrsqrt.pop %v1121
  %v1126 = vrsqrt.pop %v1122
  %v1127 = vrsqrt.pop %v1123
  %v1128 = vmul.f32 %v1096, %v1124
  %v1129 = vmul.f32 %v1097, %v1125
  %v1130 = vmul.f32 %v1098, %v1126
  %v1131 = vmul.f32 %v1099, %v1127
  %v1133 = vlaneseq
  %v1134 = vshrl.u32 %v1133, 7
  %v1135 = vsub.s32 0, %v1134
  %v1136 = vrot.slane %v1076, %v1135
  %v1138 = vmul.f32 %v1128, %v1136
  %v1139 = vmul.f32 %v1129, %v1136
  %v1140 = vmul.f32 %v1130, %v1136
  %v1141 = vmul.f32 %v1131, %v1136
  %v1143 = vlaneseq
  %v1144 = vshrl.u32 %v1143, 7
  %v1145 = vsub.s32 0, %v1144
  %v1146 = vrot.slane %v1077, %v1145
  %v1148 = vadd.f32 %v1138, %v1146
  %v1149 = vadd.f32 %v1139, %v1146
  %v1150 = vadd.f32 %v1140, %v1146
  %v1151 = vadd.f32 %v1141, %v1146
  %v1152 = vld [vmem:[%s6] sm:$0xff]
  %v1153 = vld [vmem:[%s6 + $0x8] sm:$0xff]
  %v1154 = vld [vmem:[%s6 + $0x10] sm:$0xff]
  %v1155 = vld [vmem:[%s6 + $0x18] sm:$0xff]
  %v1156 = vld [vmem:[%s6 + $0x20] sm:$0xff]
  %v1157 = vld [vmem:[%s6 + $0x28] sm:$0xff]
  %v1158 = vld [vmem:[%s6 + $0x30] sm:$0xff]
  %v1159 = vld [vmem:[%s6 + $0x38] sm:$0xff]
  %v1160 = vld [vmem:[%s6 + $0x40] sm:$0xff]
  %v1161 = vld [vmem:[%s6 + $0x48] sm:$0xff]
  %v1162 = vld [vmem:[%s6 + $0x50] sm:$0xff]
  %v1163 = vld [vmem:[%s6 + $0x58] sm:$0xff]
  %v1164 = vld [vmem:[%s6 + $0x60] sm:$0xff]
  %v1165 = vld [vmem:[%s6 + $0x68] sm:$0xff]
  %v1166 = vld [vmem:[%s6 + $0x70] sm:$0xff]
  %v1167 = vld [vmem:[%s6 + $0x78] sm:$0xff]
  %v1168 = vld [vmem:[%s7] sm:$0x3]
  %v1170 = vlaneseq
  %v1171 = vshrl.u32 %v1170, 7
  %v1172 = vsub.s32 0, %v1171
  %v1173 = vrot.slane %v1168, %v1172
  %v1174 = vlaneseq
  %v1175 = vshrl.u32 %v1174, 7
  %v1176 = vsub.s32 1, %v1175
  %v1177 = vrot.slane %v1168, %v1176
  %v1181 = vsel %vm1078, %v1148, 0
  %v1184 = vsel %vm1078, %v1149, 0
  %v1187 = vsel %vm1078, %v1150, 0
  %v1190 = vsel %vm1078, %v1151, 0
  %1192 = vmatprep.subr.mxu0 0.0
  %1193 = vmatpush1.msra.mxu0 0.0
  %1194 = vmatprep.subr.mxu0 0.0
  %1195 = vmatpush1.msra.mxu0 0.0
  %1196 = vmatprep.subr.mxu0 0.0
  %1197 = vmatpush1.msra.mxu0 0.0
  %1198 = vmatprep.subr.mxu0 0.0
  %1199 = vmatpush1.msra.mxu0 0.0
  %1200 = vmatprep.subr.mxu0 0.0
  %1201 = vmatpush1.msra.mxu0 0.0
  %1202 = vmatprep.subr.mxu0 0.0
  %1203 = vmatpush1.msra.mxu0 0.0
  %1204 = vmatprep.subr.mxu0 0.0
  %1205 = vmatpush1.msra.mxu0 0.0
  %1206 = vmatprep.subr.mxu0 0.0
  %1207 = vmatpush1.msra.mxu0 0.0
  %1208 = vmatprep.subr.mxu0 %v1167
  %1209 = vmatpush1.msra.mxu0 %v1166
  %1210 = vmatprep.subr.mxu0 %v1165
  %1211 = vmatpush1.msra.mxu0 %v1164
  %1212 = vmatprep.subr.mxu0 %v1163
  %1213 = vmatpush1.msra.mxu0 %v1162
  %1214 = vmatprep.subr.mxu0 %v1161
  %1215 = vmatpush1.msra.mxu0 %v1160
  %1216 = vmatprep.subr.mxu0 %v1159
  %1217 = vmatpush1.msra.mxu0 %v1158
  %1218 = vmatprep.subr.mxu0 %v1157
  %1219 = vmatpush1.msra.mxu0 %v1156
  %1220 = vmatprep.subr.mxu0 %v1155
  %1221 = vmatpush1.msra.mxu0 %v1154
  %1222 = vmatprep.subr.mxu0 %v1153
  %1223 = vmatpush1.msra.mxu0 %v1152
  %1224 = vmatprep.subr.mxu0 0.0
  %1225 = vmatpush2.msra.mxu0 0.0
  %1226 = vmatprep.subr.mxu0 0.0
  %1227 = vmatpush2.msra.mxu0 0.0
  %1228 = vmatprep.subr.mxu0 0.0
  %1229 = vmatpush2.msra.mxu0 0.0
  %1230 = vmatprep.subr.mxu0 0.0
  %1231 = vmatpush2.msra.mxu0 0.0
  %1232 = vmatprep.subr.mxu0 0.0
  %1233 = vmatpush2.msra.mxu0 0.0
  %1234 = vmatprep.subr.mxu0 0.0
  %1235 = vmatpush2.msra.mxu0 0.0
  %1236 = vmatprep.subr.mxu0 0.0
  %1237 = vmatpush2.msra.mxu0 0.0
  %1238 = vmatprep.subr.mxu0 0.0
  %1239 = vmatpush2.msra.mxu0 0.0
  %1240 = vmatprep.subr.mxu0 0.0
  %1241 = vmatpush2.msra.mxu0 0.0
  %1242 = vmatprep.subr.mxu0 0.0
  %1243 = vmatpush2.msra.mxu0 0.0
  %1244 = vmatprep.subr.mxu0 0.0
  %1245 = vmatpush2.msra.mxu0 0.0
  %1246 = vmatprep.subr.mxu0 0.0
  %1247 = vmatpush2.msra.mxu0 0.0
  %1248 = vmatprep.subr.mxu0 0.0
  %1249 = vmatpush2.msra.mxu0 0.0
  %1250 = vmatprep.subr.mxu0 0.0
  %1251 = vmatpush2.msra.mxu0 0.0
  %1252 = vmatprep.subr.mxu0 0.0
  %1253 = vmatpush2.msra.mxu0 0.0
  %1254 = vmatprep.subr.mxu0 0.0
  %1255 = vmatpush2.msra.mxu0 0.0
  %1256 = vmatprep.mubr.f32.mxu0 0.0
  %1257 = vmatmul.mubr.f32.gmra.mxu0 %v1181
  %v1258 = vpop.f32.mrf.mxu0
  %v1259 = vadd.f32 %v1173, %v1258
  %v1260 = vpop.f32.mrf.mxu0
  %v1261 = vadd.f32 %v1177, %v1260
  %1262 = vmatprep.mubr.f32.mxu0 0.0
  %1263 = vmatmul.mubr.f32.gmra.mxu0 %v1184
  %v1264 = vpop.f32.mrf.mxu0
  %v1265 = vadd.f32 %v1173, %v1264
  %v1266 = vpop.f32.mrf.mxu0
  %v1267 = vadd.f32 %v1177, %v1266
  %1268 = vmatprep.mubr.f32.mxu0 0.0
  %1269 = vmatmul.mubr.f32.gmra.mxu0 %v1187
  %v1270 = vpop.f32.mrf.mxu0
  %v1271 = vadd.f32 %v1173, %v1270
  %v1272 = vpop.f32.mrf.mxu0
  %v1273 = vadd.f32 %v1177, %v1272
  %1274 = vmatprep.mubr.f32.mxu0 0.0
  %1275 = vmatmul.mubr.f32.gmra.mxu0 %v1190
  %v1276 = vpop.f32.mrf.mxu0
  %v1277 = vadd.f32 %v1173, %v1276
  %v1278 = vpop.f32.mrf.mxu0
  %v1279 = vadd.f32 %v1177, %v1278
  %1280 = vdwg.mxu0
  %v1281 = vmul.f32 %v1259, 0.5
  %v1282 = vmul.f32 %v1261, 0.5
  %v1283 = vmul.f32 %v1265, 0.5
  %v1284 = vmul.f32 %v1267, 0.5
  %v1285 = vmul.f32 %v1271, 0.5
  %v1286 = vmul.f32 %v1273, 0.5
  %v1287 = vmul.f32 %v1277, 0.5
  %v1288 = vmul.f32 %v1279, 0.5
  %v1289 = vmul.f32 %v1259, 0.70710677
  %v1290 = vmul.f32 %v1261, 0.70710677
  %v1291 = vmul.f32 %v1265, 0.70710677
  %v1292 = vmul.f32 %v1267, 0.70710677
  %v1293 = vmul.f32 %v1271, 0.70710677
  %v1294 = vmul.f32 %v1273, 0.70710677
  %v1295 = vmul.f32 %v1277, 0.70710677
  %v1296 = vmul.f32 %v1279, 0.70710677
  %v1297 = verf.f32.pop %v1289
  %v1298 = verf.f32.pop %v1290
  %v1299 = verf.f32.pop %v1291
  %v1300 = verf.f32.pop %v1292
  %v1301 = verf.f32.pop %v1293
  %v1302 = verf.f32.pop %v1294
  %v1303 = verf.f32.pop %v1295
  %v1304 = verf.f32.pop %v1296
  %v1305 = vadd.f32 %v1297, 1.0
  %v1306 = vadd.f32 %v1298, 1.0
  %v1307 = vadd.f32 %v1299, 1.0
  %v1308 = vadd.f32 %v1300, 1.0
  %v1309 = vadd.f32 %v1301, 1.0
  %v1310 = vadd.f32 %v1302, 1.0
  %v1311 = vadd.f32 %v1303, 1.0
  %v1312 = vadd.f32 %v1304, 1.0
  %v1313 = vmul.f32 %v1281, %v1305
  %v1314 = vmul.f32 %v1282, %v1306
  %v1315 = vmul.f32 %v1283, %v1307
  %v1316 = vmul.f32 %v1284, %v1308
  %v1317 = vmul.f32 %v1285, %v1309
  %v1318 = vmul.f32 %v1286, %v1310
  %v1319 = vmul.f32 %v1287, %v1311
  %v1320 = vmul.f32 %v1288, %v1312
  %v1321 = vld [vmem:[%s8] sm:$0xff]
  %v1322 = vld [vmem:[%s8 + $0x8] sm:$0xff]
  %v1323 = vld [vmem:[%s8 + $0x10] sm:$0xff]
  %v1324 = vld [vmem:[%s8 + $0x18] sm:$0xff]
  %v1325 = vld [vmem:[%s8 + $0x20] sm:$0xff]
  %v1326 = vld [vmem:[%s8 + $0x28] sm:$0xff]
  %v1327 = vld [vmem:[%s8 + $0x30] sm:$0xff]
  %v1328 = vld [vmem:[%s8 + $0x38] sm:$0xff]
  %v1329 = vld [vmem:[%s8 + $0x40] sm:$0xff]
  %v1330 = vld [vmem:[%s8 + $0x48] sm:$0xff]
  %v1331 = vld [vmem:[%s8 + $0x50] sm:$0xff]
  %v1332 = vld [vmem:[%s8 + $0x58] sm:$0xff]
  %v1333 = vld [vmem:[%s8 + $0x60] sm:$0xff]
  %v1334 = vld [vmem:[%s8 + $0x68] sm:$0xff]
  %v1335 = vld [vmem:[%s8 + $0x70] sm:$0xff]
  %v1336 = vld [vmem:[%s8 + $0x78] sm:$0xff]
  %v1337 = vld [vmem:[%s8 + $0x80] sm:$0xff]
  %v1338 = vld [vmem:[%s8 + $0x88] sm:$0xff]
  %v1339 = vld [vmem:[%s8 + $0x90] sm:$0xff]
  %v1340 = vld [vmem:[%s8 + $0x98] sm:$0xff]
  %v1341 = vld [vmem:[%s8 + $0xa0] sm:$0xff]
  %v1342 = vld [vmem:[%s8 + $0xa8] sm:$0xff]
  %v1343 = vld [vmem:[%s8 + $0xb0] sm:$0xff]
  %v1344 = vld [vmem:[%s8 + $0xb8] sm:$0xff]
  %v1345 = vld [vmem:[%s8 + $0xc0] sm:$0xff]
  %v1346 = vld [vmem:[%s8 + $0xc8] sm:$0xff]
  %v1347 = vld [vmem:[%s8 + $0xd0] sm:$0xff]
  %v1348 = vld [vmem:[%s8 + $0xd8] sm:$0xff]
  %v1349 = vld [vmem:[%s8 + $0xe0] sm:$0xff]
  %v1350 = vld [vmem:[%s8 + $0xe8] sm:$0xff]
  %v1351 = vld [vmem:[%s8 + $0xf0] sm:$0xff]
  %v1352 = vld [vmem:[%s8 + $0xf8] sm:$0xff]
  %v1353 = vld [vmem:[%s9] sm:$0x1]
  %v1355 = vlaneseq
  %v1356 = vshrl.u32 %v1355, 7
  %v1357 = vsub.s32 0, %v1356
  %v1358 = vrot.slane %v1353, %v1357
  %1360 = vmatprep.subr.mxu0 0.0
  %1361 = vmatpush1.msra.mxu0 %v1336
  %1362 = vmatprep.subr.mxu0 0.0
  %1363 = vmatpush1.msra.mxu0 %v1335
  %1364 = vmatprep.subr.mxu0 0.0
  %1365 = vmatpush1.msra.mxu0 %v1334
  %1366 = vmatprep.subr.mxu0 0.0
  %1367 = vmatpush1.msra.mxu0 %v1333
  %1368 = vmatprep.subr.mxu0 0.0
  %1369 = vmatpush1.msra.mxu0 %v1332
  %1370 = vmatprep.subr.mxu0 0.0
  %1371 = vmatpush1.msra.mxu0 %v1331
  %1372 = vmatprep.subr.mxu0 0.0
  %1373 = vmatpush1.msra.mxu0 %v1330
  %1374 = vmatprep.subr.mxu0 0.0
  %1375 = vmatpush1.msra.mxu0 %v1329
  %1376 = vmatprep.subr.mxu0 0.0
  %1377 = vmatpush1.msra.mxu0 %v1328
  %1378 = vmatprep.subr.mxu0 0.0
  %1379 = vmatpush1.msra.mxu0 %v1327
  %1380 = vmatprep.subr.mxu0 0.0
  %1381 = vmatpush1.msra.mxu0 %v1326
  %1382 = vmatprep.subr.mxu0 0.0
  %1383 = vmatpush1.msra.mxu0 %v1325
  %1384 = vmatprep.subr.mxu0 0.0
  %1385 = vmatpush1.msra.mxu0 %v1324
  %1386 = vmatprep.subr.mxu0 0.0
  %1387 = vmatpush1.msra.mxu0 %v1323
  %1388 = vmatprep.subr.mxu0 0.0
  %1389 = vmatpush1.msra.mxu0 %v1322
  %1390 = vmatprep.subr.mxu0 0.0
  %1391 = vmatpush1.msra.mxu0 %v1321
  %1392 = vmatprep.subr.mxu0 0.0
  %1393 = vmatpush2.msra.mxu0 %v1352
  %1394 = vmatprep.subr.mxu0 0.0
  %1395 = vmatpush2.msra.mxu0 %v1351
  %1396 = vmatprep.subr.mxu0 0.0
  %1397 = vmatpush2.msra.mxu0 %v1350
  %1398 = vmatprep.subr.mxu0 0.0
  %1399 = vmatpush2.msra.mxu0 %v1349
  %1400 = vmatprep.subr.mxu0 0.0
  %1401 = vmatpush2.msra.mxu0 %v1348
  %1402 = vmatprep.subr.mxu0 0.0
  %1403 = vmatpush2.msra.mxu0 %v1347
  %1404 = vmatprep.subr.mxu0 0.0
  %1405 = vmatpush2.msra.mxu0 %v1346
  %1406 = vmatprep.subr.mxu0 0.0
  %1407 = vmatpush2.msra.mxu0 %v1345
  %1408 = vmatprep.subr.mxu0 0.0
  %1409 = vmatpush2.msra.mxu0 %v1344
  %1410 = vmatprep.subr.mxu0 0.0
  %1411 = vmatpush2.msra.mxu0 %v1343
  %1412 = vmatprep.subr.mxu0 0.0
  %1413 = vmatpush2.msra.mxu0 %v1342
  %1414 = vmatprep.subr.mxu0 0.0
  %1415 = vmatpush2.msra.mxu0 %v1341
  %1416 = vmatprep.subr.mxu0 0.0
  %1417 = vmatpush2.msra.mxu0 %v1340
  %1418 = vmatprep.subr.mxu0 0.0
  %1419 = vmatpush2.msra.mxu0 %v1339
  %1420 = vmatprep.subr.mxu0 0.0
  %1421 = vmatpush2.msra.mxu0 %v1338
  %1422 = vmatprep.subr.mxu0 0.0
  %1423 = vmatpush2.msra.mxu0 %v1337
  %1424 = vmatprep.mubr.f32.mxu0 %v1314
  %1425 = vmatmul.mubr.f32.gmra.mxu0 %v1313
  %v1426 = vpop.f32.mrf.mxu0
  %v1427 = vadd.f32 %v1358, %v1426
  %v1428 = vpop.f32.mrf.mxu0
  %1429 = vmatprep.mubr.f32.mxu0 %v1316
  %1430 = vmatmul.mubr.f32.gmra.mxu0 %v1315
  %v1431 = vpop.f32.mrf.mxu0
  %v1432 = vadd.f32 %v1358, %v1431
  %v1433 = vpop.f32.mrf.mxu0
  %1434 = vmatprep.mubr.f32.mxu0 %v1318
  %1435 = vmatmul.mubr.f32.gmra.mxu0 %v1317
  %v1436 = vpop.f32.mrf.mxu0
  %v1437 = vadd.f32 %v1358, %v1436
  %v1438 = vpop.f32.mrf.mxu0
  %1439 = vmatprep.mubr.f32.mxu0 %v1320
  %1440 = vmatmul.mubr.f32.gmra.mxu0 %v1319
  %v1441 = vpop.f32.mrf.mxu0
  %v1442 = vadd.f32 %v1358, %v1441
  %v1443 = vpop.f32.mrf.mxu0
  %1444 = vdwg.mxu0
  %v1445 = vld [vmem:[%s10] sm:$0x1]
  %v1447 = vlaneseq
  %v1448 = vshrl.u32 %v1447, 7
  %v1449 = vsub.s32 0, %v1448
  %v1450 = vrot.slane %v1445, %v1449
  %v1452 = vmul.f32 %v1450, %v1427
  %v1453 = vmul.f32 %v1450, %v1432
  %v1454 = vmul.f32 %v1450, %v1437
  %v1455 = vmul.f32 %v1450, %v1442
  %v1456 = vadd.f32 %v38, %v1452
  %v1457 = vadd.f32 %v39, %v1453
  %v1458 = vadd.f32 %v40, %v1454
  %v1459 = vadd.f32 %v41, %v1455
  %1460 = vst.msk [vmem:[%s11] sm:$0xff] %vm1078, %v1456
  %1461 = vst.msk [vmem:[%s11 + $0x8] sm:$0xff] %vm1078, %v1457
  %1462 = vst.msk [vmem:[%s11 + $0x10] sm:$0xff] %vm1078, %v1458
  %1463 = vst.msk [vmem:[%s11 + $0x18] sm:$0xff] %vm1078, %v1459
  // Predicated region
  $region46: #{convnext_forward.11} parent=0 // pred_check
    _
  $region47: #{convnext_forward.11} parent=0 // pred_check_branch
    %1465 = sbr.rel (0) target = $region49
  $region48: #{convnext_forward.11} parent=0 // pred_region
    _
  $region49: #{convnext_forward.11} parent=0 // pred_fallthru
    _
  // Predicated region
  $region50: #{convnext_forward.11} parent=0 // pred_check
    _
  $region51: #{convnext_forward.11} parent=0 // pred_check_branch
    %1467 = sbr.rel (0) target = $region53
  $region52: #{convnext_forward.11} parent=0 // pred_region
    _
  $region53: #{convnext_forward.11} parent=0 // pred_fallthru
    _

// kernel: convnext_forward.8
$region0: #{convnext_forward.8}
  #allocation0 [shape = 'u32[]', space=smem, size = 0x4, offset = 0x4, fixed_abs, tag = 'smem constant byte address 0x4 - core index']
  #allocation1 [shape = 'u32[144,128]{1,0:T(1,128)}', space=vmem, size = 0x12000, scoped, tag = 'internal scratch']
  %s0 = inlined_call_operand.vmem [shape: f32[128,32], index: 0, kind: input, shape index: {}]
  %s1 = inlined_call_operand.vmem [shape: f32[49,128,32], index: 1, kind: input, shape index: {}]
  %s2 = inlined_call_operand.vmem [shape: f32[49,1,32], index: 2, kind: input, shape index: {}]
  %s3 = inlined_call_operand.vmem [shape: f32[1,32], index: 3, kind: input, shape index: {}]
  %s4 = inlined_call_operand.vmem [shape: f32[1,32], index: 4, kind: input, shape index: {}]
  %s5 = inlined_call_operand.vmem [shape: f32[1,32], index: 5, kind: input, shape index: {}]
  %s6 = inlined_call_operand.vmem [shape: f32[32,128], index: 6, kind: input, shape index: {}]
  %s7 = inlined_call_operand.vmem [shape: f32[1,128], index: 7, kind: input, shape index: {}]
  %s8 = inlined_call_operand.vmem [shape: f32[128,32], index: 8, kind: input, shape index: {}]
  %s9 = inlined_call_operand.vmem [shape: f32[1,32], index: 9, kind: input, shape index: {}]
  %s10 = inlined_call_operand.vmem [shape: f32[1,32], index: 10, kind: input, shape index: {}]
  %s11 = inlined_call_operand.vmem [shape: f32[128,32], index: 11, kind: output, shape index: {}]
  %s12 = sld [smem:[#allocation0]]
  $region54: #{convnext_forward.8} parent=0
    _
  %s14 = ssub.s32 1, %s12
  %s15 = scalar_select 0, %s14, %s12
  // Predicated region
  $region2: #{convnext_forward.8} parent=0 // pred_check
    _
  $region3: #{convnext_forward.8} parent=0 // pred_check_branch
    %17 = sbr.rel (0) target = $region5
  $region4: #{convnext_forward.8} parent=0 // pred_region
    _
  $region5: #{convnext_forward.8} parent=0 // pred_fallthru
    _
  // Predicated region
  $region6: #{convnext_forward.8} parent=0 // pred_check
    _
  $region7: #{convnext_forward.8} parent=0 // pred_check_branch
    %19 = sbr.rel (0) target = $region9
  $region8: #{convnext_forward.8} parent=0 // pred_region
    _
  $region9: #{convnext_forward.8} parent=0 // pred_fallthru
    _
  // Predicated region
  $region10: #{convnext_forward.8} parent=0 // pred_check
    _
  $region11: #{convnext_forward.8} parent=0 // pred_check_branch
    %21 = sbr.rel (0) target = $region13
  $region12: #{convnext_forward.8} parent=0 // pred_region
    _
  $region13: #{convnext_forward.8} parent=0 // pred_fallthru
    _
  // Predicated region
  $region14: #{convnext_forward.8} parent=0 // pred_check
    _
  $region15: #{convnext_forward.8} parent=0 // pred_check_branch
    %23 = sbr.rel (0) target = $region17
  $region16: #{convnext_forward.8} parent=0 // pred_region
    _
  $region17: #{convnext_forward.8} parent=0 // pred_fallthru
    _
  // Predicated region
  $region18: #{convnext_forward.8} parent=0 // pred_check
    _
  $region19: #{convnext_forward.8} parent=0 // pred_check_branch
    %25 = sbr.rel (0) target = $region21
  $region20: #{convnext_forward.8} parent=0 // pred_region
    _
  $region21: #{convnext_forward.8} parent=0 // pred_fallthru
    _
  // Predicated region
  $region22: #{convnext_forward.8} parent=0 // pred_check
    _
  $region23: #{convnext_forward.8} parent=0 // pred_check_branch
    %27 = sbr.rel (0) target = $region25
  $region24: #{convnext_forward.8} parent=0 // pred_region
    _
  $region25: #{convnext_forward.8} parent=0 // pred_fallthru
    _
  // Predicated region
  $region26: #{convnext_forward.8} parent=0 // pred_check
    _
  $region27: #{convnext_forward.8} parent=0 // pred_check_branch
    %29 = sbr.rel (0) target = $region29
  $region28: #{convnext_forward.8} parent=0 // pred_region
    _
  $region29: #{convnext_forward.8} parent=0 // pred_fallthru
    _
  // Predicated region
  $region30: #{convnext_forward.8} parent=0 // pred_check
    _
  $region31: #{convnext_forward.8} parent=0 // pred_check_branch
    %31 = sbr.rel (0) target = $region33
  $region32: #{convnext_forward.8} parent=0 // pred_region
    _
  $region33: #{convnext_forward.8} parent=0 // pred_fallthru
    _
  // Predicated region
  $region34: #{convnext_forward.8} parent=0 // pred_check
    _
  $region35: #{convnext_forward.8} parent=0 // pred_check_branch
    %33 = sbr.rel (0) target = $region37
  $region36: #{convnext_forward.8} parent=0 // pred_region
    _
  $region37: #{convnext_forward.8} parent=0 // pred_fallthru
    _
  // Predicated region
  $region38: #{convnext_forward.8} parent=0 // pred_check
    _
  $region39: #{convnext_forward.8} parent=0 // pred_check_branch
    %35 = sbr.rel (0) target = $region41
  $region40: #{convnext_forward.8} parent=0 // pred_region
    _
  $region41: #{convnext_forward.8} parent=0 // pred_fallthru
    _
  // Predicated region
  $region42: #{convnext_forward.8} parent=0 // pred_check
    _
  $region43: #{convnext_forward.8} parent=0 // pred_check_branch
    %37 = sbr.rel (0) target = $region45
  $region44: #{convnext_forward.8} parent=0 // pred_region
    _
  $region45: #{convnext_forward.8} parent=0 // pred_fallthru
    _
  %v38 = vld [vmem:[%s0] sm:$0xff]
  %v39 = vld [vmem:[%s0 + $0x8] sm:$0xff]
  %v40 = vld [vmem:[%s0 + $0x10] sm:$0xff]
  %v41 = vld [vmem:[%s0 + $0x18] sm:$0xff]
  %v42 = vld [vmem:[%s0 + $0x20] sm:$0xff]
  %v43 = vld [vmem:[%s0 + $0x28] sm:$0xff]
  %v44 = vld [vmem:[%s0 + $0x30] sm:$0xff]
  %v45 = vld [vmem:[%s0 + $0x38] sm:$0xff]
  %v46 = vld [vmem:[%s0 + $0x40] sm:$0xff]
  %v47 = vld [vmem:[%s0 + $0x48] sm:$0xff]
  %v48 = vld [vmem:[%s0 + $0x50] sm:$0xff]
  %v49 = vld [vmem:[%s0 + $0x58] sm:$0xff]
  %v50 = vld [vmem:[%s0 + $0x60] sm:$0xff]
  %v51 = vld [vmem:[%s0 + $0x68] sm:$0xff]
  %v52 = vld [vmem:[%s0 + $0x70] sm:$0xff]
  %v53 = vld [vmem:[%s0 + $0x78] sm:$0xff]
  %v54 = vld [vmem:[%s1] sm:$0xff]
  %v55 = vld [vmem:[%s1 + $0x8] sm:$0xff]
  %v56 = vld [vmem:[%s1 + $0x10] sm:$0xff]
  %v57 = vld [vmem:[%s1 + $0x18] sm:$0xff]
  %v58 = vld [vmem:[%s1 + $0x20] sm:$0xff]
  %v59 = vld [vmem:[%s1 + $0x28] sm:$0xff]
  %v60 = vld [vmem:[%s1 + $0x30] sm:$0xff]
  %v61 = vld [vmem:[%s1 + $0x38] sm:$0xff]
  %v62 = vld [vmem:[%s1 + $0x40] sm:$0xff]
  %v63 = vld [vmem:[%s1 + $0x48] sm:$0xff]
  %v64 = vld [vmem:[%s1 + $0x50] sm:$0xff]
  %v65 = vld [vmem:[%s1 + $0x58] sm:$0xff]
  %v66 = vld [vmem:[%s1 + $0x60] sm:$0xff]
  %v67 = vld [vmem:[%s1 + $0x68] sm:$0xff]
  %v68 = vld [vmem:[%s1 + $0x70] sm:$0xff]
  %v69 = vld [vmem:[%s1 + $0x78] sm:$0xff]
  %v70 = vld [vmem:[%s2] sm:$0x1]
  %v72 = vlaneseq
  %v73 = vshrl.u32 %v72, 7
  %v74 = vsub.s32 0, %v73
  %v75 = vrot.slane %v70, %v74
  %v77 = vmul.f32 %v54, %v75
  %v78 = vmul.f32 %v55, %v75
  %v79 = vmul.f32 %v56, %v75
  %v80 = vmul.f32 %v57, %v75
  %v81 = vmul.f32 %v58, %v75
  %v82 = vmul.f32 %v59, %v75
  %v83 = vmul.f32 %v60, %v75
  %v84 = vmul.f32 %v61, %v75
  %v85 = vmul.f32 %v62, %v75
  %v86 = vmul.f32 %v63, %v75
  %v87 = vmul.f32 %v64, %v75
  %v88 = vmul.f32 %v65, %v75
  %v89 = vmul.f32 %v66, %v75
  %v90 = vmul.f32 %v67, %v75
  %v91 = vmul.f32 %v68, %v75
  %v92 = vmul.f32 %v69, %v75
  %s93 = scalar_lea.vmem %s1, 128
  %v94 = vld [vmem:[%s93] sm:$0xff]
  %v95 = vld [vmem:[%s93 + $0x8] sm:$0xff]
  %v96 = vld [vmem:[%s93 + $0x10] sm:$0xff]
  %v97 = vld [vmem:[%s93 + $0x18] sm:$0xff]
  %v98 = vld [vmem:[%s93 + $0x20] sm:$0xff]
  %v99 = vld [vmem:[%s93 + $0x28] sm:$0xff]
  %v100 = vld [vmem:[%s93 + $0x30] sm:$0xff]
  %v101 = vld [vmem:[%s93 + $0x38] sm:$0xff]
  %v102 = vld [vmem:[%s93 + $0x40] sm:$0xff]
  %v103 = vld [vmem:[%s93 + $0x48] sm:$0xff]
  %v104 = vld [vmem:[%s93 + $0x50] sm:$0xff]
  %v105 = vld [vmem:[%s93 + $0x58] sm:$0xff]
  %v106 = vld [vmem:[%s93 + $0x60] sm:$0xff]
  %v107 = vld [vmem:[%s93 + $0x68] sm:$0xff]
  %v108 = vld [vmem:[%s93 + $0x70] sm:$0xff]
  %v109 = vld [vmem:[%s93 + $0x78] sm:$0xff]
  %s110 = scalar_lea.vmem %s2, 1
  %v111 = vld [vmem:[%s110] sm:$0x1]
  %v113 = vlaneseq
  %v114 = vshrl.u32 %v113, 7
  %v115 = vsub.s32 0, %v114
  %v116 = vrot.slane %v111, %v115
  %v118 = vmul.f32 %v94, %v116
  %v119 = vmul.f32 %v95, %v116
  %v120 = vmul.f32 %v96, %v116
  %v121 = vmul.f32 %v97, %v116
  %v122 = vmul.f32 %v98, %v116
  %v123 = vmul.f32 %v99, %v116
  %v124 = vmul.f32 %v100, %v116
  %v125 = vmul.f32 %v101, %v116
  %v126 = vmul.f32 %v102, %v116
  %v127 = vmul.f32 %v103, %v116
  %v128 = vmul.f32 %v104, %v116
  %v129 = vmul.f32 %v105, %v116
  %v130 = vmul.f32 %v106, %v116
  %v131 = vmul.f32 %v107, %v116
  %v132 = vmul.f32 %v108, %v116
  %v133 = vmul.f32 %v109, %v116
  %v134 = vadd.f32 %v77, %v118
  %v135 = vadd.f32 %v78, %v119
  %v136 = vadd.f32 %v79, %v120
  %v137 = vadd.f32 %v80, %v121
  %v138 = vadd.f32 %v81, %v122
  %v139 = vadd.f32 %v82, %v123
  %v140 = vadd.f32 %v83, %v124
  %v141 = vadd.f32 %v84, %v125
  %v142 = vadd.f32 %v85, %v126
  %v143 = vadd.f32 %v86, %v127
  %v144 = vadd.f32 %v87, %v128
  %v145 = vadd.f32 %v88, %v129
  %v146 = vadd.f32 %v89, %v130
  %v147 = vadd.f32 %v90, %v131
  %v148 = vadd.f32 %v91, %v132
  %v149 = vadd.f32 %v92, %v133
  %s150 = scalar_lea.vmem %s1, 256
  %v151 = vld [vmem:[%s150] sm:$0xff]
  %v152 = vld [vmem:[%s150 + $0x8] sm:$0xff]
  %v153 = vld [vmem:[%s150 + $0x10] sm:$0xff]
  %v154 = vld [vmem:[%s150 + $0x18] sm:$0xff]
  %v155 = vld [vmem:[%s150 + $0x20] sm:$0xff]
  %v156 = vld [vmem:[%s150 + $0x28] sm:$0xff]
  %v157 = vld [vmem:[%s150 + $0x30] sm:$0xff]
  %v158 = vld [vmem:[%s150 + $0x38] sm:$0xff]
  %v159 = vld [vmem:[%s150 + $0x40] sm:$0xff]
  %v160 = vld [vmem:[%s150 + $0x48] sm:$0xff]
  %v161 = vld [vmem:[%s150 + $0x50] sm:$0xff]
  %v162 = vld [vmem:[%s150 + $0x58] sm:$0xff]
  %v163 = vld [vmem:[%s150 + $0x60] sm:$0xff]
  %v164 = vld [vmem:[%s150 + $0x68] sm:$0xff]
  %v165 = vld [vmem:[%s150 + $0x70] sm:$0xff]
  %v166 = vld [vmem:[%s150 + $0x78] sm:$0xff]
  %s167 = scalar_lea.vmem %s2, 2
  %v168 = vld [vmem:[%s167] sm:$0x1]
  %v170 = vlaneseq
  %v171 = vshrl.u32 %v170, 7
  %v172 = vsub.s32 0, %v171
  %v173 = vrot.slane %v168, %v172
  %v175 = vmul.f32 %v151, %v173
  %v176 = vmul.f32 %v152, %v173
  %v177 = vmul.f32 %v153, %v173
  %v178 = vmul.f32 %v154, %v173
  %v179 = vmul.f32 %v155, %v173
  %v180 = vmul.f32 %v156, %v173
  %v181 = vmul.f32 %v157, %v173
  %v182 = vmul.f32 %v158, %v173
  %v183 = vmul.f32 %v159, %v173
  %v184 = vmul.f32 %v160, %v173
  %v185 = vmul.f32 %v161, %v173
  %v186 = vmul.f32 %v162, %v173
  %v187 = vmul.f32 %v163, %v173
  %v188 = vmul.f32 %v164, %v173
  %v189 = vmul.f32 %v165, %v173
  %v190 = vmul.f32 %v166, %v173
  %v191 = vadd.f32 %v134, %v175
  %v192 = vadd.f32 %v135, %v176
  %v193 = vadd.f32 %v136, %v177
  %v194 = vadd.f32 %v137, %v178
  %v195 = vadd.f32 %v138, %v179
  %v196 = vadd.f32 %v139, %v180
  %v197 = vadd.f32 %v140, %v181
  %v198 = vadd.f32 %v141, %v182
  %v199 = vadd.f32 %v142, %v183
  %v200 = vadd.f32 %v143, %v184
  %v201 = vadd.f32 %v144, %v185
  %v202 = vadd.f32 %v145, %v186
  %v203 = vadd.f32 %v146, %v187
  %v204 = vadd.f32 %v147, %v188
  %v205 = vadd.f32 %v148, %v189
  %v206 = vadd.f32 %v149, %v190
  %s207 = scalar_lea.vmem %s1, 384
  %v208 = vld [vmem:[%s207] sm:$0xff]
  %v209 = vld [vmem:[%s207 + $0x8] sm:$0xff]
  %v210 = vld [vmem:[%s207 + $0x10] sm:$0xff]
  %v211 = vld [vmem:[%s207 + $0x18] sm:$0xff]
  %v212 = vld [vmem:[%s207 + $0x20] sm:$0xff]
  %v213 = vld [vmem:[%s207 + $0x28] sm:$0xff]
  %v214 = vld [vmem:[%s207 + $0x30] sm:$0xff]
  %v215 = vld [vmem:[%s207 + $0x38] sm:$0xff]
  %v216 = vld [vmem:[%s207 + $0x40] sm:$0xff]
  %v217 = vld [vmem:[%s207 + $0x48] sm:$0xff]
  %v218 = vld [vmem:[%s207 + $0x50] sm:$0xff]
  %v219 = vld [vmem:[%s207 + $0x58] sm:$0xff]
  %v220 = vld [vmem:[%s207 + $0x60] sm:$0xff]
  %v221 = vld [vmem:[%s207 + $0x68] sm:$0xff]
  %v222 = vld [vmem:[%s207 + $0x70] sm:$0xff]
  %v223 = vld [vmem:[%s207 + $0x78] sm:$0xff]
  %s224 = scalar_lea.vmem %s2, 3
  %v225 = vld [vmem:[%s224] sm:$0x1]
  %v227 = vlaneseq
  %v228 = vshrl.u32 %v227, 7
  %v229 = vsub.s32 0, %v228
  %v230 = vrot.slane %v225, %v229
  %v232 = vmul.f32 %v208, %v230
  %v233 = vmul.f32 %v209, %v230
  %v234 = vmul.f32 %v210, %v230
  %v235 = vmul.f32 %v211, %v230
  %v236 = vmul.f32 %v212, %v230
  %v237 = vmul.f32 %v213, %v230
  %v238 = vmul.f32 %v214, %v230
  %v239 = vmul.f32 %v215, %v230
  %v240 = vmul.f32 %v216, %v230
  %v241 = vmul.f32 %v217, %v230
  %v242 = vmul.f32 %v218, %v230
  %v243 = vmul.f32 %v219, %v230
  %v244 = vmul.f32 %v220, %v230
  %v245 = vmul.f32 %v221, %v230
  %v246 = vmul.f32 %v222, %v230
  %v247 = vmul.f32 %v223, %v230
  %v248 = vadd.f32 %v191, %v232
  %v249 = vadd.f32 %v192, %v233
  %v250 = vadd.f32 %v193, %v234
  %v251 = vadd.f32 %v194, %v235
  %v252 = vadd.f32 %v195, %v236
  %v253 = vadd.f32 %v196, %v237
  %v254 = vadd.f32 %v197, %v238
  %v255 = vadd.f32 %v198, %v239
  %v256 = vadd.f32 %v199, %v240
  %v257 = vadd.f32 %v200, %v241
  %v258 = vadd.f32 %v201, %v242
  %v259 = vadd.f32 %v202, %v243
  %v260 = vadd.f32 %v203, %v244
  %v261 = vadd.f32 %v204, %v245
  %v262 = vadd.f32 %v205, %v246
  %v263 = vadd.f32 %v206, %v247
  %s264 = scalar_lea.vmem %s1, 512
  %v265 = vld [vmem:[%s264] sm:$0xff]
  %v266 = vld [vmem:[%s264 + $0x8] sm:$0xff]
  %v267 = vld [vmem:[%s264 + $0x10] sm:$0xff]
  %v268 = vld [vmem:[%s264 + $0x18] sm:$0xff]
  %v269 = vld [vmem:[%s264 + $0x20] sm:$0xff]
  %v270 = vld [vmem:[%s264 + $0x28] sm:$0xff]
  %v271 = vld [vmem:[%s264 + $0x30] sm:$0xff]
  %v272 = vld [vmem:[%s264 + $0x38] sm:$0xff]
  %v273 = vld [vmem:[%s264 + $0x40] sm:$0xff]
  %v274 = vld [vmem:[%s264 + $0x48] sm:$0xff]
  %v275 = vld [vmem:[%s264 + $0x50] sm:$0xff]
  %v276 = vld [vmem:[%s264 + $0x58] sm:$0xff]
  %v277 = vld [vmem:[%s264 + $0x60] sm:$0xff]
  %v278 = vld [vmem:[%s264 + $0x68] sm:$0xff]
  %v279 = vld [vmem:[%s264 + $0x70] sm:$0xff]
  %v280 = vld [vmem:[%s264 + $0x78] sm:$0xff]
  %s281 = scalar_lea.vmem %s2, 4
  %v282 = vld [vmem:[%s281] sm:$0x1]
  %v284 = vlaneseq
  %v285 = vshrl.u32 %v284, 7
  %v286 = vsub.s32 0, %v285
  %v287 = vrot.slane %v282, %v286
  %v289 = vmul.f32 %v265, %v287
  %v290 = vmul.f32 %v266, %v287
  %v291 = vmul.f32 %v267, %v287
  %v292 = vmul.f32 %v268, %v287
  %v293 = vmul.f32 %v269, %v287
  %v294 = vmul.f32 %v270, %v287
  %v295 = vmul.f32 %v271, %v287
  %v296 = vmul.f32 %v272, %v287
  %v297 = vmul.f32 %v273, %v287
  %v298 = vmul.f32 %v274, %v287
  %v299 = vmul.f32 %v275, %v287
  %v300 = vmul.f32 %v276, %v287
  %v301 = vmul.f32 %v277, %v287
  %v302 = vmul.f32 %v278, %v287
  %v303 = vmul.f32 %v279, %v287
  %v304 = vmul.f32 %v280, %v287
  %v305 = vadd.f32 %v248, %v289
  %v306 = vadd.f32 %v249, %v290
  %v307 = vadd.f32 %v250, %v291
  %v308 = vadd.f32 %v251, %v292
  %v309 = vadd.f32 %v252, %v293
  %v310 = vadd.f32 %v253, %v294
  %v311 = vadd.f32 %v254, %v295
  %v312 = vadd.f32 %v255, %v296
  %v313 = vadd.f32 %v256, %v297
  %v314 = vadd.f32 %v257, %v298
  %v315 = vadd.f32 %v258, %v299
  %v316 = vadd.f32 %v259, %v300
  %v317 = vadd.f32 %v260, %v301
  %v318 = vadd.f32 %v261, %v302
  %v319 = vadd.f32 %v262, %v303
  %v320 = vadd.f32 %v263, %v304
  %s321 = scalar_lea.vmem %s1, 640
  %v322 = vld [vmem:[%s321] sm:$0xff]
  %v323 = vld [vmem:[%s321 + $0x8] sm:$0xff]
  %v324 = vld [vmem:[%s321 + $0x10] sm:$0xff]
  %v325 = vld [vmem:[%s321 + $0x18] sm:$0xff]
  %v326 = vld [vmem:[%s321 + $0x20] sm:$0xff]
  %v327 = vld [vmem:[%s321 + $0x28] sm:$0xff]
  %v328 = vld [vmem:[%s321 + $0x30] sm:$0xff]
  %v329 = vld [vmem:[%s321 + $0x38] sm:$0xff]
  %v330 = vld [vmem:[%s321 + $0x40] sm:$0xff]
  %v331 = vld [vmem:[%s321 + $0x48] sm:$0xff]
  %v332 = vld [vmem:[%s321 + $0x50] sm:$0xff]
  %v333 = vld [vmem:[%s321 + $0x58] sm:$0xff]
  %v334 = vld [vmem:[%s321 + $0x60] sm:$0xff]
  %v335 = vld [vmem:[%s321 + $0x68] sm:$0xff]
  %v336 = vld [vmem:[%s321 + $0x70] sm:$0xff]
  %v337 = vld [vmem:[%s321 + $0x78] sm:$0xff]
  %s338 = scalar_lea.vmem %s2, 5
  %v339 = vld [vmem:[%s338] sm:$0x1]
  %v341 = vlaneseq
  %v342 = vshrl.u32 %v341, 7
  %v343 = vsub.s32 0, %v342
  %v344 = vrot.slane %v339, %v343
  %v346 = vmul.f32 %v322, %v344
  %v347 = vmul.f32 %v323, %v344
  %v348 = vmul.f32 %v324, %v344
  %v349 = vmul.f32 %v325, %v344
  %v350 = vmul.f32 %v326, %v344
  %v351 = vmul.f32 %v327, %v344
  %v352 = vmul.f32 %v328, %v344
  %v353 = vmul.f32 %v329, %v344
  %v354 = vmul.f32 %v330, %v344
  %v355 = vmul.f32 %v331, %v344
  %v356 = vmul.f32 %v332, %v344
  %v357 = vmul.f32 %v333, %v344
  %v358 = vmul.f32 %v334, %v344
  %v359 = vmul.f32 %v335, %v344
  %v360 = vmul.f32 %v336, %v344
  %v361 = vmul.f32 %v337, %v344
  %v362 = vadd.f32 %v305, %v346
  %v363 = vadd.f32 %v306, %v347
  %v364 = vadd.f32 %v307, %v348
  %v365 = vadd.f32 %v308, %v349
  %v366 = vadd.f32 %v309, %v350
  %v367 = vadd.f32 %v310, %v351
  %v368 = vadd.f32 %v311, %v352
  %v369 = vadd.f32 %v312, %v353
  %v370 = vadd.f32 %v313, %v354
  %v371 = vadd.f32 %v314, %v355
  %v372 = vadd.f32 %v315, %v356
  %v373 = vadd.f32 %v316, %v357
  %v374 = vadd.f32 %v317, %v358
  %v375 = vadd.f32 %v318, %v359
  %v376 = vadd.f32 %v319, %v360
  %v377 = vadd.f32 %v320, %v361
  %s378 = scalar_lea.vmem %s1, 768
  %v379 = vld [vmem:[%s378] sm:$0xff]
  %v380 = vld [vmem:[%s378 + $0x8] sm:$0xff]
  %v381 = vld [vmem:[%s378 + $0x10] sm:$0xff]
  %v382 = vld [vmem:[%s378 + $0x18] sm:$0xff]
  %v383 = vld [vmem:[%s378 + $0x20] sm:$0xff]
  %v384 = vld [vmem:[%s378 + $0x28] sm:$0xff]
  %v385 = vld [vmem:[%s378 + $0x30] sm:$0xff]
  %v386 = vld [vmem:[%s378 + $0x38] sm:$0xff]
  %v387 = vld [vmem:[%s378 + $0x40] sm:$0xff]
  %v388 = vld [vmem:[%s378 + $0x48] sm:$0xff]
  %v389 = vld [vmem:[%s378 + $0x50] sm:$0xff]
  %v390 = vld [vmem:[%s378 + $0x58] sm:$0xff]
  %v391 = vld [vmem:[%s378 + $0x60] sm:$0xff]
  %v392 = vld [vmem:[%s378 + $0x68] sm:$0xff]
  %v393 = vld [vmem:[%s378 + $0x70] sm:$0xff]
  %v394 = vld [vmem:[%s378 + $0x78] sm:$0xff]
  %s395 = scalar_lea.vmem %s2, 6
  %v396 = vld [vmem:[%s395] sm:$0x1]
  %v398 = vlaneseq
  %v399 = vshrl.u32 %v398, 7
  %v400 = vsub.s32 0, %v399
  %v401 = vrot.slane %v396, %v400
  %v403 = vmul.f32 %v379, %v401
  %v404 = vmul.f32 %v380, %v401
  %v405 = vmul.f32 %v381, %v401
  %v406 = vmul.f32 %v382, %v401
  %v407 = vmul.f32 %v383, %v401
  %v408 = vmul.f32 %v384, %v401
  %v409 = vmul.f32 %v385, %v401
  %v410 = vmul.f32 %v386, %v401
  %v411 = vmul.f32 %v387, %v401
  %v412 = vmul.f32 %v388, %v401
  %v413 = vmul.f32 %v389, %v401
  %v414 = vmul.f32 %v390, %v401
  %v415 = vmul.f32 %v391, %v401
  %v416 = vmul.f32 %v392, %v401
  %v417 = vmul.f32 %v393, %v401
  %v418 = vmul.f32 %v394, %v401
  %v419 = vadd.f32 %v362, %v403
  %v420 = vadd.f32 %v363, %v404
  %v421 = vadd.f32 %v364, %v405
  %v422 = vadd.f32 %v365, %v406
  %v423 = vadd.f32 %v366, %v407
  %v424 = vadd.f32 %v367, %v408
  %v425 = vadd.f32 %v368, %v409
  %v426 = vadd.f32 %v369, %v410
  %v427 = vadd.f32 %v370, %v411
  %v428 = vadd.f32 %v371, %v412
  %v429 = vadd.f32 %v372, %v413
  %v430 = vadd.f32 %v373, %v414
  %v431 = vadd.f32 %v374, %v415
  %v432 = vadd.f32 %v375, %v416
  %v433 = vadd.f32 %v376, %v417
  %v434 = vadd.f32 %v377, %v418
  %s435 = scalar_lea.vmem %s1, 896
  %v436 = vld [vmem:[%s435] sm:$0xff]
  %v437 = vld [vmem:[%s435 + $0x8] sm:$0xff]
  %v438 = vld [vmem:[%s435 + $0x10] sm:$0xff]
  %v439 = vld [vmem:[%s435 + $0x18] sm:$0xff]
  %v440 = vld [vmem:[%s435 + $0x20] sm:$0xff]
  %v441 = vld [vmem:[%s435 + $0x28] sm:$0xff]
  %v442 = vld [vmem:[%s435 + $0x30] sm:$0xff]
  %v443 = vld [vmem:[%s435 + $0x38] sm:$0xff]
  %v444 = vld [vmem:[%s435 + $0x40] sm:$0xff]
  %v445 = vld [vmem:[%s435 + $0x48] sm:$0xff]
  %v446 = vld [vmem:[%s435 + $0x50] sm:$0xff]
  %v447 = vld [vmem:[%s435 + $0x58] sm:$0xff]
  %v448 = vld [vmem:[%s435 + $0x60] sm:$0xff]
  %v449 = vld [vmem:[%s435 + $0x68] sm:$0xff]
  %v450 = vld [vmem:[%s435 + $0x70] sm:$0xff]
  %v451 = vld [vmem:[%s435 + $0x78] sm:$0xff]
  %s452 = scalar_lea.vmem %s2, 7
  %v453 = vld [vmem:[%s452] sm:$0x1]
  %v455 = vlaneseq
  %v456 = vshrl.u32 %v455, 7
  %v457 = vsub.s32 0, %v456
  %v458 = vrot.slane %v453, %v457
  %v460 = vmul.f32 %v436, %v458
  %v461 = vmul.f32 %v437, %v458
  %v462 = vmul.f32 %v438, %v458
  %v463 = vmul.f32 %v439, %v458
  %v464 = vmul.f32 %v440, %v458
  %v465 = vmul.f32 %v441, %v458
  %v466 = vmul.f32 %v442, %v458
  %v467 = vmul.f32 %v443, %v458
  %v468 = vmul.f32 %v444, %v458
  %v469 = vmul.f32 %v445, %v458
  %v470 = vmul.f32 %v446, %v458
  %v471 = vmul.f32 %v447, %v458
  %v472 = vmul.f32 %v448, %v458
  %v473 = vmul.f32 %v449, %v458
  %v474 = vmul.f32 %v450, %v458
  %v475 = vmul.f32 %v451, %v458
  %v476 = vadd.f32 %v419, %v460
  %v477 = vadd.f32 %v420, %v461
  %v478 = vadd.f32 %v421, %v462
  %v479 = vadd.f32 %v422, %v463
  %v480 = vadd.f32 %v423, %v464
  %v481 = vadd.f32 %v424, %v465
  %v482 = vadd.f32 %v425, %v466
  %v483 = vadd.f32 %v426, %v467
  %v484 = vadd.f32 %v427, %v468
  %v485 = vadd.f32 %v428, %v469
  %v486 = vadd.f32 %v429, %v470
  %v487 = vadd.f32 %v430, %v471
  %v488 = vadd.f32 %v431, %v472
  %v489 = vadd.f32 %v432, %v473
  %v490 = vadd.f32 %v433, %v474
  %v491 = vadd.f32 %v434, %v475
  %s492 = scalar_lea.vmem %s1, 1024
  %v493 = vld [vmem:[%s492] sm:$0xff]
  %v494 = vld [vmem:[%s492 + $0x8] sm:$0xff]
  %v495 = vld [vmem:[%s492 + $0x10] sm:$0xff]
  %v496 = vld [vmem:[%s492 + $0x18] sm:$0xff]
  %v497 = vld [vmem:[%s492 + $0x20] sm:$0xff]
  %v498 = vld [vmem:[%s492 + $0x28] sm:$0xff]
  %v499 = vld [vmem:[%s492 + $0x30] sm:$0xff]
  %v500 = vld [vmem:[%s492 + $0x38] sm:$0xff]
  %v501 = vld [vmem:[%s492 + $0x40] sm:$0xff]
  %v502 = vld [vmem:[%s492 + $0x48] sm:$0xff]
  %v503 = vld [vmem:[%s492 + $0x50] sm:$0xff]
  %v504 = vld [vmem:[%s492 + $0x58] sm:$0xff]
  %v505 = vld [vmem:[%s492 + $0x60] sm:$0xff]
  %v506 = vld [vmem:[%s492 + $0x68] sm:$0xff]
  %v507 = vld [vmem:[%s492 + $0x70] sm:$0xff]
  %v508 = vld [vmem:[%s492 + $0x78] sm:$0xff]
  %s509 = scalar_lea.vmem %s2, 8
  %v510 = vld [vmem:[%s509] sm:$0x1]
  %v512 = vlaneseq
  %v513 = vshrl.u32 %v512, 7
  %v514 = vsub.s32 0, %v513
  %v515 = vrot.slane %v510, %v514
  %v517 = vmul.f32 %v493, %v515
  %v518 = vmul.f32 %v494, %v515
  %v519 = vmul.f32 %v495, %v515
  %v520 = vmul.f32 %v496, %v515
  %v521 = vmul.f32 %v497, %v515
  %v522 = vmul.f32 %v498, %v515
  %v523 = vmul.f32 %v499, %v515
  %v524 = vmul.f32 %v500, %v515
  %v525 = vmul.f32 %v501, %v515
  %v526 = vmul.f32 %v502, %v515
  %v527 = vmul.f32 %v503, %v515
  %v528 = vmul.f32 %v504, %v515
  %v529 = vmul.f32 %v505, %v515
  %v530 = vmul.f32 %v506, %v515
  %v531 = vmul.f32 %v507, %v515
  %v532 = vmul.f32 %v508, %v515
  %v533 = vadd.f32 %v476, %v517
  %v534 = vadd.f32 %v477, %v518
  %v535 = vadd.f32 %v478, %v519
  %v536 = vadd.f32 %v479, %v520
  %v537 = vadd.f32 %v480, %v521
  %v538 = vadd.f32 %v481, %v522
  %v539 = vadd.f32 %v482, %v523
  %v540 = vadd.f32 %v483, %v524
  %v541 = vadd.f32 %v484, %v525
  %v542 = vadd.f32 %v485, %v526
  %v543 = vadd.f32 %v486, %v527
  %v544 = vadd.f32 %v487, %v528
  %v545 = vadd.f32 %v488, %v529
  %v546 = vadd.f32 %v489, %v530
  %v547 = vadd.f32 %v490, %v531
  %v548 = vadd.f32 %v491, %v532
  %s549 = scalar_lea.vmem %s1, 1152
  %v550 = vld [vmem:[%s549] sm:$0xff]
  %v551 = vld [vmem:[%s549 + $0x8] sm:$0xff]
  %v552 = vld [vmem:[%s549 + $0x10] sm:$0xff]
  %v553 = vld [vmem:[%s549 + $0x18] sm:$0xff]
  %v554 = vld [vmem:[%s549 + $0x20] sm:$0xff]
  %v555 = vld [vmem:[%s549 + $0x28] sm:$0xff]
  %v556 = vld [vmem:[%s549 + $0x30] sm:$0xff]
  %v557 = vld [vmem:[%s549 + $0x38] sm:$0xff]
  %v558 = vld [vmem:[%s549 + $0x40] sm:$0xff]
  %v559 = vld [vmem:[%s549 + $0x48] sm:$0xff]
  %v560 = vld [vmem:[%s549 + $0x50] sm:$0xff]
  %v561 = vld [vmem:[%s549 + $0x58] sm:$0xff]
  %v562 = vld [vmem:[%s549 + $0x60] sm:$0xff]
  %v563 = vld [vmem:[%s549 + $0x68] sm:$0xff]
  %v564 = vld [vmem:[%s549 + $0x70] sm:$0xff]
  %v565 = vld [vmem:[%s549 + $0x78] sm:$0xff]
  %s566 = scalar_lea.vmem %s2, 9
  %v567 = vld [vmem:[%s566] sm:$0x1]
  %v569 = vlaneseq
  %v570 = vshrl.u32 %v569, 7
  %v571 = vsub.s32 0, %v570
  %v572 = vrot.slane %v567, %v571
  %v574 = vmul.f32 %v550, %v572
  %v575 = vmul.f32 %v551, %v572
  %v576 = vmul.f32 %v552, %v572
  %v577 = vmul.f32 %v553, %v572
  %v578 = vmul.f32 %v554, %v572
  %v579 = vmul.f32 %v555, %v572
  %v580 = vmul.f32 %v556, %v572
  %v581 = vmul.f32 %v557, %v572
  %v582 = vmul.f32 %v558, %v572
  %v583 = vmul.f32 %v559, %v572
  %v584 = vmul.f32 %v560, %v572
  %v585 = vmul.f32 %v561, %v572
  %v586 = vmul.f32 %v562, %v572
  %v587 = vmul.f32 %v563, %v572
  %v588 = vmul.f32 %v564, %v572
  %v589 = vmul.f32 %v565, %v572
  %v590 = vadd.f32 %v533, %v574
  %v591 = vadd.f32 %v534, %v575
  %v592 = vadd.f32 %v535, %v576
  %v593 = vadd.f32 %v536, %v577
  %v594 = vadd.f32 %v537, %v578
  %v595 = vadd.f32 %v538, %v579
  %v596 = vadd.f32 %v539, %v580
  %v597 = vadd.f32 %v540, %v581
  %v598 = vadd.f32 %v541, %v582
  %v599 = vadd.f32 %v542, %v583
  %v600 = vadd.f32 %v543, %v584
  %v601 = vadd.f32 %v544, %v585
  %v602 = vadd.f32 %v545, %v586
  %v603 = vadd.f32 %v546, %v587
  %v604 = vadd.f32 %v547, %v588
  %v605 = vadd.f32 %v548, %v589
  %s606 = scalar_lea.vmem %s1, 1280
  %v607 = vld [vmem:[%s606] sm:$0xff]
  %v608 = vld [vmem:[%s606 + $0x8] sm:$0xff]
  %v609 = vld [vmem:[%s606 + $0x10] sm:$0xff]
  %v610 = vld [vmem:[%s606 + $0x18] sm:$0xff]
  %v611 = vld [vmem:[%s606 + $0x20] sm:$0xff]
  %v612 = vld [vmem:[%s606 + $0x28] sm:$0xff]
  %v613 = vld [vmem:[%s606 + $0x30] sm:$0xff]
  %v614 = vld [vmem:[%s606 + $0x38] sm:$0xff]
  %v615 = vld [vmem:[%s606 + $0x40] sm:$0xff]
  %v616 = vld [vmem:[%s606 + $0x48] sm:$0xff]
  %v617 = vld [vmem:[%s606 + $0x50] sm:$0xff]
  %v618 = vld [vmem:[%s606 + $0x58] sm:$0xff]
  %v619 = vld [vmem:[%s606 + $0x60] sm:$0xff]
  %v620 = vld [vmem:[%s606 + $0x68] sm:$0xff]
  %v621 = vld [vmem:[%s606 + $0x70] sm:$0xff]
  %v622 = vld [vmem:[%s606 + $0x78] sm:$0xff]
  %s623 = scalar_lea.vmem %s2, 10
  %v624 = vld [vmem:[%s623] sm:$0x1]
  %v626 = vlaneseq
  %v627 = vshrl.u32 %v626, 7
  %v628 = vsub.s32 0, %v627
  %v629 = vrot.slane %v624, %v628
  %v631 = vmul.f32 %v607, %v629
  %v632 = vmul.f32 %v608, %v629
  %v633 = vmul.f32 %v609, %v629
  %v634 = vmul.f32 %v610, %v629
  %v635 = vmul.f32 %v611, %v629
  %v636 = vmul.f32 %v612, %v629
  %v637 = vmul.f32 %v613, %v629
  %v638 = vmul.f32 %v614, %v629
  %v639 = vmul.f32 %v615, %v629
  %v640 = vmul.f32 %v616, %v629
  %v641 = vmul.f32 %v617, %v629
  %v642 = vmul.f32 %v618, %v629
  %v643 = vmul.f32 %v619, %v629
  %v644 = vmul.f32 %v620, %v629
  %v645 = vmul.f32 %v621, %v629
  %v646 = vmul.f32 %v622, %v629
  %v647 = vadd.f32 %v590, %v631
  %v648 = vadd.f32 %v591, %v632
  %v649 = vadd.f32 %v592, %v633
  %v650 = vadd.f32 %v593, %v634
  %v651 = vadd.f32 %v594, %v635
  %v652 = vadd.f32 %v595, %v636
  %v653 = vadd.f32 %v596, %v637
  %v654 = vadd.f32 %v597, %v638
  %v655 = vadd.f32 %v598, %v639
  %v656 = vadd.f32 %v599, %v640
  %v657 = vadd.f32 %v600, %v641
  %v658 = vadd.f32 %v601, %v642
  %v659 = vadd.f32 %v602, %v643
  %v660 = vadd.f32 %v603, %v644
  %v661 = vadd.f32 %v604, %v645
  %v662 = vadd.f32 %v605, %v646
  %s663 = scalar_lea.vmem %s1, 1408
  %v664 = vld [vmem:[%s663] sm:$0xff]
  %v665 = vld [vmem:[%s663 + $0x8] sm:$0xff]
  %v666 = vld [vmem:[%s663 + $0x10] sm:$0xff]
  %v667 = vld [vmem:[%s663 + $0x18] sm:$0xff]
  %v668 = vld [vmem:[%s663 + $0x20] sm:$0xff]
  %v669 = vld [vmem:[%s663 + $0x28] sm:$0xff]
  %v670 = vld [vmem:[%s663 + $0x30] sm:$0xff]
  %v671 = vld [vmem:[%s663 + $0x38] sm:$0xff]
  %v672 = vld [vmem:[%s663 + $0x40] sm:$0xff]
  %v673 = vld [vmem:[%s663 + $0x48] sm:$0xff]
  %v674 = vld [vmem:[%s663 + $0x50] sm:$0xff]
  %v675 = vld [vmem:[%s663 + $0x58] sm:$0xff]
  %v676 = vld [vmem:[%s663 + $0x60] sm:$0xff]
  %v677 = vld [vmem:[%s663 + $0x68] sm:$0xff]
  %v678 = vld [vmem:[%s663 + $0x70] sm:$0xff]
  %v679 = vld [vmem:[%s663 + $0x78] sm:$0xff]
  %s680 = scalar_lea.vmem %s2, 11
  %v681 = vld [vmem:[%s680] sm:$0x1]
  %v683 = vlaneseq
  %v684 = vshrl.u32 %v683, 7
  %v685 = vsub.s32 0, %v684
  %v686 = vrot.slane %v681, %v685
  %v688 = vmul.f32 %v664, %v686
  %v689 = vmul.f32 %v665, %v686
  %v690 = vmul.f32 %v666, %v686
  %v691 = vmul.f32 %v667, %v686
  %v692 = vmul.f32 %v668, %v686
  %v693 = vmul.f32 %v669, %v686
  %v694 = vmul.f32 %v670, %v686
  %v695 = vmul.f32 %v671, %v686
  %v696 = vmul.f32 %v672, %v686
  %v697 = vmul.f32 %v673, %v686
  %v698 = vmul.f32 %v674, %v686
  %v699 = vmul.f32 %v675, %v686
  %v700 = vmul.f32 %v676, %v686
  %v701 = vmul.f32 %v677, %v686
  %v702 = vmul.f32 %v678, %v686
  %v703 = vmul.f32 %v679, %v686
  %v704 = vadd.f32 %v647, %v688
  %v705 = vadd.f32 %v648, %v689
  %v706 = vadd.f32 %v649, %v690
  %v707 = vadd.f32 %v650, %v691
  %v708 = vadd.f32 %v651, %v692
  %v709 = vadd.f32 %v652, %v693
  %v710 = vadd.f32 %v653, %v694
  %v711 = vadd.f32 %v654, %v695
  %v712 = vadd.f32 %v655, %v696
  %v713 = vadd.f32 %v656, %v697
  %v714 = vadd.f32 %v657, %v698
  %v715 = vadd.f32 %v658, %v699
  %v716 = vadd.f32 %v659, %v700
  %v717 = vadd.f32 %v660, %v701
  %v718 = vadd.f32 %v661, %v702
  %v719 = vadd.f32 %v662, %v703
  %s720 = scalar_lea.vmem %s1, 1536
  %v721 = vld [vmem:[%s720] sm:$0xff]
  %v722 = vld [vmem:[%s720 + $0x8] sm:$0xff]
  %v723 = vld [vmem:[%s720 + $0x10] sm:$0xff]
  %v724 = vld [vmem:[%s720 + $0x18] sm:$0xff]
  %v725 = vld [vmem:[%s720 + $0x20] sm:$0xff]
  %v726 = vld [vmem:[%s720 + $0x28] sm:$0xff]
  %v727 = vld [vmem:[%s720 + $0x30] sm:$0xff]
  %v728 = vld [vmem:[%s720 + $0x38] sm:$0xff]
  %v729 = vld [vmem:[%s720 + $0x40] sm:$0xff]
  %v730 = vld [vmem:[%s720 + $0x48] sm:$0xff]
  %v731 = vld [vmem:[%s720 + $0x50] sm:$0xff]
  %v732 = vld [vmem:[%s720 + $0x58] sm:$0xff]
  %v733 = vld [vmem:[%s720 + $0x60] sm:$0xff]
  %v734 = vld [vmem:[%s720 + $0x68] sm:$0xff]
  %v735 = vld [vmem:[%s720 + $0x70] sm:$0xff]
  %v736 = vld [vmem:[%s720 + $0x78] sm:$0xff]
  %s737 = scalar_lea.vmem %s2, 12
  %v738 = vld [vmem:[%s737] sm:$0x1]
  %v740 = vlaneseq
  %v741 = vshrl.u32 %v740, 7
  %v742 = vsub.s32 0, %v741
  %v743 = vrot.slane %v738, %v742
  %v745 = vmul.f32 %v721, %v743
  %v746 = vmul.f32 %v722, %v743
  %v747 = vmul.f32 %v723, %v743
  %v748 = vmul.f32 %v724, %v743
  %v749 = vmul.f32 %v725, %v743
  %v750 = vmul.f32 %v726, %v743
  %v751 = vmul.f32 %v727, %v743
  %v752 = vmul.f32 %v728, %v743
  %v753 = vmul.f32 %v729, %v743
  %v754 = vmul.f32 %v730, %v743
  %v755 = vmul.f32 %v731, %v743
  %v756 = vmul.f32 %v732, %v743
  %v757 = vmul.f32 %v733, %v743
  %v758 = vmul.f32 %v734, %v743
  %v759 = vmul.f32 %v735, %v743
  %v760 = vmul.f32 %v736, %v743
  %v761 = vadd.f32 %v704, %v745
  %v762 = vadd.f32 %v705, %v746
  %v763 = vadd.f32 %v706, %v747
  %v764 = vadd.f32 %v707, %v748
  %v765 = vadd.f32 %v708, %v749
  %v766 = vadd.f32 %v709, %v750
  %v767 = vadd.f32 %v710, %v751
  %v768 = vadd.f32 %v711, %v752
  %v769 = vadd.f32 %v712, %v753
  %v770 = vadd.f32 %v713, %v754
  %v771 = vadd.f32 %v714, %v755
  %v772 = vadd.f32 %v715, %v756
  %v773 = vadd.f32 %v716, %v757
  %v774 = vadd.f32 %v717, %v758
  %v775 = vadd.f32 %v718, %v759
  %v776 = vadd.f32 %v719, %v760
  %s777 = scalar_lea.vmem %s1, 1664
  %v778 = vld [vmem:[%s777] sm:$0xff]
  %v779 = vld [vmem:[%s777 + $0x8] sm:$0xff]
  %v780 = vld [vmem:[%s777 + $0x10] sm:$0xff]
  %v781 = vld [vmem:[%s777 + $0x18] sm:$0xff]
  %v782 = vld [vmem:[%s777 + $0x20] sm:$0xff]
  %v783 = vld [vmem:[%s777 + $0x28] sm:$0xff]
  %v784 = vld [vmem:[%s777 + $0x30] sm:$0xff]
  %v785 = vld [vmem:[%s777 + $0x38] sm:$0xff]
  %v786 = vld [vmem:[%s777 + $0x40] sm:$0xff]
  %v787 = vld [vmem:[%s777 + $0x48] sm:$0xff]
  %v788 = vld [vmem:[%s777 + $0x50] sm:$0xff]
  %v789 = vld [vmem:[%s777 + $0x58] sm:$0xff]
  %v790 = vld [vmem:[%s777 + $0x60] sm:$0xff]
  %v791 = vld [vmem:[%s777 + $0x68] sm:$0xff]
  %v792 = vld [vmem:[%s777 + $0x70] sm:$0xff]
  %v793 = vld [vmem:[%s777 + $0x78] sm:$0xff]
  %s794 = scalar_lea.vmem %s2, 13
  %v795 = vld [vmem:[%s794] sm:$0x1]
  %v797 = vlaneseq
  %v798 = vshrl.u32 %v797, 7
  %v799 = vsub.s32 0, %v798
  %v800 = vrot.slane %v795, %v799
  %v802 = vmul.f32 %v778, %v800
  %v803 = vmul.f32 %v779, %v800
  %v804 = vmul.f32 %v780, %v800
  %v805 = vmul.f32 %v781, %v800
  %v806 = vmul.f32 %v782, %v800
  %v807 = vmul.f32 %v783, %v800
  %v808 = vmul.f32 %v784, %v800
  %v809 = vmul.f32 %v785, %v800
  %v810 = vmul.f32 %v786, %v800
  %v811 = vmul.f32 %v787, %v800
  %v812 = vmul.f32 %v788, %v800
  %v813 = vmul.f32 %v789, %v800
  %v814 = vmul.f32 %v790, %v800
  %v815 = vmul.f32 %v791, %v800
  %v816 = vmul.f32 %v792, %v800
  %v817 = vmul.f32 %v793, %v800
  %v818 = vadd.f32 %v761, %v802
  %v819 = vadd.f32 %v762, %v803
  %v820 = vadd.f32 %v763, %v804
  %v821 = vadd.f32 %v764, %v805
  %v822 = vadd.f32 %v765, %v806
  %v823 = vadd.f32 %v766, %v807
  %v824 = vadd.f32 %v767, %v808
  %v825 = vadd.f32 %v768, %v809
  %v826 = vadd.f32 %v769, %v810
  %v827 = vadd.f32 %v770, %v811
  %v828 = vadd.f32 %v771, %v812
  %v829 = vadd.f32 %v772, %v813
  %v830 = vadd.f32 %v773, %v814
  %v831 = vadd.f32 %v774, %v815
  %v832 = vadd.f32 %v775, %v816
  %v833 = vadd.f32 %v776, %v817
  %s834 = scalar_lea.vmem %s1, 1792
  %v835 = vld [vmem:[%s834] sm:$0xff]
  %v836 = vld [vmem:[%s834 + $0x8] sm:$0xff]
  %v837 = vld [vmem:[%s834 + $0x10] sm:$0xff]
  %v838 = vld [vmem:[%s834 + $0x18] sm:$0xff]
  %v839 = vld [vmem:[%s834 + $0x20] sm:$0xff]
  %v840 = vld [vmem:[%s834 + $0x28] sm:$0xff]
  %v841 = vld [vmem:[%s834 + $0x30] sm:$0xff]
  %v842 = vld [vmem:[%s834 + $0x38] sm:$0xff]
  %v843 = vld [vmem:[%s834 + $0x40] sm:$0xff]
  %v844 = vld [vmem:[%s834 + $0x48] sm:$0xff]
  %v845 = vld [vmem:[%s834 + $0x50] sm:$0xff]
  %v846 = vld [vmem:[%s834 + $0x58] sm:$0xff]
  %v847 = vld [vmem:[%s834 + $0x60] sm:$0xff]
  %v848 = vld [vmem:[%s834 + $0x68] sm:$0xff]
  %v849 = vld [vmem:[%s834 + $0x70] sm:$0xff]
  %v850 = vld [vmem:[%s834 + $0x78] sm:$0xff]
  %s851 = scalar_lea.vmem %s2, 14
  %v852 = vld [vmem:[%s851] sm:$0x1]
  %v854 = vlaneseq
  %v855 = vshrl.u32 %v854, 7
  %v856 = vsub.s32 0, %v855
  %v857 = vrot.slane %v852, %v856
  %v859 = vmul.f32 %v835, %v857
  %v860 = vmul.f32 %v836, %v857
  %v861 = vmul.f32 %v837, %v857
  %v862 = vmul.f32 %v838, %v857
  %v863 = vmul.f32 %v839, %v857
  %v864 = vmul.f32 %v840, %v857
  %v865 = vmul.f32 %v841, %v857
  %v866 = vmul.f32 %v842, %v857
  %v867 = vmul.f32 %v843, %v857
  %v868 = vmul.f32 %v844, %v857
  %v869 = vmul.f32 %v845, %v857
  %v870 = vmul.f32 %v846, %v857
  %v871 = vmul.f32 %v847, %v857
  %v872 = vmul.f32 %v848, %v857
  %v873 = vmul.f32 %v849, %v857
  %v874 = vmul.f32 %v850, %v857
  %v875 = vadd.f32 %v818, %v859
  %v876 = vadd.f32 %v819, %v860
  %v877 = vadd.f32 %v820, %v861
  %v878 = vadd.f32 %v821, %v862
  %v879 = vadd.f32 %v822, %v863
  %v880 = vadd.f32 %v823, %v864
  %v881 = vadd.f32 %v824, %v865
  %v882 = vadd.f32 %v825, %v866
  %v883 = vadd.f32 %v826, %v867
  %v884 = vadd.f32 %v827, %v868
  %v885 = vadd.f32 %v828, %v869
  %v886 = vadd.f32 %v829, %v870
  %v887 = vadd.f32 %v830, %v871
  %v888 = vadd.f32 %v831, %v872
  %v889 = vadd.f32 %v832, %v873
  %v890 = vadd.f32 %v833, %v874
  %s891 = scalar_lea.vmem %s1, 1920
  %v892 = vld [vmem:[%s891] sm:$0xff]
  %v893 = vld [vmem:[%s891 + $0x8] sm:$0xff]
  %v894 = vld [vmem:[%s891 + $0x10] sm:$0xff]
  %v895 = vld [vmem:[%s891 + $0x18] sm:$0xff]
  %v896 = vld [vmem:[%s891 + $0x20] sm:$0xff]
  %v897 = vld [vmem:[%s891 + $0x28] sm:$0xff]
  %v898 = vld [vmem:[%s891 + $0x30] sm:$0xff]
  %v899 = vld [vmem:[%s891 + $0x38] sm:$0xff]
  %v900 = vld [vmem:[%s891 + $0x40] sm:$0xff]
  %v901 = vld [vmem:[%s891 + $0x48] sm:$0xff]
  %v902 = vld [vmem:[%s891 + $0x50] sm:$0xff]
  %v903 = vld [vmem:[%s891 + $0x58] sm:$0xff]
  %v904 = vld [vmem:[%s891 + $0x60] sm:$0xff]
  %v905 = vld [vmem:[%s891 + $0x68] sm:$0xff]
  %v906 = vld [vmem:[%s891 + $0x70] sm:$0xff]
  %v907 = vld [vmem:[%s891 + $0x78] sm:$0xff]
  %s908 = scalar_lea.vmem %s2, 15
  %v909 = vld [vmem:[%s908] sm:$0x1]
  %v911 = vlaneseq
  %v912 = vshrl.u32 %v911, 7
  %v913 = vsub.s32 0, %v912
  %v914 = vrot.slane %v909, %v913
  %v916 = vmul.f32 %v892, %v914
  %v917 = vmul.f32 %v893, %v914
  %v918 = vmul.f32 %v894, %v914
  %v919 = vmul.f32 %v895, %v914
  %v920 = vmul.f32 %v896, %v914
  %v921 = vmul.f32 %v897, %v914
  %v922 = vmul.f32 %v898, %v914
  %v923 = vmul.f32 %v899, %v914
  %v924 = vmul.f32 %v900, %v914
  %v925 = vmul.f32 %v901, %v914
  %v926 = vmul.f32 %v902, %v914
  %v927 = vmul.f32 %v903, %v914
  %v928 = vmul.f32 %v904, %v914
  %v929 = vmul.f32 %v905, %v914
  %v930 = vmul.f32 %v906, %v914
  %v931 = vmul.f32 %v907, %v914
  %v932 = vadd.f32 %v875, %v916
  %v933 = vadd.f32 %v876, %v917
  %v934 = vadd.f32 %v877, %v918
  %v935 = vadd.f32 %v878, %v919
  %v936 = vadd.f32 %v879, %v920
  %v937 = vadd.f32 %v880, %v921
  %v938 = vadd.f32 %v881, %v922
  %v939 = vadd.f32 %v882, %v923
  %v940 = vadd.f32 %v883, %v924
  %v941 = vadd.f32 %v884, %v925
  %v942 = vadd.f32 %v885, %v926
  %v943 = vadd.f32 %v886, %v927
  %v944 = vadd.f32 %v887, %v928
  %v945 = vadd.f32 %v888, %v929
  %v946 = vadd.f32 %v889, %v930
  %v947 = vadd.f32 %v890, %v931
  %s948 = scalar_lea.vmem %s1, 2048
  %v949 = vld [vmem:[%s948] sm:$0xff]
  %v950 = vld [vmem:[%s948 + $0x8] sm:$0xff]
  %v951 = vld [vmem:[%s948 + $0x10] sm:$0xff]
  %v952 = vld [vmem:[%s948 + $0x18] sm:$0xff]
  %v953 = vld [vmem:[%s948 + $0x20] sm:$0xff]
  %v954 = vld [vmem:[%s948 + $0x28] sm:$0xff]
  %v955 = vld [vmem:[%s948 + $0x30] sm:$0xff]
  %v956 = vld [vmem:[%s948 + $0x38] sm:$0xff]
  %v957 = vld [vmem:[%s948 + $0x40] sm:$0xff]
  %v958 = vld [vmem:[%s948 + $0x48] sm:$0xff]
  %v959 = vld [vmem:[%s948 + $0x50] sm:$0xff]
  %v960 = vld [vmem:[%s948 + $0x58] sm:$0xff]
  %v961 = vld [vmem:[%s948 + $0x60] sm:$0xff]
  %v962 = vld [vmem:[%s948 + $0x68] sm:$0xff]
  %v963 = vld [vmem:[%s948 + $0x70] sm:$0xff]
  %v964 = vld [vmem:[%s948 + $0x78] sm:$0xff]
  %s965 = scalar_lea.vmem %s2, 16
  %v966 = vld [vmem:[%s965] sm:$0x1]
  %v968 = vlaneseq
  %v969 = vshrl.u32 %v968, 7
  %v970 = vsub.s32 0, %v969
  %v971 = vrot.slane %v966, %v970
  %v973 = vmul.f32 %v949, %v971
  %v974 = vmul.f32 %v950, %v971
  %v975 = vmul.f32 %v951, %v971
  %v976 = vmul.f32 %v952, %v971
  %v977 = vmul.f32 %v953, %v971
  %v978 = vmul.f32 %v954, %v971
  %v979 = vmul.f32 %v955, %v971
  %v980 = vmul.f32 %v956, %v971
  %v981 = vmul.f32 %v957, %v971
  %v982 = vmul.f32 %v958, %v971
  %v983 = vmul.f32 %v959, %v971
  %v984 = vmul.f32 %v960, %v971
  %v985 = vmul.f32 %v961, %v971
  %v986 = vmul.f32 %v962, %v971
  %v987 = vmul.f32 %v963, %v971
  %v988 = vmul.f32 %v964, %v971
  %v989 = vadd.f32 %v932, %v973
  %v990 = vadd.f32 %v933, %v974
  %v991 = vadd.f32 %v934, %v975
  %v992 = vadd.f32 %v935, %v976
  %v993 = vadd.f32 %v936, %v977
  %v994 = vadd.f32 %v937, %v978
  %v995 = vadd.f32 %v938, %v979
  %v996 = vadd.f32 %v939, %v980
  %v997 = vadd.f32 %v940, %v981
  %v998 = vadd.f32 %v941, %v982
  %v999 = vadd.f32 %v942, %v983
  %v1000 = vadd.f32 %v943, %v984
  %v1001 = vadd.f32 %v944, %v985
  %v1002 = vadd.f32 %v945, %v986
  %v1003 = vadd.f32 %v946, %v987
  %v1004 = vadd.f32 %v947, %v988
  %s1005 = scalar_lea.vmem %s1, 2176
  %v1006 = vld [vmem:[%s1005] sm:$0xff]
  %v1007 = vld [vmem:[%s1005 + $0x8] sm:$0xff]
  %v1008 = vld [vmem:[%s1005 + $0x10] sm:$0xff]
  %v1009 = vld [vmem:[%s1005 + $0x18] sm:$0xff]
  %v1010 = vld [vmem:[%s1005 + $0x20] sm:$0xff]
  %v1011 = vld [vmem:[%s1005 + $0x28] sm:$0xff]
  %v1012 = vld [vmem:[%s1005 + $0x30] sm:$0xff]
  %v1013 = vld [vmem:[%s1005 + $0x38] sm:$0xff]
  %v1014 = vld [vmem:[%s1005 + $0x40] sm:$0xff]
  %v1015 = vld [vmem:[%s1005 + $0x48] sm:$0xff]
  %v1016 = vld [vmem:[%s1005 + $0x50] sm:$0xff]
  %v1017 = vld [vmem:[%s1005 + $0x58] sm:$0xff]
  %v1018 = vld [vmem:[%s1005 + $0x60] sm:$0xff]
  %v1019 = vld [vmem:[%s1005 + $0x68] sm:$0xff]
  %v1020 = vld [vmem:[%s1005 + $0x70] sm:$0xff]
  %v1021 = vld [vmem:[%s1005 + $0x78] sm:$0xff]
  %s1022 = scalar_lea.vmem %s2, 17
  %v1023 = vld [vmem:[%s1022] sm:$0x1]
  %v1025 = vlaneseq
  %v1026 = vshrl.u32 %v1025, 7
  %v1027 = vsub.s32 0, %v1026
  %v1028 = vrot.slane %v1023, %v1027
  %v1030 = vmul.f32 %v1006, %v1028
  %v1031 = vmul.f32 %v1007, %v1028
  %v1032 = vmul.f32 %v1008, %v1028
  %v1033 = vmul.f32 %v1009, %v1028
  %v1034 = vmul.f32 %v1010, %v1028
  %v1035 = vmul.f32 %v1011, %v1028
  %v1036 = vmul.f32 %v1012, %v1028
  %v1037 = vmul.f32 %v1013, %v1028
  %v1038 = vmul.f32 %v1014, %v1028
  %v1039 = vmul.f32 %v1015, %v1028
  %v1040 = vmul.f32 %v1016, %v1028
  %v1041 = vmul.f32 %v1017, %v1028
  %v1042 = vmul.f32 %v1018, %v1028
  %v1043 = vmul.f32 %v1019, %v1028
  %v1044 = vmul.f32 %v1020, %v1028
  %v1045 = vmul.f32 %v1021, %v1028
  %v1046 = vadd.f32 %v989, %v1030
  %v1047 = vadd.f32 %v990, %v1031
  %v1048 = vadd.f32 %v991, %v1032
  %v1049 = vadd.f32 %v992, %v1033
  %v1050 = vadd.f32 %v993, %v1034
  %v1051 = vadd.f32 %v994, %v1035
  %v1052 = vadd.f32 %v995, %v1036
  %v1053 = vadd.f32 %v996, %v1037
  %v1054 = vadd.f32 %v997, %v1038
  %v1055 = vadd.f32 %v998, %v1039
  %v1056 = vadd.f32 %v999, %v1040
  %v1057 = vadd.f32 %v1000, %v1041
  %v1058 = vadd.f32 %v1001, %v1042
  %v1059 = vadd.f32 %v1002, %v1043
  %v1060 = vadd.f32 %v1003, %v1044
  %v1061 = vadd.f32 %v1004, %v1045
  %s1062 = scalar_lea.vmem %s1, 2304
  %v1063 = vld [vmem:[%s1062] sm:$0xff]
  %v1064 = vld [vmem:[%s1062 + $0x8] sm:$0xff]
  %v1065 = vld [vmem:[%s1062 + $0x10] sm:$0xff]
  %v1066 = vld [vmem:[%s1062 + $0x18] sm:$0xff]
  %v1067 = vld [vmem:[%s1062 + $0x20] sm:$0xff]
  %v1068 = vld [vmem:[%s1062 + $0x28] sm:$0xff]
  %v1069 = vld [vmem:[%s1062 + $0x30] sm:$0xff]
  %v1070 = vld [vmem:[%s1062 + $0x38] sm:$0xff]
  %v1071 = vld [vmem:[%s1062 + $0x40] sm:$0xff]
  %v1072 = vld [vmem:[%s1062 + $0x48] sm:$0xff]
  %v1073 = vld [vmem:[%s1062 + $0x50] sm:$0xff]
  %v1074 = vld [vmem:[%s1062 + $0x58] sm:$0xff]
  %v1075 = vld [vmem:[%s1062 + $0x60] sm:$0xff]
  %v1076 = vld [vmem:[%s1062 + $0x68] sm:$0xff]
  %v1077 = vld [vmem:[%s1062 + $0x70] sm:$0xff]
  %v1078 = vld [vmem:[%s1062 + $0x78] sm:$0xff]
  %s1079 = scalar_lea.vmem %s2, 18
  %v1080 = vld [vmem:[%s1079] sm:$0x1]
  %v1082 = vlaneseq
  %v1083 = vshrl.u32 %v1082, 7
  %v1084 = vsub.s32 0, %v1083
  %v1085 = vrot.slane %v1080, %v1084
  %v1087 = vmul.f32 %v1063, %v1085
  %v1088 = vmul.f32 %v1064, %v1085
  %v1089 = vmul.f32 %v1065, %v1085
  %v1090 = vmul.f32 %v1066, %v1085
  %v1091 = vmul.f32 %v1067, %v1085
  %v1092 = vmul.f32 %v1068, %v1085
  %v1093 = vmul.f32 %v1069, %v1085
  %v1094 = vmul.f32 %v1070, %v1085
  %v1095 = vmul.f32 %v1071, %v1085
  %v1096 = vmul.f32 %v1072, %v1085
  %v1097 = vmul.f32 %v1073, %v1085
  %v1098 = vmul.f32 %v1074, %v1085
  %v1099 = vmul.f32 %v1075, %v1085
  %v1100 = vmul.f32 %v1076, %v1085
  %v1101 = vmul.f32 %v1077, %v1085
  %v1102 = vmul.f32 %v1078, %v1085
  %v1103 = vadd.f32 %v1046, %v1087
  %v1104 = vadd.f32 %v1047, %v1088
  %v1105 = vadd.f32 %v1048, %v1089
  %v1106 = vadd.f32 %v1049, %v1090
  %v1107 = vadd.f32 %v1050, %v1091
  %v1108 = vadd.f32 %v1051, %v1092
  %v1109 = vadd.f32 %v1052, %v1093
  %v1110 = vadd.f32 %v1053, %v1094
  %v1111 = vadd.f32 %v1054, %v1095
  %v1112 = vadd.f32 %v1055, %v1096
  %v1113 = vadd.f32 %v1056, %v1097
  %v1114 = vadd.f32 %v1057, %v1098
  %v1115 = vadd.f32 %v1058, %v1099
  %v1116 = vadd.f32 %v1059, %v1100
  %v1117 = vadd.f32 %v1060, %v1101
  %v1118 = vadd.f32 %v1061, %v1102
  %s1119 = scalar_lea.vmem %s1, 2432
  %v1120 = vld [vmem:[%s1119] sm:$0xff]
  %v1121 = vld [vmem:[%s1119 + $0x8] sm:$0xff]
  %v1122 = vld [vmem:[%s1119 + $0x10] sm:$0xff]
  %v1123 = vld [vmem:[%s1119 + $0x18] sm:$0xff]
  %v1124 = vld [vmem:[%s1119 + $0x20] sm:$0xff]
  %v1125 = vld [vmem:[%s1119 + $0x28] sm:$0xff]
  %v1126 = vld [vmem:[%s1119 + $0x30] sm:$0xff]
  %v1127 = vld [vmem:[%s1119 + $0x38] sm:$0xff]
  %v1128 = vld [vmem:[%s1119 + $0x40] sm:$0xff]
  %v1129 = vld [vmem:[%s1119 + $0x48] sm:$0xff]
  %v1130 = vld [vmem:[%s1119 + $0x50] sm:$0xff]
  %v1131 = vld [vmem:[%s1119 + $0x58] sm:$0xff]
  %v1132 = vld [vmem:[%s1119 + $0x60] sm:$0xff]
  %v1133 = vld [vmem:[%s1119 + $0x68] sm:$0xff]
  %v1134 = vld [vmem:[%s1119 + $0x70] sm:$0xff]
  %v1135 = vld [vmem:[%s1119 + $0x78] sm:$0xff]
  %s1136 = scalar_lea.vmem %s2, 19
  %v1137 = vld [vmem:[%s1136] sm:$0x1]
  %v1139 = vlaneseq
  %v1140 = vshrl.u32 %v1139, 7
  %v1141 = vsub.s32 0, %v1140
  %v1142 = vrot.slane %v1137, %v1141
  %v1144 = vmul.f32 %v1120, %v1142
  %v1145 = vmul.f32 %v1121, %v1142
  %v1146 = vmul.f32 %v1122, %v1142
  %v1147 = vmul.f32 %v1123, %v1142
  %v1148 = vmul.f32 %v1124, %v1142
  %v1149 = vmul.f32 %v1125, %v1142
  %v1150 = vmul.f32 %v1126, %v1142
  %v1151 = vmul.f32 %v1127, %v1142
  %v1152 = vmul.f32 %v1128, %v1142
  %v1153 = vmul.f32 %v1129, %v1142
  %v1154 = vmul.f32 %v1130, %v1142
  %v1155 = vmul.f32 %v1131, %v1142
  %v1156 = vmul.f32 %v1132, %v1142
  %v1157 = vmul.f32 %v1133, %v1142
  %v1158 = vmul.f32 %v1134, %v1142
  %v1159 = vmul.f32 %v1135, %v1142
  %v1160 = vadd.f32 %v1103, %v1144
  %v1161 = vadd.f32 %v1104, %v1145
  %v1162 = vadd.f32 %v1105, %v1146
  %v1163 = vadd.f32 %v1106, %v1147
  %v1164 = vadd.f32 %v1107, %v1148
  %v1165 = vadd.f32 %v1108, %v1149
  %v1166 = vadd.f32 %v1109, %v1150
  %v1167 = vadd.f32 %v1110, %v1151
  %v1168 = vadd.f32 %v1111, %v1152
  %v1169 = vadd.f32 %v1112, %v1153
  %v1170 = vadd.f32 %v1113, %v1154
  %v1171 = vadd.f32 %v1114, %v1155
  %v1172 = vadd.f32 %v1115, %v1156
  %v1173 = vadd.f32 %v1116, %v1157
  %v1174 = vadd.f32 %v1117, %v1158
  %v1175 = vadd.f32 %v1118, %v1159
  %s1176 = scalar_lea.vmem %s1, 2560
  %v1177 = vld [vmem:[%s1176] sm:$0xff]
  %v1178 = vld [vmem:[%s1176 + $0x8] sm:$0xff]
  %v1179 = vld [vmem:[%s1176 + $0x10] sm:$0xff]
  %v1180 = vld [vmem:[%s1176 + $0x18] sm:$0xff]
  %v1181 = vld [vmem:[%s1176 + $0x20] sm:$0xff]
  %v1182 = vld [vmem:[%s1176 + $0x28] sm:$0xff]
  %v1183 = vld [vmem:[%s1176 + $0x30] sm:$0xff]
  %v1184 = vld [vmem:[%s1176 + $0x38] sm:$0xff]
  %v1185 = vld [vmem:[%s1176 + $0x40] sm:$0xff]
  %v1186 = vld [vmem:[%s1176 + $0x48] sm:$0xff]
  %v1187 = vld [vmem:[%s1176 + $0x50] sm:$0xff]
  %v1188 = vld [vmem:[%s1176 + $0x58] sm:$0xff]
  %v1189 = vld [vmem:[%s1176 + $0x60] sm:$0xff]
  %v1190 = vld [vmem:[%s1176 + $0x68] sm:$0xff]
  %v1191 = vld [vmem:[%s1176 + $0x70] sm:$0xff]
  %v1192 = vld [vmem:[%s1176 + $0x78] sm:$0xff]
  %s1193 = scalar_lea.vmem %s2, 20
  %v1194 = vld [vmem:[%s1193] sm:$0x1]
  %v1196 = vlaneseq
  %v1197 = vshrl.u32 %v1196, 7
  %v1198 = vsub.s32 0, %v1197
  %v1199 = vrot.slane %v1194, %v1198
  %v1201 = vmul.f32 %v1177, %v1199
  %v1202 = vmul.f32 %v1178, %v1199
  %v1203 = vmul.f32 %v1179, %v1199
  %v1204 = vmul.f32 %v1180, %v1199
  %v1205 = vmul.f32 %v1181, %v1199
  %v1206 = vmul.f32 %v1182, %v1199
  %v1207 = vmul.f32 %v1183, %v1199
  %v1208 = vmul.f32 %v1184, %v1199
  %v1209 = vmul.f32 %v1185, %v1199
  %v1210 = vmul.f32 %v1186, %v1199
  %v1211 = vmul.f32 %v1187, %v1199
  %v1212 = vmul.f32 %v1188, %v1199
  %v1213 = vmul.f32 %v1189, %v1199
  %v1214 = vmul.f32 %v1190, %v1199
  %v1215 = vmul.f32 %v1191, %v1199
  %v1216 = vmul.f32 %v1192, %v1199
  %v1217 = vadd.f32 %v1160, %v1201
  %v1218 = vadd.f32 %v1161, %v1202
  %v1219 = vadd.f32 %v1162, %v1203
  %v1220 = vadd.f32 %v1163, %v1204
  %v1221 = vadd.f32 %v1164, %v1205
  %v1222 = vadd.f32 %v1165, %v1206
  %v1223 = vadd.f32 %v1166, %v1207
  %v1224 = vadd.f32 %v1167, %v1208
  %v1225 = vadd.f32 %v1168, %v1209
  %v1226 = vadd.f32 %v1169, %v1210
  %v1227 = vadd.f32 %v1170, %v1211
  %v1228 = vadd.f32 %v1171, %v1212
  %v1229 = vadd.f32 %v1172, %v1213
  %v1230 = vadd.f32 %v1173, %v1214
  %v1231 = vadd.f32 %v1174, %v1215
  %v1232 = vadd.f32 %v1175, %v1216
  %s1233 = scalar_lea.vmem %s1, 2688
  %v1234 = vld [vmem:[%s1233] sm:$0xff]
  %v1235 = vld [vmem:[%s1233 + $0x8] sm:$0xff]
  %v1236 = vld [vmem:[%s1233 + $0x10] sm:$0xff]
  %v1237 = vld [vmem:[%s1233 + $0x18] sm:$0xff]
  %v1238 = vld [vmem:[%s1233 + $0x20] sm:$0xff]
  %v1239 = vld [vmem:[%s1233 + $0x28] sm:$0xff]
  %v1240 = vld [vmem:[%s1233 + $0x30] sm:$0xff]
  %v1241 = vld [vmem:[%s1233 + $0x38] sm:$0xff]
  %v1242 = vld [vmem:[%s1233 + $0x40] sm:$0xff]
  %v1243 = vld [vmem:[%s1233 + $0x48] sm:$0xff]
  %v1244 = vld [vmem:[%s1233 + $0x50] sm:$0xff]
  %v1245 = vld [vmem:[%s1233 + $0x58] sm:$0xff]
  %v1246 = vld [vmem:[%s1233 + $0x60] sm:$0xff]
  %v1247 = vld [vmem:[%s1233 + $0x68] sm:$0xff]
  %v1248 = vld [vmem:[%s1233 + $0x70] sm:$0xff]
  %v1249 = vld [vmem:[%s1233 + $0x78] sm:$0xff]
  %s1250 = scalar_lea.vmem %s2, 21
  %v1251 = vld [vmem:[%s1250] sm:$0x1]
  %v1253 = vlaneseq
  %v1254 = vshrl.u32 %v1253, 7
  %v1255 = vsub.s32 0, %v1254
  %v1256 = vrot.slane %v1251, %v1255
  %v1258 = vmul.f32 %v1234, %v1256
  %v1259 = vmul.f32 %v1235, %v1256
  %v1260 = vmul.f32 %v1236, %v1256
  %v1261 = vmul.f32 %v1237, %v1256
  %v1262 = vmul.f32 %v1238, %v1256
  %v1263 = vmul.f32 %v1239, %v1256
  %v1264 = vmul.f32 %v1240, %v1256
  %v1265 = vmul.f32 %v1241, %v1256
  %v1266 = vmul.f32 %v1242, %v1256
  %v1267 = vmul.f32 %v1243, %v1256
  %v1268 = vmul.f32 %v1244, %v1256
  %v1269 = vmul.f32 %v1245, %v1256
  %v1270 = vmul.f32 %v1246, %v1256
  %v1271 = vmul.f32 %v1247, %v1256
  %v1272 = vmul.f32 %v1248, %v1256
  %v1273 = vmul.f32 %v1249, %v1256
  %v1274 = vadd.f32 %v1217, %v1258
  %v1275 = vadd.f32 %v1218, %v1259
  %v1276 = vadd.f32 %v1219, %v1260
  %v1277 = vadd.f32 %v1220, %v1261
  %v1278 = vadd.f32 %v1221, %v1262
  %v1279 = vadd.f32 %v1222, %v1263
  %v1280 = vadd.f32 %v1223, %v1264
  %v1281 = vadd.f32 %v1224, %v1265
  %v1282 = vadd.f32 %v1225, %v1266
  %v1283 = vadd.f32 %v1226, %v1267
  %v1284 = vadd.f32 %v1227, %v1268
  %v1285 = vadd.f32 %v1228, %v1269
  %v1286 = vadd.f32 %v1229, %v1270
  %v1287 = vadd.f32 %v1230, %v1271
  %v1288 = vadd.f32 %v1231, %v1272
  %v1289 = vadd.f32 %v1232, %v1273
  %s1290 = scalar_lea.vmem %s1, 2816
  %v1291 = vld [vmem:[%s1290] sm:$0xff]
  %v1292 = vld [vmem:[%s1290 + $0x8] sm:$0xff]
  %v1293 = vld [vmem:[%s1290 + $0x10] sm:$0xff]
  %v1294 = vld [vmem:[%s1290 + $0x18] sm:$0xff]
  %v1295 = vld [vmem:[%s1290 + $0x20] sm:$0xff]
  %v1296 = vld [vmem:[%s1290 + $0x28] sm:$0xff]
  %v1297 = vld [vmem:[%s1290 + $0x30] sm:$0xff]
  %v1298 = vld [vmem:[%s1290 + $0x38] sm:$0xff]
  %v1299 = vld [vmem:[%s1290 + $0x40] sm:$0xff]
  %v1300 = vld [vmem:[%s1290 + $0x48] sm:$0xff]
  %v1301 = vld [vmem:[%s1290 + $0x50] sm:$0xff]
  %v1302 = vld [vmem:[%s1290 + $0x58] sm:$0xff]
  %v1303 = vld [vmem:[%s1290 + $0x60] sm:$0xff]
  %v1304 = vld [vmem:[%s1290 + $0x68] sm:$0xff]
  %v1305 = vld [vmem:[%s1290 + $0x70] sm:$0xff]
  %v1306 = vld [vmem:[%s1290 + $0x78] sm:$0xff]
  %s1307 = scalar_lea.vmem %s2, 22
  %v1308 = vld [vmem:[%s1307] sm:$0x1]
  %v1310 = vlaneseq
  %v1311 = vshrl.u32 %v1310, 7
  %v1312 = vsub.s32 0, %v1311
  %v1313 = vrot.slane %v1308, %v1312
  %v1315 = vmul.f32 %v1291, %v1313
  %v1316 = vmul.f32 %v1292, %v1313
  %v1317 = vmul.f32 %v1293, %v1313
  %v1318 = vmul.f32 %v1294, %v1313
  %v1319 = vmul.f32 %v1295, %v1313
  %v1320 = vmul.f32 %v1296, %v1313
  %v1321 = vmul.f32 %v1297, %v1313
  %v1322 = vmul.f32 %v1298, %v1313
  %v1323 = vmul.f32 %v1299, %v1313
  %v1324 = vmul.f32 %v1300, %v1313
  %v1325 = vmul.f32 %v1301, %v1313
  %v1326 = vmul.f32 %v1302, %v1313
  %v1327 = vmul.f32 %v1303, %v1313
  %v1328 = vmul.f32 %v1304, %v1313
  %v1329 = vmul.f32 %v1305, %v1313
  %v1330 = vmul.f32 %v1306, %v1313
  %v1331 = vadd.f32 %v1274, %v1315
  %v1332 = vadd.f32 %v1275, %v1316
  %v1333 = vadd.f32 %v1276, %v1317
  %v1334 = vadd.f32 %v1277, %v1318
  %v1335 = vadd.f32 %v1278, %v1319
  %v1336 = vadd.f32 %v1279, %v1320
  %v1337 = vadd.f32 %v1280, %v1321
  %v1338 = vadd.f32 %v1281, %v1322
  %v1339 = vadd.f32 %v1282, %v1323
  %v1340 = vadd.f32 %v1283, %v1324
  %v1341 = vadd.f32 %v1284, %v1325
  %v1342 = vadd.f32 %v1285, %v1326
  %v1343 = vadd.f32 %v1286, %v1327
  %v1344 = vadd.f32 %v1287, %v1328
  %v1345 = vadd.f32 %v1288, %v1329
  %v1346 = vadd.f32 %v1289, %v1330
  %s1347 = scalar_lea.vmem %s1, 2944
  %v1348 = vld [vmem:[%s1347] sm:$0xff]
  %v1349 = vld [vmem:[%s1347 + $0x8] sm:$0xff]
  %v1350 = vld [vmem:[%s1347 + $0x10] sm:$0xff]
  %v1351 = vld [vmem:[%s1347 + $0x18] sm:$0xff]
  %v1352 = vld [vmem:[%s1347 + $0x20] sm:$0xff]
  %v1353 = vld [vmem:[%s1347 + $0x28] sm:$0xff]
  %v1354 = vld [vmem:[%s1347 + $0x30] sm:$0xff]
  %v1355 = vld [vmem:[%s1347 + $0x38] sm:$0xff]
  %v1356 = vld [vmem:[%s1347 + $0x40] sm:$0xff]
  %v1357 = vld [vmem:[%s1347 + $0x48] sm:$0xff]
  %v1358 = vld [vmem:[%s1347 + $0x50] sm:$0xff]
  %v1359 = vld [vmem:[%s1347 + $0x58] sm:$0xff]
  %v1360 = vld [vmem:[%s1347 + $0x60] sm:$0xff]
  %v1361 = vld [vmem:[%s1347 + $0x68] sm:$0xff]
  %v1362 = vld [vmem:[%s1347 + $0x70] sm:$0xff]
  %v1363 = vld [vmem:[%s1347 + $0x78] sm:$0xff]
  %s1364 = scalar_lea.vmem %s2, 23
  %v1365 = vld [vmem:[%s1364] sm:$0x1]
  %v1367 = vlaneseq
  %v1368 = vshrl.u32 %v1367, 7
  %v1369 = vsub.s32 0, %v1368
  %v1370 = vrot.slane %v1365, %v1369
  %v1372 = vmul.f32 %v1348, %v1370
  %v1373 = vmul.f32 %v1349, %v1370
  %v1374 = vmul.f32 %v1350, %v1370
  %v1375 = vmul.f32 %v1351, %v1370
  %v1376 = vmul.f32 %v1352, %v1370
  %v1377 = vmul.f32 %v1353, %v1370
  %v1378 = vmul.f32 %v1354, %v1370
  %v1379 = vmul.f32 %v1355, %v1370
  %v1380 = vmul.f32 %v1356, %v1370
  %v1381 = vmul.f32 %v1357, %v1370
  %v1382 = vmul.f32 %v1358, %v1370
  %v1383 = vmul.f32 %v1359, %v1370
  %v1384 = vmul.f32 %v1360, %v1370
  %v1385 = vmul.f32 %v1361, %v1370
  %v1386 = vmul.f32 %v1362, %v1370
  %v1387 = vmul.f32 %v1363, %v1370
  %v1388 = vadd.f32 %v1331, %v1372
  %v1389 = vadd.f32 %v1332, %v1373
  %v1390 = vadd.f32 %v1333, %v1374
  %v1391 = vadd.f32 %v1334, %v1375
  %v1392 = vadd.f32 %v1335, %v1376
  %v1393 = vadd.f32 %v1336, %v1377
  %v1394 = vadd.f32 %v1337, %v1378
  %v1395 = vadd.f32 %v1338, %v1379
  %v1396 = vadd.f32 %v1339, %v1380
  %v1397 = vadd.f32 %v1340, %v1381
  %v1398 = vadd.f32 %v1341, %v1382
  %v1399 = vadd.f32 %v1342, %v1383
  %v1400 = vadd.f32 %v1343, %v1384
  %v1401 = vadd.f32 %v1344, %v1385
  %v1402 = vadd.f32 %v1345, %v1386
  %v1403 = vadd.f32 %v1346, %v1387
  %s1404 = scalar_lea.vmem %s1, 3072
  %v1405 = vld [vmem:[%s1404] sm:$0xff]
  %v1406 = vld [vmem:[%s1404 + $0x8] sm:$0xff]
  %v1407 = vld [vmem:[%s1404 + $0x10] sm:$0xff]
  %v1408 = vld [vmem:[%s1404 + $0x18] sm:$0xff]
  %v1409 = vld [vmem:[%s1404 + $0x20] sm:$0xff]
  %v1410 = vld [vmem:[%s1404 + $0x28] sm:$0xff]
  %v1411 = vld [vmem:[%s1404 + $0x30] sm:$0xff]
  %v1412 = vld [vmem:[%s1404 + $0x38] sm:$0xff]
  %v1413 = vld [vmem:[%s1404 + $0x40] sm:$0xff]
  %v1414 = vld [vmem:[%s1404 + $0x48] sm:$0xff]
  %v1415 = vld [vmem:[%s1404 + $0x50] sm:$0xff]
  %v1416 = vld [vmem:[%s1404 + $0x58] sm:$0xff]
  %v1417 = vld [vmem:[%s1404 + $0x60] sm:$0xff]
  %v1418 = vld [vmem:[%s1404 + $0x68] sm:$0xff]
  %v1419 = vld [vmem:[%s1404 + $0x70] sm:$0xff]
  %v1420 = vld [vmem:[%s1404 + $0x78] sm:$0xff]
  %s1421 = scalar_lea.vmem %s2, 24
  %v1422 = vld [vmem:[%s1421] sm:$0x1]
  %v1424 = vlaneseq
  %v1425 = vshrl.u32 %v1424, 7
  %v1426 = vsub.s32 0, %v1425
  %v1427 = vrot.slane %v1422, %v1426
  %v1429 = vmul.f32 %v1405, %v1427
  %v1430 = vmul.f32 %v1406, %v1427
  %v1431 = vmul.f32 %v1407, %v1427
  %v1432 = vmul.f32 %v1408, %v1427
  %v1433 = vmul.f32 %v1409, %v1427
  %v1434 = vmul.f32 %v1410, %v1427
  %v1435 = vmul.f32 %v1411, %v1427
  %v1436 = vmul.f32 %v1412, %v1427
  %v1437 = vmul.f32 %v1413, %v1427
  %v1438 = vmul.f32 %v1414, %v1427
  %v1439 = vmul.f32 %v1415, %v1427
  %v1440 = vmul.f32 %v1416, %v1427
  %v1441 = vmul.f32 %v1417, %v1427
  %v1442 = vmul.f32 %v1418, %v1427
  %v1443 = vmul.f32 %v1419, %v1427
  %v1444 = vmul.f32 %v1420, %v1427
  %v1445 = vadd.f32 %v1388, %v1429
  %v1446 = vadd.f32 %v1389, %v1430
  %v1447 = vadd.f32 %v1390, %v1431
  %v1448 = vadd.f32 %v1391, %v1432
  %v1449 = vadd.f32 %v1392, %v1433
  %v1450 = vadd.f32 %v1393, %v1434
  %v1451 = vadd.f32 %v1394, %v1435
  %v1452 = vadd.f32 %v1395, %v1436
  %v1453 = vadd.f32 %v1396, %v1437
  %v1454 = vadd.f32 %v1397, %v1438
  %v1455 = vadd.f32 %v1398, %v1439
  %v1456 = vadd.f32 %v1399, %v1440
  %v1457 = vadd.f32 %v1400, %v1441
  %v1458 = vadd.f32 %v1401, %v1442
  %v1459 = vadd.f32 %v1402, %v1443
  %v1460 = vadd.f32 %v1403, %v1444
  %s1461 = scalar_lea.vmem %s1, 3200
  %v1462 = vld [vmem:[%s1461] sm:$0xff]
  %v1463 = vld [vmem:[%s1461 + $0x8] sm:$0xff]
  %v1464 = vld [vmem:[%s1461 + $0x10] sm:$0xff]
  %v1465 = vld [vmem:[%s1461 + $0x18] sm:$0xff]
  %v1466 = vld [vmem:[%s1461 + $0x20] sm:$0xff]
  %v1467 = vld [vmem:[%s1461 + $0x28] sm:$0xff]
  %v1468 = vld [vmem:[%s1461 + $0x30] sm:$0xff]
  %v1469 = vld [vmem:[%s1461 + $0x38] sm:$0xff]
  %v1470 = vld [vmem:[%s1461 + $0x40] sm:$0xff]
  %v1471 = vld [vmem:[%s1461 + $0x48] sm:$0xff]
  %v1472 = vld [vmem:[%s1461 + $0x50] sm:$0xff]
  %v1473 = vld [vmem:[%s1461 + $0x58] sm:$0xff]
  %v1474 = vld [vmem:[%s1461 + $0x60] sm:$0xff]
  %v1475 = vld [vmem:[%s1461 + $0x68] sm:$0xff]
  %v1476 = vld [vmem:[%s1461 + $0x70] sm:$0xff]
  %v1477 = vld [vmem:[%s1461 + $0x78] sm:$0xff]
  %s1478 = scalar_lea.vmem %s2, 25
  %v1479 = vld [vmem:[%s1478] sm:$0x1]
  %v1481 = vlaneseq
  %v1482 = vshrl.u32 %v1481, 7
  %v1483 = vsub.s32 0, %v1482
  %v1484 = vrot.slane %v1479, %v1483
  %v1486 = vmul.f32 %v1462, %v1484
  %v1487 = vmul.f32 %v1463, %v1484
  %v1488 = vmul.f32 %v1464, %v1484
  %v1489 = vmul.f32 %v1465, %v1484
  %v1490 = vmul.f32 %v1466, %v1484
  %v1491 = vmul.f32 %v1467, %v1484
  %v1492 = vmul.f32 %v1468, %v1484
  %v1493 = vmul.f32 %v1469, %v1484
  %v1494 = vmul.f32 %v1470, %v1484
  %v1495 = vmul.f32 %v1471, %v1484
  %v1496 = vmul.f32 %v1472, %v1484
  %v1497 = vmul.f32 %v1473, %v1484
  %v1498 = vmul.f32 %v1474, %v1484
  %v1499 = vmul.f32 %v1475, %v1484
  %v1500 = vmul.f32 %v1476, %v1484
  %v1501 = vmul.f32 %v1477, %v1484
  %v1502 = vadd.f32 %v1445, %v1486
  %v1503 = vadd.f32 %v1446, %v1487
  %v1504 = vadd.f32 %v1447, %v1488
  %v1505 = vadd.f32 %v1448, %v1489
  %v1506 = vadd.f32 %v1449, %v1490
  %v1507 = vadd.f32 %v1450, %v1491
  %v1508 = vadd.f32 %v1451, %v1492
  %v1509 = vadd.f32 %v1452, %v1493
  %v1510 = vadd.f32 %v1453, %v1494
  %v1511 = vadd.f32 %v1454, %v1495
  %v1512 = vadd.f32 %v1455, %v1496
  %v1513 = vadd.f32 %v1456, %v1497
  %v1514 = vadd.f32 %v1457, %v1498
  %v1515 = vadd.f32 %v1458, %v1499
  %v1516 = vadd.f32 %v1459, %v1500
  %v1517 = vadd.f32 %v1460, %v1501
  %s1518 = scalar_lea.vmem %s1, 3328
  %v1519 = vld [vmem:[%s1518] sm:$0xff]
  %v1520 = vld [vmem:[%s1518 + $0x8] sm:$0xff]
  %v1521 = vld [vmem:[%s1518 + $0x10] sm:$0xff]
  %v1522 = vld [vmem:[%s1518 + $0x18] sm:$0xff]
  %v1523 = vld [vmem:[%s1518 + $0x20] sm:$0xff]
  %v1524 = vld [vmem:[%s1518 + $0x28] sm:$0xff]
  %v1525 = vld [vmem:[%s1518 + $0x30] sm:$0xff]
  %v1526 = vld [vmem:[%s1518 + $0x38] sm:$0xff]
  %v1527 = vld [vmem:[%s1518 + $0x40] sm:$0xff]
  %v1528 = vld [vmem:[%s1518 + $0x48] sm:$0xff]
  %v1529 = vld [vmem:[%s1518 + $0x50] sm:$0xff]
  %v1530 = vld [vmem:[%s1518 + $0x58] sm:$0xff]
  %v1531 = vld [vmem:[%s1518 + $0x60] sm:$0xff]
  %v1532 = vld [vmem:[%s1518 + $0x68] sm:$0xff]
  %v1533 = vld [vmem:[%s1518 + $0x70] sm:$0xff]
  %v1534 = vld [vmem:[%s1518 + $0x78] sm:$0xff]
  %s1535 = scalar_lea.vmem %s2, 26
  %v1536 = vld [vmem:[%s1535] sm:$0x1]
  %v1538 = vlaneseq
  %v1539 = vshrl.u32 %v1538, 7
  %v1540 = vsub.s32 0, %v1539
  %v1541 = vrot.slane %v1536, %v1540
  %v1543 = vmul.f32 %v1519, %v1541
  %v1544 = vmul.f32 %v1520, %v1541
  %v1545 = vmul.f32 %v1521, %v1541
  %v1546 = vmul.f32 %v1522, %v1541
  %v1547 = vmul.f32 %v1523, %v1541
  %v1548 = vmul.f32 %v1524, %v1541
  %v1549 = vmul.f32 %v1525, %v1541
  %v1550 = vmul.f32 %v1526, %v1541
  %v1551 = vmul.f32 %v1527, %v1541
  %v1552 = vmul.f32 %v1528, %v1541
  %v1553 = vmul.f32 %v1529, %v1541
  %v1554 = vmul.f32 %v1530, %v1541
  %v1555 = vmul.f32 %v1531, %v1541
  %v1556 = vmul.f32 %v1532, %v1541
  %v1557 = vmul.f32 %v1533, %v1541
  %v1558 = vmul.f32 %v1534, %v1541
  %v1559 = vadd.f32 %v1502, %v1543
  %v1560 = vadd.f32 %v1503, %v1544
  %v1561 = vadd.f32 %v1504, %v1545
  %v1562 = vadd.f32 %v1505, %v1546
  %v1563 = vadd.f32 %v1506, %v1547
  %v1564 = vadd.f32 %v1507, %v1548
  %v1565 = vadd.f32 %v1508, %v1549
  %v1566 = vadd.f32 %v1509, %v1550
  %v1567 = vadd.f32 %v1510, %v1551
  %v1568 = vadd.f32 %v1511, %v1552
  %v1569 = vadd.f32 %v1512, %v1553
  %v1570 = vadd.f32 %v1513, %v1554
  %v1571 = vadd.f32 %v1514, %v1555
  %v1572 = vadd.f32 %v1515, %v1556
  %v1573 = vadd.f32 %v1516, %v1557
  %v1574 = vadd.f32 %v1517, %v1558
  %s1575 = scalar_lea.vmem %s1, 3456
  %v1576 = vld [vmem:[%s1575] sm:$0xff]
  %v1577 = vld [vmem:[%s1575 + $0x8] sm:$0xff]
  %v1578 = vld [vmem:[%s1575 + $0x10] sm:$0xff]
  %v1579 = vld [vmem:[%s1575 + $0x18] sm:$0xff]
  %v1580 = vld [vmem:[%s1575 + $0x20] sm:$0xff]
  %v1581 = vld [vmem:[%s1575 + $0x28] sm:$0xff]
  %v1582 = vld [vmem:[%s1575 + $0x30] sm:$0xff]
  %v1583 = vld [vmem:[%s1575 + $0x38] sm:$0xff]
  %v1584 = vld [vmem:[%s1575 + $0x40] sm:$0xff]
  %v1585 = vld [vmem:[%s1575 + $0x48] sm:$0xff]
  %v1586 = vld [vmem:[%s1575 + $0x50] sm:$0xff]
  %v1587 = vld [vmem:[%s1575 + $0x58] sm:$0xff]
  %v1588 = vld [vmem:[%s1575 + $0x60] sm:$0xff]
  %v1589 = vld [vmem:[%s1575 + $0x68] sm:$0xff]
  %v1590 = vld [vmem:[%s1575 + $0x70] sm:$0xff]
  %v1591 = vld [vmem:[%s1575 + $0x78] sm:$0xff]
  %s1592 = scalar_lea.vmem %s2, 27
  %v1593 = vld [vmem:[%s1592] sm:$0x1]
  %v1595 = vlaneseq
  %v1596 = vshrl.u32 %v1595, 7
  %v1597 = vsub.s32 0, %v1596
  %v1598 = vrot.slane %v1593, %v1597
  %v1600 = vmul.f32 %v1576, %v1598
  %v1601 = vmul.f32 %v1577, %v1598
  %v1602 = vmul.f32 %v1578, %v1598
  %v1603 = vmul.f32 %v1579, %v1598
  %v1604 = vmul.f32 %v1580, %v1598
  %v1605 = vmul.f32 %v1581, %v1598
  %v1606 = vmul.f32 %v1582, %v1598
  %v1607 = vmul.f32 %v1583, %v1598
  %v1608 = vmul.f32 %v1584, %v1598
  %v1609 = vmul.f32 %v1585, %v1598
  %v1610 = vmul.f32 %v1586, %v1598
  %v1611 = vmul.f32 %v1587, %v1598
  %v1612 = vmul.f32 %v1588, %v1598
  %v1613 = vmul.f32 %v1589, %v1598
  %v1614 = vmul.f32 %v1590, %v1598
  %v1615 = vmul.f32 %v1591, %v1598
  %v1616 = vadd.f32 %v1559, %v1600
  %v1617 = vadd.f32 %v1560, %v1601
  %v1618 = vadd.f32 %v1561, %v1602
  %v1619 = vadd.f32 %v1562, %v1603
  %v1620 = vadd.f32 %v1563, %v1604
  %v1621 = vadd.f32 %v1564, %v1605
  %v1622 = vadd.f32 %v1565, %v1606
  %v1623 = vadd.f32 %v1566, %v1607
  %v1624 = vadd.f32 %v1567, %v1608
  %v1625 = vadd.f32 %v1568, %v1609
  %v1626 = vadd.f32 %v1569, %v1610
  %v1627 = vadd.f32 %v1570, %v1611
  %v1628 = vadd.f32 %v1571, %v1612
  %v1629 = vadd.f32 %v1572, %v1613
  %v1630 = vadd.f32 %v1573, %v1614
  %v1631 = vadd.f32 %v1574, %v1615
  %s1632 = scalar_lea.vmem %s1, 3584
  %v1633 = vld [vmem:[%s1632] sm:$0xff]
  %v1634 = vld [vmem:[%s1632 + $0x8] sm:$0xff]
  %v1635 = vld [vmem:[%s1632 + $0x10] sm:$0xff]
  %v1636 = vld [vmem:[%s1632 + $0x18] sm:$0xff]
  %v1637 = vld [vmem:[%s1632 + $0x20] sm:$0xff]
  %v1638 = vld [vmem:[%s1632 + $0x28] sm:$0xff]
  %v1639 = vld [vmem:[%s1632 + $0x30] sm:$0xff]
  %v1640 = vld [vmem:[%s1632 + $0x38] sm:$0xff]
  %v1641 = vld [vmem:[%s1632 + $0x40] sm:$0xff]
  %v1642 = vld [vmem:[%s1632 + $0x48] sm:$0xff]
  %v1643 = vld [vmem:[%s1632 + $0x50] sm:$0xff]
  %v1644 = vld [vmem:[%s1632 + $0x58] sm:$0xff]
  %v1645 = vld [vmem:[%s1632 + $0x60] sm:$0xff]
  %v1646 = vld [vmem:[%s1632 + $0x68] sm:$0xff]
  %v1647 = vld [vmem:[%s1632 + $0x70] sm:$0xff]
  %v1648 = vld [vmem:[%s1632 + $0x78] sm:$0xff]
  %s1649 = scalar_lea.vmem %s2, 28
  %v1650 = vld [vmem:[%s1649] sm:$0x1]
  %v1652 = vlaneseq
  %v1653 = vshrl.u32 %v1652, 7
  %v1654 = vsub.s32 0, %v1653
  %v1655 = vrot.slane %v1650, %v1654
  %v1657 = vmul.f32 %v1633, %v1655
  %v1658 = vmul.f32 %v1634, %v1655
  %v1659 = vmul.f32 %v1635, %v1655
  %v1660 = vmul.f32 %v1636, %v1655
  %v1661 = vmul.f32 %v1637, %v1655
  %v1662 = vmul.f32 %v1638, %v1655
  %v1663 = vmul.f32 %v1639, %v1655
  %v1664 = vmul.f32 %v1640, %v1655
  %v1665 = vmul.f32 %v1641, %v1655
  %v1666 = vmul.f32 %v1642, %v1655
  %v1667 = vmul.f32 %v1643, %v1655
  %v1668 = vmul.f32 %v1644, %v1655
  %v1669 = vmul.f32 %v1645, %v1655
  %v1670 = vmul.f32 %v1646, %v1655
  %v1671 = vmul.f32 %v1647, %v1655
  %v1672 = vmul.f32 %v1648, %v1655
  %v1673 = vadd.f32 %v1616, %v1657
  %v1674 = vadd.f32 %v1617, %v1658
  %v1675 = vadd.f32 %v1618, %v1659
  %v1676 = vadd.f32 %v1619, %v1660
  %v1677 = vadd.f32 %v1620, %v1661
  %v1678 = vadd.f32 %v1621, %v1662
  %v1679 = vadd.f32 %v1622, %v1663
  %v1680 = vadd.f32 %v1623, %v1664
  %v1681 = vadd.f32 %v1624, %v1665
  %v1682 = vadd.f32 %v1625, %v1666
  %v1683 = vadd.f32 %v1626, %v1667
  %v1684 = vadd.f32 %v1627, %v1668
  %v1685 = vadd.f32 %v1628, %v1669
  %v1686 = vadd.f32 %v1629, %v1670
  %v1687 = vadd.f32 %v1630, %v1671
  %v1688 = vadd.f32 %v1631, %v1672
  %s1689 = scalar_lea.vmem %s1, 3712
  %v1690 = vld [vmem:[%s1689] sm:$0xff]
  %v1691 = vld [vmem:[%s1689 + $0x8] sm:$0xff]
  %v1692 = vld [vmem:[%s1689 + $0x10] sm:$0xff]
  %v1693 = vld [vmem:[%s1689 + $0x18] sm:$0xff]
  %v1694 = vld [vmem:[%s1689 + $0x20] sm:$0xff]
  %v1695 = vld [vmem:[%s1689 + $0x28] sm:$0xff]
  %v1696 = vld [vmem:[%s1689 + $0x30] sm:$0xff]
  %v1697 = vld [vmem:[%s1689 + $0x38] sm:$0xff]
  %v1698 = vld [vmem:[%s1689 + $0x40] sm:$0xff]
  %v1699 = vld [vmem:[%s1689 + $0x48] sm:$0xff]
  %v1700 = vld [vmem:[%s1689 + $0x50] sm:$0xff]
  %v1701 = vld [vmem:[%s1689 + $0x58] sm:$0xff]
  %v1702 = vld [vmem:[%s1689 + $0x60] sm:$0xff]
  %v1703 = vld [vmem:[%s1689 + $0x68] sm:$0xff]
  %v1704 = vld [vmem:[%s1689 + $0x70] sm:$0xff]
  %v1705 = vld [vmem:[%s1689 + $0x78] sm:$0xff]
  %s1706 = scalar_lea.vmem %s2, 29
  %v1707 = vld [vmem:[%s1706] sm:$0x1]
  %v1709 = vlaneseq
  %v1710 = vshrl.u32 %v1709, 7
  %v1711 = vsub.s32 0, %v1710
  %v1712 = vrot.slane %v1707, %v1711
  %v1714 = vmul.f32 %v1690, %v1712
  %v1715 = vmul.f32 %v1691, %v1712
  %v1716 = vmul.f32 %v1692, %v1712
  %v1717 = vmul.f32 %v1693, %v1712
  %v1718 = vmul.f32 %v1694, %v1712
  %v1719 = vmul.f32 %v1695, %v1712
  %v1720 = vmul.f32 %v1696, %v1712
  %v1721 = vmul.f32 %v1697, %v1712
  %v1722 = vmul.f32 %v1698, %v1712
  %v1723 = vmul.f32 %v1699, %v1712
  %v1724 = vmul.f32 %v1700, %v1712
  %v1725 = vmul.f32 %v1701, %v1712
  %v1726 = vmul.f32 %v1702, %v1712
  %v1727 = vmul.f32 %v1703, %v1712
  %v1728 = vmul.f32 %v1704, %v1712
  %v1729 = vmul.f32 %v1705, %v1712
  %v1730 = vadd.f32 %v1673, %v1714
  %v1731 = vadd.f32 %v1674, %v1715
  %v1732 = vadd.f32 %v1675, %v1716
  %v1733 = vadd.f32 %v1676, %v1717
  %v1734 = vadd.f32 %v1677, %v1718
  %v1735 = vadd.f32 %v1678, %v1719
  %v1736 = vadd.f32 %v1679, %v1720
  %v1737 = vadd.f32 %v1680, %v1721
  %v1738 = vadd.f32 %v1681, %v1722
  %v1739 = vadd.f32 %v1682, %v1723
  %v1740 = vadd.f32 %v1683, %v1724
  %v1741 = vadd.f32 %v1684, %v1725
  %v1742 = vadd.f32 %v1685, %v1726
  %v1743 = vadd.f32 %v1686, %v1727
  %v1744 = vadd.f32 %v1687, %v1728
  %v1745 = vadd.f32 %v1688, %v1729
  %s1746 = scalar_lea.vmem %s1, 3840
  %v1747 = vld [vmem:[%s1746] sm:$0xff]
  %v1748 = vld [vmem:[%s1746 + $0x8] sm:$0xff]
  %v1749 = vld [vmem:[%s1746 + $0x10] sm:$0xff]
  %v1750 = vld [vmem:[%s1746 + $0x18] sm:$0xff]
  %v1751 = vld [vmem:[%s1746 + $0x20] sm:$0xff]
  %v1752 = vld [vmem:[%s1746 + $0x28] sm:$0xff]
  %v1753 = vld [vmem:[%s1746 + $0x30] sm:$0xff]
  %v1754 = vld [vmem:[%s1746 + $0x38] sm:$0xff]
  %v1755 = vld [vmem:[%s1746 + $0x40] sm:$0xff]
  %v1756 = vld [vmem:[%s1746 + $0x48] sm:$0xff]
  %v1757 = vld [vmem:[%s1746 + $0x50] sm:$0xff]
  %v1758 = vld [vmem:[%s1746 + $0x58] sm:$0xff]
  %v1759 = vld [vmem:[%s1746 + $0x60] sm:$0xff]
  %v1760 = vld [vmem:[%s1746 + $0x68] sm:$0xff]
  %v1761 = vld [vmem:[%s1746 + $0x70] sm:$0xff]
  %v1762 = vld [vmem:[%s1746 + $0x78] sm:$0xff]
  %s1763 = scalar_lea.vmem %s2, 30
  %v1764 = vld [vmem:[%s1763] sm:$0x1]
  %v1766 = vlaneseq
  %v1767 = vshrl.u32 %v1766, 7
  %v1768 = vsub.s32 0, %v1767
  %v1769 = vrot.slane %v1764, %v1768
  %v1771 = vmul.f32 %v1747, %v1769
  %v1772 = vmul.f32 %v1748, %v1769
  %v1773 = vmul.f32 %v1749, %v1769
  %v1774 = vmul.f32 %v1750, %v1769
  %v1775 = vmul.f32 %v1751, %v1769
  %v1776 = vmul.f32 %v1752, %v1769
  %v1777 = vmul.f32 %v1753, %v1769
  %v1778 = vmul.f32 %v1754, %v1769
  %v1779 = vmul.f32 %v1755, %v1769
  %v1780 = vmul.f32 %v1756, %v1769
  %v1781 = vmul.f32 %v1757, %v1769
  %v1782 = vmul.f32 %v1758, %v1769
  %v1783 = vmul.f32 %v1759, %v1769
  %v1784 = vmul.f32 %v1760, %v1769
  %v1785 = vmul.f32 %v1761, %v1769
  %v1786 = vmul.f32 %v1762, %v1769
  %v1787 = vadd.f32 %v1730, %v1771
  %v1788 = vadd.f32 %v1731, %v1772
  %v1789 = vadd.f32 %v1732, %v1773
  %v1790 = vadd.f32 %v1733, %v1774
  %v1791 = vadd.f32 %v1734, %v1775
  %v1792 = vadd.f32 %v1735, %v1776
  %v1793 = vadd.f32 %v1736, %v1777
  %v1794 = vadd.f32 %v1737, %v1778
  %v1795 = vadd.f32 %v1738, %v1779
  %v1796 = vadd.f32 %v1739, %v1780
  %v1797 = vadd.f32 %v1740, %v1781
  %v1798 = vadd.f32 %v1741, %v1782
  %v1799 = vadd.f32 %v1742, %v1783
  %v1800 = vadd.f32 %v1743, %v1784
  %v1801 = vadd.f32 %v1744, %v1785
  %v1802 = vadd.f32 %v1745, %v1786
  %s1803 = scalar_lea.vmem %s1, 3968
  %v1804 = vld [vmem:[%s1803] sm:$0xff]
  %v1805 = vld [vmem:[%s1803 + $0x8] sm:$0xff]
  %v1806 = vld [vmem:[%s1803 + $0x10] sm:$0xff]
  %v1807 = vld [vmem:[%s1803 + $0x18] sm:$0xff]
  %v1808 = vld [vmem:[%s1803 + $0x20] sm:$0xff]
  %v1809 = vld [vmem:[%s1803 + $0x28] sm:$0xff]
  %v1810 = vld [vmem:[%s1803 + $0x30] sm:$0xff]
  %v1811 = vld [vmem:[%s1803 + $0x38] sm:$0xff]
  %v1812 = vld [vmem:[%s1803 + $0x40] sm:$0xff]
  %v1813 = vld [vmem:[%s1803 + $0x48] sm:$0xff]
  %v1814 = vld [vmem:[%s1803 + $0x50] sm:$0xff]
  %v1815 = vld [vmem:[%s1803 + $0x58] sm:$0xff]
  %v1816 = vld [vmem:[%s1803 + $0x60] sm:$0xff]
  %v1817 = vld [vmem:[%s1803 + $0x68] sm:$0xff]
  %v1818 = vld [vmem:[%s1803 + $0x70] sm:$0xff]
  %v1819 = vld [vmem:[%s1803 + $0x78] sm:$0xff]
  %s1820 = scalar_lea.vmem %s2, 31
  %v1821 = vld [vmem:[%s1820] sm:$0x1]
  %v1823 = vlaneseq
  %v1824 = vshrl.u32 %v1823, 7
  %v1825 = vsub.s32 0, %v1824
  %v1826 = vrot.slane %v1821, %v1825
  %v1828 = vmul.f32 %v1804, %v1826
  %v1829 = vmul.f32 %v1805, %v1826
  %v1830 = vmul.f32 %v1806, %v1826
  %v1831 = vmul.f32 %v1807, %v1826
  %v1832 = vmul.f32 %v1808, %v1826
  %v1833 = vmul.f32 %v1809, %v1826
  %v1834 = vmul.f32 %v1810, %v1826
  %v1835 = vmul.f32 %v1811, %v1826
  %v1836 = vmul.f32 %v1812, %v1826
  %v1837 = vmul.f32 %v1813, %v1826
  %v1838 = vmul.f32 %v1814, %v1826
  %v1839 = vmul.f32 %v1815, %v1826
  %v1840 = vmul.f32 %v1816, %v1826
  %v1841 = vmul.f32 %v1817, %v1826
  %v1842 = vmul.f32 %v1818, %v1826
  %v1843 = vmul.f32 %v1819, %v1826
  %v1844 = vadd.f32 %v1787, %v1828
  %v1845 = vadd.f32 %v1788, %v1829
  %v1846 = vadd.f32 %v1789, %v1830
  %v1847 = vadd.f32 %v1790, %v1831
  %v1848 = vadd.f32 %v1791, %v1832
  %v1849 = vadd.f32 %v1792, %v1833
  %v1850 = vadd.f32 %v1793, %v1834
  %v1851 = vadd.f32 %v1794, %v1835
  %v1852 = vadd.f32 %v1795, %v1836
  %v1853 = vadd.f32 %v1796, %v1837
  %v1854 = vadd.f32 %v1797, %v1838
  %v1855 = vadd.f32 %v1798, %v1839
  %v1856 = vadd.f32 %v1799, %v1840
  %v1857 = vadd.f32 %v1800, %v1841
  %v1858 = vadd.f32 %v1801, %v1842
  %v1859 = vadd.f32 %v1802, %v1843
  %s1860 = scalar_lea.vmem %s1, 4096
  %v1861 = vld [vmem:[%s1860] sm:$0xff]
  %v1862 = vld [vmem:[%s1860 + $0x8] sm:$0xff]
  %v1863 = vld [vmem:[%s1860 + $0x10] sm:$0xff]
  %v1864 = vld [vmem:[%s1860 + $0x18] sm:$0xff]
  %v1865 = vld [vmem:[%s1860 + $0x20] sm:$0xff]
  %v1866 = vld [vmem:[%s1860 + $0x28] sm:$0xff]
  %v1867 = vld [vmem:[%s1860 + $0x30] sm:$0xff]
  %v1868 = vld [vmem:[%s1860 + $0x38] sm:$0xff]
  %v1869 = vld [vmem:[%s1860 + $0x40] sm:$0xff]
  %v1870 = vld [vmem:[%s1860 + $0x48] sm:$0xff]
  %v1871 = vld [vmem:[%s1860 + $0x50] sm:$0xff]
  %v1872 = vld [vmem:[%s1860 + $0x58] sm:$0xff]
  %v1873 = vld [vmem:[%s1860 + $0x60] sm:$0xff]
  %v1874 = vld [vmem:[%s1860 + $0x68] sm:$0xff]
  %v1875 = vld [vmem:[%s1860 + $0x70] sm:$0xff]
  %v1876 = vld [vmem:[%s1860 + $0x78] sm:$0xff]
  %s1877 = scalar_lea.vmem %s2, 32
  %v1878 = vld [vmem:[%s1877] sm:$0x1]
  %v1880 = vlaneseq
  %v1881 = vshrl.u32 %v1880, 7
  %v1882 = vsub.s32 0, %v1881
  %v1883 = vrot.slane %v1878, %v1882
  %v1885 = vmul.f32 %v1861, %v1883
  %v1886 = vmul.f32 %v1862, %v1883
  %v1887 = vmul.f32 %v1863, %v1883
  %v1888 = vmul.f32 %v1864, %v1883
  %v1889 = vmul.f32 %v1865, %v1883
  %v1890 = vmul.f32 %v1866, %v1883
  %v1891 = vmul.f32 %v1867, %v1883
  %v1892 = vmul.f32 %v1868, %v1883
  %v1893 = vmul.f32 %v1869, %v1883
  %v1894 = vmul.f32 %v1870, %v1883
  %v1895 = vmul.f32 %v1871, %v1883
  %v1896 = vmul.f32 %v1872, %v1883
  %v1897 = vmul.f32 %v1873, %v1883
  %v1898 = vmul.f32 %v1874, %v1883
  %v1899 = vmul.f32 %v1875, %v1883
  %v1900 = vmul.f32 %v1876, %v1883
  %v1901 = vadd.f32 %v1844, %v1885
  %v1902 = vadd.f32 %v1845, %v1886
  %v1903 = vadd.f32 %v1846, %v1887
  %v1904 = vadd.f32 %v1847, %v1888
  %v1905 = vadd.f32 %v1848, %v1889
  %v1906 = vadd.f32 %v1849, %v1890
  %v1907 = vadd.f32 %v1850, %v1891
  %v1908 = vadd.f32 %v1851, %v1892
  %v1909 = vadd.f32 %v1852, %v1893
  %v1910 = vadd.f32 %v1853, %v1894
  %v1911 = vadd.f32 %v1854, %v1895
  %v1912 = vadd.f32 %v1855, %v1896
  %v1913 = vadd.f32 %v1856, %v1897
  %v1914 = vadd.f32 %v1857, %v1898
  %v1915 = vadd.f32 %v1858, %v1899
  %v1916 = vadd.f32 %v1859, %v1900
  %s1917 = scalar_lea.vmem %s1, 4224
  %v1918 = vld [vmem:[%s1917] sm:$0xff]
  %v1919 = vld [vmem:[%s1917 + $0x8] sm:$0xff]
  %v1920 = vld [vmem:[%s1917 + $0x10] sm:$0xff]
  %v1921 = vld [vmem:[%s1917 + $0x18] sm:$0xff]
  %v1922 = vld [vmem:[%s1917 + $0x20] sm:$0xff]
  %v1923 = vld [vmem:[%s1917 + $0x28] sm:$0xff]
  %v1924 = vld [vmem:[%s1917 + $0x30] sm:$0xff]
  %v1925 = vld [vmem:[%s1917 + $0x38] sm:$0xff]
  %v1926 = vld [vmem:[%s1917 + $0x40] sm:$0xff]
  %v1927 = vld [vmem:[%s1917 + $0x48] sm:$0xff]
  %v1928 = vld [vmem:[%s1917 + $0x50] sm:$0xff]
  %v1929 = vld [vmem:[%s1917 + $0x58] sm:$0xff]
  %v1930 = vld [vmem:[%s1917 + $0x60] sm:$0xff]
  %v1931 = vld [vmem:[%s1917 + $0x68] sm:$0xff]
  %v1932 = vld [vmem:[%s1917 + $0x70] sm:$0xff]
  %v1933 = vld [vmem:[%s1917 + $0x78] sm:$0xff]
  %s1934 = scalar_lea.vmem %s2, 33
  %v1935 = vld [vmem:[%s1934] sm:$0x1]
  %v1937 = vlaneseq
  %v1938 = vshrl.u32 %v1937, 7
  %v1939 = vsub.s32 0, %v1938
  %v1940 = vrot.slane %v1935, %v1939
  %v1942 = vmul.f32 %v1918, %v1940
  %v1943 = vmul.f32 %v1919, %v1940
  %v1944 = vmul.f32 %v1920, %v1940
  %v1945 = vmul.f32 %v1921, %v1940
  %v1946 = vmul.f32 %v1922, %v1940
  %v1947 = vmul.f32 %v1923, %v1940
  %v1948 = vmul.f32 %v1924, %v1940
  %v1949 = vmul.f32 %v1925, %v1940
  %v1950 = vmul.f32 %v1926, %v1940
  %v1951 = vmul.f32 %v1927, %v1940
  %v1952 = vmul.f32 %v1928, %v1940
  %v1953 = vmul.f32 %v1929, %v1940
  %v1954 = vmul.f32 %v1930, %v1940
  %v1955 = vmul.f32 %v1931, %v1940
  %v1956 = vmul.f32 %v1932, %v1940
  %v1957 = vmul.f32 %v1933, %v1940
  %v1958 = vadd.f32 %v1901, %v1942
  %v1959 = vadd.f32 %v1902, %v1943
  %v1960 = vadd.f32 %v1903, %v1944
  %v1961 = vadd.f32 %v1904, %v1945
  %v1962 = vadd.f32 %v1905, %v1946
  %v1963 = vadd.f32 %v1906, %v1947
  %v1964 = vadd.f32 %v1907, %v1948
  %v1965 = vadd.f32 %v1908, %v1949
  %v1966 = vadd.f32 %v1909, %v1950
  %v1967 = vadd.f32 %v1910, %v1951
  %v1968 = vadd.f32 %v1911, %v1952
  %v1969 = vadd.f32 %v1912, %v1953
  %v1970 = vadd.f32 %v1913, %v1954
  %v1971 = vadd.f32 %v1914, %v1955
  %v1972 = vadd.f32 %v1915, %v1956
  %v1973 = vadd.f32 %v1916, %v1957
  %s1974 = scalar_lea.vmem %s1, 4352
  %v1975 = vld [vmem:[%s1974] sm:$0xff]
  %v1976 = vld [vmem:[%s1974 + $0x8] sm:$0xff]
  %v1977 = vld [vmem:[%s1974 + $0x10] sm:$0xff]
  %v1978 = vld [vmem:[%s1974 + $0x18] sm:$0xff]
  %v1979 = vld [vmem:[%s1974 + $0x20] sm:$0xff]
  %v1980 = vld [vmem:[%s1974 + $0x28] sm:$0xff]
  %v1981 = vld [vmem:[%s1974 + $0x30] sm:$0xff]
  %v1982 = vld [vmem:[%s1974 + $0x38] sm:$0xff]
  %v1983 = vld [vmem:[%s1974 + $0x40] sm:$0xff]
  %v1984 = vld [vmem:[%s1974 + $0x48] sm:$0xff]
  %v1985 = vld [vmem:[%s1974 + $0x50] sm:$0xff]
  %v1986 = vld [vmem:[%s1974 + $0x58] sm:$0xff]
  %v1987 = vld [vmem:[%s1974 + $0x60] sm:$0xff]
  %v1988 = vld [vmem:[%s1974 + $0x68] sm:$0xff]
  %v1989 = vld [vmem:[%s1974 + $0x70] sm:$0xff]
  %v1990 = vld [vmem:[%s1974 + $0x78] sm:$0xff]
  %s1991 = scalar_lea.vmem %s2, 34
  %v1992 = vld [vmem:[%s1991] sm:$0x1]
  %v1994 = vlaneseq
  %v1995 = vshrl.u32 %v1994, 7
  %v1996 = vsub.s32 0, %v1995
  %v1997 = vrot.slane %v1992, %v1996
  %v1999 = vmul.f32 %v1975, %v1997
  %v2000 = vmul.f32 %v1976, %v1997
  %v2001 = vmul.f32 %v1977, %v1997
  %v2002 = vmul.f32 %v1978, %v1997
  %v2003 = vmul.f32 %v1979, %v1997
  %v2004 = vmul.f32 %v1980, %v1997
  %v2005 = vmul.f32 %v1981, %v1997
  %v2006 = vmul.f32 %v1982, %v1997
  %v2007 = vmul.f32 %v1983, %v1997
  %v2008 = vmul.f32 %v1984, %v1997
  %v2009 = vmul.f32 %v1985, %v1997
  %v2010 = vmul.f32 %v1986, %v1997
  %v2011 = vmul.f32 %v1987, %v1997
  %v2012 = vmul.f32 %v1988, %v1997
  %v2013 = vmul.f32 %v1989, %v1997
  %v2014 = vmul.f32 %v1990, %v1997
  %v2015 = vadd.f32 %v1958, %v1999
  %v2016 = vadd.f32 %v1959, %v2000
  %v2017 = vadd.f32 %v1960, %v2001
  %v2018 = vadd.f32 %v1961, %v2002
  %v2019 = vadd.f32 %v1962, %v2003
  %v2020 = vadd.f32 %v1963, %v2004
  %v2021 = vadd.f32 %v1964, %v2005
  %v2022 = vadd.f32 %v1965, %v2006
  %v2023 = vadd.f32 %v1966, %v2007
  %v2024 = vadd.f32 %v1967, %v2008
  %v2025 = vadd.f32 %v1968, %v2009
  %v2026 = vadd.f32 %v1969, %v2010
  %v2027 = vadd.f32 %v1970, %v2011
  %v2028 = vadd.f32 %v1971, %v2012
  %v2029 = vadd.f32 %v1972, %v2013
  %v2030 = vadd.f32 %v1973, %v2014
  %s2031 = scalar_lea.vmem %s1, 4480
  %v2032 = vld [vmem:[%s2031] sm:$0xff]
  %v2033 = vld [vmem:[%s2031 + $0x8] sm:$0xff]
  %v2034 = vld [vmem:[%s2031 + $0x10] sm:$0xff]
  %v2035 = vld [vmem:[%s2031 + $0x18] sm:$0xff]
  %v2036 = vld [vmem:[%s2031 + $0x20] sm:$0xff]
  %v2037 = vld [vmem:[%s2031 + $0x28] sm:$0xff]
  %v2038 = vld [vmem:[%s2031 + $0x30] sm:$0xff]
  %v2039 = vld [vmem:[%s2031 + $0x38] sm:$0xff]
  %v2040 = vld [vmem:[%s2031 + $0x40] sm:$0xff]
  %v2041 = vld [vmem:[%s2031 + $0x48] sm:$0xff]
  %v2042 = vld [vmem:[%s2031 + $0x50] sm:$0xff]
  %v2043 = vld [vmem:[%s2031 + $0x58] sm:$0xff]
  %v2044 = vld [vmem:[%s2031 + $0x60] sm:$0xff]
  %v2045 = vld [vmem:[%s2031 + $0x68] sm:$0xff]
  %v2046 = vld [vmem:[%s2031 + $0x70] sm:$0xff]
  %v2047 = vld [vmem:[%s2031 + $0x78] sm:$0xff]
  %s2048 = scalar_lea.vmem %s2, 35
  %v2049 = vld [vmem:[%s2048] sm:$0x1]
  %v2051 = vlaneseq
  %v2052 = vshrl.u32 %v2051, 7
  %v2053 = vsub.s32 0, %v2052
  %v2054 = vrot.slane %v2049, %v2053
  %v2056 = vmul.f32 %v2032, %v2054
  %v2057 = vmul.f32 %v2033, %v2054
  %v2058 = vmul.f32 %v2034, %v2054
  %v2059 = vmul.f32 %v2035, %v2054
  %v2060 = vmul.f32 %v2036, %v2054
  %v2061 = vmul.f32 %v2037, %v2054
  %v2062 = vmul.f32 %v2038, %v2054
  %v2063 = vmul.f32 %v2039, %v2054
  %v2064 = vmul.f32 %v2040, %v2054
  %v2065 = vmul.f32 %v2041, %v2054
  %v2066 = vmul.f32 %v2042, %v2054
  %v2067 = vmul.f32 %v2043, %v2054
  %v2068 = vmul.f32 %v2044, %v2054
  %v2069 = vmul.f32 %v2045, %v2054
  %v2070 = vmul.f32 %v2046, %v2054
  %v2071 = vmul.f32 %v2047, %v2054
  %v2072 = vadd.f32 %v2015, %v2056
  %v2073 = vadd.f32 %v2016, %v2057
  %v2074 = vadd.f32 %v2017, %v2058
  %v2075 = vadd.f32 %v2018, %v2059
  %v2076 = vadd.f32 %v2019, %v2060
  %v2077 = vadd.f32 %v2020, %v2061
  %v2078 = vadd.f32 %v2021, %v2062
  %v2079 = vadd.f32 %v2022, %v2063
  %v2080 = vadd.f32 %v2023, %v2064
  %v2081 = vadd.f32 %v2024, %v2065
  %v2082 = vadd.f32 %v2025, %v2066
  %v2083 = vadd.f32 %v2026, %v2067
  %v2084 = vadd.f32 %v2027, %v2068
  %v2085 = vadd.f32 %v2028, %v2069
  %v2086 = vadd.f32 %v2029, %v2070
  %v2087 = vadd.f32 %v2030, %v2071
  %s2088 = scalar_lea.vmem %s1, 4608
  %v2089 = vld [vmem:[%s2088] sm:$0xff]
  %v2090 = vld [vmem:[%s2088 + $0x8] sm:$0xff]
  %v2091 = vld [vmem:[%s2088 + $0x10] sm:$0xff]
  %v2092 = vld [vmem:[%s2088 + $0x18] sm:$0xff]
  %v2093 = vld [vmem:[%s2088 + $0x20] sm:$0xff]
  %v2094 = vld [vmem:[%s2088 + $0x28] sm:$0xff]
  %v2095 = vld [vmem:[%s2088 + $0x30] sm:$0xff]
  %v2096 = vld [vmem:[%s2088 + $0x38] sm:$0xff]
  %v2097 = vld [vmem:[%s2088 + $0x40] sm:$0xff]
  %v2098 = vld [vmem:[%s2088 + $0x48] sm:$0xff]
  %v2099 = vld [vmem:[%s2088 + $0x50] sm:$0xff]
  %v2100 = vld [vmem:[%s2088 + $0x58] sm:$0xff]
  %v2101 = vld [vmem:[%s2088 + $0x60] sm:$0xff]
  %v2102 = vld [vmem:[%s2088 + $0x68] sm:$0xff]
  %v2103 = vld [vmem:[%s2088 + $0x70] sm:$0xff]
  %v2104 = vld [vmem:[%s2088 + $0x78] sm:$0xff]
  %s2105 = scalar_lea.vmem %s2, 36
  %v2106 = vld [vmem:[%s2105] sm:$0x1]
  %v2108 = vlaneseq
  %v2109 = vshrl.u32 %v2108, 7
  %v2110 = vsub.s32 0, %v2109
  %v2111 = vrot.slane %v2106, %v2110
  %v2113 = vmul.f32 %v2089, %v2111
  %v2114 = vmul.f32 %v2090, %v2111
  %v2115 = vmul.f32 %v2091, %v2111
  %v2116 = vmul.f32 %v2092, %v2111
  %v2117 = vmul.f32 %v2093, %v2111
  %v2118 = vmul.f32 %v2094, %v2111
  %v2119 = vmul.f32 %v2095, %v2111
  %v2120 = vmul.f32 %v2096, %v2111
  %v2121 = vmul.f32 %v2097, %v2111
  %v2122 = vmul.f32 %v2098, %v2111
  %v2123 = vmul.f32 %v2099, %v2111
  %v2124 = vmul.f32 %v2100, %v2111
  %v2125 = vmul.f32 %v2101, %v2111
  %v2126 = vmul.f32 %v2102, %v2111
  %v2127 = vmul.f32 %v2103, %v2111
  %v2128 = vmul.f32 %v2104, %v2111
  %v2129 = vadd.f32 %v2072, %v2113
  %v2130 = vadd.f32 %v2073, %v2114
  %v2131 = vadd.f32 %v2074, %v2115
  %v2132 = vadd.f32 %v2075, %v2116
  %v2133 = vadd.f32 %v2076, %v2117
  %v2134 = vadd.f32 %v2077, %v2118
  %v2135 = vadd.f32 %v2078, %v2119
  %v2136 = vadd.f32 %v2079, %v2120
  %v2137 = vadd.f32 %v2080, %v2121
  %v2138 = vadd.f32 %v2081, %v2122
  %v2139 = vadd.f32 %v2082, %v2123
  %v2140 = vadd.f32 %v2083, %v2124
  %v2141 = vadd.f32 %v2084, %v2125
  %v2142 = vadd.f32 %v2085, %v2126
  %v2143 = vadd.f32 %v2086, %v2127
  %v2144 = vadd.f32 %v2087, %v2128
  %s2145 = scalar_lea.vmem %s1, 4736
  %v2146 = vld [vmem:[%s2145] sm:$0xff]
  %v2147 = vld [vmem:[%s2145 + $0x8] sm:$0xff]
  %v2148 = vld [vmem:[%s2145 + $0x10] sm:$0xff]
  %v2149 = vld [vmem:[%s2145 + $0x18] sm:$0xff]
  %v2150 = vld [vmem:[%s2145 + $0x20] sm:$0xff]
  %v2151 = vld [vmem:[%s2145 + $0x28] sm:$0xff]
  %v2152 = vld [vmem:[%s2145 + $0x30] sm:$0xff]
  %v2153 = vld [vmem:[%s2145 + $0x38] sm:$0xff]
  %v2154 = vld [vmem:[%s2145 + $0x40] sm:$0xff]
  %v2155 = vld [vmem:[%s2145 + $0x48] sm:$0xff]
  %v2156 = vld [vmem:[%s2145 + $0x50] sm:$0xff]
  %v2157 = vld [vmem:[%s2145 + $0x58] sm:$0xff]
  %v2158 = vld [vmem:[%s2145 + $0x60] sm:$0xff]
  %v2159 = vld [vmem:[%s2145 + $0x68] sm:$0xff]
  %v2160 = vld [vmem:[%s2145 + $0x70] sm:$0xff]
  %v2161 = vld [vmem:[%s2145 + $0x78] sm:$0xff]
  %s2162 = scalar_lea.vmem %s2, 37
  %v2163 = vld [vmem:[%s2162] sm:$0x1]
  %v2165 = vlaneseq
  %v2166 = vshrl.u32 %v2165, 7
  %v2167 = vsub.s32 0, %v2166
  %v2168 = vrot.slane %v2163, %v2167
  %v2170 = vmul.f32 %v2146, %v2168
  %v2171 = vmul.f32 %v2147, %v2168
  %v2172 = vmul.f32 %v2148, %v2168
  %v2173 = vmul.f32 %v2149, %v2168
  %v2174 = vmul.f32 %v2150, %v2168
  %v2175 = vmul.f32 %v2151, %v2168
  %v2176 = vmul.f32 %v2152, %v2168
  %v2177 = vmul.f32 %v2153, %v2168
  %v2178 = vmul.f32 %v2154, %v2168
  %v2179 = vmul.f32 %v2155, %v2168
  %v2180 = vmul.f32 %v2156, %v2168
  %v2181 = vmul.f32 %v2157, %v2168
  %v2182 = vmul.f32 %v2158, %v2168
  %v2183 = vmul.f32 %v2159, %v2168
  %v2184 = vmul.f32 %v2160, %v2168
  %v2185 = vmul.f32 %v2161, %v2168
  %v2186 = vadd.f32 %v2129, %v2170
  %v2187 = vadd.f32 %v2130, %v2171
  %v2188 = vadd.f32 %v2131, %v2172
  %v2189 = vadd.f32 %v2132, %v2173
  %v2190 = vadd.f32 %v2133, %v2174
  %v2191 = vadd.f32 %v2134, %v2175
  %v2192 = vadd.f32 %v2135, %v2176
  %v2193 = vadd.f32 %v2136, %v2177
  %v2194 = vadd.f32 %v2137, %v2178
  %v2195 = vadd.f32 %v2138, %v2179
  %v2196 = vadd.f32 %v2139, %v2180
  %v2197 = vadd.f32 %v2140, %v2181
  %v2198 = vadd.f32 %v2141, %v2182
  %v2199 = vadd.f32 %v2142, %v2183
  %v2200 = vadd.f32 %v2143, %v2184
  %v2201 = vadd.f32 %v2144, %v2185
  %s2202 = scalar_lea.vmem %s1, 4864
  %v2203 = vld [vmem:[%s2202] sm:$0xff]
  %v2204 = vld [vmem:[%s2202 + $0x8] sm:$0xff]
  %v2205 = vld [vmem:[%s2202 + $0x10] sm:$0xff]
  %v2206 = vld [vmem:[%s2202 + $0x18] sm:$0xff]
  %v2207 = vld [vmem:[%s2202 + $0x20] sm:$0xff]
  %v2208 = vld [vmem:[%s2202 + $0x28] sm:$0xff]
  %v2209 = vld [vmem:[%s2202 + $0x30] sm:$0xff]
  %v2210 = vld [vmem:[%s2202 + $0x38] sm:$0xff]
  %v2211 = vld [vmem:[%s2202 + $0x40] sm:$0xff]
  %v2212 = vld [vmem:[%s2202 + $0x48] sm:$0xff]
  %v2213 = vld [vmem:[%s2202 + $0x50] sm:$0xff]
  %v2214 = vld [vmem:[%s2202 + $0x58] sm:$0xff]
  %v2215 = vld [vmem:[%s2202 + $0x60] sm:$0xff]
  %v2216 = vld [vmem:[%s2202 + $0x68] sm:$0xff]
  %v2217 = vld [vmem:[%s2202 + $0x70] sm:$0xff]
  %v2218 = vld [vmem:[%s2202 + $0x78] sm:$0xff]
  %s2219 = scalar_lea.vmem %s2, 38
  %v2220 = vld [vmem:[%s2219] sm:$0x1]
  %v2222 = vlaneseq
  %v2223 = vshrl.u32 %v2222, 7
  %v2224 = vsub.s32 0, %v2223
  %v2225 = vrot.slane %v2220, %v2224
  %v2227 = vmul.f32 %v2203, %v2225
  %v2228 = vmul.f32 %v2204, %v2225
  %v2229 = vmul.f32 %v2205, %v2225
  %v2230 = vmul.f32 %v2206, %v2225
  %v2231 = vmul.f32 %v2207, %v2225
  %v2232 = vmul.f32 %v2208, %v2225
  %v2233 = vmul.f32 %v2209, %v2225
  %v2234 = vmul.f32 %v2210, %v2225
  %v2235 = vmul.f32 %v2211, %v2225
  %v2236 = vmul.f32 %v2212, %v2225
  %v2237 = vmul.f32 %v2213, %v2225
  %v2238 = vmul.f32 %v2214, %v2225
  %v2239 = vmul.f32 %v2215, %v2225
  %v2240 = vmul.f32 %v2216, %v2225
  %v2241 = vmul.f32 %v2217, %v2225
  %v2242 = vmul.f32 %v2218, %v2225
  %v2243 = vadd.f32 %v2186, %v2227
  %v2244 = vadd.f32 %v2187, %v2228
  %v2245 = vadd.f32 %v2188, %v2229
  %v2246 = vadd.f32 %v2189, %v2230
  %v2247 = vadd.f32 %v2190, %v2231
  %v2248 = vadd.f32 %v2191, %v2232
  %v2249 = vadd.f32 %v2192, %v2233
  %v2250 = vadd.f32 %v2193, %v2234
  %v2251 = vadd.f32 %v2194, %v2235
  %v2252 = vadd.f32 %v2195, %v2236
  %v2253 = vadd.f32 %v2196, %v2237
  %v2254 = vadd.f32 %v2197, %v2238
  %v2255 = vadd.f32 %v2198, %v2239
  %v2256 = vadd.f32 %v2199, %v2240
  %v2257 = vadd.f32 %v2200, %v2241
  %v2258 = vadd.f32 %v2201, %v2242
  %s2259 = scalar_lea.vmem %s1, 4992
  %v2260 = vld [vmem:[%s2259] sm:$0xff]
  %v2261 = vld [vmem:[%s2259 + $0x8] sm:$0xff]
  %v2262 = vld [vmem:[%s2259 + $0x10] sm:$0xff]
  %v2263 = vld [vmem:[%s2259 + $0x18] sm:$0xff]
  %v2264 = vld [vmem:[%s2259 + $0x20] sm:$0xff]
  %v2265 = vld [vmem:[%s2259 + $0x28] sm:$0xff]
  %v2266 = vld [vmem:[%s2259 + $0x30] sm:$0xff]
  %v2267 = vld [vmem:[%s2259 + $0x38] sm:$0xff]
  %v2268 = vld [vmem:[%s2259 + $0x40] sm:$0xff]
  %v2269 = vld [vmem:[%s2259 + $0x48] sm:$0xff]
  %v2270 = vld [vmem:[%s2259 + $0x50] sm:$0xff]
  %v2271 = vld [vmem:[%s2259 + $0x58] sm:$0xff]
  %v2272 = vld [vmem:[%s2259 + $0x60] sm:$0xff]
  %v2273 = vld [vmem:[%s2259 + $0x68] sm:$0xff]
  %v2274 = vld [vmem:[%s2259 + $0x70] sm:$0xff]
  %v2275 = vld [vmem:[%s2259 + $0x78] sm:$0xff]
  %s2276 = scalar_lea.vmem %s2, 39
  %v2277 = vld [vmem:[%s2276] sm:$0x1]
  %v2279 = vlaneseq
  %v2280 = vshrl.u32 %v2279, 7
  %v2281 = vsub.s32 0, %v2280
  %v2282 = vrot.slane %v2277, %v2281
  %v2284 = vmul.f32 %v2260, %v2282
  %v2285 = vmul.f32 %v2261, %v2282
  %v2286 = vmul.f32 %v2262, %v2282
  %v2287 = vmul.f32 %v2263, %v2282
  %v2288 = vmul.f32 %v2264, %v2282
  %v2289 = vmul.f32 %v2265, %v2282
  %v2290 = vmul.f32 %v2266, %v2282
  %v2291 = vmul.f32 %v2267, %v2282
  %v2292 = vmul.f32 %v2268, %v2282
  %v2293 = vmul.f32 %v2269, %v2282
  %v2294 = vmul.f32 %v2270, %v2282
  %v2295 = vmul.f32 %v2271, %v2282
  %v2296 = vmul.f32 %v2272, %v2282
  %v2297 = vmul.f32 %v2273, %v2282
  %v2298 = vmul.f32 %v2274, %v2282
  %v2299 = vmul.f32 %v2275, %v2282
  %v2300 = vadd.f32 %v2243, %v2284
  %v2301 = vadd.f32 %v2244, %v2285
  %v2302 = vadd.f32 %v2245, %v2286
  %v2303 = vadd.f32 %v2246, %v2287
  %v2304 = vadd.f32 %v2247, %v2288
  %v2305 = vadd.f32 %v2248, %v2289
  %v2306 = vadd.f32 %v2249, %v2290
  %v2307 = vadd.f32 %v2250, %v2291
  %v2308 = vadd.f32 %v2251, %v2292
  %v2309 = vadd.f32 %v2252, %v2293
  %v2310 = vadd.f32 %v2253, %v2294
  %v2311 = vadd.f32 %v2254, %v2295
  %v2312 = vadd.f32 %v2255, %v2296
  %v2313 = vadd.f32 %v2256, %v2297
  %v2314 = vadd.f32 %v2257, %v2298
  %v2315 = vadd.f32 %v2258, %v2299
  %s2316 = scalar_lea.vmem %s1, 5120
  %v2317 = vld [vmem:[%s2316] sm:$0xff]
  %v2318 = vld [vmem:[%s2316 + $0x8] sm:$0xff]
  %v2319 = vld [vmem:[%s2316 + $0x10] sm:$0xff]
  %v2320 = vld [vmem:[%s2316 + $0x18] sm:$0xff]
  %v2321 = vld [vmem:[%s2316 + $0x20] sm:$0xff]
  %v2322 = vld [vmem:[%s2316 + $0x28] sm:$0xff]
  %v2323 = vld [vmem:[%s2316 + $0x30] sm:$0xff]
  %v2324 = vld [vmem:[%s2316 + $0x38] sm:$0xff]
  %v2325 = vld [vmem:[%s2316 + $0x40] sm:$0xff]
  %v2326 = vld [vmem:[%s2316 + $0x48] sm:$0xff]
  %v2327 = vld [vmem:[%s2316 + $0x50] sm:$0xff]
  %v2328 = vld [vmem:[%s2316 + $0x58] sm:$0xff]
  %v2329 = vld [vmem:[%s2316 + $0x60] sm:$0xff]
  %v2330 = vld [vmem:[%s2316 + $0x68] sm:$0xff]
  %v2331 = vld [vmem:[%s2316 + $0x70] sm:$0xff]
  %v2332 = vld [vmem:[%s2316 + $0x78] sm:$0xff]
  %s2333 = scalar_lea.vmem %s2, 40
  %v2334 = vld [vmem:[%s2333] sm:$0x1]
  %v2336 = vlaneseq
  %v2337 = vshrl.u32 %v2336, 7
  %v2338 = vsub.s32 0, %v2337
  %v2339 = vrot.slane %v2334, %v2338
  %v2341 = vmul.f32 %v2317, %v2339
  %v2342 = vmul.f32 %v2318, %v2339
  %v2343 = vmul.f32 %v2319, %v2339
  %v2344 = vmul.f32 %v2320, %v2339
  %v2345 = vmul.f32 %v2321, %v2339
  %v2346 = vmul.f32 %v2322, %v2339
  %v2347 = vmul.f32 %v2323, %v2339
  %v2348 = vmul.f32 %v2324, %v2339
  %v2349 = vmul.f32 %v2325, %v2339
  %v2350 = vmul.f32 %v2326, %v2339
  %v2351 = vmul.f32 %v2327, %v2339
  %v2352 = vmul.f32 %v2328, %v2339
  %v2353 = vmul.f32 %v2329, %v2339
  %v2354 = vmul.f32 %v2330, %v2339
  %v2355 = vmul.f32 %v2331, %v2339
  %v2356 = vmul.f32 %v2332, %v2339
  %v2357 = vadd.f32 %v2300, %v2341
  %v2358 = vadd.f32 %v2301, %v2342
  %v2359 = vadd.f32 %v2302, %v2343
  %v2360 = vadd.f32 %v2303, %v2344
  %v2361 = vadd.f32 %v2304, %v2345
  %v2362 = vadd.f32 %v2305, %v2346
  %v2363 = vadd.f32 %v2306, %v2347
  %v2364 = vadd.f32 %v2307, %v2348
  %v2365 = vadd.f32 %v2308, %v2349
  %v2366 = vadd.f32 %v2309, %v2350
  %v2367 = vadd.f32 %v2310, %v2351
  %v2368 = vadd.f32 %v2311, %v2352
  %v2369 = vadd.f32 %v2312, %v2353
  %v2370 = vadd.f32 %v2313, %v2354
  %v2371 = vadd.f32 %v2314, %v2355
  %v2372 = vadd.f32 %v2315, %v2356
  %s2373 = scalar_lea.vmem %s1, 5248
  %v2374 = vld [vmem:[%s2373] sm:$0xff]
  %v2375 = vld [vmem:[%s2373 + $0x8] sm:$0xff]
  %v2376 = vld [vmem:[%s2373 + $0x10] sm:$0xff]
  %v2377 = vld [vmem:[%s2373 + $0x18] sm:$0xff]
  %v2378 = vld [vmem:[%s2373 + $0x20] sm:$0xff]
  %v2379 = vld [vmem:[%s2373 + $0x28] sm:$0xff]
  %v2380 = vld [vmem:[%s2373 + $0x30] sm:$0xff]
  %v2381 = vld [vmem:[%s2373 + $0x38] sm:$0xff]
  %v2382 = vld [vmem:[%s2373 + $0x40] sm:$0xff]
  %v2383 = vld [vmem:[%s2373 + $0x48] sm:$0xff]
  %v2384 = vld [vmem:[%s2373 + $0x50] sm:$0xff]
  %v2385 = vld [vmem:[%s2373 + $0x58] sm:$0xff]
  %v2386 = vld [vmem:[%s2373 + $0x60] sm:$0xff]
  %v2387 = vld [vmem:[%s2373 + $0x68] sm:$0xff]
  %v2388 = vld [vmem:[%s2373 + $0x70] sm:$0xff]
  %v2389 = vld [vmem:[%s2373 + $0x78] sm:$0xff]
  %s2390 = scalar_lea.vmem %s2, 41
  %v2391 = vld [vmem:[%s2390] sm:$0x1]
  %v2393 = vlaneseq
  %v2394 = vshrl.u32 %v2393, 7
  %v2395 = vsub.s32 0, %v2394
  %v2396 = vrot.slane %v2391, %v2395
  %v2398 = vmul.f32 %v2374, %v2396
  %v2399 = vmul.f32 %v2375, %v2396
  %v2400 = vmul.f32 %v2376, %v2396
  %v2401 = vmul.f32 %v2377, %v2396
  %v2402 = vmul.f32 %v2378, %v2396
  %v2403 = vmul.f32 %v2379, %v2396
  %v2404 = vmul.f32 %v2380, %v2396
  %v2405 = vmul.f32 %v2381, %v2396
  %v2406 = vmul.f32 %v2382, %v2396
  %v2407 = vmul.f32 %v2383, %v2396
  %v2408 = vmul.f32 %v2384, %v2396
  %v2409 = vmul.f32 %v2385, %v2396
  %v2410 = vmul.f32 %v2386, %v2396
  %v2411 = vmul.f32 %v2387, %v2396
  %v2412 = vmul.f32 %v2388, %v2396
  %v2413 = vmul.f32 %v2389, %v2396
  %v2414 = vadd.f32 %v2357, %v2398
  %v2415 = vadd.f32 %v2358, %v2399
  %v2416 = vadd.f32 %v2359, %v2400
  %v2417 = vadd.f32 %v2360, %v2401
  %v2418 = vadd.f32 %v2361, %v2402
  %v2419 = vadd.f32 %v2362, %v2403
  %v2420 = vadd.f32 %v2363, %v2404
  %v2421 = vadd.f32 %v2364, %v2405
  %v2422 = vadd.f32 %v2365, %v2406
  %v2423 = vadd.f32 %v2366, %v2407
  %v2424 = vadd.f32 %v2367, %v2408
  %v2425 = vadd.f32 %v2368, %v2409
  %v2426 = vadd.f32 %v2369, %v2410
  %v2427 = vadd.f32 %v2370, %v2411
  %v2428 = vadd.f32 %v2371, %v2412
  %v2429 = vadd.f32 %v2372, %v2413
  %s2430 = scalar_lea.vmem %s1, 5376
  %v2431 = vld [vmem:[%s2430] sm:$0xff]
  %v2432 = vld [vmem:[%s2430 + $0x8] sm:$0xff]
  %v2433 = vld [vmem:[%s2430 + $0x10] sm:$0xff]
  %v2434 = vld [vmem:[%s2430 + $0x18] sm:$0xff]
  %v2435 = vld [vmem:[%s2430 + $0x20] sm:$0xff]
  %v2436 = vld [vmem:[%s2430 + $0x28] sm:$0xff]
  %v2437 = vld [vmem:[%s2430 + $0x30] sm:$0xff]
  %v2438 = vld [vmem:[%s2430 + $0x38] sm:$0xff]
  %v2439 = vld [vmem:[%s2430 + $0x40] sm:$0xff]
  %v2440 = vld [vmem:[%s2430 + $0x48] sm:$0xff]
  %v2441 = vld [vmem:[%s2430 + $0x50] sm:$0xff]
  %v2442 = vld [vmem:[%s2430 + $0x58] sm:$0xff]
  %v2443 = vld [vmem:[%s2430 + $0x60] sm:$0xff]
  %v2444 = vld [vmem:[%s2430 + $0x68] sm:$0xff]
  %v2445 = vld [vmem:[%s2430 + $0x70] sm:$0xff]
  %v2446 = vld [vmem:[%s2430 + $0x78] sm:$0xff]
  %s2447 = scalar_lea.vmem %s2, 42
  %v2448 = vld [vmem:[%s2447] sm:$0x1]
  %v2450 = vlaneseq
  %v2451 = vshrl.u32 %v2450, 7
  %v2452 = vsub.s32 0, %v2451
  %v2453 = vrot.slane %v2448, %v2452
  %v2455 = vmul.f32 %v2431, %v2453
  %v2456 = vmul.f32 %v2432, %v2453
  %v2457 = vmul.f32 %v2433, %v2453
  %v2458 = vmul.f32 %v2434, %v2453
  %v2459 = vmul.f32 %v2435, %v2453
  %v2460 = vmul.f32 %v2436, %v2453
  %v2461 = vmul.f32 %v2437, %v2453
  %v2462 = vmul.f32 %v2438, %v2453
  %v2463 = vmul.f32 %v2439, %v2453
  %v2464 = vmul.f32 %v2440, %v2453
  %v2465 = vmul.f32 %v2441, %v2453
  %v2466 = vmul.f32 %v2442, %v2453
  %v2467 = vmul.f32 %v2443, %v2453
  %v2468 = vmul.f32 %v2444, %v2453
  %v2469 = vmul.f32 %v2445, %v2453
  %v2470 = vmul.f32 %v2446, %v2453
  %v2471 = vadd.f32 %v2414, %v2455
  %v2472 = vadd.f32 %v2415, %v2456
  %v2473 = vadd.f32 %v2416, %v2457
  %v2474 = vadd.f32 %v2417, %v2458
  %v2475 = vadd.f32 %v2418, %v2459
  %v2476 = vadd.f32 %v2419, %v2460
  %v2477 = vadd.f32 %v2420, %v2461
  %v2478 = vadd.f32 %v2421, %v2462
  %v2479 = vadd.f32 %v2422, %v2463
  %v2480 = vadd.f32 %v2423, %v2464
  %v2481 = vadd.f32 %v2424, %v2465
  %v2482 = vadd.f32 %v2425, %v2466
  %v2483 = vadd.f32 %v2426, %v2467
  %v2484 = vadd.f32 %v2427, %v2468
  %v2485 = vadd.f32 %v2428, %v2469
  %v2486 = vadd.f32 %v2429, %v2470
  %s2487 = scalar_lea.vmem %s1, 5504
  %v2488 = vld [vmem:[%s2487] sm:$0xff]
  %v2489 = vld [vmem:[%s2487 + $0x8] sm:$0xff]
  %v2490 = vld [vmem:[%s2487 + $0x10] sm:$0xff]
  %v2491 = vld [vmem:[%s2487 + $0x18] sm:$0xff]
  %v2492 = vld [vmem:[%s2487 + $0x20] sm:$0xff]
  %v2493 = vld [vmem:[%s2487 + $0x28] sm:$0xff]
  %v2494 = vld [vmem:[%s2487 + $0x30] sm:$0xff]
  %v2495 = vld [vmem:[%s2487 + $0x38] sm:$0xff]
  %v2496 = vld [vmem:[%s2487 + $0x40] sm:$0xff]
  %v2497 = vld [vmem:[%s2487 + $0x48] sm:$0xff]
  %v2498 = vld [vmem:[%s2487 + $0x50] sm:$0xff]
  %v2499 = vld [vmem:[%s2487 + $0x58] sm:$0xff]
  %v2500 = vld [vmem:[%s2487 + $0x60] sm:$0xff]
  %v2501 = vld [vmem:[%s2487 + $0x68] sm:$0xff]
  %v2502 = vld [vmem:[%s2487 + $0x70] sm:$0xff]
  %v2503 = vld [vmem:[%s2487 + $0x78] sm:$0xff]
  %s2504 = scalar_lea.vmem %s2, 43
  %v2505 = vld [vmem:[%s2504] sm:$0x1]
  %v2507 = vlaneseq
  %v2508 = vshrl.u32 %v2507, 7
  %v2509 = vsub.s32 0, %v2508
  %v2510 = vrot.slane %v2505, %v2509
  %v2512 = vmul.f32 %v2488, %v2510
  %v2513 = vmul.f32 %v2489, %v2510
  %v2514 = vmul.f32 %v2490, %v2510
  %v2515 = vmul.f32 %v2491, %v2510
  %v2516 = vmul.f32 %v2492, %v2510
  %v2517 = vmul.f32 %v2493, %v2510
  %v2518 = vmul.f32 %v2494, %v2510
  %v2519 = vmul.f32 %v2495, %v2510
  %v2520 = vmul.f32 %v2496, %v2510
  %v2521 = vmul.f32 %v2497, %v2510
  %v2522 = vmul.f32 %v2498, %v2510
  %v2523 = vmul.f32 %v2499, %v2510
  %v2524 = vmul.f32 %v2500, %v2510
  %v2525 = vmul.f32 %v2501, %v2510
  %v2526 = vmul.f32 %v2502, %v2510
  %v2527 = vmul.f32 %v2503, %v2510
  %v2528 = vadd.f32 %v2471, %v2512
  %v2529 = vadd.f32 %v2472, %v2513
  %v2530 = vadd.f32 %v2473, %v2514
  %v2531 = vadd.f32 %v2474, %v2515
  %v2532 = vadd.f32 %v2475, %v2516
  %v2533 = vadd.f32 %v2476, %v2517
  %v2534 = vadd.f32 %v2477, %v2518
  %v2535 = vadd.f32 %v2478, %v2519
  %v2536 = vadd.f32 %v2479, %v2520
  %v2537 = vadd.f32 %v2480, %v2521
  %v2538 = vadd.f32 %v2481, %v2522
  %v2539 = vadd.f32 %v2482, %v2523
  %v2540 = vadd.f32 %v2483, %v2524
  %v2541 = vadd.f32 %v2484, %v2525
  %v2542 = vadd.f32 %v2485, %v2526
  %v2543 = vadd.f32 %v2486, %v2527
  %s2544 = scalar_lea.vmem %s1, 5632
  %v2545 = vld [vmem:[%s2544] sm:$0xff]
  %v2546 = vld [vmem:[%s2544 + $0x8] sm:$0xff]
  %v2547 = vld [vmem:[%s2544 + $0x10] sm:$0xff]
  %v2548 = vld [vmem:[%s2544 + $0x18] sm:$0xff]
  %v2549 = vld [vmem:[%s2544 + $0x20] sm:$0xff]
  %v2550 = vld [vmem:[%s2544 + $0x28] sm:$0xff]
  %v2551 = vld [vmem:[%s2544 + $0x30] sm:$0xff]
  %v2552 = vld [vmem:[%s2544 + $0x38] sm:$0xff]
  %v2553 = vld [vmem:[%s2544 + $0x40] sm:$0xff]
  %v2554 = vld [vmem:[%s2544 + $0x48] sm:$0xff]
  %v2555 = vld [vmem:[%s2544 + $0x50] sm:$0xff]
  %v2556 = vld [vmem:[%s2544 + $0x58] sm:$0xff]
  %v2557 = vld [vmem:[%s2544 + $0x60] sm:$0xff]
  %v2558 = vld [vmem:[%s2544 + $0x68] sm:$0xff]
  %v2559 = vld [vmem:[%s2544 + $0x70] sm:$0xff]
  %v2560 = vld [vmem:[%s2544 + $0x78] sm:$0xff]
  %s2561 = scalar_lea.vmem %s2, 44
  %v2562 = vld [vmem:[%s2561] sm:$0x1]
  %v2564 = vlaneseq
  %v2565 = vshrl.u32 %v2564, 7
  %v2566 = vsub.s32 0, %v2565
  %v2567 = vrot.slane %v2562, %v2566
  %v2569 = vmul.f32 %v2545, %v2567
  %v2570 = vmul.f32 %v2546, %v2567
  %v2571 = vmul.f32 %v2547, %v2567
  %v2572 = vmul.f32 %v2548, %v2567
  %v2573 = vmul.f32 %v2549, %v2567
  %v2574 = vmul.f32 %v2550, %v2567
  %v2575 = vmul.f32 %v2551, %v2567
  %v2576 = vmul.f32 %v2552, %v2567
  %v2577 = vmul.f32 %v2553, %v2567
  %v2578 = vmul.f32 %v2554, %v2567
  %v2579 = vmul.f32 %v2555, %v2567
  %v2580 = vmul.f32 %v2556, %v2567
  %v2581 = vmul.f32 %v2557, %v2567
  %v2582 = vmul.f32 %v2558, %v2567
  %v2583 = vmul.f32 %v2559, %v2567
  %v2584 = vmul.f32 %v2560, %v2567
  %v2585 = vadd.f32 %v2528, %v2569
  %v2586 = vadd.f32 %v2529, %v2570
  %v2587 = vadd.f32 %v2530, %v2571
  %v2588 = vadd.f32 %v2531, %v2572
  %v2589 = vadd.f32 %v2532, %v2573
  %v2590 = vadd.f32 %v2533, %v2574
  %v2591 = vadd.f32 %v2534, %v2575
  %v2592 = vadd.f32 %v2535, %v2576
  %v2593 = vadd.f32 %v2536, %v2577
  %v2594 = vadd.f32 %v2537, %v2578
  %v2595 = vadd.f32 %v2538, %v2579
  %v2596 = vadd.f32 %v2539, %v2580
  %v2597 = vadd.f32 %v2540, %v2581
  %v2598 = vadd.f32 %v2541, %v2582
  %v2599 = vadd.f32 %v2542, %v2583
  %v2600 = vadd.f32 %v2543, %v2584
  %s2601 = scalar_lea.vmem %s1, 5760
  %v2602 = vld [vmem:[%s2601] sm:$0xff]
  %v2603 = vld [vmem:[%s2601 + $0x8] sm:$0xff]
  %v2604 = vld [vmem:[%s2601 + $0x10] sm:$0xff]
  %v2605 = vld [vmem:[%s2601 + $0x18] sm:$0xff]
  %v2606 = vld [vmem:[%s2601 + $0x20] sm:$0xff]
  %v2607 = vld [vmem:[%s2601 + $0x28] sm:$0xff]
  %v2608 = vld [vmem:[%s2601 + $0x30] sm:$0xff]
  %v2609 = vld [vmem:[%s2601 + $0x38] sm:$0xff]
  %v2610 = vld [vmem:[%s2601 + $0x40] sm:$0xff]
  %v2611 = vld [vmem:[%s2601 + $0x48] sm:$0xff]
  %v2612 = vld [vmem:[%s2601 + $0x50] sm:$0xff]
  %v2613 = vld [vmem:[%s2601 + $0x58] sm:$0xff]
  %v2614 = vld [vmem:[%s2601 + $0x60] sm:$0xff]
  %v2615 = vld [vmem:[%s2601 + $0x68] sm:$0xff]
  %v2616 = vld [vmem:[%s2601 + $0x70] sm:$0xff]
  %v2617 = vld [vmem:[%s2601 + $0x78] sm:$0xff]
  %s2618 = scalar_lea.vmem %s2, 45
  %v2619 = vld [vmem:[%s2618] sm:$0x1]
  %v2621 = vlaneseq
  %v2622 = vshrl.u32 %v2621, 7
  %v2623 = vsub.s32 0, %v2622
  %v2624 = vrot.slane %v2619, %v2623
  %v2626 = vmul.f32 %v2602, %v2624
  %v2627 = vmul.f32 %v2603, %v2624
  %v2628 = vmul.f32 %v2604, %v2624
  %v2629 = vmul.f32 %v2605, %v2624
  %v2630 = vmul.f32 %v2606, %v2624
  %v2631 = vmul.f32 %v2607, %v2624
  %v2632 = vmul.f32 %v2608, %v2624
  %v2633 = vmul.f32 %v2609, %v2624
  %v2634 = vmul.f32 %v2610, %v2624
  %v2635 = vmul.f32 %v2611, %v2624
  %v2636 = vmul.f32 %v2612, %v2624
  %v2637 = vmul.f32 %v2613, %v2624
  %v2638 = vmul.f32 %v2614, %v2624
  %v2639 = vmul.f32 %v2615, %v2624
  %v2640 = vmul.f32 %v2616, %v2624
  %v2641 = vmul.f32 %v2617, %v2624
  %v2642 = vadd.f32 %v2585, %v2626
  %v2643 = vadd.f32 %v2586, %v2627
  %v2644 = vadd.f32 %v2587, %v2628
  %v2645 = vadd.f32 %v2588, %v2629
  %v2646 = vadd.f32 %v2589, %v2630
  %v2647 = vadd.f32 %v2590, %v2631
  %v2648 = vadd.f32 %v2591, %v2632
  %v2649 = vadd.f32 %v2592, %v2633
  %v2650 = vadd.f32 %v2593, %v2634
  %v2651 = vadd.f32 %v2594, %v2635
  %v2652 = vadd.f32 %v2595, %v2636
  %v2653 = vadd.f32 %v2596, %v2637
  %v2654 = vadd.f32 %v2597, %v2638
  %v2655 = vadd.f32 %v2598, %v2639
  %v2656 = vadd.f32 %v2599, %v2640
  %v2657 = vadd.f32 %v2600, %v2641
  %s2658 = scalar_lea.vmem %s1, 5888
  %v2659 = vld [vmem:[%s2658] sm:$0xff]
  %v2660 = vld [vmem:[%s2658 + $0x8] sm:$0xff]
  %v2661 = vld [vmem:[%s2658 + $0x10] sm:$0xff]
  %v2662 = vld [vmem:[%s2658 + $0x18] sm:$0xff]
  %v2663 = vld [vmem:[%s2658 + $0x20] sm:$0xff]
  %v2664 = vld [vmem:[%s2658 + $0x28] sm:$0xff]
  %v2665 = vld [vmem:[%s2658 + $0x30] sm:$0xff]
  %v2666 = vld [vmem:[%s2658 + $0x38] sm:$0xff]
  %v2667 = vld [vmem:[%s2658 + $0x40] sm:$0xff]
  %v2668 = vld [vmem:[%s2658 + $0x48] sm:$0xff]
  %v2669 = vld [vmem:[%s2658 + $0x50] sm:$0xff]
  %v2670 = vld [vmem:[%s2658 + $0x58] sm:$0xff]
  %v2671 = vld [vmem:[%s2658 + $0x60] sm:$0xff]
  %v2672 = vld [vmem:[%s2658 + $0x68] sm:$0xff]
  %v2673 = vld [vmem:[%s2658 + $0x70] sm:$0xff]
  %v2674 = vld [vmem:[%s2658 + $0x78] sm:$0xff]
  %s2675 = scalar_lea.vmem %s2, 46
  %v2676 = vld [vmem:[%s2675] sm:$0x1]
  %v2678 = vlaneseq
  %v2679 = vshrl.u32 %v2678, 7
  %v2680 = vsub.s32 0, %v2679
  %v2681 = vrot.slane %v2676, %v2680
  %v2683 = vmul.f32 %v2659, %v2681
  %v2684 = vmul.f32 %v2660, %v2681
  %v2685 = vmul.f32 %v2661, %v2681
  %v2686 = vmul.f32 %v2662, %v2681
  %v2687 = vmul.f32 %v2663, %v2681
  %v2688 = vmul.f32 %v2664, %v2681
  %v2689 = vmul.f32 %v2665, %v2681
  %v2690 = vmul.f32 %v2666, %v2681
  %v2691 = vmul.f32 %v2667, %v2681
  %v2692 = vmul.f32 %v2668, %v2681
  %v2693 = vmul.f32 %v2669, %v2681
  %v2694 = vmul.f32 %v2670, %v2681
  %v2695 = vmul.f32 %v2671, %v2681
  %v2696 = vmul.f32 %v2672, %v2681
  %v2697 = vmul.f32 %v2673, %v2681
  %v2698 = vmul.f32 %v2674, %v2681
  %v2699 = vadd.f32 %v2642, %v2683
  %v2700 = vadd.f32 %v2643, %v2684
  %v2701 = vadd.f32 %v2644, %v2685
  %v2702 = vadd.f32 %v2645, %v2686
  %v2703 = vadd.f32 %v2646, %v2687
  %v2704 = vadd.f32 %v2647, %v2688
  %v2705 = vadd.f32 %v2648, %v2689
  %v2706 = vadd.f32 %v2649, %v2690
  %v2707 = vadd.f32 %v2650, %v2691
  %v2708 = vadd.f32 %v2651, %v2692
  %v2709 = vadd.f32 %v2652, %v2693
  %v2710 = vadd.f32 %v2653, %v2694
  %v2711 = vadd.f32 %v2654, %v2695
  %v2712 = vadd.f32 %v2655, %v2696
  %v2713 = vadd.f32 %v2656, %v2697
  %v2714 = vadd.f32 %v2657, %v2698
  %s2715 = scalar_lea.vmem %s1, 6016
  %v2716 = vld [vmem:[%s2715] sm:$0xff]
  %v2717 = vld [vmem:[%s2715 + $0x8] sm:$0xff]
  %v2718 = vld [vmem:[%s2715 + $0x10] sm:$0xff]
  %v2719 = vld [vmem:[%s2715 + $0x18] sm:$0xff]
  %v2720 = vld [vmem:[%s2715 + $0x20] sm:$0xff]
  %v2721 = vld [vmem:[%s2715 + $0x28] sm:$0xff]
  %v2722 = vld [vmem:[%s2715 + $0x30] sm:$0xff]
  %v2723 = vld [vmem:[%s2715 + $0x38] sm:$0xff]
  %v2724 = vld [vmem:[%s2715 + $0x40] sm:$0xff]
  %v2725 = vld [vmem:[%s2715 + $0x48] sm:$0xff]
  %v2726 = vld [vmem:[%s2715 + $0x50] sm:$0xff]
  %v2727 = vld [vmem:[%s2715 + $0x58] sm:$0xff]
  %v2728 = vld [vmem:[%s2715 + $0x60] sm:$0xff]
  %v2729 = vld [vmem:[%s2715 + $0x68] sm:$0xff]
  %v2730 = vld [vmem:[%s2715 + $0x70] sm:$0xff]
  %v2731 = vld [vmem:[%s2715 + $0x78] sm:$0xff]
  %s2732 = scalar_lea.vmem %s2, 47
  %v2733 = vld [vmem:[%s2732] sm:$0x1]
  %v2735 = vlaneseq
  %v2736 = vshrl.u32 %v2735, 7
  %v2737 = vsub.s32 0, %v2736
  %v2738 = vrot.slane %v2733, %v2737
  %v2740 = vmul.f32 %v2716, %v2738
  %v2741 = vmul.f32 %v2717, %v2738
  %v2742 = vmul.f32 %v2718, %v2738
  %v2743 = vmul.f32 %v2719, %v2738
  %v2744 = vmul.f32 %v2720, %v2738
  %v2745 = vmul.f32 %v2721, %v2738
  %v2746 = vmul.f32 %v2722, %v2738
  %v2747 = vmul.f32 %v2723, %v2738
  %v2748 = vmul.f32 %v2724, %v2738
  %v2749 = vmul.f32 %v2725, %v2738
  %v2750 = vmul.f32 %v2726, %v2738
  %v2751 = vmul.f32 %v2727, %v2738
  %v2752 = vmul.f32 %v2728, %v2738
  %v2753 = vmul.f32 %v2729, %v2738
  %v2754 = vmul.f32 %v2730, %v2738
  %v2755 = vmul.f32 %v2731, %v2738
  %v2756 = vadd.f32 %v2699, %v2740
  %v2757 = vadd.f32 %v2700, %v2741
  %v2758 = vadd.f32 %v2701, %v2742
  %v2759 = vadd.f32 %v2702, %v2743
  %v2760 = vadd.f32 %v2703, %v2744
  %v2761 = vadd.f32 %v2704, %v2745
  %v2762 = vadd.f32 %v2705, %v2746
  %v2763 = vadd.f32 %v2706, %v2747
  %v2764 = vadd.f32 %v2707, %v2748
  %v2765 = vadd.f32 %v2708, %v2749
  %v2766 = vadd.f32 %v2709, %v2750
  %v2767 = vadd.f32 %v2710, %v2751
  %v2768 = vadd.f32 %v2711, %v2752
  %v2769 = vadd.f32 %v2712, %v2753
  %v2770 = vadd.f32 %v2713, %v2754
  %v2771 = vadd.f32 %v2714, %v2755
  %s2772 = scalar_lea.vmem %s1, 6144
  %v2773 = vld [vmem:[%s2772] sm:$0xff]
  %v2774 = vld [vmem:[%s2772 + $0x8] sm:$0xff]
  %v2775 = vld [vmem:[%s2772 + $0x10] sm:$0xff]
  %v2776 = vld [vmem:[%s2772 + $0x18] sm:$0xff]
  %v2777 = vld [vmem:[%s2772 + $0x20] sm:$0xff]
  %v2778 = vld [vmem:[%s2772 + $0x28] sm:$0xff]
  %v2779 = vld [vmem:[%s2772 + $0x30] sm:$0xff]
  %v2780 = vld [vmem:[%s2772 + $0x38] sm:$0xff]
  %v2781 = vld [vmem:[%s2772 + $0x40] sm:$0xff]
  %v2782 = vld [vmem:[%s2772 + $0x48] sm:$0xff]
  %v2783 = vld [vmem:[%s2772 + $0x50] sm:$0xff]
  %v2784 = vld [vmem:[%s2772 + $0x58] sm:$0xff]
  %v2785 = vld [vmem:[%s2772 + $0x60] sm:$0xff]
  %v2786 = vld [vmem:[%s2772 + $0x68] sm:$0xff]
  %v2787 = vld [vmem:[%s2772 + $0x70] sm:$0xff]
  %v2788 = vld [vmem:[%s2772 + $0x78] sm:$0xff]
  %s2789 = scalar_lea.vmem %s2, 48
  %v2790 = vld [vmem:[%s2789] sm:$0x1]
  %v2792 = vlaneseq
  %v2793 = vshrl.u32 %v2792, 7
  %v2794 = vsub.s32 0, %v2793
  %v2795 = vrot.slane %v2790, %v2794
  %v2797 = vmul.f32 %v2773, %v2795
  %v2798 = vmul.f32 %v2774, %v2795
  %v2799 = vmul.f32 %v2775, %v2795
  %v2800 = vmul.f32 %v2776, %v2795
  %v2801 = vmul.f32 %v2777, %v2795
  %v2802 = vmul.f32 %v2778, %v2795
  %v2803 = vmul.f32 %v2779, %v2795
  %v2804 = vmul.f32 %v2780, %v2795
  %v2805 = vmul.f32 %v2781, %v2795
  %v2806 = vmul.f32 %v2782, %v2795
  %v2807 = vmul.f32 %v2783, %v2795
  %v2808 = vmul.f32 %v2784, %v2795
  %v2809 = vmul.f32 %v2785, %v2795
  %v2810 = vmul.f32 %v2786, %v2795
  %v2811 = vmul.f32 %v2787, %v2795
  %v2812 = vmul.f32 %v2788, %v2795
  %v2813 = vadd.f32 %v2756, %v2797
  %v2814 = vadd.f32 %v2757, %v2798
  %v2815 = vadd.f32 %v2758, %v2799
  %v2816 = vadd.f32 %v2759, %v2800
  %v2817 = vadd.f32 %v2760, %v2801
  %v2818 = vadd.f32 %v2761, %v2802
  %v2819 = vadd.f32 %v2762, %v2803
  %v2820 = vadd.f32 %v2763, %v2804
  %v2821 = vadd.f32 %v2764, %v2805
  %v2822 = vadd.f32 %v2765, %v2806
  %v2823 = vadd.f32 %v2766, %v2807
  %v2824 = vadd.f32 %v2767, %v2808
  %v2825 = vadd.f32 %v2768, %v2809
  %v2826 = vadd.f32 %v2769, %v2810
  %v2827 = vadd.f32 %v2770, %v2811
  %v2828 = vadd.f32 %v2771, %v2812
  %v2829 = vld [vmem:[%s3] sm:$0x1]
  %v2831 = vlaneseq
  %v2832 = vshrl.u32 %v2831, 7
  %v2833 = vsub.s32 0, %v2832
  %v2834 = vrot.slane %v2829, %v2833
  %v2836 = vadd.f32 %v2813, %v2834
  %v2837 = vadd.f32 %v2814, %v2834
  %v2838 = vadd.f32 %v2815, %v2834
  %v2839 = vadd.f32 %v2816, %v2834
  %v2840 = vadd.f32 %v2817, %v2834
  %v2841 = vadd.f32 %v2818, %v2834
  %v2842 = vadd.f32 %v2819, %v2834
  %v2843 = vadd.f32 %v2820, %v2834
  %v2844 = vadd.f32 %v2821, %v2834
  %v2845 = vadd.f32 %v2822, %v2834
  %v2846 = vadd.f32 %v2823, %v2834
  %v2847 = vadd.f32 %v2824, %v2834
  %v2848 = vadd.f32 %v2825, %v2834
  %v2849 = vadd.f32 %v2826, %v2834
  %v2850 = vadd.f32 %v2827, %v2834
  %v2851 = vadd.f32 %v2828, %v2834
  %v2852 = vld [vmem:[%s4] sm:$0x1]
  %v2853 = vld [vmem:[%s5] sm:$0x1]
  %vm2854 = vcmask 261120
  %v2855 = vsel %vm2854, %v2836, 0.0
  %2856 = vadd.xlane.f32.xlu0 %v2855
  %v2857 = vpop.xlane.xlu0 %2856
  %v2858 = vsel %vm2854, %v2837, 0.0
  %2859 = vadd.xlane.f32.xlu0 %v2858
  %v2860 = vpop.xlane.xlu0 %2859
  %v2861 = vsel %vm2854, %v2838, 0.0
  %2862 = vadd.xlane.f32.xlu0 %v2861
  %v2863 = vpop.xlane.xlu0 %2862
  %v2864 = vsel %vm2854, %v2839, 0.0
  %2865 = vadd.xlane.f32.xlu0 %v2864
  %v2866 = vpop.xlane.xlu0 %2865
  %v2867 = vsel %vm2854, %v2840, 0.0
  %2868 = vadd.xlane.f32.xlu0 %v2867
  %v2869 = vpop.xlane.xlu0 %2868
  %v2870 = vsel %vm2854, %v2841, 0.0
  %2871 = vadd.xlane.f32.xlu0 %v2870
  %v2872 = vpop.xlane.xlu0 %2871
  %v2873 = vsel %vm2854, %v2842, 0.0
  %2874 = vadd.xlane.f32.xlu0 %v2873
  %v2875 = vpop.xlane.xlu0 %2874
  %v2876 = vsel %vm2854, %v2843, 0.0
  %2877 = vadd.xlane.f32.xlu0 %v2876
  %v2878 = vpop.xlane.xlu0 %2877
  %v2879 = vsel %vm2854, %v2844, 0.0
  %2880 = vadd.xlane.f32.xlu0 %v2879
  %v2881 = vpop.xlane.xlu0 %2880
  %v2882 = vsel %vm2854, %v2845, 0.0
  %2883 = vadd.xlane.f32.xlu0 %v2882
  %v2884 = vpop.xlane.xlu0 %2883
  %v2885 = vsel %vm2854, %v2846, 0.0
  %2886 = vadd.xlane.f32.xlu0 %v2885
  %v2887 = vpop.xlane.xlu0 %2886
  %v2888 = vsel %vm2854, %v2847, 0.0
  %2889 = vadd.xlane.f32.xlu0 %v2888
  %v2890 = vpop.xlane.xlu0 %2889
  %v2891 = vsel %vm2854, %v2848, 0.0
  %2892 = vadd.xlane.f32.xlu0 %v2891
  %v2893 = vpop.xlane.xlu0 %2892
  %v2894 = vsel %vm2854, %v2849, 0.0
  %2895 = vadd.xlane.f32.xlu0 %v2894
  %v2896 = vpop.xlane.xlu0 %2895
  %v2897 = vsel %vm2854, %v2850, 0.0
  %2898 = vadd.xlane.f32.xlu0 %v2897
  %v2899 = vpop.xlane.xlu0 %2898
  %v2900 = vsel %vm2854, %v2851, 0.0
  %2901 = vadd.xlane.f32.xlu0 %v2900
  %v2902 = vpop.xlane.xlu0 %2901
  %v2903 = vrcp.pop 32.0
  %v2904 = vmul.f32 %v2857, %v2903
  %v2905 = vmul.f32 %v2860, %v2903
  %v2906 = vmul.f32 %v2863, %v2903
  %v2907 = vmul.f32 %v2866, %v2903
  %v2908 = vmul.f32 %v2869, %v2903
  %v2909 = vmul.f32 %v2872, %v2903
  %v2910 = vmul.f32 %v2875, %v2903
  %v2911 = vmul.f32 %v2878, %v2903
  %v2912 = vmul.f32 %v2881, %v2903
  %v2913 = vmul.f32 %v2884, %v2903
  %v2914 = vmul.f32 %v2887, %v2903
  %v2915 = vmul.f32 %v2890, %v2903
  %v2916 = vmul.f32 %v2893, %v2903
  %v2917 = vmul.f32 %v2896, %v2903
  %v2918 = vmul.f32 %v2899, %v2903
  %v2919 = vmul.f32 %v2902, %v2903
  %v2920 = vsub.f32 %v2836, %v2904
  %v2921 = vsub.f32 %v2837, %v2905
  %v2922 = vsub.f32 %v2838, %v2906
  %v2923 = vsub.f32 %v2839, %v2907
  %v2924 = vsub.f32 %v2840, %v2908
  %v2925 = vsub.f32 %v2841, %v2909
  %v2926 = vsub.f32 %v2842, %v2910
  %v2927 = vsub.f32 %v2843, %v2911
  %v2928 = vsub.f32 %v2844, %v2912
  %v2929 = vsub.f32 %v2845, %v2913
  %v2930 = vsub.f32 %v2846, %v2914
  %v2931 = vsub.f32 %v2847, %v2915
  %v2932 = vsub.f32 %v2848, %v2916
  %v2933 = vsub.f32 %v2849, %v2917
  %v2934 = vsub.f32 %v2850, %v2918
  %v2935 = vsub.f32 %v2851, %v2919
  %v2936 = vmul.f32 %v2920, %v2920
  %v2937 = vmul.f32 %v2921, %v2921
  %v2938 = vmul.f32 %v2922, %v2922
  %v2939 = vmul.f32 %v2923, %v2923
  %v2940 = vmul.f32 %v2924, %v2924
  %v2941 = vmul.f32 %v2925, %v2925
  %v2942 = vmul.f32 %v2926, %v2926
  %v2943 = vmul.f32 %v2927, %v2927
  %v2944 = vmul.f32 %v2928, %v2928
  %v2945 = vmul.f32 %v2929, %v2929
  %v2946 = vmul.f32 %v2930, %v2930
  %v2947 = vmul.f32 %v2931, %v2931
  %v2948 = vmul.f32 %v2932, %v2932
  %v2949 = vmul.f32 %v2933, %v2933
  %v2950 = vmul.f32 %v2934, %v2934
  %v2951 = vmul.f32 %v2935, %v2935
  %v2952 = vsel %vm2854, %v2936, 0.0
  %2953 = vadd.xlane.f32.xlu0 %v2952
  %v2954 = vpop.xlane.xlu0 %2953
  %v2955 = vsel %vm2854, %v2937, 0.0
  %2956 = vadd.xlane.f32.xlu0 %v2955
  %v2957 = vpop.xlane.xlu0 %2956
  %v2958 = vsel %vm2854, %v2938, 0.0
  %2959 = vadd.xlane.f32.xlu0 %v2958
  %v2960 = vpop.xlane.xlu0 %2959
  %v2961 = vsel %vm2854, %v2939, 0.0
  %2962 = vadd.xlane.f32.xlu0 %v2961
  %v2963 = vpop.xlane.xlu0 %2962
  %v2964 = vsel %vm2854, %v2940, 0.0
  %2965 = vadd.xlane.f32.xlu0 %v2964
  %v2966 = vpop.xlane.xlu0 %2965
  %v2967 = vsel %vm2854, %v2941, 0.0
  %2968 = vadd.xlane.f32.xlu0 %v2967
  %v2969 = vpop.xlane.xlu0 %2968
  %v2970 = vsel %vm2854, %v2942, 0.0
  %2971 = vadd.xlane.f32.xlu0 %v2970
  %v2972 = vpop.xlane.xlu0 %2971
  %v2973 = vsel %vm2854, %v2943, 0.0
  %2974 = vadd.xlane.f32.xlu0 %v2973
  %v2975 = vpop.xlane.xlu0 %2974
  %v2976 = vsel %vm2854, %v2944, 0.0
  %2977 = vadd.xlane.f32.xlu0 %v2976
  %v2978 = vpop.xlane.xlu0 %2977
  %v2979 = vsel %vm2854, %v2945, 0.0
  %2980 = vadd.xlane.f32.xlu0 %v2979
  %v2981 = vpop.xlane.xlu0 %2980
  %v2982 = vsel %vm2854, %v2946, 0.0
  %2983 = vadd.xlane.f32.xlu0 %v2982
  %v2984 = vpop.xlane.xlu0 %2983
  %v2985 = vsel %vm2854, %v2947, 0.0
  %2986 = vadd.xlane.f32.xlu0 %v2985
  %v2987 = vpop.xlane.xlu0 %2986
  %v2988 = vsel %vm2854, %v2948, 0.0
  %2989 = vadd.xlane.f32.xlu0 %v2988
  %v2990 = vpop.xlane.xlu0 %2989
  %v2991 = vsel %vm2854, %v2949, 0.0
  %2992 = vadd.xlane.f32.xlu0 %v2991
  %v2993 = vpop.xlane.xlu0 %2992
  %v2994 = vsel %vm2854, %v2950, 0.0
  %2995 = vadd.xlane.f32.xlu0 %v2994
  %v2996 = vpop.xlane.xlu0 %2995
  %v2997 = vsel %vm2854, %v2951, 0.0
  %2998 = vadd.xlane.f32.xlu0 %v2997
  %v2999 = vpop.xlane.xlu0 %2998
  %v3000 = vmul.f32 %v2954, %v2903
  %v3001 = vmul.f32 %v2957, %v2903
  %v3002 = vmul.f32 %v2960, %v2903
  %v3003 = vmul.f32 %v2963, %v2903
  %v3004 = vmul.f32 %v2966, %v2903
  %v3005 = vmul.f32 %v2969, %v2903
  %v3006 = vmul.f32 %v2972, %v2903
  %v3007 = vmul.f32 %v2975, %v2903
  %v3008 = vmul.f32 %v2978, %v2903
  %v3009 = vmul.f32 %v2981, %v2903
  %v3010 = vmul.f32 %v2984, %v2903
  %v3011 = vmul.f32 %v2987, %v2903
  %v3012 = vmul.f32 %v2990, %v2903
  %v3013 = vmul.f32 %v2993, %v2903
  %v3014 = vmul.f32 %v2996, %v2903
  %v3015 = vmul.f32 %v2999, %v2903
  %v3016 = vadd.f32 %v3000, 1e-06
  %v3017 = vadd.f32 %v3001, 1e-06
  %v3018 = vadd.f32 %v3002, 1e-06
  %v3019 = vadd.f32 %v3003, 1e-06
  %v3020 = vadd.f32 %v3004, 1e-06
  %v3021 = vadd.f32 %v3005, 1e-06
  %v3022 = vadd.f32 %v3006, 1e-06
  %v3023 = vadd.f32 %v3007, 1e-06
  %v3024 = vadd.f32 %v3008, 1e-06
  %v3025 = vadd.f32 %v3009, 1e-06
  %v3026 = vadd.f32 %v3010, 1e-06
  %v3027 = vadd.f32 %v3011, 1e-06
  %v3028 = vadd.f32 %v3012, 1e-06
  %v3029 = vadd.f32 %v3013, 1e-06
  %v3030 = vadd.f32 %v3014, 1e-06
  %v3031 = vadd.f32 %v3015, 1e-06
  %v3032 = vrsqrt.pop %v3016
  %v3033 = vrsqrt.pop %v3017
  %v3034 = vrsqrt.pop %v3018
  %v3035 = vrsqrt.pop %v3019
  %v3036 = vrsqrt.pop %v3020
  %v3037 = vrsqrt.pop %v3021
  %v3038 = vrsqrt.pop %v3022
  %v3039 = vrsqrt.pop %v3023
  %v3040 = vrsqrt.pop %v3024
  %v3041 = vrsqrt.pop %v3025
  %v3042 = vrsqrt.pop %v3026
  %v3043 = vrsqrt.pop %v3027
  %v3044 = vrsqrt.pop %v3028
  %v3045 = vrsqrt.pop %v3029
  %v3046 = vrsqrt.pop %v3030
  %v3047 = vrsqrt.pop %v3031
  %v3048 = vmul.f32 %v2920, %v3032
  %v3049 = vmul.f32 %v2921, %v3033
  %v3050 = vmul.f32 %v2922, %v3034
  %v3051 = vmul.f32 %v2923, %v3035
  %v3052 = vmul.f32 %v2924, %v3036
  %v3053 = vmul.f32 %v2925, %v3037
  %v3054 = vmul.f32 %v2926, %v3038
  %v3055 = vmul.f32 %v2927, %v3039
  %v3056 = vmul.f32 %v2928, %v3040
  %v3057 = vmul.f32 %v2929, %v3041
  %v3058 = vmul.f32 %v2930, %v3042
  %v3059 = vmul.f32 %v2931, %v3043
  %v3060 = vmul.f32 %v2932, %v3044
  %v3061 = vmul.f32 %v2933, %v3045
  %v3062 = vmul.f32 %v2934, %v3046
  %v3063 = vmul.f32 %v2935, %v3047
  %v3065 = vlaneseq
  %v3066 = vshrl.u32 %v3065, 7
  %v3067 = vsub.s32 0, %v3066
  %v3068 = vrot.slane %v2852, %v3067
  %v3070 = vmul.f32 %v3048, %v3068
  %v3071 = vmul.f32 %v3049, %v3068
  %v3072 = vmul.f32 %v3050, %v3068
  %v3073 = vmul.f32 %v3051, %v3068
  %v3074 = vmul.f32 %v3052, %v3068
  %v3075 = vmul.f32 %v3053, %v3068
  %v3076 = vmul.f32 %v3054, %v3068
  %v3077 = vmul.f32 %v3055, %v3068
  %v3078 = vmul.f32 %v3056, %v3068
  %v3079 = vmul.f32 %v3057, %v3068
  %v3080 = vmul.f32 %v3058, %v3068
  %v3081 = vmul.f32 %v3059, %v3068
  %v3082 = vmul.f32 %v3060, %v3068
  %v3083 = vmul.f32 %v3061, %v3068
  %v3084 = vmul.f32 %v3062, %v3068
  %v3085 = vmul.f32 %v3063, %v3068
  %v3087 = vlaneseq
  %v3088 = vshrl.u32 %v3087, 7
  %v3089 = vsub.s32 0, %v3088
  %v3090 = vrot.slane %v2853, %v3089
  %v3092 = vadd.f32 %v3070, %v3090
  %v3093 = vadd.f32 %v3071, %v3090
  %v3094 = vadd.f32 %v3072, %v3090
  %v3095 = vadd.f32 %v3073, %v3090
  %v3096 = vadd.f32 %v3074, %v3090
  %v3097 = vadd.f32 %v3075, %v3090
  %v3098 = vadd.f32 %v3076, %v3090
  %v3099 = vadd.f32 %v3077, %v3090
  %v3100 = vadd.f32 %v3078, %v3090
  %v3101 = vadd.f32 %v3079, %v3090
  %v3102 = vadd.f32 %v3080, %v3090
  %v3103 = vadd.f32 %v3081, %v3090
  %v3104 = vadd.f32 %v3082, %v3090
  %v3105 = vadd.f32 %v3083, %v3090
  %v3106 = vadd.f32 %v3084, %v3090
  %v3107 = vadd.f32 %v3085, %v3090
  %v3108 = vld [vmem:[%s6] sm:$0xff]
  %v3109 = vld [vmem:[%s6 + $0x8] sm:$0xff]
  %v3110 = vld [vmem:[%s6 + $0x10] sm:$0xff]
  %v3111 = vld [vmem:[%s6 + $0x18] sm:$0xff]
  %v3112 = vld [vmem:[%s7] sm:$0x1]
  %v3114 = vlaneseq
  %v3115 = vshrl.u32 %v3114, 7
  %v3116 = vsub.s32 0, %v3115
  %v3117 = vrot.slane %v3112, %v3116
  %v3120 = vsel %vm2854, %v3092, 0
  %v3123 = vsel %vm2854, %v3093, 0
  %v3126 = vsel %vm2854, %v3094, 0
  %v3129 = vsel %vm2854, %v3095, 0
  %v3132 = vsel %vm2854, %v3096, 0
  %v3135 = vsel %vm2854, %v3097, 0
  %v3138 = vsel %vm2854, %v3098, 0
  %v3141 = vsel %vm2854, %v3099, 0
  %v3144 = vsel %vm2854, %v3100, 0
  %v3147 = vsel %vm2854, %v3101, 0
  %v3150 = vsel %vm2854, %v3102, 0
  %v3153 = vsel %vm2854, %v3103, 0
  %v3156 = vsel %vm2854, %v3104, 0
  %v3159 = vsel %vm2854, %v3105, 0
  %v3162 = vsel %vm2854, %v3106, 0
  %v3165 = vsel %vm2854, %v3107, 0
  %3167 = vmatprep.subr.mxu0 0.0
  %3168 = vmatpush1.msra.mxu0 0.0
  %3169 = vmatprep.subr.mxu0 0.0
  %3170 = vmatpush1.msra.mxu0 0.0
  %3171 = vmatprep.subr.mxu0 0.0
  %3172 = vmatpush1.msra.mxu0 0.0
  %3173 = vmatprep.subr.mxu0 0.0
  %3174 = vmatpush1.msra.mxu0 0.0
  %3175 = vmatprep.subr.mxu0 0.0
  %3176 = vmatpush1.msra.mxu0 0.0
  %3177 = vmatprep.subr.mxu0 0.0
  %3178 = vmatpush1.msra.mxu0 0.0
  %3179 = vmatprep.subr.mxu0 0.0
  %3180 = vmatpush1.msra.mxu0 0.0
  %3181 = vmatprep.subr.mxu0 0.0
  %3182 = vmatpush1.msra.mxu0 0.0
  %3183 = vmatprep.subr.mxu0 0.0
  %3184 = vmatpush1.msra.mxu0 0.0
  %3185 = vmatprep.subr.mxu0 0.0
  %3186 = vmatpush1.msra.mxu0 0.0
  %3187 = vmatprep.subr.mxu0 0.0
  %3188 = vmatpush1.msra.mxu0 0.0
  %3189 = vmatprep.subr.mxu0 0.0
  %3190 = vmatpush1.msra.mxu0 0.0
  %3191 = vmatprep.subr.mxu0 0.0
  %3192 = vmatpush1.msra.mxu0 %v3111
  %3193 = vmatprep.subr.mxu0 0.0
  %3194 = vmatpush1.msra.mxu0 %v3110
  %3195 = vmatprep.subr.mxu0 0.0
  %3196 = vmatpush1.msra.mxu0 %v3109
  %3197 = vmatprep.subr.mxu0 0.0
  %3198 = vmatpush1.msra.mxu0 %v3108
  %3199 = vmatprep.subr.mxu0 0.0
  %3200 = vmatpush2.msra.mxu0 0.0
  %3201 = vmatprep.subr.mxu0 0.0
  %3202 = vmatpush2.msra.mxu0 0.0
  %3203 = vmatprep.subr.mxu0 0.0
  %3204 = vmatpush2.msra.mxu0 0.0
  %3205 = vmatprep.subr.mxu0 0.0
  %3206 = vmatpush2.msra.mxu0 0.0
  %3207 = vmatprep.subr.mxu0 0.0
  %3208 = vmatpush2.msra.mxu0 0.0
  %3209 = vmatprep.subr.mxu0 0.0
  %3210 = vmatpush2.msra.mxu0 0.0
  %3211 = vmatprep.subr.mxu0 0.0
  %3212 = vmatpush2.msra.mxu0 0.0
  %3213 = vmatprep.subr.mxu0 0.0
  %3214 = vmatpush2.msra.mxu0 0.0
  %3215 = vmatprep.subr.mxu0 0.0
  %3216 = vmatpush2.msra.mxu0 0.0
  %3217 = vmatprep.subr.mxu0 0.0
  %3218 = vmatpush2.msra.mxu0 0.0
  %3219 = vmatprep.subr.mxu0 0.0
  %3220 = vmatpush2.msra.mxu0 0.0
  %3221 = vmatprep.subr.mxu0 0.0
  %3222 = vmatpush2.msra.mxu0 0.0
  %3223 = vmatprep.subr.mxu0 0.0
  %3224 = vmatpush2.msra.mxu0 0.0
  %3225 = vmatprep.subr.mxu0 0.0
  %3226 = vmatpush2.msra.mxu0 0.0
  %3227 = vmatprep.subr.mxu0 0.0
  %3228 = vmatpush2.msra.mxu0 0.0
  %3229 = vmatprep.subr.mxu0 0.0
  %3230 = vmatpush2.msra.mxu0 0.0
  %3231 = vmatprep.mubr.f32.mxu0 0.0
  %3232 = vmatmul.mubr.f32.gmra.mxu0 %v3120
  %v3233 = vpop.f32.mrf.mxu0
  %v3234 = vadd.f32 %v3117, %v3233
  %v3235 = vpop.f32.mrf.mxu0
  %3236 = vmatprep.mubr.f32.mxu0 0.0
  %3237 = vmatmul.mubr.f32.gmra.mxu0 %v3123
  %v3238 = vpop.f32.mrf.mxu0
  %v3239 = vadd.f32 %v3117, %v3238
  %v3240 = vpop.f32.mrf.mxu0
  %3241 = vmatprep.mubr.f32.mxu0 0.0
  %3242 = vmatmul.mubr.f32.gmra.mxu0 %v3126
  %v3243 = vpop.f32.mrf.mxu0
  %v3244 = vadd.f32 %v3117, %v3243
  %v3245 = vpop.f32.mrf.mxu0
  %3246 = vmatprep.mubr.f32.mxu0 0.0
  %3247 = vmatmul.mubr.f32.gmra.mxu0 %v3129
  %v3248 = vpop.f32.mrf.mxu0
  %v3249 = vadd.f32 %v3117, %v3248
  %v3250 = vpop.f32.mrf.mxu0
  %3251 = vmatprep.mubr.f32.mxu0 0.0
  %3252 = vmatmul.mubr.f32.gmra.mxu0 %v3132
  %v3253 = vpop.f32.mrf.mxu0
  %v3254 = vadd.f32 %v3117, %v3253
  %v3255 = vpop.f32.mrf.mxu0
  %3256 = vmatprep.mubr.f32.mxu0 0.0
  %3257 = vmatmul.mubr.f32.gmra.mxu0 %v3135
  %v3258 = vpop.f32.mrf.mxu0
  %v3259 = vadd.f32 %v3117, %v3258
  %v3260 = vpop.f32.mrf.mxu0
  %3261 = vmatprep.mubr.f32.mxu0 0.0
  %3262 = vmatmul.mubr.f32.gmra.mxu0 %v3138
  %v3263 = vpop.f32.mrf.mxu0
  %v3264 = vadd.f32 %v3117, %v3263
  %v3265 = vpop.f32.mrf.mxu0
  %3266 = vmatprep.mubr.f32.mxu0 0.0
  %3267 = vmatmul.mubr.f32.gmra.mxu0 %v3141
  %v3268 = vpop.f32.mrf.mxu0
  %v3269 = vadd.f32 %v3117, %v3268
  %v3270 = vpop.f32.mrf.mxu0
  %3271 = vmatprep.mubr.f32.mxu0 0.0
  %3272 = vmatmul.mubr.f32.gmra.mxu0 %v3144
  %v3273 = vpop.f32.mrf.mxu0
  %v3274 = vadd.f32 %v3117, %v3273
  %v3275 = vpop.f32.mrf.mxu0
  %3276 = vmatprep.mubr.f32.mxu0 0.0
  %3277 = vmatmul.mubr.f32.gmra.mxu0 %v3147
  %v3278 = vpop.f32.mrf.mxu0
  %v3279 = vadd.f32 %v3117, %v3278
  %v3280 = vpop.f32.mrf.mxu0
  %3281 = vmatprep.mubr.f32.mxu0 0.0
  %3282 = vmatmul.mubr.f32.gmra.mxu0 %v3150
  %v3283 = vpop.f32.mrf.mxu0
  %v3284 = vadd.f32 %v3117, %v3283
  %v3285 = vpop.f32.mrf.mxu0
  %3286 = vmatprep.mubr.f32.mxu0 0.0
  %3287 = vmatmul.mubr.f32.gmra.mxu0 %v3153
  %v3288 = vpop.f32.mrf.mxu0
  %v3289 = vadd.f32 %v3117, %v3288
  %v3290 = vpop.f32.mrf.mxu0
  %3291 = vmatprep.mubr.f32.mxu0 0.0
  %3292 = vmatmul.mubr.f32.gmra.mxu0 %v3156
  %v3293 = vpop.f32.mrf.mxu0
  %v3294 = vadd.f32 %v3117, %v3293
  %v3295 = vpop.f32.mrf.mxu0
  %3296 = vmatprep.mubr.f32.mxu0 0.0
  %3297 = vmatmul.mubr.f32.gmra.mxu0 %v3159
  %v3298 = vpop.f32.mrf.mxu0
  %v3299 = vadd.f32 %v3117, %v3298
  %v3300 = vpop.f32.mrf.mxu0
  %3301 = vmatprep.mubr.f32.mxu0 0.0
  %3302 = vmatmul.mubr.f32.gmra.mxu0 %v3162
  %v3303 = vpop.f32.mrf.mxu0
  %v3304 = vadd.f32 %v3117, %v3303
  %v3305 = vpop.f32.mrf.mxu0
  %3306 = vmatprep.mubr.f32.mxu0 0.0
  %3307 = vmatmul.mubr.f32.gmra.mxu0 %v3165
  %v3308 = vpop.f32.mrf.mxu0
  %v3309 = vadd.f32 %v3117, %v3308
  %v3310 = vpop.f32.mrf.mxu0
  %3311 = vdwg.mxu0
  %v3312 = vmul.f32 %v3234, 0.5
  %v3313 = vmul.f32 %v3239, 0.5
  %v3314 = vmul.f32 %v3244, 0.5
  %v3315 = vmul.f32 %v3249, 0.5
  %v3316 = vmul.f32 %v3254, 0.5
  %v3317 = vmul.f32 %v3259, 0.5
  %v3318 = vmul.f32 %v3264, 0.5
  %v3319 = vmul.f32 %v3269, 0.5
  %v3320 = vmul.f32 %v3274, 0.5
  %v3321 = vmul.f32 %v3279, 0.5
  %v3322 = vmul.f32 %v3284, 0.5
  %v3323 = vmul.f32 %v3289, 0.5
  %v3324 = vmul.f32 %v3294, 0.5
  %v3325 = vmul.f32 %v3299, 0.5
  %v3326 = vmul.f32 %v3304, 0.5
  %v3327 = vmul.f32 %v3309, 0.5
  %v3328 = vmul.f32 %v3234, 0.70710677
  %v3329 = vmul.f32 %v3239, 0.70710677
  %v3330 = vmul.f32 %v3244, 0.70710677
  %v3331 = vmul.f32 %v3249, 0.70710677
  %v3332 = vmul.f32 %v3254, 0.70710677
  %v3333 = vmul.f32 %v3259, 0.70710677
  %v3334 = vmul.f32 %v3264, 0.70710677
  %v3335 = vmul.f32 %v3269, 0.70710677
  %v3336 = vmul.f32 %v3274, 0.70710677
  %v3337 = vmul.f32 %v3279, 0.70710677
  %v3338 = vmul.f32 %v3284, 0.70710677
  %v3339 = vmul.f32 %v3289, 0.70710677
  %v3340 = vmul.f32 %v3294, 0.70710677
  %v3341 = vmul.f32 %v3299, 0.70710677
  %v3342 = vmul.f32 %v3304, 0.70710677
  %v3343 = vmul.f32 %v3309, 0.70710677
  %v3344 = verf.f32.pop %v3328
  %v3345 = verf.f32.pop %v3329
  %v3346 = verf.f32.pop %v3330
  %v3347 = verf.f32.pop %v3331
  %v3348 = verf.f32.pop %v3332
  %v3349 = verf.f32.pop %v3333
  %v3350 = verf.f32.pop %v3334
  %v3351 = verf.f32.pop %v3335
  %v3352 = verf.f32.pop %v3336
  %v3353 = verf.f32.pop %v3337
  %v3354 = verf.f32.pop %v3338
  %v3355 = verf.f32.pop %v3339
  %v3356 = verf.f32.pop %v3340
  %v3357 = verf.f32.pop %v3341
  %v3358 = verf.f32.pop %v3342
  %v3359 = verf.f32.pop %v3343
  %v3360 = vadd.f32 %v3344, 1.0
  %v3361 = vadd.f32 %v3345, 1.0
  %v3362 = vadd.f32 %v3346, 1.0
  %v3363 = vadd.f32 %v3347, 1.0
  %v3364 = vadd.f32 %v3348, 1.0
  %v3365 = vadd.f32 %v3349, 1.0
  %v3366 = vadd.f32 %v3350, 1.0
  %v3367 = vadd.f32 %v3351, 1.0
  %v3368 = vadd.f32 %v3352, 1.0
  %v3369 = vadd.f32 %v3353, 1.0
  %v3370 = vadd.f32 %v3354, 1.0
  %v3371 = vadd.f32 %v3355, 1.0
  %v3372 = vadd.f32 %v3356, 1.0
  %v3373 = vadd.f32 %v3357, 1.0
  %v3374 = vadd.f32 %v3358, 1.0
  %v3375 = vadd.f32 %v3359, 1.0
  %v3376 = vmul.f32 %v3312, %v3360
  %v3377 = vmul.f32 %v3313, %v3361
  %v3378 = vmul.f32 %v3314, %v3362
  %v3379 = vmul.f32 %v3315, %v3363
  %v3380 = vmul.f32 %v3316, %v3364
  %v3381 = vmul.f32 %v3317, %v3365
  %v3382 = vmul.f32 %v3318, %v3366
  %v3383 = vmul.f32 %v3319, %v3367
  %v3384 = vmul.f32 %v3320, %v3368
  %v3385 = vmul.f32 %v3321, %v3369
  %v3386 = vmul.f32 %v3322, %v3370
  %v3387 = vmul.f32 %v3323, %v3371
  %v3388 = vmul.f32 %v3324, %v3372
  %v3389 = vmul.f32 %v3325, %v3373
  %v3390 = vmul.f32 %v3326, %v3374
  %v3391 = vmul.f32 %v3327, %v3375
  %v3392 = vld [vmem:[%s8] sm:$0xff]
  %v3393 = vld [vmem:[%s8 + $0x8] sm:$0xff]
  %v3394 = vld [vmem:[%s8 + $0x10] sm:$0xff]
  %v3395 = vld [vmem:[%s8 + $0x18] sm:$0xff]
  %v3396 = vld [vmem:[%s8 + $0x20] sm:$0xff]
  %v3397 = vld [vmem:[%s8 + $0x28] sm:$0xff]
  %v3398 = vld [vmem:[%s8 + $0x30] sm:$0xff]
  %v3399 = vld [vmem:[%s8 + $0x38] sm:$0xff]
  %v3400 = vld [vmem:[%s8 + $0x40] sm:$0xff]
  %v3401 = vld [vmem:[%s8 + $0x48] sm:$0xff]
  %v3402 = vld [vmem:[%s8 + $0x50] sm:$0xff]
  %v3403 = vld [vmem:[%s8 + $0x58] sm:$0xff]
  %v3404 = vld [vmem:[%s8 + $0x60] sm:$0xff]
  %v3405 = vld [vmem:[%s8 + $0x68] sm:$0xff]
  %v3406 = vld [vmem:[%s8 + $0x70] sm:$0xff]
  %v3407 = vld [vmem:[%s8 + $0x78] sm:$0xff]
  %v3408 = vld [vmem:[%s9] sm:$0x1]
  %v3410 = vlaneseq
  %v3411 = vshrl.u32 %v3410, 7
  %v3412 = vsub.s32 0, %v3411
  %v3413 = vrot.slane %v3408, %v3412
  %3415 = vmatprep.subr.mxu0 0.0
  %3416 = vmatpush1.msra.mxu0 %v3407
  %3417 = vmatprep.subr.mxu0 0.0
  %3418 = vmatpush1.msra.mxu0 %v3406
  %3419 = vmatprep.subr.mxu0 0.0
  %3420 = vmatpush1.msra.mxu0 %v3405
  %3421 = vmatprep.subr.mxu0 0.0
  %3422 = vmatpush1.msra.mxu0 %v3404
  %3423 = vmatprep.subr.mxu0 0.0
  %3424 = vmatpush1.msra.mxu0 %v3403
  %3425 = vmatprep.subr.mxu0 0.0
  %3426 = vmatpush1.msra.mxu0 %v3402
  %3427 = vmatprep.subr.mxu0 0.0
  %3428 = vmatpush1.msra.mxu0 %v3401
  %3429 = vmatprep.subr.mxu0 0.0
  %3430 = vmatpush1.msra.mxu0 %v3400
  %3431 = vmatprep.subr.mxu0 0.0
  %3432 = vmatpush1.msra.mxu0 %v3399
  %3433 = vmatprep.subr.mxu0 0.0
  %3434 = vmatpush1.msra.mxu0 %v3398
  %3435 = vmatprep.subr.mxu0 0.0
  %3436 = vmatpush1.msra.mxu0 %v3397
  %3437 = vmatprep.subr.mxu0 0.0
  %3438 = vmatpush1.msra.mxu0 %v3396
  %3439 = vmatprep.subr.mxu0 0.0
  %3440 = vmatpush1.msra.mxu0 %v3395
  %3441 = vmatprep.subr.mxu0 0.0
  %3442 = vmatpush1.msra.mxu0 %v3394
  %3443 = vmatprep.subr.mxu0 0.0
  %3444 = vmatpush1.msra.mxu0 %v3393
  %3445 = vmatprep.subr.mxu0 0.0
  %3446 = vmatpush1.msra.mxu0 %v3392
  %3447 = vmatprep.subr.mxu0 0.0
  %3448 = vmatpush2.msra.mxu0 0.0
  %3449 = vmatprep.subr.mxu0 0.0
  %3450 = vmatpush2.msra.mxu0 0.0
  %3451 = vmatprep.subr.mxu0 0.0
  %3452 = vmatpush2.msra.mxu0 0.0
  %3453 = vmatprep.subr.mxu0 0.0
  %3454 = vmatpush2.msra.mxu0 0.0
  %3455 = vmatprep.subr.mxu0 0.0
  %3456 = vmatpush2.msra.mxu0 0.0
  %3457 = vmatprep.subr.mxu0 0.0
  %3458 = vmatpush2.msra.mxu0 0.0
  %3459 = vmatprep.subr.mxu0 0.0
  %3460 = vmatpush2.msra.mxu0 0.0
  %3461 = vmatprep.subr.mxu0 0.0
  %3462 = vmatpush2.msra.mxu0 0.0
  %3463 = vmatprep.subr.mxu0 0.0
  %3464 = vmatpush2.msra.mxu0 0.0
  %3465 = vmatprep.subr.mxu0 0.0
  %3466 = vmatpush2.msra.mxu0 0.0
  %3467 = vmatprep.subr.mxu0 0.0
  %3468 = vmatpush2.msra.mxu0 0.0
  %3469 = vmatprep.subr.mxu0 0.0
  %3470 = vmatpush2.msra.mxu0 0.0
  %3471 = vmatprep.subr.mxu0 0.0
  %3472 = vmatpush2.msra.mxu0 0.0
  %3473 = vmatprep.subr.mxu0 0.0
  %3474 = vmatpush2.msra.mxu0 0.0
  %3475 = vmatprep.subr.mxu0 0.0
  %3476 = vmatpush2.msra.mxu0 0.0
  %3477 = vmatprep.subr.mxu0 0.0
  %3478 = vmatpush2.msra.mxu0 0.0
  %3479 = vmatprep.mubr.f32.mxu0 0.0
  %3480 = vmatmul.mubr.f32.gmra.mxu0 %v3376
  %v3481 = vpop.f32.mrf.mxu0
  %v3482 = vadd.f32 %v3413, %v3481
  %v3483 = vpop.f32.mrf.mxu0
  %3484 = vmatprep.mubr.f32.mxu0 0.0
  %3485 = vmatmul.mubr.f32.gmra.mxu0 %v3377
  %v3486 = vpop.f32.mrf.mxu0
  %v3487 = vadd.f32 %v3413, %v3486
  %v3488 = vpop.f32.mrf.mxu0
  %3489 = vmatprep.mubr.f32.mxu0 0.0
  %3490 = vmatmul.mubr.f32.gmra.mxu0 %v3378
  %v3491 = vpop.f32.mrf.mxu0
  %v3492 = vadd.f32 %v3413, %v3491
  %v3493 = vpop.f32.mrf.mxu0
  %3494 = vmatprep.mubr.f32.mxu0 0.0
  %3495 = vmatmul.mubr.f32.gmra.mxu0 %v3379
  %v3496 = vpop.f32.mrf.mxu0
  %v3497 = vadd.f32 %v3413, %v3496
  %v3498 = vpop.f32.mrf.mxu0
  %3499 = vmatprep.mubr.f32.mxu0 0.0
  %3500 = vmatmul.mubr.f32.gmra.mxu0 %v3380
  %v3501 = vpop.f32.mrf.mxu0
  %v3502 = vadd.f32 %v3413, %v3501
  %v3503 = vpop.f32.mrf.mxu0
  %3504 = vmatprep.mubr.f32.mxu0 0.0
  %3505 = vmatmul.mubr.f32.gmra.mxu0 %v3381
  %v3506 = vpop.f32.mrf.mxu0
  %v3507 = vadd.f32 %v3413, %v3506
  %v3508 = vpop.f32.mrf.mxu0
  %3509 = vmatprep.mubr.f32.mxu0 0.0
  %3510 = vmatmul.mubr.f32.gmra.mxu0 %v3382
  %v3511 = vpop.f32.mrf.mxu0
  %v3512 = vadd.f32 %v3413, %v3511
  %v3513 = vpop.f32.mrf.mxu0
  %3514 = vmatprep.mubr.f32.mxu0 0.0
  %3515 = vmatmul.mubr.f32.gmra.mxu0 %v3383
  %v3516 = vpop.f32.mrf.mxu0
  %v3517 = vadd.f32 %v3413, %v3516
  %v3518 = vpop.f32.mrf.mxu0
  %3519 = vmatprep.mubr.f32.mxu0 0.0
  %3520 = vmatmul.mubr.f32.gmra.mxu0 %v3384
  %v3521 = vpop.f32.mrf.mxu0
  %v3522 = vadd.f32 %v3413, %v3521
  %v3523 = vpop.f32.mrf.mxu0
  %3524 = vmatprep.mubr.f32.mxu0 0.0
  %3525 = vmatmul.mubr.f32.gmra.mxu0 %v3385
  %v3526 = vpop.f32.mrf.mxu0
  %v3527 = vadd.f32 %v3413, %v3526
  %v3528 = vpop.f32.mrf.mxu0
  %3529 = vmatprep.mubr.f32.mxu0 0.0
  %3530 = vmatmul.mubr.f32.gmra.mxu0 %v3386
  %v3531 = vpop.f32.mrf.mxu0
  %v3532 = vadd.f32 %v3413, %v3531
  %v3533 = vpop.f32.mrf.mxu0
  %3534 = vmatprep.mubr.f32.mxu0 0.0
  %3535 = vmatmul.mubr.f32.gmra.mxu0 %v3387
  %v3536 = vpop.f32.mrf.mxu0
  %v3537 = vadd.f32 %v3413, %v3536
  %v3538 = vpop.f32.mrf.mxu0
  %3539 = vmatprep.mubr.f32.mxu0 0.0
  %3540 = vmatmul.mubr.f32.gmra.mxu0 %v3388
  %v3541 = vpop.f32.mrf.mxu0
  %v3542 = vadd.f32 %v3413, %v3541
  %v3543 = vpop.f32.mrf.mxu0
  %3544 = vmatprep.mubr.f32.mxu0 0.0
  %3545 = vmatmul.mubr.f32.gmra.mxu0 %v3389
  %v3546 = vpop.f32.mrf.mxu0
  %v3547 = vadd.f32 %v3413, %v3546
  %v3548 = vpop.f32.mrf.mxu0
  %3549 = vmatprep.mubr.f32.mxu0 0.0
  %3550 = vmatmul.mubr.f32.gmra.mxu0 %v3390
  %v3551 = vpop.f32.mrf.mxu0
  %v3552 = vadd.f32 %v3413, %v3551
  %v3553 = vpop.f32.mrf.mxu0
  %3554 = vmatprep.mubr.f32.mxu0 0.0
  %3555 = vmatmul.mubr.f32.gmra.mxu0 %v3391
  %v3556 = vpop.f32.mrf.mxu0
  %v3557 = vadd.f32 %v3413, %v3556
  %v3558 = vpop.f32.mrf.mxu0
  %3559 = vdwg.mxu0
  %v3560 = vld [vmem:[%s10] sm:$0x1]
  %v3562 = vlaneseq
  %v3563 = vshrl.u32 %v3562, 7
  %v3564 = vsub.s32 0, %v3563
  %v3565 = vrot.slane %v3560, %v3564
  %v3567 = vmul.f32 %v3565, %v3482
  %v3568 = vmul.f32 %v3565, %v3487
  %v3569 = vmul.f32 %v3565, %v3492
  %v3570 = vmul.f32 %v3565, %v3497
  %v3571 = vmul.f32 %v3565, %v3502
  %v3572 = vmul.f32 %v3565, %v3507
  %v3573 = vmul.f32 %v3565, %v3512
  %v3574 = vmul.f32 %v3565, %v3517
  %v3575 = vmul.f32 %v3565, %v3522
  %v3576 = vmul.f32 %v3565, %v3527
  %v3577 = vmul.f32 %v3565, %v3532
  %v3578 = vmul.f32 %v3565, %v3537
  %v3579 = vmul.f32 %v3565, %v3542
  %v3580 = vmul.f32 %v3565, %v3547
  %v3581 = vmul.f32 %v3565, %v3552
  %v3582 = vmul.f32 %v3565, %v3557
  %v3583 = vadd.f32 %v38, %v3567
  %v3584 = vadd.f32 %v39, %v3568
  %v3585 = vadd.f32 %v40, %v3569
  %v3586 = vadd.f32 %v41, %v3570
  %v3587 = vadd.f32 %v42, %v3571
  %v3588 = vadd.f32 %v43, %v3572
  %v3589 = vadd.f32 %v44, %v3573
  %v3590 = vadd.f32 %v45, %v3574
  %v3591 = vadd.f32 %v46, %v3575
  %v3592 = vadd.f32 %v47, %v3576
  %v3593 = vadd.f32 %v48, %v3577
  %v3594 = vadd.f32 %v49, %v3578
  %v3595 = vadd.f32 %v50, %v3579
  %v3596 = vadd.f32 %v51, %v3580
  %v3597 = vadd.f32 %v52, %v3581
  %v3598 = vadd.f32 %v53, %v3582
  %3599 = vst.msk [vmem:[%s11] sm:$0xff] %vm2854, %v3583
  %3600 = vst.msk [vmem:[%s11 + $0x8] sm:$0xff] %vm2854, %v3584
  %3601 = vst.msk [vmem:[%s11 + $0x10] sm:$0xff] %vm2854, %v3585
  %3602 = vst.msk [vmem:[%s11 + $0x18] sm:$0xff] %vm2854, %v3586
  %3603 = vst.msk [vmem:[%s11 + $0x20] sm:$0xff] %vm2854, %v3587
  %3604 = vst.msk [vmem:[%s11 + $0x28] sm:$0xff] %vm2854, %v3588
  %3605 = vst.msk [vmem:[%s11 + $0x30] sm:$0xff] %vm2854, %v3589
  %3606 = vst.msk [vmem:[%s11 + $0x38] sm:$0xff] %vm2854, %v3590
  %3607 = vst.msk [vmem:[%s11 + $0x40] sm:$0xff] %vm2854, %v3591
  %3608 = vst.msk [vmem:[%s11 + $0x48] sm:$0xff] %vm2854, %v3592
  %3609 = vst.msk [vmem:[%s11 + $0x50] sm:$0xff] %vm2854, %v3593
  %3610 = vst.msk [vmem:[%s11 + $0x58] sm:$0xff] %vm2854, %v3594
  %3611 = vst.msk [vmem:[%s11 + $0x60] sm:$0xff] %vm2854, %v3595
  %3612 = vst.msk [vmem:[%s11 + $0x68] sm:$0xff] %vm2854, %v3596
  %3613 = vst.msk [vmem:[%s11 + $0x70] sm:$0xff] %vm2854, %v3597
  %3614 = vst.msk [vmem:[%s11 + $0x78] sm:$0xff] %vm2854, %v3598
  // Predicated region
  $region46: #{convnext_forward.8} parent=0 // pred_check
    _
  $region47: #{convnext_forward.8} parent=0 // pred_check_branch
    %3616 = sbr.rel (0) target = $region49
  $region48: #{convnext_forward.8} parent=0 // pred_region
    _
  $region49: #{convnext_forward.8} parent=0 // pred_fallthru
    _
  // Predicated region
  $region50: #{convnext_forward.8} parent=0 // pred_check
    _
  $region51: #{convnext_forward.8} parent=0 // pred_check_branch
    %3618 = sbr.rel (0) target = $region53
  $region52: #{convnext_forward.8} parent=0 // pred_region
    _
  $region53: #{convnext_forward.8} parent=0 // pred_fallthru
    _

</llo_original>
